<compile_context>
chip_gen: v7x
topology: tpu7x:2x2x1
jax: 0.10.0
libtpu: 0.0.40
codegen_flags: <defaults>
</compile_context>

<pallas_src>
import jax
import jax.numpy as jnp
from jax.experimental import pallas as pl
from jax.experimental.pallas import tpu as pltpu

# ---- small demo shapes (module hard-codes hs=512; reduced to 128 here) --------
HS = 128          # hidden size
B = 8             # batch (>=8 fills f32 sublanes)
P = 8             # num_processors  (input_shape[0][2])
A = 8             # num_attributes  (input_shape[0][-1])
NSUB = 4          # num_subtasks
D1 = 16           # input_shape[1][1]  (extra flat features x[1])

NHEADS = 2 * NSUB - 1                    # NSUB policy heads + (NSUB-1) prior heads
CONV_OUT = HS * P + HS * A + D1          # fc layer-1 fan-in (PyTorch flatten + x1)
NOUT = NSUB * P + (NSUB - 1) * NSUB + 1  # policy(32) + prior(12) + critic(1) = 45
NOUT_PAD = 128                           # lane-dense combined output
assert NOUT <= NOUT_PAD

# ---- PReLU alpha index layout inside the single SMEM array ---------------------
ALPHA_FC = 0                             # [t*5 + l], t: 0=policy tower, 1=value tower
ALPHA_HEAD = ALPHA_FC + 2 * 5            # [j*4 + l], j: 0..3 policy, 4..6 prior
ALPHA_CRI = ALPHA_HEAD + NHEADS * 4      # [l], critic layers 0..2
N_ALPHA = ALPHA_CRI + 3


# ------------------------------ fused kernel -----------------------------------
def _doublenet_kernel(
    alpha_ref,                                   # SMEM (N_ALPHA,) f32
    xrow_ref, xcol_ref, x1_ref, u_ref,           # activations (VMEM, f32)
    wrow_ref, brow_ref, wcol_ref, bcol_ref,      # block-diag conv (both towers, N-fused)
    w1rc_ref, w1x_ref, b1_ref,                   # fc layer 1 (K-concatenated, per tower)
    wfc_ref, bfc_ref,                            # fc layers 2..5  (2*4, HS, HS)
    wh0_ref, bh0_ref,                            # head layer 0 (HS, NHEADS*HS) wide
    wh12_ref, bh12_ref,                          # head layers 1,2 (2*NHEADS, HS, HS)
    wcr_ref, bcr_ref,                            # critic hidden layers (2, HS, HS)
    wout_ref, bout_ref,                          # block-diag output ((NHEADS+1)*HS, 128)
    out_ref,                                     # (B, NOUT_PAD) f32
):
    f32 = jnp.float32
    bf16 = jnp.bfloat16

    def mm(x, w):                                # bf16 MXU matmul, f32 accumulation
        return jnp.dot(x.astype(bf16), w, preferred_element_type=f32)

    def prelu(x, a):
        return jnp.where(x > 0.0, x, a * x)

    # ---- both towers' degenerate convs: ONE dot each (columns = tower-major) ----
    row_feat = mm(xrow_ref[...], wrow_ref[...]) + brow_ref[...]   # (B, 2*P*HS)
    col_feat = mm(xcol_ref[...], wcol_ref[...]) + bcol_ref[...]   # (B, 2*A*HS)
    x1 = x1_ref[...]

    RH = P * HS
    CH = A * HS
    tower_out = []
    for t in range(2):                           # t=0 policy tower, t=1 value tower
        a0 = alpha_ref[ALPHA_FC + 5 * t]
        rp = prelu(row_feat[:, t * RH:(t + 1) * RH], a0)          # (B, P*HS)
        cp = prelu(col_feat[:, t * CH:(t + 1) * CH], a0)          # (B, A*HS)
        rc = jnp.concatenate([rp, cp], axis=1)                    # (B, (P+A)*HS)
        # fc layer 1 as one long-K dot (+ tiny x1 dot); weight rows permuted at init
        h = mm(rc, w1rc_ref[t]) + mm(prelu(x1, a0), w1x_ref[t]) + b1_ref[t]
        # fc layers 2..5
        for l in range(4):
            al = alpha_ref[ALPHA_FC + 5 * t + l + 1]
            h = mm(prelu(h, al), wfc_ref[t * 4 + l]) + bfc_ref[t * 4 + l]
        tower_out.append(h)
    out_p, out_v = tower_out

    # ---- 7 heads: layer-0 fused wide via the pos/neg PReLU hoist ----------------
    pos = jnp.maximum(out_p, 0.0)
    neg = jnp.minimum(out_p, 0.0)
    pos_w = mm(pos, wh0_ref[...])                # (B, NHEADS*HS)
    neg_w = mm(neg, wh0_ref[...])                # (B, NHEADS*HS)

    hps = []
    for j in range(NHEADS):
        lo, hi = j * HS, (j + 1) * HS
        a0 = alpha_ref[ALPHA_HEAD + 4 * j]
        h = pos_w[:, lo:hi] + a0 * neg_w[:, lo:hi] + bh0_ref[:, lo:hi]
        for l in range(2):                       # head hidden layers 1, 2
            al = alpha_ref[ALPHA_HEAD + 4 * j + l + 1]
            h = mm(prelu(h, al), wh12_ref[l * NHEADS + j]) + bh12_ref[l * NHEADS + j]
        hps.append(prelu(h, alpha_ref[ALPHA_HEAD + 4 * j + 3]))

    # ---- critic on the value tower (depart=True) ---------------------------------
    h = out_v
    for l in range(2):
        h = mm(prelu(h, alpha_ref[ALPHA_CRI + l]), wcr_ref[l]) + bcr_ref[l]
    hps.append(prelu(h, alpha_ref[ALPHA_CRI + 2]))

    # ---- one block-diagonal output projection: one dot + one lane-dense store ----
    hp_all = jnp.concatenate(hps, axis=1)                       # (B, (NHEADS+1)*HS)
    raw = mm(hp_all, wout_ref[...]) + bout_ref[...]             # (B, NOUT_PAD)

    # policy combine p = 1/(-u) + 1 + w (exact); u is padded with 1.0 outside the
    # policy columns so 1/(-1) + 1 == 0 there and the add is an exact no-op.
    out_ref[...] = raw + (1.0 / (-u_ref[...]) + 1.0)


# ------------------------------ pallas_call wrapper ------------------------------
_VMEM = pl.BlockSpec(memory_space=pltpu.MemorySpace.VMEM)
_SMEM = pl.BlockSpec(memory_space=pltpu.MemorySpace.SMEM)


def _vmem_limit_bytes():
    # Size the scoped-VMEM limit per TPU generation (v7x has 64 MiB physical/TC).
    try:
        cap = int(pltpu.get_tpu_info().vmem_capacity_bytes)
        return min((cap * 3) // 4, 96 * 1024 * 1024)
    except Exception:
        return 32 * 1024 * 1024


def _fused_forward(params, x_row, x_col, x1, u_pad):
    args = (
        params["alphas"], x_row, x_col, x1, u_pad,
        params["w_row_bd"], params["b_row_bd"], params["w_col_bd"], params["b_col_bd"],
        params["w1_rc"], params["w1_x"], params["b1"],
        params["w_fc"], params["b_fc"],
        params["w_h0"], params["b_h0"], params["w_h12"], params["b_h12"],
        params["w_cr"], params["b_cr"], params["w_out"], params["b_out"],
    )
    call = pl.pallas_call(
        _doublenet_kernel,
        out_shape=jax.ShapeDtypeStruct((B, NOUT_PAD), jnp.float32),
        in_specs=[_SMEM] + [_VMEM] * (len(args) - 1),
        out_specs=_VMEM,
        compiler_params=pltpu.CompilerParams(vmem_limit_bytes=_vmem_limit_bytes()),
    )
    return call(*args)


# ------------------------------ parameters ---------------------------------------
def init_params(key):
    keys = iter(jax.random.split(key, 160))

    def uni(shape, bound):
        return jax.random.uniform(next(keys), shape, jnp.float32, -bound, bound)

    def lin(n_in, n_out):
        bound = 1.0 / (n_in ** 0.5)
        # weight stored already transposed to (in, out) for the kernel
        return uni((n_in, n_out), bound), uni((n_out,), bound)

    # base convs (policy tower; depart=True deepcopies them for the value tower)
    w_row, b_row = lin(A, HS)       # Conv2d(1, hs, (1, A)) -> per-row linear over attributes
    w_col, b_col = lin(P, HS)       # Conv2d(1, hs, (P, 1)) -> per-col linear over processors

    # block-diagonal conv weights so ONE dot produces every (position, channel) for
    # BOTH towers; columns are tower-major: t*(P*HS) + p*HS + c (resp. a*HS + c).
    eyeP = jnp.eye(P, dtype=jnp.float32)
    eyeA = jnp.eye(A, dtype=jnp.float32)
    row_blk = jnp.einsum('pq,ac->paqc', eyeP, w_row).reshape(P * A, P * HS)
    col_blk = jnp.einsum('ab,pc->apbc', eyeA, w_col).reshape(A * P, A * HS)
    w_row_bd = jnp.concatenate([row_blk, row_blk], axis=1)        # (P*A, 2*P*HS)
    w_col_bd = jnp.concatenate([col_blk, col_blk], axis=1)        # (A*P, 2*A*HS)
    b_row_bd = jnp.tile(b_row, 2 * P).reshape(1, 2 * P * HS)
    b_col_bd = jnp.tile(b_col, 2 * A).reshape(1, 2 * A * HS)

    # fc tower: PReLU,Linear(CONV_OUT,HS) + 4 x (PReLU,Linear(HS,HS))
    w1, b1 = lin(CONV_OUT, HS)      # rows in PyTorch NCHW-flatten order
    fc = [lin(HS, HS) for _ in range(4)]

    # One-time re-indexing of fc layer 1 so the kernel consumes the conv output's
    # natural (p/a, channel) lane order; PyTorch flatten: row part -> c*P + p,
    # col part -> HS*P + c*A + a, then x1.  Then concat row+col along K.
    w1_row = w1[:HS * P].reshape(HS, P, HS).transpose(1, 0, 2).reshape(P * HS, HS)
    w1_col = w1[HS * P:HS * (P + A)].reshape(HS, A, HS).transpose(1, 0, 2).reshape(A * HS, HS)
    w1_rc = jnp.concatenate([w1_row, w1_col], axis=0)             # ((P+A)*HS, HS)
    w1_x = w1[HS * (P + A):]                                      # (D1, HS)

    # heads: NSUB policy (out=P) + NSUB-1 prior (out=NSUB); 3 hidden Linear(HS,HS) + out
    w_out = jnp.zeros(((NHEADS + 1) * HS, NOUT_PAD), jnp.float32)
    b_out = jnp.zeros((NOUT_PAD,), jnp.float32)
    wh0_cols, bh0_cols = [], []
    wh1, bh1, wh2, bh2 = [], [], [], []
    col0 = 0
    for j in range(NHEADS):
        w0, b0 = lin(HS, HS)
        w1h, b1h = lin(HS, HS)
        w2h, b2h = lin(HS, HS)
        wh0_cols.append(w0); bh0_cols.append(b0)
        wh1.append(w1h); bh1.append(b1h)
        wh2.append(w2h); bh2.append(b2h)
        n_out = P if j < NSUB else NSUB
        wo, bo = lin(HS, n_out)
        w_out = w_out.at[j * HS:(j + 1) * HS, col0:col0 + n_out].set(wo)
        b_out = b_out.at[col0:col0 + n_out].set(bo)
        col0 += n_out

    # critic: 2 x (PReLU,Linear(HS,HS)) + PReLU,Linear(HS,1); output folded into w_out
    wc1, bc1 = lin(HS, HS)
    wc2, bc2 = lin(HS, HS)
    wco, bco = lin(HS, 1)
    w_out = w_out.at[NHEADS * HS:, col0:col0 + 1].set(wco)
    b_out = b_out.at[col0:col0 + 1].set(bco)

    bf = lambda t: t.astype(jnp.bfloat16)
    # depart=True: value-tower params equal the policy tower at init; a second slot
    # is kept so distinct weights can be dropped in later without kernel changes.
    tw = lambda t: jnp.stack([t, t], axis=0)
    tw4 = lambda lst: jnp.concatenate([jnp.stack(lst, 0)] * 2, axis=0)

    return {
        "alphas": jnp.full((N_ALPHA,), 0.25, jnp.float32),        # nn.PReLU() default
        "w_row_bd": bf(w_row_bd), "b_row_bd": b_row_bd,
        "w_col_bd": bf(w_col_bd), "b_col_bd": b_col_bd,
        "w1_rc": bf(tw(w1_rc)),                                   # (2, (P+A)*HS, HS)
        "w1_x": bf(tw(w1_x)),                                     # (2, D1, HS)
        "b1": tw(b1.reshape(1, HS)),                              # (2, 1, HS)
        "w_fc": bf(tw4([w for w, _ in fc])),                      # (8, HS, HS), idx t*4+l
        "b_fc": tw4([b.reshape(1, HS) for _, b in fc]),           # (8, 1, HS)
        "w_h0": bf(jnp.concatenate(wh0_cols, axis=1)),            # (HS, NHEADS*HS)
        "b_h0": jnp.concatenate(bh0_cols).reshape(1, NHEADS * HS),
        "w_h12": bf(jnp.stack(wh1 + wh2, 0)),                     # (2*NHEADS, HS, HS)
        "b_h12": jnp.stack([b.reshape(1, HS) for b in (bh1 + bh2)], 0),
        "w_cr": bf(jnp.stack([wc1, wc2], 0)),                     # (2, HS, HS)
        "b_cr": jnp.stack([bc1.reshape(1, HS), bc2.reshape(1, HS)], 0),
        "w_out": bf(w_out),                                       # ((NHEADS+1)*HS, 128)
        "b_out": b_out.reshape(1, NOUT_PAD),
    }


# ------------------------------ forward -------------------------------------------
def forward(params, x0, x1):
    # Note: despite the module name, the PyTorch forward applies no softmax; the
    # policy output is exactly 1/(-u) + 1 + head(out_fc), reproduced here.
    x = x0[:, 0]                                              # (B, P, A)
    x_row = x.reshape(B, P * A)                               # rows of w_row_bd: p*A + a
    x_col = x.transpose(0, 2, 1).reshape(B, A * P)            # rows of w_col_bd: a*P + p
    u = x[:, :, A - NSUB:].transpose(0, 2, 1).reshape(B, NSUB * P)
    # pad u with 1.0 so 1/(-1)+1 == 0 on the prior/critic/padding columns
    u_pad = jnp.concatenate([u, jnp.ones((B, NOUT_PAD - NSUB * P), u.dtype)], axis=1)

    out = _fused_forward(params, x_row, x_col, x1, u_pad)     # (B, NOUT_PAD)

    l1 = [out[:, i * P:(i + 1) * P] for i in range(NSUB)]
    base = NSUB * P
    l2 = [out[:, base + i * NSUB: base + (i + 1) * NSUB] for i in range(NSUB - 1)]
    critic = out[:, base + (NSUB - 1) * NSUB: base + (NSUB - 1) * NSUB + 1]
    return (l1, l2), critic


# ------------------------------ main -----------------------------------------------
if __name__ == "__main__":
    key = jax.random.PRNGKey(0)
    kp, k0, k1 = jax.random.split(key, 3)
    params = init_params(kp)

    # x0 in (0.1, 1.0) so the 1/(-u) term in the policy head is well defined
    x0 = jax.random.uniform(k0, (B, 1, P, A), jnp.float32, 0.1, 1.0)
    x1 = jax.random.normal(k1, (B, D1), jnp.float32)

    fwd = jax.jit(forward)
    (l1, l2), critic = fwd(params, x0, x1)
    jax.block_until_ready((l1, l2, critic))

    assert len(l1) == NSUB and all(p.shape == (B, P) for p in l1)
    assert len(l2) == NSUB - 1 and all(q.shape == (B, NSUB) for q in l2)
    assert critic.shape == (B, 1)
    assert all(bool(jnp.all(jnp.isfinite(p))) for p in l1)
    assert all(bool(jnp.all(jnp.isfinite(q))) for q in l2)
    assert bool(jnp.all(jnp.isfinite(critic)))
    print("KERNEL_OK")
</pallas_src>

<mosaic_0001>
module attributes {stable_mosaic.version = 11 : i64} {
  func.func @_doublenet_kernel(%arg0: memref<41xf32, #tpu.memory_space<smem>>, %arg1: memref<8x64xf32, #tpu.memory_space<vmem>>, %arg2: memref<8x64xf32, #tpu.memory_space<vmem>>, %arg3: memref<8x16xf32, #tpu.memory_space<vmem>>, %arg4: memref<8x128xf32, #tpu.memory_space<vmem>>, %arg5: memref<64x2048xbf16, #tpu.memory_space<vmem>>, %arg6: memref<1x2048xf32, #tpu.memory_space<vmem>>, %arg7: memref<64x2048xbf16, #tpu.memory_space<vmem>>, %arg8: memref<1x2048xf32, #tpu.memory_space<vmem>>, %arg9: memref<2x2048x128xbf16, #tpu.memory_space<vmem>>, %arg10: memref<2x16x128xbf16, #tpu.memory_space<vmem>>, %arg11: memref<2x1x128xf32, #tpu.memory_space<vmem>>, %arg12: memref<8x128x128xbf16, #tpu.memory_space<vmem>>, %arg13: memref<8x1x128xf32, #tpu.memory_space<vmem>>, %arg14: memref<128x896xbf16, #tpu.memory_space<vmem>>, %arg15: memref<1x896xf32, #tpu.memory_space<vmem>>, %arg16: memref<14x128x128xbf16, #tpu.memory_space<vmem>>, %arg17: memref<14x1x128xf32, #tpu.memory_space<vmem>>, %arg18: memref<2x128x128xbf16, #tpu.memory_space<vmem>>, %arg19: memref<2x1x128xf32, #tpu.memory_space<vmem>>, %arg20: memref<1024x128xbf16, #tpu.memory_space<vmem>>, %arg21: memref<1x128xf32, #tpu.memory_space<vmem>>, %arg22: memref<8x128xf32, #tpu.memory_space<vmem>>) attributes {dimension_semantics = [], scalar_prefetch = 0 : i64, scratch_operands = 0 : i64, tpu.core_type = #tpu.core_type<tc>} {
    %c0 = arith.constant 0 : index
    %c0_0 = arith.constant 0 : index
    %0 = vector.load %arg1[%c0, %c0_0] : memref<8x64xf32, #tpu.memory_space<vmem>>, vector<8x64xf32>
    %c0_1 = arith.constant 0 : index
    %c0_2 = arith.constant 0 : index
    %1 = vector.load %arg5[%c0_1, %c0_2] : memref<64x2048xbf16, #tpu.memory_space<vmem>>, vector<64x2048xbf16>
    %2 = arith.truncf %0 : vector<8x64xf32> to vector<8x64xbf16>
    %cst = arith.constant dense<0.000000e+00> : vector<8x2048xf32>
    %3 = tpu.matmul %2, %1, %cst {dimension_numbers = #tpu.dot_dimension_numbers<[1], [0], [0], [1], [0, 0, 1, 1], [], []>} : vector<8x64xbf16>, vector<64x2048xbf16>, vector<8x2048xf32> -> vector<8x2048xf32>
    %c0_3 = arith.constant 0 : index
    %c0_4 = arith.constant 0 : index
    %4 = vector.load %arg6[%c0_3, %c0_4] : memref<1x2048xf32, #tpu.memory_space<vmem>>, vector<1x2048xf32>
    %5 = vector.broadcast %4 : vector<1x2048xf32> to vector<8x2048xf32>
    %6 = arith.addf %3, %5 : vector<8x2048xf32>
    %c0_5 = arith.constant 0 : index
    %c0_6 = arith.constant 0 : index
    %7 = vector.load %arg2[%c0_5, %c0_6] : memref<8x64xf32, #tpu.memory_space<vmem>>, vector<8x64xf32>
    %c0_7 = arith.constant 0 : index
    %c0_8 = arith.constant 0 : index
    %8 = vector.load %arg7[%c0_7, %c0_8] : memref<64x2048xbf16, #tpu.memory_space<vmem>>, vector<64x2048xbf16>
    %9 = arith.truncf %7 : vector<8x64xf32> to vector<8x64xbf16>
    %cst_9 = arith.constant dense<0.000000e+00> : vector<8x2048xf32>
    %10 = tpu.matmul %9, %8, %cst_9 {dimension_numbers = #tpu.dot_dimension_numbers<[1], [0], [0], [1], [0, 0, 1, 1], [], []>} : vector<8x64xbf16>, vector<64x2048xbf16>, vector<8x2048xf32> -> vector<8x2048xf32>
    %c0_10 = arith.constant 0 : index
    %c0_11 = arith.constant 0 : index
    %11 = vector.load %arg8[%c0_10, %c0_11] : memref<1x2048xf32, #tpu.memory_space<vmem>>, vector<1x2048xf32>
    %12 = vector.broadcast %11 : vector<1x2048xf32> to vector<8x2048xf32>
    %13 = arith.addf %10, %12 : vector<8x2048xf32>
    %c0_12 = arith.constant 0 : index
    %c0_13 = arith.constant 0 : index
    %14 = vector.load %arg3[%c0_12, %c0_13] : memref<8x16xf32, #tpu.memory_space<vmem>>, vector<8x16xf32>
    %c0_14 = arith.constant 0 : index
    %15 = memref.load %arg0[%c0_14] : memref<41xf32, #tpu.memory_space<smem>>
    %16 = vector.extract_strided_slice %6 {offsets = [0, 0], sizes = [8, 1024], strides = [1, 1]} : vector<8x2048xf32> to vector<8x1024xf32>
    %cst_15 = arith.constant 0.000000e+00 : f32
    %17 = vector.broadcast %cst_15 : f32 to vector<8x1024xf32>
    %18 = arith.cmpf ogt, %16, %17 : vector<8x1024xf32>
    %19 = vector.broadcast %15 : f32 to vector<8x1024xf32>
    %20 = arith.mulf %19, %16 : vector<8x1024xf32>
    %21 = arith.select %18, %16, %20 : vector<8x1024xi1>, vector<8x1024xf32>
    %22 = vector.extract_strided_slice %13 {offsets = [0, 0], sizes = [8, 1024], strides = [1, 1]} : vector<8x2048xf32> to vector<8x1024xf32>
    %cst_16 = arith.constant 0.000000e+00 : f32
    %23 = vector.broadcast %cst_16 : f32 to vector<8x1024xf32>
    %24 = arith.cmpf ogt, %22, %23 : vector<8x1024xf32>
    %25 = vector.broadcast %15 : f32 to vector<8x1024xf32>
    %26 = arith.mulf %25, %22 : vector<8x1024xf32>
    %27 = arith.select %24, %22, %26 : vector<8x1024xi1>, vector<8x1024xf32>
    %28 = tpu.concatenate %21, %27 in 1 : vector<8x1024xf32>, vector<8x1024xf32> -> vector<8x2048xf32>
    %c0_17 = arith.constant 0 : index
    %c0_18 = arith.constant 0 : index
    %c0_19 = arith.constant 0 : index
    %29 = vector.load %arg9[%c0_17, %c0_18, %c0_19] : memref<2x2048x128xbf16, #tpu.memory_space<vmem>>, vector<1x2048x128xbf16>
    %30 = vector.shape_cast %29 : vector<1x2048x128xbf16> to vector<2048x128xbf16>
    %31 = arith.truncf %28 : vector<8x2048xf32> to vector<8x2048xbf16>
    %cst_20 = arith.constant dense<0.000000e+00> : vector<8x128xf32>
    %32 = tpu.matmul %31, %30, %cst_20 {dimension_numbers = #tpu.dot_dimension_numbers<[1], [0], [0], [1], [0, 0, 1, 1], [], []>} : vector<8x2048xbf16>, vector<2048x128xbf16>, vector<8x128xf32> -> vector<8x128xf32>
    %cst_21 = arith.constant 0.000000e+00 : f32
    %33 = vector.broadcast %cst_21 : f32 to vector<8x16xf32>
    %34 = arith.cmpf ogt, %14, %33 : vector<8x16xf32>
    %35 = vector.broadcast %15 : f32 to vector<8x16xf32>
    %36 = arith.mulf %35, %14 : vector<8x16xf32>
    %37 = arith.select %34, %14, %36 : vector<8x16xi1>, vector<8x16xf32>
    %c0_22 = arith.constant 0 : index
    %c0_23 = arith.constant 0 : index
    %c0_24 = arith.constant 0 : index
    %38 = vector.load %arg10[%c0_22, %c0_23, %c0_24] : memref<2x16x128xbf16, #tpu.memory_space<vmem>>, vector<1x16x128xbf16>
    %39 = vector.shape_cast %38 : vector<1x16x128xbf16> to vector<16x128xbf16>
    %40 = arith.truncf %37 : vector<8x16xf32> to vector<8x16xbf16>
    %cst_25 = arith.constant dense<0.000000e+00> : vector<8x128xf32>
    %41 = tpu.matmul %40, %39, %cst_25 {dimension_numbers = #tpu.dot_dimension_numbers<[1], [0], [0], [1], [0, 0, 1, 1], [], []>} : vector<8x16xbf16>, vector<16x128xbf16>, vector<8x128xf32> -> vector<8x128xf32>
    %42 = arith.addf %32, %41 : vector<8x128xf32>
    %c0_26 = arith.constant 0 : index
    %c0_27 = arith.constant 0 : index
    %c0_28 = arith.constant 0 : index
    %43 = vector.load %arg11[%c0_26, %c0_27, %c0_28] : memref<2x1x128xf32, #tpu.memory_space<vmem>>, vector<1x1x128xf32>
    %44 = vector.shape_cast %43 : vector<1x1x128xf32> to vector<1x128xf32>
    %45 = vector.broadcast %44 : vector<1x128xf32> to vector<8x128xf32>
    %46 = arith.addf %42, %45 : vector<8x128xf32>
    %c1 = arith.constant 1 : index
    %47 = memref.load %arg0[%c1] : memref<41xf32, #tpu.memory_space<smem>>
    %cst_29 = arith.constant 0.000000e+00 : f32
    %48 = vector.broadcast %cst_29 : f32 to vector<8x128xf32>
    %49 = arith.cmpf ogt, %46, %48 : vector<8x128xf32>
    %50 = vector.broadcast %47 : f32 to vector<8x128xf32>
    %51 = arith.mulf %50, %46 : vector<8x128xf32>
    %52 = arith.select %49, %46, %51 : vector<8x128xi1>, vector<8x128xf32>
    %c0_30 = arith.constant 0 : index
    %c0_31 = arith.constant 0 : index
    %c0_32 = arith.constant 0 : index
    %53 = vector.load %arg12[%c0_30, %c0_31, %c0_32] : memref<8x128x128xbf16, #tpu.memory_space<vmem>>, vector<1x128x128xbf16>
    %54 = vector.shape_cast %53 : vector<1x128x128xbf16> to vector<128x128xbf16>
    %55 = arith.truncf %52 : vector<8x128xf32> to vector<8x128xbf16>
    %cst_33 = arith.constant dense<0.000000e+00> : vector<8x128xf32>
    %56 = tpu.matmul %55, %54, %cst_33 {dimension_numbers = #tpu.dot_dimension_numbers<[1], [0], [0], [1], [0, 0, 1, 1], [], []>} : vector<8x128xbf16>, vector<128x128xbf16>, vector<8x128xf32> -> vector<8x128xf32>
    %c0_34 = arith.constant 0 : index
    %c0_35 = arith.constant 0 : index
    %c0_36 = arith.constant 0 : index
    %57 = vector.load %arg13[%c0_34, %c0_35, %c0_36] : memref<8x1x128xf32, #tpu.memory_space<vmem>>, vector<1x1x128xf32>
    %58 = vector.shape_cast %57 : vector<1x1x128xf32> to vector<1x128xf32>
    %59 = vector.broadcast %58 : vector<1x128xf32> to vector<8x128xf32>
    %60 = arith.addf %56, %59 : vector<8x128xf32>
    %c2 = arith.constant 2 : index
    %61 = memref.load %arg0[%c2] : memref<41xf32, #tpu.memory_space<smem>>
    %cst_37 = arith.constant 0.000000e+00 : f32
    %62 = vector.broadcast %cst_37 : f32 to vector<8x128xf32>
    %63 = arith.cmpf ogt, %60, %62 : vector<8x128xf32>
    %64 = vector.broadcast %61 : f32 to vector<8x128xf32>
    %65 = arith.mulf %64, %60 : vector<8x128xf32>
    %66 = arith.select %63, %60, %65 : vector<8x128xi1>, vector<8x128xf32>
    %c1_38 = arith.constant 1 : index
    %c0_39 = arith.constant 0 : index
    %c0_40 = arith.constant 0 : index
    %67 = vector.load %arg12[%c1_38, %c0_39, %c0_40] : memref<8x128x128xbf16, #tpu.memory_space<vmem>>, vector<1x128x128xbf16>
    %68 = vector.shape_cast %67 : vector<1x128x128xbf16> to vector<128x128xbf16>
    %69 = arith.truncf %66 : vector<8x128xf32> to vector<8x128xbf16>
    %cst_41 = arith.constant dense<0.000000e+00> : vector<8x128xf32>
    %70 = tpu.matmul %69, %68, %cst_41 {dimension_numbers = #tpu.dot_dimension_numbers<[1], [0], [0], [1], [0, 0, 1, 1], [], []>} : vector<8x128xbf16>, vector<128x128xbf16>, vector<8x128xf32> -> vector<8x128xf32>
    %c1_42 = arith.constant 1 : index
    %c0_43 = arith.constant 0 : index
    %c0_44 = arith.constant 0 : index
    %71 = vector.load %arg13[%c1_42, %c0_43, %c0_44] : memref<8x1x128xf32, #tpu.memory_space<vmem>>, vector<1x1x128xf32>
    %72 = vector.shape_cast %71 : vector<1x1x128xf32> to vector<1x128xf32>
    %73 = vector.broadcast %72 : vector<1x128xf32> to vector<8x128xf32>
    %74 = arith.addf %70, %73 : vector<8x128xf32>
    %c3 = arith.constant 3 : index
    %75 = memref.load %arg0[%c3] : memref<41xf32, #tpu.memory_space<smem>>
    %cst_45 = arith.constant 0.000000e+00 : f32
    %76 = vector.broadcast %cst_45 : f32 to vector<8x128xf32>
    %77 = arith.cmpf ogt, %74, %76 : vector<8x128xf32>
    %78 = vector.broadcast %75 : f32 to vector<8x128xf32>
    %79 = arith.mulf %78, %74 : vector<8x128xf32>
    %80 = arith.select %77, %74, %79 : vector<8x128xi1>, vector<8x128xf32>
    %c2_46 = arith.constant 2 : index
    %c0_47 = arith.constant 0 : index
    %c0_48 = arith.constant 0 : index
    %81 = vector.load %arg12[%c2_46, %c0_47, %c0_48] : memref<8x128x128xbf16, #tpu.memory_space<vmem>>, vector<1x128x128xbf16>
    %82 = vector.shape_cast %81 : vector<1x128x128xbf16> to vector<128x128xbf16>
    %83 = arith.truncf %80 : vector<8x128xf32> to vector<8x128xbf16>
    %cst_49 = arith.constant dense<0.000000e+00> : vector<8x128xf32>
    %84 = tpu.matmul %83, %82, %cst_49 {dimension_numbers = #tpu.dot_dimension_numbers<[1], [0], [0], [1], [0, 0, 1, 1], [], []>} : vector<8x128xbf16>, vector<128x128xbf16>, vector<8x128xf32> -> vector<8x128xf32>
    %c2_50 = arith.constant 2 : index
    %c0_51 = arith.constant 0 : index
    %c0_52 = arith.constant 0 : index
    %85 = vector.load %arg13[%c2_50, %c0_51, %c0_52] : memref<8x1x128xf32, #tpu.memory_space<vmem>>, vector<1x1x128xf32>
    %86 = vector.shape_cast %85 : vector<1x1x128xf32> to vector<1x128xf32>
    %87 = vector.broadcast %86 : vector<1x128xf32> to vector<8x128xf32>
    %88 = arith.addf %84, %87 : vector<8x128xf32>
    %c4 = arith.constant 4 : index
    %89 = memref.load %arg0[%c4] : memref<41xf32, #tpu.memory_space<smem>>
    %cst_53 = arith.constant 0.000000e+00 : f32
    %90 = vector.broadcast %cst_53 : f32 to vector<8x128xf32>
    %91 = arith.cmpf ogt, %88, %90 : vector<8x128xf32>
    %92 = vector.broadcast %89 : f32 to vector<8x128xf32>
    %93 = arith.mulf %92, %88 : vector<8x128xf32>
    %94 = arith.select %91, %88, %93 : vector<8x128xi1>, vector<8x128xf32>
    %c3_54 = arith.constant 3 : index
    %c0_55 = arith.constant 0 : index
    %c0_56 = arith.constant 0 : index
    %95 = vector.load %arg12[%c3_54, %c0_55, %c0_56] : memref<8x128x128xbf16, #tpu.memory_space<vmem>>, vector<1x128x128xbf16>
    %96 = vector.shape_cast %95 : vector<1x128x128xbf16> to vector<128x128xbf16>
    %97 = arith.truncf %94 : vector<8x128xf32> to vector<8x128xbf16>
    %cst_57 = arith.constant dense<0.000000e+00> : vector<8x128xf32>
    %98 = tpu.matmul %97, %96, %cst_57 {dimension_numbers = #tpu.dot_dimension_numbers<[1], [0], [0], [1], [0, 0, 1, 1], [], []>} : vector<8x128xbf16>, vector<128x128xbf16>, vector<8x128xf32> -> vector<8x128xf32>
    %c3_58 = arith.constant 3 : index
    %c0_59 = arith.constant 0 : index
    %c0_60 = arith.constant 0 : index
    %99 = vector.load %arg13[%c3_58, %c0_59, %c0_60] : memref<8x1x128xf32, #tpu.memory_space<vmem>>, vector<1x1x128xf32>
    %100 = vector.shape_cast %99 : vector<1x1x128xf32> to vector<1x128xf32>
    %101 = vector.broadcast %100 : vector<1x128xf32> to vector<8x128xf32>
    %102 = arith.addf %98, %101 : vector<8x128xf32>
    %c5 = arith.constant 5 : index
    %103 = memref.load %arg0[%c5] : memref<41xf32, #tpu.memory_space<smem>>
    %104 = vector.extract_strided_slice %6 {offsets = [0, 1024], sizes = [8, 1024], strides = [1, 1]} : vector<8x2048xf32> to vector<8x1024xf32>
    %cst_61 = arith.constant 0.000000e+00 : f32
    %105 = vector.broadcast %cst_61 : f32 to vector<8x1024xf32>
    %106 = arith.cmpf ogt, %104, %105 : vector<8x1024xf32>
    %107 = vector.broadcast %103 : f32 to vector<8x1024xf32>
    %108 = arith.mulf %107, %104 : vector<8x1024xf32>
    %109 = arith.select %106, %104, %108 : vector<8x1024xi1>, vector<8x1024xf32>
    %110 = vector.extract_strided_slice %13 {offsets = [0, 1024], sizes = [8, 1024], strides = [1, 1]} : vector<8x2048xf32> to vector<8x1024xf32>
    %cst_62 = arith.constant 0.000000e+00 : f32
    %111 = vector.broadcast %cst_62 : f32 to vector<8x1024xf32>
    %112 = arith.cmpf ogt, %110, %111 : vector<8x1024xf32>
    %113 = vector.broadcast %103 : f32 to vector<8x1024xf32>
    %114 = arith.mulf %113, %110 : vector<8x1024xf32>
    %115 = arith.select %112, %110, %114 : vector<8x1024xi1>, vector<8x1024xf32>
    %116 = tpu.concatenate %109, %115 in 1 : vector<8x1024xf32>, vector<8x1024xf32> -> vector<8x2048xf32>
    %c1_63 = arith.constant 1 : index
    %c0_64 = arith.constant 0 : index
    %c0_65 = arith.constant 0 : index
    %117 = vector.load %arg9[%c1_63, %c0_64, %c0_65] : memref<2x2048x128xbf16, #tpu.memory_space<vmem>>, vector<1x2048x128xbf16>
    %118 = vector.shape_cast %117 : vector<1x2048x128xbf16> to vector<2048x128xbf16>
    %119 = arith.truncf %116 : vector<8x2048xf32> to vector<8x2048xbf16>
    %cst_66 = arith.constant dense<0.000000e+00> : vector<8x128xf32>
    %120 = tpu.matmul %119, %118, %cst_66 {dimension_numbers = #tpu.dot_dimension_numbers<[1], [0], [0], [1], [0, 0, 1, 1], [], []>} : vector<8x2048xbf16>, vector<2048x128xbf16>, vector<8x128xf32> -> vector<8x128xf32>
    %cst_67 = arith.constant 0.000000e+00 : f32
    %121 = vector.broadcast %cst_67 : f32 to vector<8x16xf32>
    %122 = arith.cmpf ogt, %14, %121 : vector<8x16xf32>
    %123 = vector.broadcast %103 : f32 to vector<8x16xf32>
    %124 = arith.mulf %123, %14 : vector<8x16xf32>
    %125 = arith.select %122, %14, %124 : vector<8x16xi1>, vector<8x16xf32>
    %c1_68 = arith.constant 1 : index
    %c0_69 = arith.constant 0 : index
    %c0_70 = arith.constant 0 : index
    %126 = vector.load %arg10[%c1_68, %c0_69, %c0_70] : memref<2x16x128xbf16, #tpu.memory_space<vmem>>, vector<1x16x128xbf16>
    %127 = vector.shape_cast %126 : vector<1x16x128xbf16> to vector<16x128xbf16>
    %128 = arith.truncf %125 : vector<8x16xf32> to vector<8x16xbf16>
    %cst_71 = arith.constant dense<0.000000e+00> : vector<8x128xf32>
    %129 = tpu.matmul %128, %127, %cst_71 {dimension_numbers = #tpu.dot_dimension_numbers<[1], [0], [0], [1], [0, 0, 1, 1], [], []>} : vector<8x16xbf16>, vector<16x128xbf16>, vector<8x128xf32> -> vector<8x128xf32>
    %130 = arith.addf %120, %129 : vector<8x128xf32>
    %c1_72 = arith.constant 1 : index
    %c0_73 = arith.constant 0 : index
    %c0_74 = arith.constant 0 : index
    %131 = vector.load %arg11[%c1_72, %c0_73, %c0_74] : memref<2x1x128xf32, #tpu.memory_space<vmem>>, vector<1x1x128xf32>
    %132 = vector.shape_cast %131 : vector<1x1x128xf32> to vector<1x128xf32>
    %133 = vector.broadcast %132 : vector<1x128xf32> to vector<8x128xf32>
    %134 = arith.addf %130, %133 : vector<8x128xf32>
    %c6 = arith.constant 6 : index
    %135 = memref.load %arg0[%c6] : memref<41xf32, #tpu.memory_space<smem>>
    %cst_75 = arith.constant 0.000000e+00 : f32
    %136 = vector.broadcast %cst_75 : f32 to vector<8x128xf32>
    %137 = arith.cmpf ogt, %134, %136 : vector<8x128xf32>
    %138 = vector.broadcast %135 : f32 to vector<8x128xf32>
    %139 = arith.mulf %138, %134 : vector<8x128xf32>
    %140 = arith.select %137, %134, %139 : vector<8x128xi1>, vector<8x128xf32>
    %c4_76 = arith.constant 4 : index
    %c0_77 = arith.constant 0 : index
    %c0_78 = arith.constant 0 : index
    %141 = vector.load %arg12[%c4_76, %c0_77, %c0_78] : memref<8x128x128xbf16, #tpu.memory_space<vmem>>, vector<1x128x128xbf16>
    %142 = vector.shape_cast %141 : vector<1x128x128xbf16> to vector<128x128xbf16>
    %143 = arith.truncf %140 : vector<8x128xf32> to vector<8x128xbf16>
    %cst_79 = arith.constant dense<0.000000e+00> : vector<8x128xf32>
    %144 = tpu.matmul %143, %142, %cst_79 {dimension_numbers = #tpu.dot_dimension_numbers<[1], [0], [0], [1], [0, 0, 1, 1], [], []>} : vector<8x128xbf16>, vector<128x128xbf16>, vector<8x128xf32> -> vector<8x128xf32>
    %c4_80 = arith.constant 4 : index
    %c0_81 = arith.constant 0 : index
    %c0_82 = arith.constant 0 : index
    %145 = vector.load %arg13[%c4_80, %c0_81, %c0_82] : memref<8x1x128xf32, #tpu.memory_space<vmem>>, vector<1x1x128xf32>
    %146 = vector.shape_cast %145 : vector<1x1x128xf32> to vector<1x128xf32>
    %147 = vector.broadcast %146 : vector<1x128xf32> to vector<8x128xf32>
    %148 = arith.addf %144, %147 : vector<8x128xf32>
    %c7 = arith.constant 7 : index
    %149 = memref.load %arg0[%c7] : memref<41xf32, #tpu.memory_space<smem>>
    %cst_83 = arith.constant 0.000000e+00 : f32
    %150 = vector.broadcast %cst_83 : f32 to vector<8x128xf32>
    %151 = arith.cmpf ogt, %148, %150 : vector<8x128xf32>
    %152 = vector.broadcast %149 : f32 to vector<8x128xf32>
    %153 = arith.mulf %152, %148 : vector<8x128xf32>
    %154 = arith.select %151, %148, %153 : vector<8x128xi1>, vector<8x128xf32>
    %c5_84 = arith.constant 5 : index
    %c0_85 = arith.constant 0 : index
    %c0_86 = arith.constant 0 : index
    %155 = vector.load %arg12[%c5_84, %c0_85, %c0_86] : memref<8x128x128xbf16, #tpu.memory_space<vmem>>, vector<1x128x128xbf16>
    %156 = vector.shape_cast %155 : vector<1x128x128xbf16> to vector<128x128xbf16>
    %157 = arith.truncf %154 : vector<8x128xf32> to vector<8x128xbf16>
    %cst_87 = arith.constant dense<0.000000e+00> : vector<8x128xf32>
    %158 = tpu.matmul %157, %156, %cst_87 {dimension_numbers = #tpu.dot_dimension_numbers<[1], [0], [0], [1], [0, 0, 1, 1], [], []>} : vector<8x128xbf16>, vector<128x128xbf16>, vector<8x128xf32> -> vector<8x128xf32>
    %c5_88 = arith.constant 5 : index
    %c0_89 = arith.constant 0 : index
    %c0_90 = arith.constant 0 : index
    %159 = vector.load %arg13[%c5_88, %c0_89, %c0_90] : memref<8x1x128xf32, #tpu.memory_space<vmem>>, vector<1x1x128xf32>
    %160 = vector.shape_cast %159 : vector<1x1x128xf32> to vector<1x128xf32>
    %161 = vector.broadcast %160 : vector<1x128xf32> to vector<8x128xf32>
    %162 = arith.addf %158, %161 : vector<8x128xf32>
    %c8 = arith.constant 8 : index
    %163 = memref.load %arg0[%c8] : memref<41xf32, #tpu.memory_space<smem>>
    %cst_91 = arith.constant 0.000000e+00 : f32
    %164 = vector.broadcast %cst_91 : f32 to vector<8x128xf32>
    %165 = arith.cmpf ogt, %162, %164 : vector<8x128xf32>
    %166 = vector.broadcast %163 : f32 to vector<8x128xf32>
    %167 = arith.mulf %166, %162 : vector<8x128xf32>
    %168 = arith.select %165, %162, %167 : vector<8x128xi1>, vector<8x128xf32>
    %c6_92 = arith.constant 6 : index
    %c0_93 = arith.constant 0 : index
    %c0_94 = arith.constant 0 : index
    %169 = vector.load %arg12[%c6_92, %c0_93, %c0_94] : memref<8x128x128xbf16, #tpu.memory_space<vmem>>, vector<1x128x128xbf16>
    %170 = vector.shape_cast %169 : vector<1x128x128xbf16> to vector<128x128xbf16>
    %171 = arith.truncf %168 : vector<8x128xf32> to vector<8x128xbf16>
    %cst_95 = arith.constant dense<0.000000e+00> : vector<8x128xf32>
    %172 = tpu.matmul %171, %170, %cst_95 {dimension_numbers = #tpu.dot_dimension_numbers<[1], [0], [0], [1], [0, 0, 1, 1], [], []>} : vector<8x128xbf16>, vector<128x128xbf16>, vector<8x128xf32> -> vector<8x128xf32>
    %c6_96 = arith.constant 6 : index
    %c0_97 = arith.constant 0 : index
    %c0_98 = arith.constant 0 : index
    %173 = vector.load %arg13[%c6_96, %c0_97, %c0_98] : memref<8x1x128xf32, #tpu.memory_space<vmem>>, vector<1x1x128xf32>
    %174 = vector.shape_cast %173 : vector<1x1x128xf32> to vector<1x128xf32>
    %175 = vector.broadcast %174 : vector<1x128xf32> to vector<8x128xf32>
    %176 = arith.addf %172, %175 : vector<8x128xf32>
    %c9 = arith.constant 9 : index
    %177 = memref.load %arg0[%c9] : memref<41xf32, #tpu.memory_space<smem>>
    %cst_99 = arith.constant 0.000000e+00 : f32
    %178 = vector.broadcast %cst_99 : f32 to vector<8x128xf32>
    %179 = arith.cmpf ogt, %176, %178 : vector<8x128xf32>
    %180 = vector.broadcast %177 : f32 to vector<8x128xf32>
    %181 = arith.mulf %180, %176 : vector<8x128xf32>
    %182 = arith.select %179, %176, %181 : vector<8x128xi1>, vector<8x128xf32>
    %c7_100 = arith.constant 7 : index
    %c0_101 = arith.constant 0 : index
    %c0_102 = arith.constant 0 : index
    %183 = vector.load %arg12[%c7_100, %c0_101, %c0_102] : memref<8x128x128xbf16, #tpu.memory_space<vmem>>, vector<1x128x128xbf16>
    %184 = vector.shape_cast %183 : vector<1x128x128xbf16> to vector<128x128xbf16>
    %185 = arith.truncf %182 : vector<8x128xf32> to vector<8x128xbf16>
    %cst_103 = arith.constant dense<0.000000e+00> : vector<8x128xf32>
    %186 = tpu.matmul %185, %184, %cst_103 {dimension_numbers = #tpu.dot_dimension_numbers<[1], [0], [0], [1], [0, 0, 1, 1], [], []>} : vector<8x128xbf16>, vector<128x128xbf16>, vector<8x128xf32> -> vector<8x128xf32>
    %c7_104 = arith.constant 7 : index
    %c0_105 = arith.constant 0 : index
    %c0_106 = arith.constant 0 : index
    %187 = vector.load %arg13[%c7_104, %c0_105, %c0_106] : memref<8x1x128xf32, #tpu.memory_space<vmem>>, vector<1x1x128xf32>
    %188 = vector.shape_cast %187 : vector<1x1x128xf32> to vector<1x128xf32>
    %189 = vector.broadcast %188 : vector<1x128xf32> to vector<8x128xf32>
    %190 = arith.addf %186, %189 : vector<8x128xf32>
    %cst_107 = arith.constant 0.000000e+00 : f32
    %191 = vector.broadcast %cst_107 : f32 to vector<8x128xf32>
    %192 = arith.maximumf %102, %191 : vector<8x128xf32>
    %cst_108 = arith.constant 0.000000e+00 : f32
    %193 = vector.broadcast %cst_108 : f32 to vector<8x128xf32>
    %194 = arith.minimumf %102, %193 : vector<8x128xf32>
    %c0_109 = arith.constant 0 : index
    %c0_110 = arith.constant 0 : index
    %195 = vector.load %arg14[%c0_109, %c0_110] : memref<128x896xbf16, #tpu.memory_space<vmem>>, vector<128x896xbf16>
    %196 = arith.truncf %192 : vector<8x128xf32> to vector<8x128xbf16>
    %cst_111 = arith.constant dense<0.000000e+00> : vector<8x896xf32>
    %197 = tpu.matmul %196, %195, %cst_111 {dimension_numbers = #tpu.dot_dimension_numbers<[1], [0], [0], [1], [0, 0, 1, 1], [], []>} : vector<8x128xbf16>, vector<128x896xbf16>, vector<8x896xf32> -> vector<8x896xf32>
    %c0_112 = arith.constant 0 : index
    %c0_113 = arith.constant 0 : index
    %198 = vector.load %arg14[%c0_112, %c0_113] : memref<128x896xbf16, #tpu.memory_space<vmem>>, vector<128x896xbf16>
    %199 = arith.truncf %194 : vector<8x128xf32> to vector<8x128xbf16>
    %cst_114 = arith.constant dense<0.000000e+00> : vector<8x896xf32>
    %200 = tpu.matmul %199, %198, %cst_114 {dimension_numbers = #tpu.dot_dimension_numbers<[1], [0], [0], [1], [0, 0, 1, 1], [], []>} : vector<8x128xbf16>, vector<128x896xbf16>, vector<8x896xf32> -> vector<8x896xf32>
    %c10 = arith.constant 10 : index
    %201 = memref.load %arg0[%c10] : memref<41xf32, #tpu.memory_space<smem>>
    %202 = vector.extract_strided_slice %197 {offsets = [0, 0], sizes = [8, 128], strides = [1, 1]} : vector<8x896xf32> to vector<8x128xf32>
    %203 = vector.extract_strided_slice %200 {offsets = [0, 0], sizes = [8, 128], strides = [1, 1]} : vector<8x896xf32> to vector<8x128xf32>
    %204 = vector.broadcast %201 : f32 to vector<8x128xf32>
    %205 = arith.mulf %204, %203 : vector<8x128xf32>
    %206 = arith.addf %202, %205 : vector<8x128xf32>
    %c0_115 = arith.constant 0 : index
    %c0_116 = arith.constant 0 : index
    %207 = vector.load %arg15[%c0_115, %c0_116] : memref<1x896xf32, #tpu.memory_space<vmem>>, vector<1x128xf32>
    %208 = vector.broadcast %207 : vector<1x128xf32> to vector<8x128xf32>
    %209 = arith.addf %206, %208 : vector<8x128xf32>
    %c11 = arith.constant 11 : index
    %210 = memref.load %arg0[%c11] : memref<41xf32, #tpu.memory_space<smem>>
    %cst_117 = arith.constant 0.000000e+00 : f32
    %211 = vector.broadcast %cst_117 : f32 to vector<8x128xf32>
    %212 = arith.cmpf ogt, %209, %211 : vector<8x128xf32>
    %213 = vector.broadcast %210 : f32 to vector<8x128xf32>
    %214 = arith.mulf %213, %209 : vector<8x128xf32>
    %215 = arith.select %212, %209, %214 : vector<8x128xi1>, vector<8x128xf32>
    %c0_118 = arith.constant 0 : index
    %c0_119 = arith.constant 0 : index
    %c0_120 = arith.constant 0 : index
    %216 = vector.load %arg16[%c0_118, %c0_119, %c0_120] : memref<14x128x128xbf16, #tpu.memory_space<vmem>>, vector<1x128x128xbf16>
    %217 = vector.shape_cast %216 : vector<1x128x128xbf16> to vector<128x128xbf16>
    %218 = arith.truncf %215 : vector<8x128xf32> to vector<8x128xbf16>
    %cst_121 = arith.constant dense<0.000000e+00> : vector<8x128xf32>
    %219 = tpu.matmul %218, %217, %cst_121 {dimension_numbers = #tpu.dot_dimension_numbers<[1], [0], [0], [1], [0, 0, 1, 1], [], []>} : vector<8x128xbf16>, vector<128x128xbf16>, vector<8x128xf32> -> vector<8x128xf32>
    %c0_122 = arith.constant 0 : index
    %c0_123 = arith.constant 0 : index
    %c0_124 = arith.constant 0 : index
    %220 = vector.load %arg17[%c0_122, %c0_123, %c0_124] : memref<14x1x128xf32, #tpu.memory_space<vmem>>, vector<1x1x128xf32>
    %221 = vector.shape_cast %220 : vector<1x1x128xf32> to vector<1x128xf32>
    %222 = vector.broadcast %221 : vector<1x128xf32> to vector<8x128xf32>
    %223 = arith.addf %219, %222 : vector<8x128xf32>
    %c12 = arith.constant 12 : index
    %224 = memref.load %arg0[%c12] : memref<41xf32, #tpu.memory_space<smem>>
    %cst_125 = arith.constant 0.000000e+00 : f32
    %225 = vector.broadcast %cst_125 : f32 to vector<8x128xf32>
    %226 = arith.cmpf ogt, %223, %225 : vector<8x128xf32>
    %227 = vector.broadcast %224 : f32 to vector<8x128xf32>
    %228 = arith.mulf %227, %223 : vector<8x128xf32>
    %229 = arith.select %226, %223, %228 : vector<8x128xi1>, vector<8x128xf32>
    %c7_126 = arith.constant 7 : index
    %c0_127 = arith.constant 0 : index
    %c0_128 = arith.constant 0 : index
    %230 = vector.load %arg16[%c7_126, %c0_127, %c0_128] : memref<14x128x128xbf16, #tpu.memory_space<vmem>>, vector<1x128x128xbf16>
    %231 = vector.shape_cast %230 : vector<1x128x128xbf16> to vector<128x128xbf16>
    %232 = arith.truncf %229 : vector<8x128xf32> to vector<8x128xbf16>
    %cst_129 = arith.constant dense<0.000000e+00> : vector<8x128xf32>
    %233 = tpu.matmul %232, %231, %cst_129 {dimension_numbers = #tpu.dot_dimension_numbers<[1], [0], [0], [1], [0, 0, 1, 1], [], []>} : vector<8x128xbf16>, vector<128x128xbf16>, vector<8x128xf32> -> vector<8x128xf32>
    %c7_130 = arith.constant 7 : index
    %c0_131 = arith.constant 0 : index
    %c0_132 = arith.constant 0 : index
    %234 = vector.load %arg17[%c7_130, %c0_131, %c0_132] : memref<14x1x128xf32, #tpu.memory_space<vmem>>, vector<1x1x128xf32>
    %235 = vector.shape_cast %234 : vector<1x1x128xf32> to vector<1x128xf32>
    %236 = vector.broadcast %235 : vector<1x128xf32> to vector<8x128xf32>
    %237 = arith.addf %233, %236 : vector<8x128xf32>
    %c13 = arith.constant 13 : index
    %238 = memref.load %arg0[%c13] : memref<41xf32, #tpu.memory_space<smem>>
    %cst_133 = arith.constant 0.000000e+00 : f32
    %239 = vector.broadcast %cst_133 : f32 to vector<8x128xf32>
    %240 = arith.cmpf ogt, %237, %239 : vector<8x128xf32>
    %241 = vector.broadcast %238 : f32 to vector<8x128xf32>
    %242 = arith.mulf %241, %237 : vector<8x128xf32>
    %243 = arith.select %240, %237, %242 : vector<8x128xi1>, vector<8x128xf32>
    %c14 = arith.constant 14 : index
    %244 = memref.load %arg0[%c14] : memref<41xf32, #tpu.memory_space<smem>>
    %245 = vector.extract_strided_slice %197 {offsets = [0, 128], sizes = [8, 128], strides = [1, 1]} : vector<8x896xf32> to vector<8x128xf32>
    %246 = vector.extract_strided_slice %200 {offsets = [0, 128], sizes = [8, 128], strides = [1, 1]} : vector<8x896xf32> to vector<8x128xf32>
    %247 = vector.broadcast %244 : f32 to vector<8x128xf32>
    %248 = arith.mulf %247, %246 : vector<8x128xf32>
    %249 = arith.addf %245, %248 : vector<8x128xf32>
    %c0_134 = arith.constant 0 : index
    %c128 = arith.constant 128 : index
    %250 = vector.load %arg15[%c0_134, %c128] : memref<1x896xf32, #tpu.memory_space<vmem>>, vector<1x128xf32>
    %251 = vector.broadcast %250 : vector<1x128xf32> to vector<8x128xf32>
    %252 = arith.addf %249, %251 : vector<8x128xf32>
    %c15 = arith.constant 15 : index
    %253 = memref.load %arg0[%c15] : memref<41xf32, #tpu.memory_space<smem>>
    %cst_135 = arith.constant 0.000000e+00 : f32
    %254 = vector.broadcast %cst_135 : f32 to vector<8x128xf32>
    %255 = arith.cmpf ogt, %252, %254 : vector<8x128xf32>
    %256 = vector.broadcast %253 : f32 to vector<8x128xf32>
    %257 = arith.mulf %256, %252 : vector<8x128xf32>
    %258 = arith.select %255, %252, %257 : vector<8x128xi1>, vector<8x128xf32>
    %c1_136 = arith.constant 1 : index
    %c0_137 = arith.constant 0 : index
    %c0_138 = arith.constant 0 : index
    %259 = vector.load %arg16[%c1_136, %c0_137, %c0_138] : memref<14x128x128xbf16, #tpu.memory_space<vmem>>, vector<1x128x128xbf16>
    %260 = vector.shape_cast %259 : vector<1x128x128xbf16> to vector<128x128xbf16>
    %261 = arith.truncf %258 : vector<8x128xf32> to vector<8x128xbf16>
    %cst_139 = arith.constant dense<0.000000e+00> : vector<8x128xf32>
    %262 = tpu.matmul %261, %260, %cst_139 {dimension_numbers = #tpu.dot_dimension_numbers<[1], [0], [0], [1], [0, 0, 1, 1], [], []>} : vector<8x128xbf16>, vector<128x128xbf16>, vector<8x128xf32> -> vector<8x128xf32>
    %c1_140 = arith.constant 1 : index
    %c0_141 = arith.constant 0 : index
    %c0_142 = arith.constant 0 : index
    %263 = vector.load %arg17[%c1_140, %c0_141, %c0_142] : memref<14x1x128xf32, #tpu.memory_space<vmem>>, vector<1x1x128xf32>
    %264 = vector.shape_cast %263 : vector<1x1x128xf32> to vector<1x128xf32>
    %265 = vector.broadcast %264 : vector<1x128xf32> to vector<8x128xf32>
    %266 = arith.addf %262, %265 : vector<8x128xf32>
    %c16 = arith.constant 16 : index
    %267 = memref.load %arg0[%c16] : memref<41xf32, #tpu.memory_space<smem>>
    %cst_143 = arith.constant 0.000000e+00 : f32
    %268 = vector.broadcast %cst_143 : f32 to vector<8x128xf32>
    %269 = arith.cmpf ogt, %266, %268 : vector<8x128xf32>
    %270 = vector.broadcast %267 : f32 to vector<8x128xf32>
    %271 = arith.mulf %270, %266 : vector<8x128xf32>
    %272 = arith.select %269, %266, %271 : vector<8x128xi1>, vector<8x128xf32>
    %c8_144 = arith.constant 8 : index
    %c0_145 = arith.constant 0 : index
    %c0_146 = arith.constant 0 : index
    %273 = vector.load %arg16[%c8_144, %c0_145, %c0_146] : memref<14x128x128xbf16, #tpu.memory_space<vmem>>, vector<1x128x128xbf16>
    %274 = vector.shape_cast %273 : vector<1x128x128xbf16> to vector<128x128xbf16>
    %275 = arith.truncf %272 : vector<8x128xf32> to vector<8x128xbf16>
    %cst_147 = arith.constant dense<0.000000e+00> : vector<8x128xf32>
    %276 = tpu.matmul %275, %274, %cst_147 {dimension_numbers = #tpu.dot_dimension_numbers<[1], [0], [0], [1], [0, 0, 1, 1], [], []>} : vector<8x128xbf16>, vector<128x128xbf16>, vector<8x128xf32> -> vector<8x128xf32>
    %c8_148 = arith.constant 8 : index
    %c0_149 = arith.constant 0 : index
    %c0_150 = arith.constant 0 : index
    %277 = vector.load %arg17[%c8_148, %c0_149, %c0_150] : memref<14x1x128xf32, #tpu.memory_space<vmem>>, vector<1x1x128xf32>
    %278 = vector.shape_cast %277 : vector<1x1x128xf32> to vector<1x128xf32>
    %279 = vector.broadcast %278 : vector<1x128xf32> to vector<8x128xf32>
    %280 = arith.addf %276, %279 : vector<8x128xf32>
    %c17 = arith.constant 17 : index
    %281 = memref.load %arg0[%c17] : memref<41xf32, #tpu.memory_space<smem>>
    %cst_151 = arith.constant 0.000000e+00 : f32
    %282 = vector.broadcast %cst_151 : f32 to vector<8x128xf32>
    %283 = arith.cmpf ogt, %280, %282 : vector<8x128xf32>
    %284 = vector.broadcast %281 : f32 to vector<8x128xf32>
    %285 = arith.mulf %284, %280 : vector<8x128xf32>
    %286 = arith.select %283, %280, %285 : vector<8x128xi1>, vector<8x128xf32>
    %c18 = arith.constant 18 : index
    %287 = memref.load %arg0[%c18] : memref<41xf32, #tpu.memory_space<smem>>
    %288 = vector.extract_strided_slice %197 {offsets = [0, 256], sizes = [8, 128], strides = [1, 1]} : vector<8x896xf32> to vector<8x128xf32>
    %289 = vector.extract_strided_slice %200 {offsets = [0, 256], sizes = [8, 128], strides = [1, 1]} : vector<8x896xf32> to vector<8x128xf32>
    %290 = vector.broadcast %287 : f32 to vector<8x128xf32>
    %291 = arith.mulf %290, %289 : vector<8x128xf32>
    %292 = arith.addf %288, %291 : vector<8x128xf32>
    %c0_152 = arith.constant 0 : index
    %c256 = arith.constant 256 : index
    %293 = vector.load %arg15[%c0_152, %c256] : memref<1x896xf32, #tpu.memory_space<vmem>>, vector<1x128xf32>
    %294 = vector.broadcast %293 : vector<1x128xf32> to vector<8x128xf32>
    %295 = arith.addf %292, %294 : vector<8x128xf32>
    %c19 = arith.constant 19 : index
    %296 = memref.load %arg0[%c19] : memref<41xf32, #tpu.memory_space<smem>>
    %cst_153 = arith.constant 0.000000e+00 : f32
    %297 = vector.broadcast %cst_153 : f32 to vector<8x128xf32>
    %298 = arith.cmpf ogt, %295, %297 : vector<8x128xf32>
    %299 = vector.broadcast %296 : f32 to vector<8x128xf32>
    %300 = arith.mulf %299, %295 : vector<8x128xf32>
    %301 = arith.select %298, %295, %300 : vector<8x128xi1>, vector<8x128xf32>
    %c2_154 = arith.constant 2 : index
    %c0_155 = arith.constant 0 : index
    %c0_156 = arith.constant 0 : index
    %302 = vector.load %arg16[%c2_154, %c0_155, %c0_156] : memref<14x128x128xbf16, #tpu.memory_space<vmem>>, vector<1x128x128xbf16>
    %303 = vector.shape_cast %302 : vector<1x128x128xbf16> to vector<128x128xbf16>
    %304 = arith.truncf %301 : vector<8x128xf32> to vector<8x128xbf16>
    %cst_157 = arith.constant dense<0.000000e+00> : vector<8x128xf32>
    %305 = tpu.matmul %304, %303, %cst_157 {dimension_numbers = #tpu.dot_dimension_numbers<[1], [0], [0], [1], [0, 0, 1, 1], [], []>} : vector<8x128xbf16>, vector<128x128xbf16>, vector<8x128xf32> -> vector<8x128xf32>
    %c2_158 = arith.constant 2 : index
    %c0_159 = arith.constant 0 : index
    %c0_160 = arith.constant 0 : index
    %306 = vector.load %arg17[%c2_158, %c0_159, %c0_160] : memref<14x1x128xf32, #tpu.memory_space<vmem>>, vector<1x1x128xf32>
    %307 = vector.shape_cast %306 : vector<1x1x128xf32> to vector<1x128xf32>
    %308 = vector.broadcast %307 : vector<1x128xf32> to vector<8x128xf32>
    %309 = arith.addf %305, %308 : vector<8x128xf32>
    %c20 = arith.constant 20 : index
    %310 = memref.load %arg0[%c20] : memref<41xf32, #tpu.memory_space<smem>>
    %cst_161 = arith.constant 0.000000e+00 : f32
    %311 = vector.broadcast %cst_161 : f32 to vector<8x128xf32>
    %312 = arith.cmpf ogt, %309, %311 : vector<8x128xf32>
    %313 = vector.broadcast %310 : f32 to vector<8x128xf32>
    %314 = arith.mulf %313, %309 : vector<8x128xf32>
    %315 = arith.select %312, %309, %314 : vector<8x128xi1>, vector<8x128xf32>
    %c9_162 = arith.constant 9 : index
    %c0_163 = arith.constant 0 : index
    %c0_164 = arith.constant 0 : index
    %316 = vector.load %arg16[%c9_162, %c0_163, %c0_164] : memref<14x128x128xbf16, #tpu.memory_space<vmem>>, vector<1x128x128xbf16>
    %317 = vector.shape_cast %316 : vector<1x128x128xbf16> to vector<128x128xbf16>
    %318 = arith.truncf %315 : vector<8x128xf32> to vector<8x128xbf16>
    %cst_165 = arith.constant dense<0.000000e+00> : vector<8x128xf32>
    %319 = tpu.matmul %318, %317, %cst_165 {dimension_numbers = #tpu.dot_dimension_numbers<[1], [0], [0], [1], [0, 0, 1, 1], [], []>} : vector<8x128xbf16>, vector<128x128xbf16>, vector<8x128xf32> -> vector<8x128xf32>
    %c9_166 = arith.constant 9 : index
    %c0_167 = arith.constant 0 : index
    %c0_168 = arith.constant 0 : index
    %320 = vector.load %arg17[%c9_166, %c0_167, %c0_168] : memref<14x1x128xf32, #tpu.memory_space<vmem>>, vector<1x1x128xf32>
    %321 = vector.shape_cast %320 : vector<1x1x128xf32> to vector<1x128xf32>
    %322 = vector.broadcast %321 : vector<1x128xf32> to vector<8x128xf32>
    %323 = arith.addf %319, %322 : vector<8x128xf32>
    %c21 = arith.constant 21 : index
    %324 = memref.load %arg0[%c21] : memref<41xf32, #tpu.memory_space<smem>>
    %cst_169 = arith.constant 0.000000e+00 : f32
    %325 = vector.broadcast %cst_169 : f32 to vector<8x128xf32>
    %326 = arith.cmpf ogt, %323, %325 : vector<8x128xf32>
    %327 = vector.broadcast %324 : f32 to vector<8x128xf32>
    %328 = arith.mulf %327, %323 : vector<8x128xf32>
    %329 = arith.select %326, %323, %328 : vector<8x128xi1>, vector<8x128xf32>
    %c22 = arith.constant 22 : index
    %330 = memref.load %arg0[%c22] : memref<41xf32, #tpu.memory_space<smem>>
    %331 = vector.extract_strided_slice %197 {offsets = [0, 384], sizes = [8, 128], strides = [1, 1]} : vector<8x896xf32> to vector<8x128xf32>
    %332 = vector.extract_strided_slice %200 {offsets = [0, 384], sizes = [8, 128], strides = [1, 1]} : vector<8x896xf32> to vector<8x128xf32>
    %333 = vector.broadcast %330 : f32 to vector<8x128xf32>
    %334 = arith.mulf %333, %332 : vector<8x128xf32>
    %335 = arith.addf %331, %334 : vector<8x128xf32>
    %c0_170 = arith.constant 0 : index
    %c384 = arith.constant 384 : index
    %336 = vector.load %arg15[%c0_170, %c384] : memref<1x896xf32, #tpu.memory_space<vmem>>, vector<1x128xf32>
    %337 = vector.broadcast %336 : vector<1x128xf32> to vector<8x128xf32>
    %338 = arith.addf %335, %337 : vector<8x128xf32>
    %c23 = arith.constant 23 : index
    %339 = memref.load %arg0[%c23] : memref<41xf32, #tpu.memory_space<smem>>
    %cst_171 = arith.constant 0.000000e+00 : f32
    %340 = vector.broadcast %cst_171 : f32 to vector<8x128xf32>
    %341 = arith.cmpf ogt, %338, %340 : vector<8x128xf32>
    %342 = vector.broadcast %339 : f32 to vector<8x128xf32>
    %343 = arith.mulf %342, %338 : vector<8x128xf32>
    %344 = arith.select %341, %338, %343 : vector<8x128xi1>, vector<8x128xf32>
    %c3_172 = arith.constant 3 : index
    %c0_173 = arith.constant 0 : index
    %c0_174 = arith.constant 0 : index
    %345 = vector.load %arg16[%c3_172, %c0_173, %c0_174] : memref<14x128x128xbf16, #tpu.memory_space<vmem>>, vector<1x128x128xbf16>
    %346 = vector.shape_cast %345 : vector<1x128x128xbf16> to vector<128x128xbf16>
    %347 = arith.truncf %344 : vector<8x128xf32> to vector<8x128xbf16>
    %cst_175 = arith.constant dense<0.000000e+00> : vector<8x128xf32>
    %348 = tpu.matmul %347, %346, %cst_175 {dimension_numbers = #tpu.dot_dimension_numbers<[1], [0], [0], [1], [0, 0, 1, 1], [], []>} : vector<8x128xbf16>, vector<128x128xbf16>, vector<8x128xf32> -> vector<8x128xf32>
    %c3_176 = arith.constant 3 : index
    %c0_177 = arith.constant 0 : index
    %c0_178 = arith.constant 0 : index
    %349 = vector.load %arg17[%c3_176, %c0_177, %c0_178] : memref<14x1x128xf32, #tpu.memory_space<vmem>>, vector<1x1x128xf32>
    %350 = vector.shape_cast %349 : vector<1x1x128xf32> to vector<1x128xf32>
    %351 = vector.broadcast %350 : vector<1x128xf32> to vector<8x128xf32>
    %352 = arith.addf %348, %351 : vector<8x128xf32>
    %c24 = arith.constant 24 : index
    %353 = memref.load %arg0[%c24] : memref<41xf32, #tpu.memory_space<smem>>
    %cst_179 = arith.constant 0.000000e+00 : f32
    %354 = vector.broadcast %cst_179 : f32 to vector<8x128xf32>
    %355 = arith.cmpf ogt, %352, %354 : vector<8x128xf32>
    %356 = vector.broadcast %353 : f32 to vector<8x128xf32>
    %357 = arith.mulf %356, %352 : vector<8x128xf32>
    %358 = arith.select %355, %352, %357 : vector<8x128xi1>, vector<8x128xf32>
    %c10_180 = arith.constant 10 : index
    %c0_181 = arith.constant 0 : index
    %c0_182 = arith.constant 0 : index
    %359 = vector.load %arg16[%c10_180, %c0_181, %c0_182] : memref<14x128x128xbf16, #tpu.memory_space<vmem>>, vector<1x128x128xbf16>
    %360 = vector.shape_cast %359 : vector<1x128x128xbf16> to vector<128x128xbf16>
    %361 = arith.truncf %358 : vector<8x128xf32> to vector<8x128xbf16>
    %cst_183 = arith.constant dense<0.000000e+00> : vector<8x128xf32>
    %362 = tpu.matmul %361, %360, %cst_183 {dimension_numbers = #tpu.dot_dimension_numbers<[1], [0], [0], [1], [0, 0, 1, 1], [], []>} : vector<8x128xbf16>, vector<128x128xbf16>, vector<8x128xf32> -> vector<8x128xf32>
    %c10_184 = arith.constant 10 : index
    %c0_185 = arith.constant 0 : index
    %c0_186 = arith.constant 0 : index
    %363 = vector.load %arg17[%c10_184, %c0_185, %c0_186] : memref<14x1x128xf32, #tpu.memory_space<vmem>>, vector<1x1x128xf32>
    %364 = vector.shape_cast %363 : vector<1x1x128xf32> to vector<1x128xf32>
    %365 = vector.broadcast %364 : vector<1x128xf32> to vector<8x128xf32>
    %366 = arith.addf %362, %365 : vector<8x128xf32>
    %c25 = arith.constant 25 : index
    %367 = memref.load %arg0[%c25] : memref<41xf32, #tpu.memory_space<smem>>
    %cst_187 = arith.constant 0.000000e+00 : f32
    %368 = vector.broadcast %cst_187 : f32 to vector<8x128xf32>
    %369 = arith.cmpf ogt, %366, %368 : vector<8x128xf32>
    %370 = vector.broadcast %367 : f32 to vector<8x128xf32>
    %371 = arith.mulf %370, %366 : vector<8x128xf32>
    %372 = arith.select %369, %366, %371 : vector<8x128xi1>, vector<8x128xf32>
    %c26 = arith.constant 26 : index
    %373 = memref.load %arg0[%c26] : memref<41xf32, #tpu.memory_space<smem>>
    %374 = vector.extract_strided_slice %197 {offsets = [0, 512], sizes = [8, 128], strides = [1, 1]} : vector<8x896xf32> to vector<8x128xf32>
    %375 = vector.extract_strided_slice %200 {offsets = [0, 512], sizes = [8, 128], strides = [1, 1]} : vector<8x896xf32> to vector<8x128xf32>
    %376 = vector.broadcast %373 : f32 to vector<8x128xf32>
    %377 = arith.mulf %376, %375 : vector<8x128xf32>
    %378 = arith.addf %374, %377 : vector<8x128xf32>
    %c0_188 = arith.constant 0 : index
    %c512 = arith.constant 512 : index
    %379 = vector.load %arg15[%c0_188, %c512] : memref<1x896xf32, #tpu.memory_space<vmem>>, vector<1x128xf32>
    %380 = vector.broadcast %379 : vector<1x128xf32> to vector<8x128xf32>
    %381 = arith.addf %378, %380 : vector<8x128xf32>
    %c27 = arith.constant 27 : index
    %382 = memref.load %arg0[%c27] : memref<41xf32, #tpu.memory_space<smem>>
    %cst_189 = arith.constant 0.000000e+00 : f32
    %383 = vector.broadcast %cst_189 : f32 to vector<8x128xf32>
    %384 = arith.cmpf ogt, %381, %383 : vector<8x128xf32>
    %385 = vector.broadcast %382 : f32 to vector<8x128xf32>
    %386 = arith.mulf %385, %381 : vector<8x128xf32>
    %387 = arith.select %384, %381, %386 : vector<8x128xi1>, vector<8x128xf32>
    %c4_190 = arith.constant 4 : index
    %c0_191 = arith.constant 0 : index
    %c0_192 = arith.constant 0 : index
    %388 = vector.load %arg16[%c4_190, %c0_191, %c0_192] : memref<14x128x128xbf16, #tpu.memory_space<vmem>>, vector<1x128x128xbf16>
    %389 = vector.shape_cast %388 : vector<1x128x128xbf16> to vector<128x128xbf16>
    %390 = arith.truncf %387 : vector<8x128xf32> to vector<8x128xbf16>
    %cst_193 = arith.constant dense<0.000000e+00> : vector<8x128xf32>
    %391 = tpu.matmul %390, %389, %cst_193 {dimension_numbers = #tpu.dot_dimension_numbers<[1], [0], [0], [1], [0, 0, 1, 1], [], []>} : vector<8x128xbf16>, vector<128x128xbf16>, vector<8x128xf32> -> vector<8x128xf32>
    %c4_194 = arith.constant 4 : index
    %c0_195 = arith.constant 0 : index
    %c0_196 = arith.constant 0 : index
    %392 = vector.load %arg17[%c4_194, %c0_195, %c0_196] : memref<14x1x128xf32, #tpu.memory_space<vmem>>, vector<1x1x128xf32>
    %393 = vector.shape_cast %392 : vector<1x1x128xf32> to vector<1x128xf32>
    %394 = vector.broadcast %393 : vector<1x128xf32> to vector<8x128xf32>
    %395 = arith.addf %391, %394 : vector<8x128xf32>
    %c28 = arith.constant 28 : index
    %396 = memref.load %arg0[%c28] : memref<41xf32, #tpu.memory_space<smem>>
    %cst_197 = arith.constant 0.000000e+00 : f32
    %397 = vector.broadcast %cst_197 : f32 to vector<8x128xf32>
    %398 = arith.cmpf ogt, %395, %397 : vector<8x128xf32>
    %399 = vector.broadcast %396 : f32 to vector<8x128xf32>
    %400 = arith.mulf %399, %395 : vector<8x128xf32>
    %401 = arith.select %398, %395, %400 : vector<8x128xi1>, vector<8x128xf32>
    %c11_198 = arith.constant 11 : index
    %c0_199 = arith.constant 0 : index
    %c0_200 = arith.constant 0 : index
    %402 = vector.load %arg16[%c11_198, %c0_199, %c0_200] : memref<14x128x128xbf16, #tpu.memory_space<vmem>>, vector<1x128x128xbf16>
    %403 = vector.shape_cast %402 : vector<1x128x128xbf16> to vector<128x128xbf16>
    %404 = arith.truncf %401 : vector<8x128xf32> to vector<8x128xbf16>
    %cst_201 = arith.constant dense<0.000000e+00> : vector<8x128xf32>
    %405 = tpu.matmul %404, %403, %cst_201 {dimension_numbers = #tpu.dot_dimension_numbers<[1], [0], [0], [1], [0, 0, 1, 1], [], []>} : vector<8x128xbf16>, vector<128x128xbf16>, vector<8x128xf32> -> vector<8x128xf32>
    %c11_202 = arith.constant 11 : index
    %c0_203 = arith.constant 0 : index
    %c0_204 = arith.constant 0 : index
    %406 = vector.load %arg17[%c11_202, %c0_203, %c0_204] : memref<14x1x128xf32, #tpu.memory_space<vmem>>, vector<1x1x128xf32>
    %407 = vector.shape_cast %406 : vector<1x1x128xf32> to vector<1x128xf32>
    %408 = vector.broadcast %407 : vector<1x128xf32> to vector<8x128xf32>
    %409 = arith.addf %405, %408 : vector<8x128xf32>
    %c29 = arith.constant 29 : index
    %410 = memref.load %arg0[%c29] : memref<41xf32, #tpu.memory_space<smem>>
    %cst_205 = arith.constant 0.000000e+00 : f32
    %411 = vector.broadcast %cst_205 : f32 to vector<8x128xf32>
    %412 = arith.cmpf ogt, %409, %411 : vector<8x128xf32>
    %413 = vector.broadcast %410 : f32 to vector<8x128xf32>
    %414 = arith.mulf %413, %409 : vector<8x128xf32>
    %415 = arith.select %412, %409, %414 : vector<8x128xi1>, vector<8x128xf32>
    %c30 = arith.constant 30 : index
    %416 = memref.load %arg0[%c30] : memref<41xf32, #tpu.memory_space<smem>>
    %417 = vector.extract_strided_slice %197 {offsets = [0, 640], sizes = [8, 128], strides = [1, 1]} : vector<8x896xf32> to vector<8x128xf32>
    %418 = vector.extract_strided_slice %200 {offsets = [0, 640], sizes = [8, 128], strides = [1, 1]} : vector<8x896xf32> to vector<8x128xf32>
    %419 = vector.broadcast %416 : f32 to vector<8x128xf32>
    %420 = arith.mulf %419, %418 : vector<8x128xf32>
    %421 = arith.addf %417, %420 : vector<8x128xf32>
    %c0_206 = arith.constant 0 : index
    %c640 = arith.constant 640 : index
    %422 = vector.load %arg15[%c0_206, %c640] : memref<1x896xf32, #tpu.memory_space<vmem>>, vector<1x128xf32>
    %423 = vector.broadcast %422 : vector<1x128xf32> to vector<8x128xf32>
    %424 = arith.addf %421, %423 : vector<8x128xf32>
    %c31 = arith.constant 31 : index
    %425 = memref.load %arg0[%c31] : memref<41xf32, #tpu.memory_space<smem>>
    %cst_207 = arith.constant 0.000000e+00 : f32
    %426 = vector.broadcast %cst_207 : f32 to vector<8x128xf32>
    %427 = arith.cmpf ogt, %424, %426 : vector<8x128xf32>
    %428 = vector.broadcast %425 : f32 to vector<8x128xf32>
    %429 = arith.mulf %428, %424 : vector<8x128xf32>
    %430 = arith.select %427, %424, %429 : vector<8x128xi1>, vector<8x128xf32>
    %c5_208 = arith.constant 5 : index
    %c0_209 = arith.constant 0 : index
    %c0_210 = arith.constant 0 : index
    %431 = vector.load %arg16[%c5_208, %c0_209, %c0_210] : memref<14x128x128xbf16, #tpu.memory_space<vmem>>, vector<1x128x128xbf16>
    %432 = vector.shape_cast %431 : vector<1x128x128xbf16> to vector<128x128xbf16>
    %433 = arith.truncf %430 : vector<8x128xf32> to vector<8x128xbf16>
    %cst_211 = arith.constant dense<0.000000e+00> : vector<8x128xf32>
    %434 = tpu.matmul %433, %432, %cst_211 {dimension_numbers = #tpu.dot_dimension_numbers<[1], [0], [0], [1], [0, 0, 1, 1], [], []>} : vector<8x128xbf16>, vector<128x128xbf16>, vector<8x128xf32> -> vector<8x128xf32>
    %c5_212 = arith.constant 5 : index
    %c0_213 = arith.constant 0 : index
    %c0_214 = arith.constant 0 : index
    %435 = vector.load %arg17[%c5_212, %c0_213, %c0_214] : memref<14x1x128xf32, #tpu.memory_space<vmem>>, vector<1x1x128xf32>
    %436 = vector.shape_cast %435 : vector<1x1x128xf32> to vector<1x128xf32>
    %437 = vector.broadcast %436 : vector<1x128xf32> to vector<8x128xf32>
    %438 = arith.addf %434, %437 : vector<8x128xf32>
    %c32 = arith.constant 32 : index
    %439 = memref.load %arg0[%c32] : memref<41xf32, #tpu.memory_space<smem>>
    %cst_215 = arith.constant 0.000000e+00 : f32
    %440 = vector.broadcast %cst_215 : f32 to vector<8x128xf32>
    %441 = arith.cmpf ogt, %438, %440 : vector<8x128xf32>
    %442 = vector.broadcast %439 : f32 to vector<8x128xf32>
    %443 = arith.mulf %442, %438 : vector<8x128xf32>
    %444 = arith.select %441, %438, %443 : vector<8x128xi1>, vector<8x128xf32>
    %c12_216 = arith.constant 12 : index
    %c0_217 = arith.constant 0 : index
    %c0_218 = arith.constant 0 : index
    %445 = vector.load %arg16[%c12_216, %c0_217, %c0_218] : memref<14x128x128xbf16, #tpu.memory_space<vmem>>, vector<1x128x128xbf16>
    %446 = vector.shape_cast %445 : vector<1x128x128xbf16> to vector<128x128xbf16>
    %447 = arith.truncf %444 : vector<8x128xf32> to vector<8x128xbf16>
    %cst_219 = arith.constant dense<0.000000e+00> : vector<8x128xf32>
    %448 = tpu.matmul %447, %446, %cst_219 {dimension_numbers = #tpu.dot_dimension_numbers<[1], [0], [0], [1], [0, 0, 1, 1], [], []>} : vector<8x128xbf16>, vector<128x128xbf16>, vector<8x128xf32> -> vector<8x128xf32>
    %c12_220 = arith.constant 12 : index
    %c0_221 = arith.constant 0 : index
    %c0_222 = arith.constant 0 : index
    %449 = vector.load %arg17[%c12_220, %c0_221, %c0_222] : memref<14x1x128xf32, #tpu.memory_space<vmem>>, vector<1x1x128xf32>
    %450 = vector.shape_cast %449 : vector<1x1x128xf32> to vector<1x128xf32>
    %451 = vector.broadcast %450 : vector<1x128xf32> to vector<8x128xf32>
    %452 = arith.addf %448, %451 : vector<8x128xf32>
    %c33 = arith.constant 33 : index
    %453 = memref.load %arg0[%c33] : memref<41xf32, #tpu.memory_space<smem>>
    %cst_223 = arith.constant 0.000000e+00 : f32
    %454 = vector.broadcast %cst_223 : f32 to vector<8x128xf32>
    %455 = arith.cmpf ogt, %452, %454 : vector<8x128xf32>
    %456 = vector.broadcast %453 : f32 to vector<8x128xf32>
    %457 = arith.mulf %456, %452 : vector<8x128xf32>
    %458 = arith.select %455, %452, %457 : vector<8x128xi1>, vector<8x128xf32>
    %c34 = arith.constant 34 : index
    %459 = memref.load %arg0[%c34] : memref<41xf32, #tpu.memory_space<smem>>
    %460 = vector.extract_strided_slice %197 {offsets = [0, 768], sizes = [8, 128], strides = [1, 1]} : vector<8x896xf32> to vector<8x128xf32>
    %461 = vector.extract_strided_slice %200 {offsets = [0, 768], sizes = [8, 128], strides = [1, 1]} : vector<8x896xf32> to vector<8x128xf32>
    %462 = vector.broadcast %459 : f32 to vector<8x128xf32>
    %463 = arith.mulf %462, %461 : vector<8x128xf32>
    %464 = arith.addf %460, %463 : vector<8x128xf32>
    %c0_224 = arith.constant 0 : index
    %c768 = arith.constant 768 : index
    %465 = vector.load %arg15[%c0_224, %c768] : memref<1x896xf32, #tpu.memory_space<vmem>>, vector<1x128xf32>
    %466 = vector.broadcast %465 : vector<1x128xf32> to vector<8x128xf32>
    %467 = arith.addf %464, %466 : vector<8x128xf32>
    %c35 = arith.constant 35 : index
    %468 = memref.load %arg0[%c35] : memref<41xf32, #tpu.memory_space<smem>>
    %cst_225 = arith.constant 0.000000e+00 : f32
    %469 = vector.broadcast %cst_225 : f32 to vector<8x128xf32>
    %470 = arith.cmpf ogt, %467, %469 : vector<8x128xf32>
    %471 = vector.broadcast %468 : f32 to vector<8x128xf32>
    %472 = arith.mulf %471, %467 : vector<8x128xf32>
    %473 = arith.select %470, %467, %472 : vector<8x128xi1>, vector<8x128xf32>
    %c6_226 = arith.constant 6 : index
    %c0_227 = arith.constant 0 : index
    %c0_228 = arith.constant 0 : index
    %474 = vector.load %arg16[%c6_226, %c0_227, %c0_228] : memref<14x128x128xbf16, #tpu.memory_space<vmem>>, vector<1x128x128xbf16>
    %475 = vector.shape_cast %474 : vector<1x128x128xbf16> to vector<128x128xbf16>
    %476 = arith.truncf %473 : vector<8x128xf32> to vector<8x128xbf16>
    %cst_229 = arith.constant dense<0.000000e+00> : vector<8x128xf32>
    %477 = tpu.matmul %476, %475, %cst_229 {dimension_numbers = #tpu.dot_dimension_numbers<[1], [0], [0], [1], [0, 0, 1, 1], [], []>} : vector<8x128xbf16>, vector<128x128xbf16>, vector<8x128xf32> -> vector<8x128xf32>
    %c6_230 = arith.constant 6 : index
    %c0_231 = arith.constant 0 : index
    %c0_232 = arith.constant 0 : index
    %478 = vector.load %arg17[%c6_230, %c0_231, %c0_232] : memref<14x1x128xf32, #tpu.memory_space<vmem>>, vector<1x1x128xf32>
    %479 = vector.shape_cast %478 : vector<1x1x128xf32> to vector<1x128xf32>
    %480 = vector.broadcast %479 : vector<1x128xf32> to vector<8x128xf32>
    %481 = arith.addf %477, %480 : vector<8x128xf32>
    %c36 = arith.constant 36 : index
    %482 = memref.load %arg0[%c36] : memref<41xf32, #tpu.memory_space<smem>>
    %cst_233 = arith.constant 0.000000e+00 : f32
    %483 = vector.broadcast %cst_233 : f32 to vector<8x128xf32>
    %484 = arith.cmpf ogt, %481, %483 : vector<8x128xf32>
    %485 = vector.broadcast %482 : f32 to vector<8x128xf32>
    %486 = arith.mulf %485, %481 : vector<8x128xf32>
    %487 = arith.select %484, %481, %486 : vector<8x128xi1>, vector<8x128xf32>
    %c13_234 = arith.constant 13 : index
    %c0_235 = arith.constant 0 : index
    %c0_236 = arith.constant 0 : index
    %488 = vector.load %arg16[%c13_234, %c0_235, %c0_236] : memref<14x128x128xbf16, #tpu.memory_space<vmem>>, vector<1x128x128xbf16>
    %489 = vector.shape_cast %488 : vector<1x128x128xbf16> to vector<128x128xbf16>
    %490 = arith.truncf %487 : vector<8x128xf32> to vector<8x128xbf16>
    %cst_237 = arith.constant dense<0.000000e+00> : vector<8x128xf32>
    %491 = tpu.matmul %490, %489, %cst_237 {dimension_numbers = #tpu.dot_dimension_numbers<[1], [0], [0], [1], [0, 0, 1, 1], [], []>} : vector<8x128xbf16>, vector<128x128xbf16>, vector<8x128xf32> -> vector<8x128xf32>
    %c13_238 = arith.constant 13 : index
    %c0_239 = arith.constant 0 : index
    %c0_240 = arith.constant 0 : index
    %492 = vector.load %arg17[%c13_238, %c0_239, %c0_240] : memref<14x1x128xf32, #tpu.memory_space<vmem>>, vector<1x1x128xf32>
    %493 = vector.shape_cast %492 : vector<1x1x128xf32> to vector<1x128xf32>
    %494 = vector.broadcast %493 : vector<1x128xf32> to vector<8x128xf32>
    %495 = arith.addf %491, %494 : vector<8x128xf32>
    %c37 = arith.constant 37 : index
    %496 = memref.load %arg0[%c37] : memref<41xf32, #tpu.memory_space<smem>>
    %cst_241 = arith.constant 0.000000e+00 : f32
    %497 = vector.broadcast %cst_241 : f32 to vector<8x128xf32>
    %498 = arith.cmpf ogt, %495, %497 : vector<8x128xf32>
    %499 = vector.broadcast %496 : f32 to vector<8x128xf32>
    %500 = arith.mulf %499, %495 : vector<8x128xf32>
    %501 = arith.select %498, %495, %500 : vector<8x128xi1>, vector<8x128xf32>
    %c38 = arith.constant 38 : index
    %502 = memref.load %arg0[%c38] : memref<41xf32, #tpu.memory_space<smem>>
    %cst_242 = arith.constant 0.000000e+00 : f32
    %503 = vector.broadcast %cst_242 : f32 to vector<8x128xf32>
    %504 = arith.cmpf ogt, %190, %503 : vector<8x128xf32>
    %505 = vector.broadcast %502 : f32 to vector<8x128xf32>
    %506 = arith.mulf %505, %190 : vector<8x128xf32>
    %507 = arith.select %504, %190, %506 : vector<8x128xi1>, vector<8x128xf32>
    %c0_243 = arith.constant 0 : index
    %c0_244 = arith.constant 0 : index
    %c0_245 = arith.constant 0 : index
    %508 = vector.load %arg18[%c0_243, %c0_244, %c0_245] : memref<2x128x128xbf16, #tpu.memory_space<vmem>>, vector<1x128x128xbf16>
    %509 = vector.shape_cast %508 : vector<1x128x128xbf16> to vector<128x128xbf16>
    %510 = arith.truncf %507 : vector<8x128xf32> to vector<8x128xbf16>
    %cst_246 = arith.constant dense<0.000000e+00> : vector<8x128xf32>
    %511 = tpu.matmul %510, %509, %cst_246 {dimension_numbers = #tpu.dot_dimension_numbers<[1], [0], [0], [1], [0, 0, 1, 1], [], []>} : vector<8x128xbf16>, vector<128x128xbf16>, vector<8x128xf32> -> vector<8x128xf32>
    %c0_247 = arith.constant 0 : index
    %c0_248 = arith.constant 0 : index
    %c0_249 = arith.constant 0 : index
    %512 = vector.load %arg19[%c0_247, %c0_248, %c0_249] : memref<2x1x128xf32, #tpu.memory_space<vmem>>, vector<1x1x128xf32>
    %513 = vector.shape_cast %512 : vector<1x1x128xf32> to vector<1x128xf32>
    %514 = vector.broadcast %513 : vector<1x128xf32> to vector<8x128xf32>
    %515 = arith.addf %511, %514 : vector<8x128xf32>
    %c39 = arith.constant 39 : index
    %516 = memref.load %arg0[%c39] : memref<41xf32, #tpu.memory_space<smem>>
    %cst_250 = arith.constant 0.000000e+00 : f32
    %517 = vector.broadcast %cst_250 : f32 to vector<8x128xf32>
    %518 = arith.cmpf ogt, %515, %517 : vector<8x128xf32>
    %519 = vector.broadcast %516 : f32 to vector<8x128xf32>
    %520 = arith.mulf %519, %515 : vector<8x128xf32>
    %521 = arith.select %518, %515, %520 : vector<8x128xi1>, vector<8x128xf32>
    %c1_251 = arith.constant 1 : index
    %c0_252 = arith.constant 0 : index
    %c0_253 = arith.constant 0 : index
    %522 = vector.load %arg18[%c1_251, %c0_252, %c0_253] : memref<2x128x128xbf16, #tpu.memory_space<vmem>>, vector<1x128x128xbf16>
    %523 = vector.shape_cast %522 : vector<1x128x128xbf16> to vector<128x128xbf16>
    %524 = arith.truncf %521 : vector<8x128xf32> to vector<8x128xbf16>
    %cst_254 = arith.constant dense<0.000000e+00> : vector<8x128xf32>
    %525 = tpu.matmul %524, %523, %cst_254 {dimension_numbers = #tpu.dot_dimension_numbers<[1], [0], [0], [1], [0, 0, 1, 1], [], []>} : vector<8x128xbf16>, vector<128x128xbf16>, vector<8x128xf32> -> vector<8x128xf32>
    %c1_255 = arith.constant 1 : index
    %c0_256 = arith.constant 0 : index
    %c0_257 = arith.constant 0 : index
    %526 = vector.load %arg19[%c1_255, %c0_256, %c0_257] : memref<2x1x128xf32, #tpu.memory_space<vmem>>, vector<1x1x128xf32>
    %527 = vector.shape_cast %526 : vector<1x1x128xf32> to vector<1x128xf32>
    %528 = vector.broadcast %527 : vector<1x128xf32> to vector<8x128xf32>
    %529 = arith.addf %525, %528 : vector<8x128xf32>
    %c40 = arith.constant 40 : index
    %530 = memref.load %arg0[%c40] : memref<41xf32, #tpu.memory_space<smem>>
    %cst_258 = arith.constant 0.000000e+00 : f32
    %531 = vector.broadcast %cst_258 : f32 to vector<8x128xf32>
    %532 = arith.cmpf ogt, %529, %531 : vector<8x128xf32>
    %533 = vector.broadcast %530 : f32 to vector<8x128xf32>
    %534 = arith.mulf %533, %529 : vector<8x128xf32>
    %535 = arith.select %532, %529, %534 : vector<8x128xi1>, vector<8x128xf32>
    %536 = tpu.concatenate %243, %286, %329, %372, %415, %458, %501, %535 in 1 : vector<8x128xf32>, vector<8x128xf32>, vector<8x128xf32>, vector<8x128xf32>, vector<8x128xf32>, vector<8x128xf32>, vector<8x128xf32>, vector<8x128xf32> -> vector<8x1024xf32>
    %c0_259 = arith.constant 0 : index
    %c0_260 = arith.constant 0 : index
    %537 = vector.load %arg20[%c0_259, %c0_260] : memref<1024x128xbf16, #tpu.memory_space<vmem>>, vector<1024x128xbf16>
    %538 = arith.truncf %536 : vector<8x1024xf32> to vector<8x1024xbf16>
    %cst_261 = arith.constant dense<0.000000e+00> : vector<8x128xf32>
    %539 = tpu.matmul %538, %537, %cst_261 {dimension_numbers = #tpu.dot_dimension_numbers<[1], [0], [0], [1], [0, 0, 1, 1], [], []>} : vector<8x1024xbf16>, vector<1024x128xbf16>, vector<8x128xf32> -> vector<8x128xf32>
    %c0_262 = arith.constant 0 : index
    %c0_263 = arith.constant 0 : index
    %540 = vector.load %arg21[%c0_262, %c0_263] : memref<1x128xf32, #tpu.memory_space<vmem>>, vector<1x128xf32>
    %541 = vector.broadcast %540 : vector<1x128xf32> to vector<8x128xf32>
    %542 = arith.addf %539, %541 : vector<8x128xf32>
    %c0_264 = arith.constant 0 : index
    %c0_265 = arith.constant 0 : index
    %543 = vector.load %arg4[%c0_264, %c0_265] : memref<8x128xf32, #tpu.memory_space<vmem>>, vector<8x128xf32>
    %cst_266 = arith.constant 0.000000e+00 : f32
    %544 = vector.broadcast %cst_266 : f32 to vector<8x128xf32>
    %545 = arith.subf %544, %543 : vector<8x128xf32>
    %cst_267 = arith.constant 1.000000e+00 : f32
    %546 = vector.broadcast %cst_267 : f32 to vector<8x128xf32>
    %547 = arith.divf %546, %545 : vector<8x128xf32>
    %cst_268 = arith.constant 1.000000e+00 : f32
    %548 = vector.broadcast %cst_268 : f32 to vector<8x128xf32>
    %549 = arith.addf %547, %548 : vector<8x128xf32>
    %550 = arith.addf %542, %549 : vector<8x128xf32>
    %c0_269 = arith.constant 0 : index
    %c0_270 = arith.constant 0 : index
    %551 = vector.load %arg22[%c0_269, %c0_270] : memref<8x128xf32, #tpu.memory_space<vmem>>, vector<8x128xf32>
    tpu.vector_store %arg22[%c0_269, %c0_270], %550 {strides = array<i32>} : memref<8x128xf32, #tpu.memory_space<vmem>>, vector<8x128xf32>,
    return
  }
}

</mosaic_0001>

<llo_original>
// kernel: squeeze.3
$region0: #{squeeze.3}
  %s0 = inlined_call_operand.vmem [shape: f32[8,1,8,8], index: 0, kind: input, shape index: {}]
  %s1 = inlined_call_operand.vmem [shape: f32[8,64], index: 1, kind: output, shape index: {}]
  %v2 = vld [vmem:[%s0] ss:$8 sm:$0xf]
  %v3 = vld [vmem:[%s0] ss:$8 sm:$0xf0]
  %vm4 = vcmask 1047556
  %v5 = vsel %vm4, %v3, %v2
  %vm6 = vcmask 64512
  %7 = vst.msk [vmem:[%s1] sm:$0xff] %vm6, %v5
  %s8 = scalar_lea.vmem %s0, 7
  %v9 = vld [vmem:[%s8] ss:$8 sm:$0xf]
  %s10 = scalar_lea.vmem %s0, 7
  %v11 = vld [vmem:[%s10] ss:$8 sm:$0xf0]
  %vm12 = vcmask 1047556
  %v13 = vsel %vm12, %v11, %v9
  %14 = vrot.lane.b32.xlu0 %v13, 56
  %v15 = vpop.permute.xlu0 %14
  %vm16 = vcmask 523712
  %17 = vst.msk [vmem:[%s1] sm:$0xff] %vm16, %v15
  %s18 = scalar_lea.vmem %s0, 6
  %v19 = vld [vmem:[%s18] ss:$8 sm:$0xf]
  %s20 = scalar_lea.vmem %s0, 6
  %v21 = vld [vmem:[%s20] ss:$8 sm:$0xf0]
  %vm22 = vcmask 1047556
  %v23 = vsel %vm22, %v21, %v19
  %24 = vrot.lane.b32.xlu0 %v23, 48
  %v25 = vpop.permute.xlu0 %24
  %vm26 = vcmask 458112
  %27 = vst.msk [vmem:[%s1] sm:$0xff] %vm26, %v25
  %s28 = scalar_lea.vmem %s0, 5
  %v29 = vld [vmem:[%s28] ss:$8 sm:$0xf]
  %s30 = scalar_lea.vmem %s0, 5
  %v31 = vld [vmem:[%s30] ss:$8 sm:$0xf0]
  %vm32 = vcmask 1047556
  %v33 = vsel %vm32, %v31, %v29
  %34 = vrot.lane.b32.xlu0 %v33, 40
  %v35 = vpop.permute.xlu0 %34
  %vm36 = vcmask 392512
  %37 = vst.msk [vmem:[%s1] sm:$0xff] %vm36, %v35
  %s38 = scalar_lea.vmem %s0, 4
  %v39 = vld [vmem:[%s38] ss:$8 sm:$0xf]
  %s40 = scalar_lea.vmem %s0, 4
  %v41 = vld [vmem:[%s40] ss:$8 sm:$0xf0]
  %vm42 = vcmask 1047556
  %v43 = vsel %vm42, %v41, %v39
  %44 = vrot.lane.b32.xlu0 %v43, 32
  %v45 = vpop.permute.xlu0 %44
  %vm46 = vcmask 326912
  %47 = vst.msk [vmem:[%s1] sm:$0xff] %vm46, %v45
  %s48 = scalar_lea.vmem %s0, 3
  %v49 = vld [vmem:[%s48] ss:$8 sm:$0xf]
  %s50 = scalar_lea.vmem %s0, 3
  %v51 = vld [vmem:[%s50] ss:$8 sm:$0xf0]
  %vm52 = vcmask 1047556
  %v53 = vsel %vm52, %v51, %v49
  %54 = vrot.lane.b32.xlu0 %v53, 24
  %v55 = vpop.permute.xlu0 %54
  %vm56 = vcmask 261312
  %57 = vst.msk [vmem:[%s1] sm:$0xff] %vm56, %v55
  %s58 = scalar_lea.vmem %s0, 2
  %v59 = vld [vmem:[%s58] ss:$8 sm:$0xf]
  %s60 = scalar_lea.vmem %s0, 2
  %v61 = vld [vmem:[%s60] ss:$8 sm:$0xf0]
  %vm62 = vcmask 1047556
  %v63 = vsel %vm62, %v61, %v59
  %64 = vrot.lane.b32.xlu0 %v63, 16
  %v65 = vpop.permute.xlu0 %64
  %vm66 = vcmask 195712
  %67 = vst.msk [vmem:[%s1] sm:$0xff] %vm66, %v65
  %s68 = scalar_lea.vmem %s0, 1
  %v69 = vld [vmem:[%s68] ss:$8 sm:$0xf]
  %s70 = scalar_lea.vmem %s0, 1
  %v71 = vld [vmem:[%s70] ss:$8 sm:$0xf0]
  %vm72 = vcmask 1047556
  %v73 = vsel %vm72, %v71, %v69
  %74 = vrot.lane.b32.xlu0 %v73, 8
  %v75 = vpop.permute.xlu0 %74
  %vm76 = vcmask 130112
  %77 = vst.msk [vmem:[%s1] sm:$0xff] %vm76, %v75

// kernel: forward.1
$region0: #{forward.1}
  #allocation0 [shape = 'u32[]', space=smem, size = 0x4, offset = 0x4, fixed_abs, tag = 'smem constant byte address 0x4 - core index']
  #allocation1 [shape = 'u32[144,128]{1,0:T(1,128)}', space=vmem, size = 0x12000, scoped, tag = 'internal scratch']
  %s0 = inlined_call_operand.hbm [shape: f32[41], index: 0, kind: input, shape index: {}]
  %s1 = inlined_call_operand.vmem [shape: f32[8,64], index: 1, kind: input, shape index: {}]
  %s2 = inlined_call_operand.vmem [shape: f32[8,64], index: 2, kind: input, shape index: {}]
  %s3 = inlined_call_operand.hbm [shape: f32[8,16], index: 3, kind: input, shape index: {}]
  %s4 = inlined_call_operand.vmem [shape: f32[8,128], index: 4, kind: input, shape index: {}]
  %s5 = inlined_call_operand.vmem [shape: bf16[64,2048], index: 5, kind: input, shape index: {}]
  %s6 = inlined_call_operand.vmem [shape: f32[1,2048], index: 6, kind: input, shape index: {}]
  %s7 = inlined_call_operand.hbm [shape: bf16[64,2048], index: 7, kind: input, shape index: {}]
  %s8 = inlined_call_operand.vmem [shape: f32[1,2048], index: 8, kind: input, shape index: {}]
  %s9 = inlined_call_operand.hbm [shape: bf16[2,2048,128], index: 9, kind: input, shape index: {}]
  %s10 = inlined_call_operand.vmem [shape: bf16[2,16,128], index: 10, kind: input, shape index: {}]
  %s11 = inlined_call_operand.hbm [shape: f32[2,1,128], index: 11, kind: input, shape index: {}]
  %s12 = inlined_call_operand.hbm [shape: bf16[8,128,128], index: 12, kind: input, shape index: {}]
  %s13 = inlined_call_operand.vmem [shape: f32[8,1,128], index: 13, kind: input, shape index: {}]
  %s14 = inlined_call_operand.hbm [shape: bf16[128,896], index: 14, kind: input, shape index: {}]
  %s15 = inlined_call_operand.hbm [shape: f32[1,896], index: 15, kind: input, shape index: {}]
  %s16 = inlined_call_operand.hbm [shape: bf16[14,128,128], index: 16, kind: input, shape index: {}]
  %s17 = inlined_call_operand.hbm [shape: f32[14,1,128], index: 17, kind: input, shape index: {}]
  %s18 = inlined_call_operand.hbm [shape: bf16[2,128,128], index: 18, kind: input, shape index: {}]
  %s19 = inlined_call_operand.hbm [shape: f32[2,1,128], index: 19, kind: input, shape index: {}]
  %s20 = inlined_call_operand.hbm [shape: bf16[1024,128], index: 20, kind: input, shape index: {}]
  %s21 = inlined_call_operand.hbm [shape: f32[1,128], index: 21, kind: input, shape index: {}]
  %s22 = inlined_call_operand.vmem [shape: f32[8,128], index: 22, kind: output, shape index: {}]
  %s23 = sld [smem:[#allocation0]]
  $region154: #{forward.1} parent=0
    _
  %s25 = ssub.s32 1, %s23
  %s26 = scalar_select 0, %s25, %s23
  $region1: #{forward.1} parent=0
    #allocation2 [shape = 'u8[512]{0}', space=smem, size = 0x200, scoped, tag = 'input window, operand 0, single buffered']
    #allocation3 [shape = 's32[1]{0}', space=sflag, size = 0x4, scoped, tag = 'scoped memory for forward.1']
    #allocation4 [shape = 's32[1]{0}', space=sflag, size = 0x4, scoped, tag = 'scoped memory for forward.1']
    #allocation5 [shape = 'u8[4096]{0}', space=vmem, size = 0x1000, scoped, tag = 'input window, operand 3, single buffered']
    #allocation6 [shape = 'u8[262144]{0}', space=vmem, size = 0x40000, scoped, tag = 'input window, operand 7, single buffered']
    #allocation7 [shape = 's32[1]{0}', space=sflag, size = 0x4, scoped, tag = 'scoped memory for forward.1']
    #allocation8 [shape = 'u8[1048576]{0}', space=vmem, size = 0x100000, scoped, tag = 'input window, operand 9, single buffered']
    #allocation9 [shape = 'u8[1024]{0}', space=vmem, size = 0x400, scoped, tag = 'input window, operand 11, single buffered']
    #allocation10 [shape = 's32[1]{0}', space=sflag, size = 0x4, scoped, tag = 'scoped memory for forward.1']
    #allocation11 [shape = 'u8[262144]{0}', space=vmem, size = 0x40000, scoped, tag = 'input window, operand 12, single buffered']
    #allocation12 [shape = 'u8[229376]{0}', space=vmem, size = 0x38000, scoped, tag = 'input window, operand 14, single buffered']
    #allocation13 [shape = 's32[1]{0}', space=sflag, size = 0x4, scoped, tag = 'scoped memory for forward.1']
    #allocation14 [shape = 'u8[3584]{0}', space=vmem, size = 0x1000, scoped, tag = 'input window, operand 15, single buffered']
    #allocation15 [shape = 'u8[458752]{0}', space=vmem, size = 0x70000, scoped, tag = 'input window, operand 16, single buffered']
    #allocation16 [shape = 's32[1]{0}', space=sflag, size = 0x4, scoped, tag = 'scoped memory for forward.1']
    #allocation17 [shape = 'u8[7168]{0}', space=vmem, size = 0x1c00, scoped, tag = 'input window, operand 17, single buffered']
    #allocation18 [shape = 'u8[65536]{0}', space=vmem, size = 0x10000, scoped, tag = 'input window, operand 18, single buffered']
    #allocation19 [shape = 's32[1]{0}', space=sflag, size = 0x4, scoped, tag = 'scoped memory for forward.1']
    #allocation20 [shape = 'u8[1024]{0}', space=vmem, size = 0x400, scoped, tag = 'input window, operand 19, single buffered']
    #allocation21 [shape = 'u8[262144]{0}', space=vmem, size = 0x40000, scoped, tag = 'input window, operand 20, single buffered']
    #allocation22 [shape = 's32[1]{0}', space=sflag, size = 0x4, scoped, tag = 'scoped memory for forward.1']
    #allocation23 [shape = 'u8[512]{0}', space=vmem, size = 0x400, scoped, tag = 'input window, operand 21, single buffered']
    %27 = vsyncpa [#allocation4], 0
    %28 = vsyncpa [#allocation3], 0
    %29 = vsyncpa [#allocation7], 0
    %30 = vsyncpa [#allocation10], 0
    %31 = vsyncpa [#allocation13], 0
    %32 = vsyncpa [#allocation16], 0
    %33 = vsyncpa [#allocation19], 0
    %34 = vsyncpa [#allocation22], 0
    // Predicated region
    $region2: #{forward.1} parent=1 // pred_check
      _
    $region3: #{forward.1} parent=1 // pred_check_branch
      %36 = sbr.rel (0) target = $region5
    $region4: #{forward.1} parent=1 // pred_region
      %s38 = ssub.s32 16, 16
      %39 = vsyncadd [#allocation4], %s38
      %42 = dma.hbm_to_smem %s0, 16, [#allocation2], [#allocation4]
    $region5: #{forward.1} parent=1 // pred_fallthru
      _
    // Predicated region
    $region6: #{forward.1} parent=1 // pred_check
      _
    $region7: #{forward.1} parent=1 // pred_check_branch
      %44 = sbr.rel (0) target = $region9
    $region8: #{forward.1} parent=1 // pred_region
      _
    $region9: #{forward.1} parent=1 // pred_fallthru
      _
    // Predicated region
    $region10: #{forward.1} parent=1 // pred_check
      _
    $region11: #{forward.1} parent=1 // pred_check_branch
      %46 = sbr.rel (0) target = $region13
    $region12: #{forward.1} parent=1 // pred_region
      _
    $region13: #{forward.1} parent=1 // pred_fallthru
      _
    // Predicated region
    $region14: #{forward.1} parent=1 // pred_check
      _
    $region15: #{forward.1} parent=1 // pred_check_branch
      %48 = sbr.rel (0) target = $region17
    $region16: #{forward.1} parent=1 // pred_region
      %s50 = ssub.s32 128, 128
      %51 = vsyncadd [#allocation3], %s50
      %s53 = sshll.u32 [#allocation5], 4
      %s54 = int_to_ptr.vmem [resolvable:$true] %s53
      %56 = dma.hbm_to_vmem [thread:$0]  %s3, 128, %s54, [#allocation3]
    $region17: #{forward.1} parent=1 // pred_fallthru
      _
    // Predicated region
    $region18: #{forward.1} parent=1 // pred_check
      _
    $region19: #{forward.1} parent=1 // pred_check_branch
      %58 = sbr.rel (0) target = $region21
    $region20: #{forward.1} parent=1 // pred_region
      _
    $region21: #{forward.1} parent=1 // pred_fallthru
      _
    // Predicated region
    $region22: #{forward.1} parent=1 // pred_check
      _
    $region23: #{forward.1} parent=1 // pred_check_branch
      %60 = sbr.rel (0) target = $region25
    $region24: #{forward.1} parent=1 // pred_region
      _
    $region25: #{forward.1} parent=1 // pred_fallthru
      _
    // Predicated region
    $region26: #{forward.1} parent=1 // pred_check
      _
    $region27: #{forward.1} parent=1 // pred_check_branch
      %62 = sbr.rel (0) target = $region29
    $region28: #{forward.1} parent=1 // pred_region
      _
    $region29: #{forward.1} parent=1 // pred_fallthru
      _
    // Predicated region
    $region30: #{forward.1} parent=1 // pred_check
      _
    $region31: #{forward.1} parent=1 // pred_check_branch
      %64 = sbr.rel (0) target = $region33
    $region32: #{forward.1} parent=1 // pred_region
      %s66 = ssub.s32 8192, 8192
      %67 = vsyncadd [#allocation7], %s66
      %s68 = sshll.u32 [#allocation6], 4
      %s69 = int_to_ptr.vmem [resolvable:$true] %s68
      %74 = dma.hbm_to_vmem [thread:$0]  %s7, 8192, %s69, [#allocation7], 1024, 1024, 64
    $region33: #{forward.1} parent=1 // pred_fallthru
      _
    // Predicated region
    $region34: #{forward.1} parent=1 // pred_check
      _
    $region35: #{forward.1} parent=1 // pred_check_branch
      %76 = sbr.rel (0) target = $region37
    $region36: #{forward.1} parent=1 // pred_region
      _
    $region37: #{forward.1} parent=1 // pred_fallthru
      _
    // Predicated region
    $region38: #{forward.1} parent=1 // pred_check
      _
    $region39: #{forward.1} parent=1 // pred_check_branch
      %78 = sbr.rel (0) target = $region41
    $region40: #{forward.1} parent=1 // pred_region
      %s80 = ssub.s32 32768, 32768
      %81 = vsyncadd [#allocation7], %s80
      %s82 = sshll.u32 [#allocation8], 4
      %s83 = int_to_ptr.vmem [resolvable:$true] %s82
      %88 = dma.hbm_to_vmem [thread:$0]  %s9, 32768, %s83, [#allocation7], 64, 64, 4
    $region41: #{forward.1} parent=1 // pred_fallthru
      _
    // Predicated region
    $region42: #{forward.1} parent=1 // pred_check
      _
    $region43: #{forward.1} parent=1 // pred_check_branch
      %90 = sbr.rel (0) target = $region45
    $region44: #{forward.1} parent=1 // pred_region
      _
    $region45: #{forward.1} parent=1 // pred_fallthru
      _
    // Predicated region
    $region46: #{forward.1} parent=1 // pred_check
      _
    $region47: #{forward.1} parent=1 // pred_check_branch
      %92 = sbr.rel (0) target = $region49
    $region48: #{forward.1} parent=1 // pred_region
      %s94 = ssub.s32 32, 32
      %95 = vsyncadd [#allocation10], %s94
      %s96 = sshll.u32 [#allocation9], 4
      %s97 = int_to_ptr.vmem [resolvable:$true] %s96
      %102 = dma.hbm_to_vmem [thread:$0]  %s11, 32, %s97, [#allocation10], 16, 16, 1
    $region49: #{forward.1} parent=1 // pred_fallthru
      _
    // Predicated region
    $region50: #{forward.1} parent=1 // pred_check
      _
    $region51: #{forward.1} parent=1 // pred_check_branch
      %104 = sbr.rel (0) target = $region53
    $region52: #{forward.1} parent=1 // pred_region
      %s106 = ssub.s32 8192, 8192
      %107 = vsyncadd [#allocation10], %s106
      %s108 = sshll.u32 [#allocation11], 4
      %s109 = int_to_ptr.vmem [resolvable:$true] %s108
      %114 = dma.hbm_to_vmem [thread:$0]  %s12, 8192, %s109, [#allocation10], 64, 64, 4
    $region53: #{forward.1} parent=1 // pred_fallthru
      _
    // Predicated region
    $region54: #{forward.1} parent=1 // pred_check
      _
    $region55: #{forward.1} parent=1 // pred_check_branch
      %116 = sbr.rel (0) target = $region57
    $region56: #{forward.1} parent=1 // pred_region
      _
    $region57: #{forward.1} parent=1 // pred_fallthru
      _
    // Predicated region
    $region58: #{forward.1} parent=1 // pred_check
      _
    $region59: #{forward.1} parent=1 // pred_check_branch
      %118 = sbr.rel (0) target = $region61
    $region60: #{forward.1} parent=1 // pred_region
      %s120 = ssub.s32 7168, 7168
      %121 = vsyncadd [#allocation13], %s120
      %s122 = sshll.u32 [#allocation12], 4
      %s123 = int_to_ptr.vmem [resolvable:$true] %s122
      %128 = dma.hbm_to_vmem [thread:$0]  %s14, 7168, %s123, [#allocation13], 448, 448, 28
    $region61: #{forward.1} parent=1 // pred_fallthru
      _
    // Predicated region
    $region62: #{forward.1} parent=1 // pred_check
      _
    $region63: #{forward.1} parent=1 // pred_check_branch
      %130 = sbr.rel (0) target = $region65
    $region64: #{forward.1} parent=1 // pred_region
      %s132 = ssub.s32 112, 112
      %133 = vsyncadd [#allocation13], %s132
      %s135 = sshll.u32 [#allocation14], 4
      %s136 = int_to_ptr.vmem [resolvable:$true] %s135
      %138 = dma.hbm_to_vmem [thread:$0]  %s15, 112, %s136, [#allocation13]
    $region65: #{forward.1} parent=1 // pred_fallthru
      _
    // Predicated region
    $region66: #{forward.1} parent=1 // pred_check
      _
    $region67: #{forward.1} parent=1 // pred_check_branch
      %140 = sbr.rel (0) target = $region69
    $region68: #{forward.1} parent=1 // pred_region
      %s142 = ssub.s32 14336, 14336
      %143 = vsyncadd [#allocation16], %s142
      %s144 = sshll.u32 [#allocation15], 4
      %s145 = int_to_ptr.vmem [resolvable:$true] %s144
      %150 = dma.hbm_to_vmem [thread:$0]  %s16, 14336, %s145, [#allocation16], 64, 64, 4
    $region69: #{forward.1} parent=1 // pred_fallthru
      _
    // Predicated region
    $region70: #{forward.1} parent=1 // pred_check
      _
    $region71: #{forward.1} parent=1 // pred_check_branch
      %152 = sbr.rel (0) target = $region73
    $region72: #{forward.1} parent=1 // pred_region
      %s154 = ssub.s32 224, 224
      %155 = vsyncadd [#allocation16], %s154
      %s156 = sshll.u32 [#allocation17], 4
      %s157 = int_to_ptr.vmem [resolvable:$true] %s156
      %162 = dma.hbm_to_vmem [thread:$0]  %s17, 224, %s157, [#allocation16], 16, 16, 1
    $region73: #{forward.1} parent=1 // pred_fallthru
      _
    // Predicated region
    $region74: #{forward.1} parent=1 // pred_check
      _
    $region75: #{forward.1} parent=1 // pred_check_branch
      %164 = sbr.rel (0) target = $region77
    $region76: #{forward.1} parent=1 // pred_region
      %s166 = ssub.s32 2048, 2048
      %167 = vsyncadd [#allocation19], %s166
      %s168 = sshll.u32 [#allocation18], 4
      %s169 = int_to_ptr.vmem [resolvable:$true] %s168
      %174 = dma.hbm_to_vmem [thread:$0]  %s18, 2048, %s169, [#allocation19], 64, 64, 4
    $region77: #{forward.1} parent=1 // pred_fallthru
      _
    // Predicated region
    $region78: #{forward.1} parent=1 // pred_check
      _
    $region79: #{forward.1} parent=1 // pred_check_branch
      %176 = sbr.rel (0) target = $region81
    $region80: #{forward.1} parent=1 // pred_region
      %s178 = ssub.s32 32, 32
      %179 = vsyncadd [#allocation19], %s178
      %s180 = sshll.u32 [#allocation20], 4
      %s181 = int_to_ptr.vmem [resolvable:$true] %s180
      %186 = dma.hbm_to_vmem [thread:$0]  %s19, 32, %s181, [#allocation19], 16, 16, 1
    $region81: #{forward.1} parent=1 // pred_fallthru
      _
    // Predicated region
    $region82: #{forward.1} parent=1 // pred_check
      _
    $region83: #{forward.1} parent=1 // pred_check_branch
      %188 = sbr.rel (0) target = $region85
    $region84: #{forward.1} parent=1 // pred_region
      %s190 = ssub.s32 8192, 8192
      %191 = vsyncadd [#allocation22], %s190
      %s192 = sshll.u32 [#allocation21], 4
      %s193 = int_to_ptr.vmem [resolvable:$true] %s192
      %198 = dma.hbm_to_vmem [thread:$0]  %s20, 8192, %s193, [#allocation22], 64, 64, 4
    $region85: #{forward.1} parent=1 // pred_fallthru
      _
    // Predicated region
    $region86: #{forward.1} parent=1 // pred_check
      _
    $region87: #{forward.1} parent=1 // pred_check_branch
      %200 = sbr.rel (0) target = $region89
    $region88: #{forward.1} parent=1 // pred_region
      %s202 = ssub.s32 16, 16
      %203 = vsyncadd [#allocation22], %s202
      %s205 = sshll.u32 [#allocation23], 4
      %s206 = int_to_ptr.vmem [resolvable:$true] %s205
      %208 = dma.hbm_to_vmem [thread:$0]  %s21, 16, %s206, [#allocation22]
    $region89: #{forward.1} parent=1 // pred_fallthru
      _
    // Predicated region
    $region90: #{forward.1} parent=1 // pred_check
      _
    $region91: #{forward.1} parent=1 // pred_check_branch
      %210 = sbr.rel (0) target = $region93
    $region92: #{forward.1} parent=1 // pred_region
      %211 = dma.done [#allocation4], 16
    $region93: #{forward.1} parent=1 // pred_fallthru
      _
    // Predicated region
    $region94: #{forward.1} parent=1 // pred_check
      _
    $region95: #{forward.1} parent=1 // pred_check_branch
      %213 = sbr.rel (0) target = $region97
    $region96: #{forward.1} parent=1 // pred_region
      %214 = dma.done [#allocation3], 128
    $region97: #{forward.1} parent=1 // pred_fallthru
      _
    // Predicated region
    $region98: #{forward.1} parent=1 // pred_check
      _
    $region99: #{forward.1} parent=1 // pred_check_branch
      %216 = sbr.rel (0) target = $region101
    $region100: #{forward.1} parent=1 // pred_region
      %217 = dma.done [#allocation7], 8192
    $region101: #{forward.1} parent=1 // pred_fallthru
      _
    // Predicated region
    $region102: #{forward.1} parent=1 // pred_check
      _
    $region103: #{forward.1} parent=1 // pred_check_branch
      %219 = sbr.rel (0) target = $region105
    $region104: #{forward.1} parent=1 // pred_region
      %220 = dma.done [#allocation7], 32768
    $region105: #{forward.1} parent=1 // pred_fallthru
      _
    // Predicated region
    $region106: #{forward.1} parent=1 // pred_check
      _
    $region107: #{forward.1} parent=1 // pred_check_branch
      %222 = sbr.rel (0) target = $region109
    $region108: #{forward.1} parent=1 // pred_region
      %223 = dma.done [#allocation10], 32
    $region109: #{forward.1} parent=1 // pred_fallthru
      _
    // Predicated region
    $region110: #{forward.1} parent=1 // pred_check
      _
    $region111: #{forward.1} parent=1 // pred_check_branch
      %225 = sbr.rel (0) target = $region113
    $region112: #{forward.1} parent=1 // pred_region
      %226 = dma.done [#allocation10], 8192
    $region113: #{forward.1} parent=1 // pred_fallthru
      _
    // Predicated region
    $region114: #{forward.1} parent=1 // pred_check
      _
    $region115: #{forward.1} parent=1 // pred_check_branch
      %228 = sbr.rel (0) target = $region117
    $region116: #{forward.1} parent=1 // pred_region
      %229 = dma.done [#allocation13], 7168
    $region117: #{forward.1} parent=1 // pred_fallthru
      _
    // Predicated region
    $region118: #{forward.1} parent=1 // pred_check
      _
    $region119: #{forward.1} parent=1 // pred_check_branch
      %231 = sbr.rel (0) target = $region121
    $region120: #{forward.1} parent=1 // pred_region
      %232 = dma.done [#allocation13], 112
    $region121: #{forward.1} parent=1 // pred_fallthru
      _
    // Predicated region
    $region122: #{forward.1} parent=1 // pred_check
      _
    $region123: #{forward.1} parent=1 // pred_check_branch
      %234 = sbr.rel (0) target = $region125
    $region124: #{forward.1} parent=1 // pred_region
      %235 = dma.done [#allocation16], 14336
    $region125: #{forward.1} parent=1 // pred_fallthru
      _
    // Predicated region
    $region126: #{forward.1} parent=1 // pred_check
      _
    $region127: #{forward.1} parent=1 // pred_check_branch
      %237 = sbr.rel (0) target = $region129
    $region128: #{forward.1} parent=1 // pred_region
      %238 = dma.done [#allocation16], 224
    $region129: #{forward.1} parent=1 // pred_fallthru
      _
    // Predicated region
    $region130: #{forward.1} parent=1 // pred_check
      _
    $region131: #{forward.1} parent=1 // pred_check_branch
      %240 = sbr.rel (0) target = $region133
    $region132: #{forward.1} parent=1 // pred_region
      %241 = dma.done [#allocation19], 2048
    $region133: #{forward.1} parent=1 // pred_fallthru
      _
    // Predicated region
    $region134: #{forward.1} parent=1 // pred_check
      _
    $region135: #{forward.1} parent=1 // pred_check_branch
      %243 = sbr.rel (0) target = $region137
    $region136: #{forward.1} parent=1 // pred_region
      %244 = dma.done [#allocation19], 32
    $region137: #{forward.1} parent=1 // pred_fallthru
      _
    // Predicated region
    $region138: #{forward.1} parent=1 // pred_check
      _
    $region139: #{forward.1} parent=1 // pred_check_branch
      %246 = sbr.rel (0) target = $region141
    $region140: #{forward.1} parent=1 // pred_region
      %247 = dma.done [#allocation22], 8192
    $region141: #{forward.1} parent=1 // pred_fallthru
      _
    // Predicated region
    $region142: #{forward.1} parent=1 // pred_check
      _
    $region143: #{forward.1} parent=1 // pred_check_branch
      %249 = sbr.rel (0) target = $region145
    $region144: #{forward.1} parent=1 // pred_region
      %250 = dma.done [#allocation22], 16
    $region145: #{forward.1} parent=1 // pred_fallthru
      _
    %251 = sfence
    %v253 = vld [vmem:[%s1] sm:$0xff]
    %v254 = vld [vmem:[%s5] sm:$0xff]
    %v255 = vld [vmem:[%s5 + $0x8] sm:$0xff]
    %v256 = vld [vmem:[%s5 + $0x10] sm:$0xff]
    %v257 = vld [vmem:[%s5 + $0x18] sm:$0xff]
    %v258 = vld [vmem:[%s5 + $0x20] sm:$0xff]
    %v259 = vld [vmem:[%s5 + $0x28] sm:$0xff]
    %v260 = vld [vmem:[%s5 + $0x30] sm:$0xff]
    %v261 = vld [vmem:[%s5 + $0x38] sm:$0xff]
    %v262 = vld [vmem:[%s5 + $0x40] sm:$0xff]
    %v263 = vld [vmem:[%s5 + $0x48] sm:$0xff]
    %v264 = vld [vmem:[%s5 + $0x50] sm:$0xff]
    %v265 = vld [vmem:[%s5 + $0x58] sm:$0xff]
    %v266 = vld [vmem:[%s5 + $0x60] sm:$0xff]
    %v267 = vld [vmem:[%s5 + $0x68] sm:$0xff]
    %v268 = vld [vmem:[%s5 + $0x70] sm:$0xff]
    %v269 = vld [vmem:[%s5 + $0x78] sm:$0xff]
    %v270 = vld [vmem:[%s5 + $0x80] sm:$0xff]
    %v271 = vld [vmem:[%s5 + $0x88] sm:$0xff]
    %v272 = vld [vmem:[%s5 + $0x90] sm:$0xff]
    %v273 = vld [vmem:[%s5 + $0x98] sm:$0xff]
    %v274 = vld [vmem:[%s5 + $0xa0] sm:$0xff]
    %v275 = vld [vmem:[%s5 + $0xa8] sm:$0xff]
    %v276 = vld [vmem:[%s5 + $0xb0] sm:$0xff]
    %v277 = vld [vmem:[%s5 + $0xb8] sm:$0xff]
    %v278 = vld [vmem:[%s5 + $0xc0] sm:$0xff]
    %v279 = vld [vmem:[%s5 + $0xc8] sm:$0xff]
    %v280 = vld [vmem:[%s5 + $0xd0] sm:$0xff]
    %v281 = vld [vmem:[%s5 + $0xd8] sm:$0xff]
    %v282 = vld [vmem:[%s5 + $0xe0] sm:$0xff]
    %v283 = vld [vmem:[%s5 + $0xe8] sm:$0xff]
    %v284 = vld [vmem:[%s5 + $0xf0] sm:$0xff]
    %v285 = vld [vmem:[%s5 + $0xf8] sm:$0xff]
    %v286 = vld [vmem:[%s5 + $0x100] sm:$0xff]
    %v287 = vld [vmem:[%s5 + $0x108] sm:$0xff]
    %v288 = vld [vmem:[%s5 + $0x110] sm:$0xff]
    %v289 = vld [vmem:[%s5 + $0x118] sm:$0xff]
    %v290 = vld [vmem:[%s5 + $0x120] sm:$0xff]
    %v291 = vld [vmem:[%s5 + $0x128] sm:$0xff]
    %v292 = vld [vmem:[%s5 + $0x130] sm:$0xff]
    %v293 = vld [vmem:[%s5 + $0x138] sm:$0xff]
    %v294 = vld [vmem:[%s5 + $0x140] sm:$0xff]
    %v295 = vld [vmem:[%s5 + $0x148] sm:$0xff]
    %v296 = vld [vmem:[%s5 + $0x150] sm:$0xff]
    %v297 = vld [vmem:[%s5 + $0x158] sm:$0xff]
    %v298 = vld [vmem:[%s5 + $0x160] sm:$0xff]
    %v299 = vld [vmem:[%s5 + $0x168] sm:$0xff]
    %v300 = vld [vmem:[%s5 + $0x170] sm:$0xff]
    %v301 = vld [vmem:[%s5 + $0x178] sm:$0xff]
    %v302 = vld [vmem:[%s5 + $0x180] sm:$0xff]
    %v303 = vld [vmem:[%s5 + $0x188] sm:$0xff]
    %v304 = vld [vmem:[%s5 + $0x190] sm:$0xff]
    %v305 = vld [vmem:[%s5 + $0x198] sm:$0xff]
    %v306 = vld [vmem:[%s5 + $0x1a0] sm:$0xff]
    %v307 = vld [vmem:[%s5 + $0x1a8] sm:$0xff]
    %v308 = vld [vmem:[%s5 + $0x1b0] sm:$0xff]
    %v309 = vld [vmem:[%s5 + $0x1b8] sm:$0xff]
    %v310 = vld [vmem:[%s5 + $0x1c0] sm:$0xff]
    %v311 = vld [vmem:[%s5 + $0x1c8] sm:$0xff]
    %v312 = vld [vmem:[%s5 + $0x1d0] sm:$0xff]
    %v313 = vld [vmem:[%s5 + $0x1d8] sm:$0xff]
    %v314 = vld [vmem:[%s5 + $0x1e0] sm:$0xff]
    %v315 = vld [vmem:[%s5 + $0x1e8] sm:$0xff]
    %v316 = vld [vmem:[%s5 + $0x1f0] sm:$0xff]
    %v317 = vld [vmem:[%s5 + $0x1f8] sm:$0xff]
    %v318 = vpack.c.bf16 %v253, %v253
    %v319 = vld [vmem:[%s6] sm:$0xff]
    %v320 = vld [vmem:[%s6 + $0x8] sm:$0xff]
    %v323 = vlaneseq
    %v324 = vshrl.u32 %v323, 7
    %v325 = vsub.s32 0, %v324
    %v326 = vrot.slane %v319, %v325
    %v327 = vlaneseq
    %v328 = vshrl.u32 %v327, 7
    %v329 = vsub.s32 1, %v328
    %v330 = vrot.slane %v319, %v329
    %v331 = vlaneseq
    %v332 = vshrl.u32 %v331, 7
    %v333 = vsub.s32 2, %v332
    %v334 = vrot.slane %v319, %v333
    %v335 = vlaneseq
    %v336 = vshrl.u32 %v335, 7
    %v337 = vsub.s32 3, %v336
    %v338 = vrot.slane %v319, %v337
    %v339 = vlaneseq
    %v340 = vshrl.u32 %v339, 7
    %v341 = vsub.s32 4, %v340
    %v342 = vrot.slane %v319, %v341
    %v343 = vlaneseq
    %v344 = vshrl.u32 %v343, 7
    %v345 = vsub.s32 5, %v344
    %v346 = vrot.slane %v319, %v345
    %v347 = vlaneseq
    %v348 = vshrl.u32 %v347, 7
    %v349 = vsub.s32 6, %v348
    %v350 = vrot.slane %v319, %v349
    %v351 = vlaneseq
    %v352 = vshrl.u32 %v351, 7
    %v353 = vsub.s32 7, %v352
    %v354 = vrot.slane %v319, %v353
    %v355 = vlaneseq
    %v356 = vshrl.u32 %v355, 7
    %v357 = vsub.s32 0, %v356
    %v358 = vrot.slane %v320, %v357
    %v359 = vlaneseq
    %v360 = vshrl.u32 %v359, 7
    %v361 = vsub.s32 1, %v360
    %v362 = vrot.slane %v320, %v361
    %v363 = vlaneseq
    %v364 = vshrl.u32 %v363, 7
    %v365 = vsub.s32 2, %v364
    %v366 = vrot.slane %v320, %v365
    %v367 = vlaneseq
    %v368 = vshrl.u32 %v367, 7
    %v369 = vsub.s32 3, %v368
    %v370 = vrot.slane %v320, %v369
    %v371 = vlaneseq
    %v372 = vshrl.u32 %v371, 7
    %v373 = vsub.s32 4, %v372
    %v374 = vrot.slane %v320, %v373
    %v375 = vlaneseq
    %v376 = vshrl.u32 %v375, 7
    %v377 = vsub.s32 5, %v376
    %v378 = vrot.slane %v320, %v377
    %v379 = vlaneseq
    %v380 = vshrl.u32 %v379, 7
    %v381 = vsub.s32 6, %v380
    %v382 = vrot.slane %v320, %v381
    %v383 = vlaneseq
    %v384 = vshrl.u32 %v383, 7
    %v385 = vsub.s32 7, %v384
    %v386 = vrot.slane %v320, %v385
    %v467 = vunpack.c.l.b16 %v254
    %v468 = vunpack.c.h.b16 %v254
    %v469 = vunpack.c.l.b16 %v255
    %v470 = vunpack.c.h.b16 %v255
    %v471 = vunpack.c.l.b16 %v256
    %v472 = vunpack.c.h.b16 %v256
    %v473 = vunpack.c.l.b16 %v257
    %v474 = vunpack.c.h.b16 %v257
    %v475 = vunpack.c.l.b16 %v258
    %v476 = vunpack.c.h.b16 %v258
    %v477 = vunpack.c.l.b16 %v259
    %v478 = vunpack.c.h.b16 %v259
    %v479 = vunpack.c.l.b16 %v260
    %v480 = vunpack.c.h.b16 %v260
    %v481 = vunpack.c.l.b16 %v261
    %v482 = vunpack.c.h.b16 %v261
    %v483 = vunpack.c.l.b16 %v262
    %v484 = vunpack.c.h.b16 %v262
    %v485 = vunpack.c.l.b16 %v263
    %v486 = vunpack.c.h.b16 %v263
    %v487 = vunpack.c.l.b16 %v264
    %v488 = vunpack.c.h.b16 %v264
    %v489 = vunpack.c.l.b16 %v265
    %v490 = vunpack.c.h.b16 %v265
    %v491 = vunpack.c.l.b16 %v266
    %v492 = vunpack.c.h.b16 %v266
    %v493 = vunpack.c.l.b16 %v267
    %v494 = vunpack.c.h.b16 %v267
    %v495 = vunpack.c.l.b16 %v268
    %v496 = vunpack.c.h.b16 %v268
    %v497 = vunpack.c.l.b16 %v269
    %v498 = vunpack.c.h.b16 %v269
    %v499 = vunpack.c.l.b16 %v270
    %v500 = vunpack.c.h.b16 %v270
    %v501 = vunpack.c.l.b16 %v271
    %v502 = vunpack.c.h.b16 %v271
    %v503 = vunpack.c.l.b16 %v272
    %v504 = vunpack.c.h.b16 %v272
    %v505 = vunpack.c.l.b16 %v273
    %v506 = vunpack.c.h.b16 %v273
    %v507 = vunpack.c.l.b16 %v274
    %v508 = vunpack.c.h.b16 %v274
    %v509 = vunpack.c.l.b16 %v275
    %v510 = vunpack.c.h.b16 %v275
    %v511 = vunpack.c.l.b16 %v276
    %v512 = vunpack.c.h.b16 %v276
    %v513 = vunpack.c.l.b16 %v277
    %v514 = vunpack.c.h.b16 %v277
    %v515 = vunpack.c.l.b16 %v278
    %v516 = vunpack.c.h.b16 %v278
    %v517 = vunpack.c.l.b16 %v279
    %v518 = vunpack.c.h.b16 %v279
    %v519 = vunpack.c.l.b16 %v280
    %v520 = vunpack.c.h.b16 %v280
    %v521 = vunpack.c.l.b16 %v281
    %v522 = vunpack.c.h.b16 %v281
    %v523 = vunpack.c.l.b16 %v282
    %v524 = vunpack.c.h.b16 %v282
    %v525 = vunpack.c.l.b16 %v283
    %v526 = vunpack.c.h.b16 %v283
    %v527 = vunpack.c.l.b16 %v284
    %v528 = vunpack.c.h.b16 %v284
    %v529 = vunpack.c.l.b16 %v285
    %v530 = vunpack.c.h.b16 %v285
    %v531 = vunpack.c.l.b16 %v286
    %v532 = vunpack.c.h.b16 %v286
    %v533 = vunpack.c.l.b16 %v287
    %v534 = vunpack.c.h.b16 %v287
    %v535 = vunpack.c.l.b16 %v288
    %v536 = vunpack.c.h.b16 %v288
    %v537 = vunpack.c.l.b16 %v289
    %v538 = vunpack.c.h.b16 %v289
    %v539 = vunpack.c.l.b16 %v290
    %v540 = vunpack.c.h.b16 %v290
    %v541 = vunpack.c.l.b16 %v291
    %v542 = vunpack.c.h.b16 %v291
    %v543 = vunpack.c.l.b16 %v292
    %v544 = vunpack.c.h.b16 %v292
    %v545 = vunpack.c.l.b16 %v293
    %v546 = vunpack.c.h.b16 %v293
    %v547 = vunpack.c.l.b16 %v294
    %v548 = vunpack.c.h.b16 %v294
    %v549 = vunpack.c.l.b16 %v295
    %v550 = vunpack.c.h.b16 %v295
    %v551 = vunpack.c.l.b16 %v296
    %v552 = vunpack.c.h.b16 %v296
    %v553 = vunpack.c.l.b16 %v297
    %v554 = vunpack.c.h.b16 %v297
    %v555 = vunpack.c.l.b16 %v298
    %v556 = vunpack.c.h.b16 %v298
    %v557 = vunpack.c.l.b16 %v299
    %v558 = vunpack.c.h.b16 %v299
    %v559 = vunpack.c.l.b16 %v300
    %v560 = vunpack.c.h.b16 %v300
    %v561 = vunpack.c.l.b16 %v301
    %v562 = vunpack.c.h.b16 %v301
    %v563 = vunpack.c.l.b16 %v302
    %v564 = vunpack.c.h.b16 %v302
    %v565 = vunpack.c.l.b16 %v303
    %v566 = vunpack.c.h.b16 %v303
    %v567 = vunpack.c.l.b16 %v304
    %v568 = vunpack.c.h.b16 %v304
    %v569 = vunpack.c.l.b16 %v305
    %v570 = vunpack.c.h.b16 %v305
    %v571 = vunpack.c.l.b16 %v306
    %v572 = vunpack.c.h.b16 %v306
    %v573 = vunpack.c.l.b16 %v307
    %v574 = vunpack.c.h.b16 %v307
    %v575 = vunpack.c.l.b16 %v308
    %v576 = vunpack.c.h.b16 %v308
    %v577 = vunpack.c.l.b16 %v309
    %v578 = vunpack.c.h.b16 %v309
    %v579 = vunpack.c.l.b16 %v310
    %v580 = vunpack.c.h.b16 %v310
    %v581 = vunpack.c.l.b16 %v311
    %v582 = vunpack.c.h.b16 %v311
    %v583 = vunpack.c.l.b16 %v312
    %v584 = vunpack.c.h.b16 %v312
    %v585 = vunpack.c.l.b16 %v313
    %v586 = vunpack.c.h.b16 %v313
    %v587 = vunpack.c.l.b16 %v314
    %v588 = vunpack.c.h.b16 %v314
    %v589 = vunpack.c.l.b16 %v315
    %v590 = vunpack.c.h.b16 %v315
    %v591 = vunpack.c.l.b16 %v316
    %v592 = vunpack.c.h.b16 %v316
    %v593 = vunpack.c.l.b16 %v317
    %v594 = vunpack.c.h.b16 %v317
    %v595 = vpack.c.b16 %v483, %v467
    %v596 = vpack.c.b16 %v484, %v468
    %v597 = vpack.c.b16 %v485, %v469
    %v598 = vpack.c.b16 %v486, %v470
    %v599 = vpack.c.b16 %v487, %v471
    %v600 = vpack.c.b16 %v488, %v472
    %v601 = vpack.c.b16 %v489, %v473
    %v602 = vpack.c.b16 %v490, %v474
    %v603 = vpack.c.b16 %v491, %v475
    %v604 = vpack.c.b16 %v492, %v476
    %v605 = vpack.c.b16 %v493, %v477
    %v606 = vpack.c.b16 %v494, %v478
    %v607 = vpack.c.b16 %v495, %v479
    %v608 = vpack.c.b16 %v496, %v480
    %v609 = vpack.c.b16 %v497, %v481
    %v610 = vpack.c.b16 %v498, %v482
    %v611 = vpack.c.b16 %v515, %v499
    %v612 = vpack.c.b16 %v516, %v500
    %v613 = vpack.c.b16 %v517, %v501
    %v614 = vpack.c.b16 %v518, %v502
    %v615 = vpack.c.b16 %v519, %v503
    %v616 = vpack.c.b16 %v520, %v504
    %v617 = vpack.c.b16 %v521, %v505
    %v618 = vpack.c.b16 %v522, %v506
    %v619 = vpack.c.b16 %v523, %v507
    %v620 = vpack.c.b16 %v524, %v508
    %v621 = vpack.c.b16 %v525, %v509
    %v622 = vpack.c.b16 %v526, %v510
    %v623 = vpack.c.b16 %v527, %v511
    %v624 = vpack.c.b16 %v528, %v512
    %v625 = vpack.c.b16 %v529, %v513
    %v626 = vpack.c.b16 %v530, %v514
    %v627 = vpack.c.b16 %v547, %v531
    %v628 = vpack.c.b16 %v548, %v532
    %v629 = vpack.c.b16 %v549, %v533
    %v630 = vpack.c.b16 %v550, %v534
    %v631 = vpack.c.b16 %v551, %v535
    %v632 = vpack.c.b16 %v552, %v536
    %v633 = vpack.c.b16 %v553, %v537
    %v634 = vpack.c.b16 %v554, %v538
    %v635 = vpack.c.b16 %v555, %v539
    %v636 = vpack.c.b16 %v556, %v540
    %v637 = vpack.c.b16 %v557, %v541
    %v638 = vpack.c.b16 %v558, %v542
    %v639 = vpack.c.b16 %v559, %v543
    %v640 = vpack.c.b16 %v560, %v544
    %v641 = vpack.c.b16 %v561, %v545
    %v642 = vpack.c.b16 %v562, %v546
    %v643 = vpack.c.b16 %v579, %v563
    %v644 = vpack.c.b16 %v580, %v564
    %v645 = vpack.c.b16 %v581, %v565
    %v646 = vpack.c.b16 %v582, %v566
    %v647 = vpack.c.b16 %v583, %v567
    %v648 = vpack.c.b16 %v584, %v568
    %v649 = vpack.c.b16 %v585, %v569
    %v650 = vpack.c.b16 %v586, %v570
    %v651 = vpack.c.b16 %v587, %v571
    %v652 = vpack.c.b16 %v588, %v572
    %v653 = vpack.c.b16 %v589, %v573
    %v654 = vpack.c.b16 %v590, %v574
    %v655 = vpack.c.b16 %v591, %v575
    %v656 = vpack.c.b16 %v592, %v576
    %v657 = vpack.c.b16 %v593, %v577
    %v658 = vpack.c.b16 %v594, %v578
    %vm723 = vcmask 523264
    %v725 = vsel %vm723, %v318, 0
    %727 = vmatprep.subr.bf16.mxu0 %v596
    %728 = vmatpush1.bf16.msra.mxu0 %v595
    %729 = vmatprep.subr.bf16.mxu0 %v612
    %730 = vmatpush1.bf16.msra.mxu0 %v611
    %731 = vmatprep.subr.bf16.mxu0 %v628
    %732 = vmatpush1.bf16.msra.mxu0 %v627
    %733 = vmatprep.subr.bf16.mxu0 %v644
    %734 = vmatpush1.bf16.msra.mxu0 %v643
    %735 = vmatprep.subr.bf16.mxu0 0
    %736 = vmatpush1.bf16.msra.mxu0 0
    %737 = vmatprep.subr.bf16.mxu0 0
    %738 = vmatpush1.bf16.msra.mxu0 0
    %739 = vmatprep.subr.bf16.mxu0 0
    %740 = vmatpush1.bf16.msra.mxu0 0
    %741 = vmatprep.subr.bf16.mxu0 0
    %742 = vmatpush1.bf16.msra.mxu0 0
    %743 = vmatprep.subr.bf16.mxu0 0
    %744 = vmatpush1.bf16.msra.mxu0 0
    %745 = vmatprep.subr.bf16.mxu0 0
    %746 = vmatpush1.bf16.msra.mxu0 0
    %747 = vmatprep.subr.bf16.mxu0 0
    %748 = vmatpush1.bf16.msra.mxu0 0
    %749 = vmatprep.subr.bf16.mxu0 0
    %750 = vmatpush1.bf16.msra.mxu0 0
    %751 = vmatprep.subr.bf16.mxu0 0
    %752 = vmatpush1.bf16.msra.mxu0 0
    %753 = vmatprep.subr.bf16.mxu0 0
    %754 = vmatpush1.bf16.msra.mxu0 0
    %755 = vmatprep.subr.bf16.mxu0 0
    %756 = vmatpush1.bf16.msra.mxu0 0
    %757 = vmatprep.subr.bf16.mxu0 0
    %758 = vmatpush1.bf16.msra.mxu0 0
    %759 = vmatprep.mubr.bf16.mxu0 0
    %760 = vmatmul.mubr.bf16.gmra.mrb[0].mxu0 %v725
    %v761 = vpop.f32.mrb[0].mxu0
    %v762 = vadd.f32 %v326, %v761
    %v763 = vpop.f32.mrb[0].mxu0
    %v764 = vadd.f32 %v330, %v763
    %v765 = vpop.f32.mrb[0].mxu0
    %v766 = vpop.f32.mrb[0].mxu0
    %767 = vdwg.mxu0
    %768 = vmatprep.subr.bf16.mxu0 %v598
    %769 = vmatpush1.bf16.msra.mxu0 %v597
    %770 = vmatprep.subr.bf16.mxu0 %v614
    %771 = vmatpush1.bf16.msra.mxu0 %v613
    %772 = vmatprep.subr.bf16.mxu0 %v630
    %773 = vmatpush1.bf16.msra.mxu0 %v629
    %774 = vmatprep.subr.bf16.mxu0 %v646
    %775 = vmatpush1.bf16.msra.mxu0 %v645
    %776 = vmatprep.subr.bf16.mxu0 0
    %777 = vmatpush1.bf16.msra.mxu0 0
    %778 = vmatprep.subr.bf16.mxu0 0
    %779 = vmatpush1.bf16.msra.mxu0 0
    %780 = vmatprep.subr.bf16.mxu0 0
    %781 = vmatpush1.bf16.msra.mxu0 0
    %782 = vmatprep.subr.bf16.mxu0 0
    %783 = vmatpush1.bf16.msra.mxu0 0
    %784 = vmatprep.subr.bf16.mxu0 0
    %785 = vmatpush1.bf16.msra.mxu0 0
    %786 = vmatprep.subr.bf16.mxu0 0
    %787 = vmatpush1.bf16.msra.mxu0 0
    %788 = vmatprep.subr.bf16.mxu0 0
    %789 = vmatpush1.bf16.msra.mxu0 0
    %790 = vmatprep.subr.bf16.mxu0 0
    %791 = vmatpush1.bf16.msra.mxu0 0
    %792 = vmatprep.subr.bf16.mxu0 0
    %793 = vmatpush1.bf16.msra.mxu0 0
    %794 = vmatprep.subr.bf16.mxu0 0
    %795 = vmatpush1.bf16.msra.mxu0 0
    %796 = vmatprep.subr.bf16.mxu0 0
    %797 = vmatpush1.bf16.msra.mxu0 0
    %798 = vmatprep.subr.bf16.mxu0 0
    %799 = vmatpush1.bf16.msra.mxu0 0
    %800 = vmatprep.mubr.bf16.mxu0 0
    %801 = vmatmul.mubr.bf16.gmra.mrb[0].mxu0 %v725
    %v802 = vpop.f32.mrb[0].mxu0
    %v803 = vadd.f32 %v334, %v802
    %v804 = vpop.f32.mrb[0].mxu0
    %v805 = vadd.f32 %v338, %v804
    %v806 = vpop.f32.mrb[0].mxu0
    %v807 = vpop.f32.mrb[0].mxu0
    %808 = vdwg.mxu0
    %809 = vmatprep.subr.bf16.mxu0 %v600
    %810 = vmatpush1.bf16.msra.mxu0 %v599
    %811 = vmatprep.subr.bf16.mxu0 %v616
    %812 = vmatpush1.bf16.msra.mxu0 %v615
    %813 = vmatprep.subr.bf16.mxu0 %v632
    %814 = vmatpush1.bf16.msra.mxu0 %v631
    %815 = vmatprep.subr.bf16.mxu0 %v648
    %816 = vmatpush1.bf16.msra.mxu0 %v647
    %817 = vmatprep.subr.bf16.mxu0 0
    %818 = vmatpush1.bf16.msra.mxu0 0
    %819 = vmatprep.subr.bf16.mxu0 0
    %820 = vmatpush1.bf16.msra.mxu0 0
    %821 = vmatprep.subr.bf16.mxu0 0
    %822 = vmatpush1.bf16.msra.mxu0 0
    %823 = vmatprep.subr.bf16.mxu0 0
    %824 = vmatpush1.bf16.msra.mxu0 0
    %825 = vmatprep.subr.bf16.mxu0 0
    %826 = vmatpush1.bf16.msra.mxu0 0
    %827 = vmatprep.subr.bf16.mxu0 0
    %828 = vmatpush1.bf16.msra.mxu0 0
    %829 = vmatprep.subr.bf16.mxu0 0
    %830 = vmatpush1.bf16.msra.mxu0 0
    %831 = vmatprep.subr.bf16.mxu0 0
    %832 = vmatpush1.bf16.msra.mxu0 0
    %833 = vmatprep.subr.bf16.mxu0 0
    %834 = vmatpush1.bf16.msra.mxu0 0
    %835 = vmatprep.subr.bf16.mxu0 0
    %836 = vmatpush1.bf16.msra.mxu0 0
    %837 = vmatprep.subr.bf16.mxu0 0
    %838 = vmatpush1.bf16.msra.mxu0 0
    %839 = vmatprep.subr.bf16.mxu0 0
    %840 = vmatpush1.bf16.msra.mxu0 0
    %841 = vmatprep.mubr.bf16.mxu0 0
    %842 = vmatmul.mubr.bf16.gmra.mrb[0].mxu0 %v725
    %v843 = vpop.f32.mrb[0].mxu0
    %v844 = vadd.f32 %v342, %v843
    %v845 = vpop.f32.mrb[0].mxu0
    %v846 = vadd.f32 %v346, %v845
    %v847 = vpop.f32.mrb[0].mxu0
    %v848 = vpop.f32.mrb[0].mxu0
    %849 = vdwg.mxu0
    %850 = vmatprep.subr.bf16.mxu0 %v602
    %851 = vmatpush1.bf16.msra.mxu0 %v601
    %852 = vmatprep.subr.bf16.mxu0 %v618
    %853 = vmatpush1.bf16.msra.mxu0 %v617
    %854 = vmatprep.subr.bf16.mxu0 %v634
    %855 = vmatpush1.bf16.msra.mxu0 %v633
    %856 = vmatprep.subr.bf16.mxu0 %v650
    %857 = vmatpush1.bf16.msra.mxu0 %v649
    %858 = vmatprep.subr.bf16.mxu0 0
    %859 = vmatpush1.bf16.msra.mxu0 0
    %860 = vmatprep.subr.bf16.mxu0 0
    %861 = vmatpush1.bf16.msra.mxu0 0
    %862 = vmatprep.subr.bf16.mxu0 0
    %863 = vmatpush1.bf16.msra.mxu0 0
    %864 = vmatprep.subr.bf16.mxu0 0
    %865 = vmatpush1.bf16.msra.mxu0 0
    %866 = vmatprep.subr.bf16.mxu0 0
    %867 = vmatpush1.bf16.msra.mxu0 0
    %868 = vmatprep.subr.bf16.mxu0 0
    %869 = vmatpush1.bf16.msra.mxu0 0
    %870 = vmatprep.subr.bf16.mxu0 0
    %871 = vmatpush1.bf16.msra.mxu0 0
    %872 = vmatprep.subr.bf16.mxu0 0
    %873 = vmatpush1.bf16.msra.mxu0 0
    %874 = vmatprep.subr.bf16.mxu0 0
    %875 = vmatpush1.bf16.msra.mxu0 0
    %876 = vmatprep.subr.bf16.mxu0 0
    %877 = vmatpush1.bf16.msra.mxu0 0
    %878 = vmatprep.subr.bf16.mxu0 0
    %879 = vmatpush1.bf16.msra.mxu0 0
    %880 = vmatprep.subr.bf16.mxu0 0
    %881 = vmatpush1.bf16.msra.mxu0 0
    %882 = vmatprep.mubr.bf16.mxu0 0
    %883 = vmatmul.mubr.bf16.gmra.mrb[0].mxu0 %v725
    %v884 = vpop.f32.mrb[0].mxu0
    %v885 = vadd.f32 %v350, %v884
    %v886 = vpop.f32.mrb[0].mxu0
    %v887 = vadd.f32 %v354, %v886
    %v888 = vpop.f32.mrb[0].mxu0
    %v889 = vpop.f32.mrb[0].mxu0
    %890 = vdwg.mxu0
    %891 = vmatprep.subr.bf16.mxu0 %v604
    %892 = vmatpush1.bf16.msra.mxu0 %v603
    %893 = vmatprep.subr.bf16.mxu0 %v620
    %894 = vmatpush1.bf16.msra.mxu0 %v619
    %895 = vmatprep.subr.bf16.mxu0 %v636
    %896 = vmatpush1.bf16.msra.mxu0 %v635
    %897 = vmatprep.subr.bf16.mxu0 %v652
    %898 = vmatpush1.bf16.msra.mxu0 %v651
    %899 = vmatprep.subr.bf16.mxu0 0
    %900 = vmatpush1.bf16.msra.mxu0 0
    %901 = vmatprep.subr.bf16.mxu0 0
    %902 = vmatpush1.bf16.msra.mxu0 0
    %903 = vmatprep.subr.bf16.mxu0 0
    %904 = vmatpush1.bf16.msra.mxu0 0
    %905 = vmatprep.subr.bf16.mxu0 0
    %906 = vmatpush1.bf16.msra.mxu0 0
    %907 = vmatprep.subr.bf16.mxu0 0
    %908 = vmatpush1.bf16.msra.mxu0 0
    %909 = vmatprep.subr.bf16.mxu0 0
    %910 = vmatpush1.bf16.msra.mxu0 0
    %911 = vmatprep.subr.bf16.mxu0 0
    %912 = vmatpush1.bf16.msra.mxu0 0
    %913 = vmatprep.subr.bf16.mxu0 0
    %914 = vmatpush1.bf16.msra.mxu0 0
    %915 = vmatprep.subr.bf16.mxu0 0
    %916 = vmatpush1.bf16.msra.mxu0 0
    %917 = vmatprep.subr.bf16.mxu0 0
    %918 = vmatpush1.bf16.msra.mxu0 0
    %919 = vmatprep.subr.bf16.mxu0 0
    %920 = vmatpush1.bf16.msra.mxu0 0
    %921 = vmatprep.subr.bf16.mxu0 0
    %922 = vmatpush1.bf16.msra.mxu0 0
    %923 = vmatprep.mubr.bf16.mxu0 0
    %924 = vmatmul.mubr.bf16.gmra.mrb[0].mxu0 %v725
    %v925 = vpop.f32.mrb[0].mxu0
    %v926 = vadd.f32 %v358, %v925
    %v927 = vpop.f32.mrb[0].mxu0
    %v928 = vadd.f32 %v362, %v927
    %v929 = vpop.f32.mrb[0].mxu0
    %v930 = vpop.f32.mrb[0].mxu0
    %931 = vdwg.mxu0
    %932 = vmatprep.subr.bf16.mxu0 %v606
    %933 = vmatpush1.bf16.msra.mxu0 %v605
    %934 = vmatprep.subr.bf16.mxu0 %v622
    %935 = vmatpush1.bf16.msra.mxu0 %v621
    %936 = vmatprep.subr.bf16.mxu0 %v638
    %937 = vmatpush1.bf16.msra.mxu0 %v637
    %938 = vmatprep.subr.bf16.mxu0 %v654
    %939 = vmatpush1.bf16.msra.mxu0 %v653
    %940 = vmatprep.subr.bf16.mxu0 0
    %941 = vmatpush1.bf16.msra.mxu0 0
    %942 = vmatprep.subr.bf16.mxu0 0
    %943 = vmatpush1.bf16.msra.mxu0 0
    %944 = vmatprep.subr.bf16.mxu0 0
    %945 = vmatpush1.bf16.msra.mxu0 0
    %946 = vmatprep.subr.bf16.mxu0 0
    %947 = vmatpush1.bf16.msra.mxu0 0
    %948 = vmatprep.subr.bf16.mxu0 0
    %949 = vmatpush1.bf16.msra.mxu0 0
    %950 = vmatprep.subr.bf16.mxu0 0
    %951 = vmatpush1.bf16.msra.mxu0 0
    %952 = vmatprep.subr.bf16.mxu0 0
    %953 = vmatpush1.bf16.msra.mxu0 0
    %954 = vmatprep.subr.bf16.mxu0 0
    %955 = vmatpush1.bf16.msra.mxu0 0
    %956 = vmatprep.subr.bf16.mxu0 0
    %957 = vmatpush1.bf16.msra.mxu0 0
    %958 = vmatprep.subr.bf16.mxu0 0
    %959 = vmatpush1.bf16.msra.mxu0 0
    %960 = vmatprep.subr.bf16.mxu0 0
    %961 = vmatpush1.bf16.msra.mxu0 0
    %962 = vmatprep.subr.bf16.mxu0 0
    %963 = vmatpush1.bf16.msra.mxu0 0
    %964 = vmatprep.mubr.bf16.mxu0 0
    %965 = vmatmul.mubr.bf16.gmra.mrb[0].mxu0 %v725
    %v966 = vpop.f32.mrb[0].mxu0
    %v967 = vadd.f32 %v366, %v966
    %v968 = vpop.f32.mrb[0].mxu0
    %v969 = vadd.f32 %v370, %v968
    %v970 = vpop.f32.mrb[0].mxu0
    %v971 = vpop.f32.mrb[0].mxu0
    %972 = vdwg.mxu0
    %973 = vmatprep.subr.bf16.mxu0 %v608
    %974 = vmatpush1.bf16.msra.mxu0 %v607
    %975 = vmatprep.subr.bf16.mxu0 %v624
    %976 = vmatpush1.bf16.msra.mxu0 %v623
    %977 = vmatprep.subr.bf16.mxu0 %v640
    %978 = vmatpush1.bf16.msra.mxu0 %v639
    %979 = vmatprep.subr.bf16.mxu0 %v656
    %980 = vmatpush1.bf16.msra.mxu0 %v655
    %981 = vmatprep.subr.bf16.mxu0 0
    %982 = vmatpush1.bf16.msra.mxu0 0
    %983 = vmatprep.subr.bf16.mxu0 0
    %984 = vmatpush1.bf16.msra.mxu0 0
    %985 = vmatprep.subr.bf16.mxu0 0
    %986 = vmatpush1.bf16.msra.mxu0 0
    %987 = vmatprep.subr.bf16.mxu0 0
    %988 = vmatpush1.bf16.msra.mxu0 0
    %989 = vmatprep.subr.bf16.mxu0 0
    %990 = vmatpush1.bf16.msra.mxu0 0
    %991 = vmatprep.subr.bf16.mxu0 0
    %992 = vmatpush1.bf16.msra.mxu0 0
    %993 = vmatprep.subr.bf16.mxu0 0
    %994 = vmatpush1.bf16.msra.mxu0 0
    %995 = vmatprep.subr.bf16.mxu0 0
    %996 = vmatpush1.bf16.msra.mxu0 0
    %997 = vmatprep.subr.bf16.mxu0 0
    %998 = vmatpush1.bf16.msra.mxu0 0
    %999 = vmatprep.subr.bf16.mxu0 0
    %1000 = vmatpush1.bf16.msra.mxu0 0
    %1001 = vmatprep.subr.bf16.mxu0 0
    %1002 = vmatpush1.bf16.msra.mxu0 0
    %1003 = vmatprep.subr.bf16.mxu0 0
    %1004 = vmatpush1.bf16.msra.mxu0 0
    %1005 = vmatprep.mubr.bf16.mxu0 0
    %1006 = vmatmul.mubr.bf16.gmra.mrb[0].mxu0 %v725
    %v1007 = vpop.f32.mrb[0].mxu0
    %v1008 = vadd.f32 %v374, %v1007
    %v1009 = vpop.f32.mrb[0].mxu0
    %v1010 = vadd.f32 %v378, %v1009
    %v1011 = vpop.f32.mrb[0].mxu0
    %v1012 = vpop.f32.mrb[0].mxu0
    %1013 = vdwg.mxu0
    %1014 = vmatprep.subr.bf16.mxu0 %v610
    %1015 = vmatpush1.bf16.msra.mxu0 %v609
    %1016 = vmatprep.subr.bf16.mxu0 %v626
    %1017 = vmatpush1.bf16.msra.mxu0 %v625
    %1018 = vmatprep.subr.bf16.mxu0 %v642
    %1019 = vmatpush1.bf16.msra.mxu0 %v641
    %1020 = vmatprep.subr.bf16.mxu0 %v658
    %1021 = vmatpush1.bf16.msra.mxu0 %v657
    %1022 = vmatprep.subr.bf16.mxu0 0
    %1023 = vmatpush1.bf16.msra.mxu0 0
    %1024 = vmatprep.subr.bf16.mxu0 0
    %1025 = vmatpush1.bf16.msra.mxu0 0
    %1026 = vmatprep.subr.bf16.mxu0 0
    %1027 = vmatpush1.bf16.msra.mxu0 0
    %1028 = vmatprep.subr.bf16.mxu0 0
    %1029 = vmatpush1.bf16.msra.mxu0 0
    %1030 = vmatprep.subr.bf16.mxu0 0
    %1031 = vmatpush1.bf16.msra.mxu0 0
    %1032 = vmatprep.subr.bf16.mxu0 0
    %1033 = vmatpush1.bf16.msra.mxu0 0
    %1034 = vmatprep.subr.bf16.mxu0 0
    %1035 = vmatpush1.bf16.msra.mxu0 0
    %1036 = vmatprep.subr.bf16.mxu0 0
    %1037 = vmatpush1.bf16.msra.mxu0 0
    %1038 = vmatprep.subr.bf16.mxu0 0
    %1039 = vmatpush1.bf16.msra.mxu0 0
    %1040 = vmatprep.subr.bf16.mxu0 0
    %1041 = vmatpush1.bf16.msra.mxu0 0
    %1042 = vmatprep.subr.bf16.mxu0 0
    %1043 = vmatpush1.bf16.msra.mxu0 0
    %1044 = vmatprep.subr.bf16.mxu0 0
    %1045 = vmatpush1.bf16.msra.mxu0 0
    %1046 = vmatprep.mubr.bf16.mxu0 0
    %1047 = vmatmul.mubr.bf16.gmra.mrb[0].mxu0 %v725
    %v1048 = vpop.f32.mrb[0].mxu0
    %v1049 = vadd.f32 %v382, %v1048
    %v1050 = vpop.f32.mrb[0].mxu0
    %v1051 = vadd.f32 %v386, %v1050
    %v1052 = vpop.f32.mrb[0].mxu0
    %v1053 = vpop.f32.mrb[0].mxu0
    %1054 = vdwg.mxu0
    %v1055 = vld [vmem:[%s2] sm:$0xff]
    %v1056 = vld [vmem:[#allocation6] sm:$0xff]
    %v1057 = vld [vmem:[#allocation6 + $0x8] sm:$0xff]
    %v1058 = vld [vmem:[#allocation6 + $0x10] sm:$0xff]
    %v1059 = vld [vmem:[#allocation6 + $0x18] sm:$0xff]
    %v1060 = vld [vmem:[#allocation6 + $0x20] sm:$0xff]
    %v1061 = vld [vmem:[#allocation6 + $0x28] sm:$0xff]
    %v1062 = vld [vmem:[#allocation6 + $0x30] sm:$0xff]
    %v1063 = vld [vmem:[#allocation6 + $0x38] sm:$0xff]
    %v1064 = vld [vmem:[#allocation6 + $0x40] sm:$0xff]
    %v1065 = vld [vmem:[#allocation6 + $0x48] sm:$0xff]
    %v1066 = vld [vmem:[#allocation6 + $0x50] sm:$0xff]
    %v1067 = vld [vmem:[#allocation6 + $0x58] sm:$0xff]
    %v1068 = vld [vmem:[#allocation6 + $0x60] sm:$0xff]
    %v1069 = vld [vmem:[#allocation6 + $0x68] sm:$0xff]
    %v1070 = vld [vmem:[#allocation6 + $0x70] sm:$0xff]
    %v1071 = vld [vmem:[#allocation6 + $0x78] sm:$0xff]
    %v1072 = vld [vmem:[#allocation6 + $0x80] sm:$0xff]
    %v1073 = vld [vmem:[#allocation6 + $0x88] sm:$0xff]
    %v1074 = vld [vmem:[#allocation6 + $0x90] sm:$0xff]
    %v1075 = vld [vmem:[#allocation6 + $0x98] sm:$0xff]
    %v1076 = vld [vmem:[#allocation6 + $0xa0] sm:$0xff]
    %v1077 = vld [vmem:[#allocation6 + $0xa8] sm:$0xff]
    %v1078 = vld [vmem:[#allocation6 + $0xb0] sm:$0xff]
    %v1079 = vld [vmem:[#allocation6 + $0xb8] sm:$0xff]
    %v1080 = vld [vmem:[#allocation6 + $0xc0] sm:$0xff]
    %v1081 = vld [vmem:[#allocation6 + $0xc8] sm:$0xff]
    %v1082 = vld [vmem:[#allocation6 + $0xd0] sm:$0xff]
    %v1083 = vld [vmem:[#allocation6 + $0xd8] sm:$0xff]
    %v1084 = vld [vmem:[#allocation6 + $0xe0] sm:$0xff]
    %v1085 = vld [vmem:[#allocation6 + $0xe8] sm:$0xff]
    %v1086 = vld [vmem:[#allocation6 + $0xf0] sm:$0xff]
    %v1087 = vld [vmem:[#allocation6 + $0xf8] sm:$0xff]
    %v1088 = vld [vmem:[#allocation6 + $0x100] sm:$0xff]
    %v1089 = vld [vmem:[#allocation6 + $0x108] sm:$0xff]
    %v1090 = vld [vmem:[#allocation6 + $0x110] sm:$0xff]
    %v1091 = vld [vmem:[#allocation6 + $0x118] sm:$0xff]
    %v1092 = vld [vmem:[#allocation6 + $0x120] sm:$0xff]
    %v1093 = vld [vmem:[#allocation6 + $0x128] sm:$0xff]
    %v1094 = vld [vmem:[#allocation6 + $0x130] sm:$0xff]
    %v1095 = vld [vmem:[#allocation6 + $0x138] sm:$0xff]
    %v1096 = vld [vmem:[#allocation6 + $0x140] sm:$0xff]
    %v1097 = vld [vmem:[#allocation6 + $0x148] sm:$0xff]
    %v1098 = vld [vmem:[#allocation6 + $0x150] sm:$0xff]
    %v1099 = vld [vmem:[#allocation6 + $0x158] sm:$0xff]
    %v1100 = vld [vmem:[#allocation6 + $0x160] sm:$0xff]
    %v1101 = vld [vmem:[#allocation6 + $0x168] sm:$0xff]
    %v1102 = vld [vmem:[#allocation6 + $0x170] sm:$0xff]
    %v1103 = vld [vmem:[#allocation6 + $0x178] sm:$0xff]
    %v1104 = vld [vmem:[#allocation6 + $0x180] sm:$0xff]
    %v1105 = vld [vmem:[#allocation6 + $0x188] sm:$0xff]
    %v1106 = vld [vmem:[#allocation6 + $0x190] sm:$0xff]
    %v1107 = vld [vmem:[#allocation6 + $0x198] sm:$0xff]
    %v1108 = vld [vmem:[#allocation6 + $0x1a0] sm:$0xff]
    %v1109 = vld [vmem:[#allocation6 + $0x1a8] sm:$0xff]
    %v1110 = vld [vmem:[#allocation6 + $0x1b0] sm:$0xff]
    %v1111 = vld [vmem:[#allocation6 + $0x1b8] sm:$0xff]
    %v1112 = vld [vmem:[#allocation6 + $0x1c0] sm:$0xff]
    %v1113 = vld [vmem:[#allocation6 + $0x1c8] sm:$0xff]
    %v1114 = vld [vmem:[#allocation6 + $0x1d0] sm:$0xff]
    %v1115 = vld [vmem:[#allocation6 + $0x1d8] sm:$0xff]
    %v1116 = vld [vmem:[#allocation6 + $0x1e0] sm:$0xff]
    %v1117 = vld [vmem:[#allocation6 + $0x1e8] sm:$0xff]
    %v1118 = vld [vmem:[#allocation6 + $0x1f0] sm:$0xff]
    %v1119 = vld [vmem:[#allocation6 + $0x1f8] sm:$0xff]
    %v1120 = vpack.c.bf16 %v1055, %v1055
    %v1121 = vld [vmem:[%s8] sm:$0xff]
    %v1122 = vld [vmem:[%s8 + $0x8] sm:$0xff]
    %v1125 = vlaneseq
    %v1126 = vshrl.u32 %v1125, 7
    %v1127 = vsub.s32 0, %v1126
    %v1128 = vrot.slane %v1121, %v1127
    %v1129 = vlaneseq
    %v1130 = vshrl.u32 %v1129, 7
    %v1131 = vsub.s32 1, %v1130
    %v1132 = vrot.slane %v1121, %v1131
    %v1133 = vlaneseq
    %v1134 = vshrl.u32 %v1133, 7
    %v1135 = vsub.s32 2, %v1134
    %v1136 = vrot.slane %v1121, %v1135
    %v1137 = vlaneseq
    %v1138 = vshrl.u32 %v1137, 7
    %v1139 = vsub.s32 3, %v1138
    %v1140 = vrot.slane %v1121, %v1139
    %v1141 = vlaneseq
    %v1142 = vshrl.u32 %v1141, 7
    %v1143 = vsub.s32 4, %v1142
    %v1144 = vrot.slane %v1121, %v1143
    %v1145 = vlaneseq
    %v1146 = vshrl.u32 %v1145, 7
    %v1147 = vsub.s32 5, %v1146
    %v1148 = vrot.slane %v1121, %v1147
    %v1149 = vlaneseq
    %v1150 = vshrl.u32 %v1149, 7
    %v1151 = vsub.s32 6, %v1150
    %v1152 = vrot.slane %v1121, %v1151
    %v1153 = vlaneseq
    %v1154 = vshrl.u32 %v1153, 7
    %v1155 = vsub.s32 7, %v1154
    %v1156 = vrot.slane %v1121, %v1155
    %v1157 = vlaneseq
    %v1158 = vshrl.u32 %v1157, 7
    %v1159 = vsub.s32 0, %v1158
    %v1160 = vrot.slane %v1122, %v1159
    %v1161 = vlaneseq
    %v1162 = vshrl.u32 %v1161, 7
    %v1163 = vsub.s32 1, %v1162
    %v1164 = vrot.slane %v1122, %v1163
    %v1165 = vlaneseq
    %v1166 = vshrl.u32 %v1165, 7
    %v1167 = vsub.s32 2, %v1166
    %v1168 = vrot.slane %v1122, %v1167
    %v1169 = vlaneseq
    %v1170 = vshrl.u32 %v1169, 7
    %v1171 = vsub.s32 3, %v1170
    %v1172 = vrot.slane %v1122, %v1171
    %v1173 = vlaneseq
    %v1174 = vshrl.u32 %v1173, 7
    %v1175 = vsub.s32 4, %v1174
    %v1176 = vrot.slane %v1122, %v1175
    %v1177 = vlaneseq
    %v1178 = vshrl.u32 %v1177, 7
    %v1179 = vsub.s32 5, %v1178
    %v1180 = vrot.slane %v1122, %v1179
    %v1181 = vlaneseq
    %v1182 = vshrl.u32 %v1181, 7
    %v1183 = vsub.s32 6, %v1182
    %v1184 = vrot.slane %v1122, %v1183
    %v1185 = vlaneseq
    %v1186 = vshrl.u32 %v1185, 7
    %v1187 = vsub.s32 7, %v1186
    %v1188 = vrot.slane %v1122, %v1187
    %v1269 = vunpack.c.l.b16 %v1056
    %v1270 = vunpack.c.h.b16 %v1056
    %v1271 = vunpack.c.l.b16 %v1057
    %v1272 = vunpack.c.h.b16 %v1057
    %v1273 = vunpack.c.l.b16 %v1058
    %v1274 = vunpack.c.h.b16 %v1058
    %v1275 = vunpack.c.l.b16 %v1059
    %v1276 = vunpack.c.h.b16 %v1059
    %v1277 = vunpack.c.l.b16 %v1060
    %v1278 = vunpack.c.h.b16 %v1060
    %v1279 = vunpack.c.l.b16 %v1061
    %v1280 = vunpack.c.h.b16 %v1061
    %v1281 = vunpack.c.l.b16 %v1062
    %v1282 = vunpack.c.h.b16 %v1062
    %v1283 = vunpack.c.l.b16 %v1063
    %v1284 = vunpack.c.h.b16 %v1063
    %v1285 = vunpack.c.l.b16 %v1064
    %v1286 = vunpack.c.h.b16 %v1064
    %v1287 = vunpack.c.l.b16 %v1065
    %v1288 = vunpack.c.h.b16 %v1065
    %v1289 = vunpack.c.l.b16 %v1066
    %v1290 = vunpack.c.h.b16 %v1066
    %v1291 = vunpack.c.l.b16 %v1067
    %v1292 = vunpack.c.h.b16 %v1067
    %v1293 = vunpack.c.l.b16 %v1068
    %v1294 = vunpack.c.h.b16 %v1068
    %v1295 = vunpack.c.l.b16 %v1069
    %v1296 = vunpack.c.h.b16 %v1069
    %v1297 = vunpack.c.l.b16 %v1070
    %v1298 = vunpack.c.h.b16 %v1070
    %v1299 = vunpack.c.l.b16 %v1071
    %v1300 = vunpack.c.h.b16 %v1071
    %v1301 = vunpack.c.l.b16 %v1072
    %v1302 = vunpack.c.h.b16 %v1072
    %v1303 = vunpack.c.l.b16 %v1073
    %v1304 = vunpack.c.h.b16 %v1073
    %v1305 = vunpack.c.l.b16 %v1074
    %v1306 = vunpack.c.h.b16 %v1074
    %v1307 = vunpack.c.l.b16 %v1075
    %v1308 = vunpack.c.h.b16 %v1075
    %v1309 = vunpack.c.l.b16 %v1076
    %v1310 = vunpack.c.h.b16 %v1076
    %v1311 = vunpack.c.l.b16 %v1077
    %v1312 = vunpack.c.h.b16 %v1077
    %v1313 = vunpack.c.l.b16 %v1078
    %v1314 = vunpack.c.h.b16 %v1078
    %v1315 = vunpack.c.l.b16 %v1079
    %v1316 = vunpack.c.h.b16 %v1079
    %v1317 = vunpack.c.l.b16 %v1080
    %v1318 = vunpack.c.h.b16 %v1080
    %v1319 = vunpack.c.l.b16 %v1081
    %v1320 = vunpack.c.h.b16 %v1081
    %v1321 = vunpack.c.l.b16 %v1082
    %v1322 = vunpack.c.h.b16 %v1082
    %v1323 = vunpack.c.l.b16 %v1083
    %v1324 = vunpack.c.h.b16 %v1083
    %v1325 = vunpack.c.l.b16 %v1084
    %v1326 = vunpack.c.h.b16 %v1084
    %v1327 = vunpack.c.l.b16 %v1085
    %v1328 = vunpack.c.h.b16 %v1085
    %v1329 = vunpack.c.l.b16 %v1086
    %v1330 = vunpack.c.h.b16 %v1086
    %v1331 = vunpack.c.l.b16 %v1087
    %v1332 = vunpack.c.h.b16 %v1087
    %v1333 = vunpack.c.l.b16 %v1088
    %v1334 = vunpack.c.h.b16 %v1088
    %v1335 = vunpack.c.l.b16 %v1089
    %v1336 = vunpack.c.h.b16 %v1089
    %v1337 = vunpack.c.l.b16 %v1090
    %v1338 = vunpack.c.h.b16 %v1090
    %v1339 = vunpack.c.l.b16 %v1091
    %v1340 = vunpack.c.h.b16 %v1091
    %v1341 = vunpack.c.l.b16 %v1092
    %v1342 = vunpack.c.h.b16 %v1092
    %v1343 = vunpack.c.l.b16 %v1093
    %v1344 = vunpack.c.h.b16 %v1093
    %v1345 = vunpack.c.l.b16 %v1094
    %v1346 = vunpack.c.h.b16 %v1094
    %v1347 = vunpack.c.l.b16 %v1095
    %v1348 = vunpack.c.h.b16 %v1095
    %v1349 = vunpack.c.l.b16 %v1096
    %v1350 = vunpack.c.h.b16 %v1096
    %v1351 = vunpack.c.l.b16 %v1097
    %v1352 = vunpack.c.h.b16 %v1097
    %v1353 = vunpack.c.l.b16 %v1098
    %v1354 = vunpack.c.h.b16 %v1098
    %v1355 = vunpack.c.l.b16 %v1099
    %v1356 = vunpack.c.h.b16 %v1099
    %v1357 = vunpack.c.l.b16 %v1100
    %v1358 = vunpack.c.h.b16 %v1100
    %v1359 = vunpack.c.l.b16 %v1101
    %v1360 = vunpack.c.h.b16 %v1101
    %v1361 = vunpack.c.l.b16 %v1102
    %v1362 = vunpack.c.h.b16 %v1102
    %v1363 = vunpack.c.l.b16 %v1103
    %v1364 = vunpack.c.h.b16 %v1103
    %v1365 = vunpack.c.l.b16 %v1104
    %v1366 = vunpack.c.h.b16 %v1104
    %v1367 = vunpack.c.l.b16 %v1105
    %v1368 = vunpack.c.h.b16 %v1105
    %v1369 = vunpack.c.l.b16 %v1106
    %v1370 = vunpack.c.h.b16 %v1106
    %v1371 = vunpack.c.l.b16 %v1107
    %v1372 = vunpack.c.h.b16 %v1107
    %v1373 = vunpack.c.l.b16 %v1108
    %v1374 = vunpack.c.h.b16 %v1108
    %v1375 = vunpack.c.l.b16 %v1109
    %v1376 = vunpack.c.h.b16 %v1109
    %v1377 = vunpack.c.l.b16 %v1110
    %v1378 = vunpack.c.h.b16 %v1110
    %v1379 = vunpack.c.l.b16 %v1111
    %v1380 = vunpack.c.h.b16 %v1111
    %v1381 = vunpack.c.l.b16 %v1112
    %v1382 = vunpack.c.h.b16 %v1112
    %v1383 = vunpack.c.l.b16 %v1113
    %v1384 = vunpack.c.h.b16 %v1113
    %v1385 = vunpack.c.l.b16 %v1114
    %v1386 = vunpack.c.h.b16 %v1114
    %v1387 = vunpack.c.l.b16 %v1115
    %v1388 = vunpack.c.h.b16 %v1115
    %v1389 = vunpack.c.l.b16 %v1116
    %v1390 = vunpack.c.h.b16 %v1116
    %v1391 = vunpack.c.l.b16 %v1117
    %v1392 = vunpack.c.h.b16 %v1117
    %v1393 = vunpack.c.l.b16 %v1118
    %v1394 = vunpack.c.h.b16 %v1118
    %v1395 = vunpack.c.l.b16 %v1119
    %v1396 = vunpack.c.h.b16 %v1119
    %v1397 = vpack.c.b16 %v1285, %v1269
    %v1398 = vpack.c.b16 %v1286, %v1270
    %v1399 = vpack.c.b16 %v1287, %v1271
    %v1400 = vpack.c.b16 %v1288, %v1272
    %v1401 = vpack.c.b16 %v1289, %v1273
    %v1402 = vpack.c.b16 %v1290, %v1274
    %v1403 = vpack.c.b16 %v1291, %v1275
    %v1404 = vpack.c.b16 %v1292, %v1276
    %v1405 = vpack.c.b16 %v1293, %v1277
    %v1406 = vpack.c.b16 %v1294, %v1278
    %v1407 = vpack.c.b16 %v1295, %v1279
    %v1408 = vpack.c.b16 %v1296, %v1280
    %v1409 = vpack.c.b16 %v1297, %v1281
    %v1410 = vpack.c.b16 %v1298, %v1282
    %v1411 = vpack.c.b16 %v1299, %v1283
    %v1412 = vpack.c.b16 %v1300, %v1284
    %v1413 = vpack.c.b16 %v1317, %v1301
    %v1414 = vpack.c.b16 %v1318, %v1302
    %v1415 = vpack.c.b16 %v1319, %v1303
    %v1416 = vpack.c.b16 %v1320, %v1304
    %v1417 = vpack.c.b16 %v1321, %v1305
    %v1418 = vpack.c.b16 %v1322, %v1306
    %v1419 = vpack.c.b16 %v1323, %v1307
    %v1420 = vpack.c.b16 %v1324, %v1308
    %v1421 = vpack.c.b16 %v1325, %v1309
    %v1422 = vpack.c.b16 %v1326, %v1310
    %v1423 = vpack.c.b16 %v1327, %v1311
    %v1424 = vpack.c.b16 %v1328, %v1312
    %v1425 = vpack.c.b16 %v1329, %v1313
    %v1426 = vpack.c.b16 %v1330, %v1314
    %v1427 = vpack.c.b16 %v1331, %v1315
    %v1428 = vpack.c.b16 %v1332, %v1316
    %v1429 = vpack.c.b16 %v1349, %v1333
    %v1430 = vpack.c.b16 %v1350, %v1334
    %v1431 = vpack.c.b16 %v1351, %v1335
    %v1432 = vpack.c.b16 %v1352, %v1336
    %v1433 = vpack.c.b16 %v1353, %v1337
    %v1434 = vpack.c.b16 %v1354, %v1338
    %v1435 = vpack.c.b16 %v1355, %v1339
    %v1436 = vpack.c.b16 %v1356, %v1340
    %v1437 = vpack.c.b16 %v1357, %v1341
    %v1438 = vpack.c.b16 %v1358, %v1342
    %v1439 = vpack.c.b16 %v1359, %v1343
    %v1440 = vpack.c.b16 %v1360, %v1344
    %v1441 = vpack.c.b16 %v1361, %v1345
    %v1442 = vpack.c.b16 %v1362, %v1346
    %v1443 = vpack.c.b16 %v1363, %v1347
    %v1444 = vpack.c.b16 %v1364, %v1348
    %v1445 = vpack.c.b16 %v1381, %v1365
    %v1446 = vpack.c.b16 %v1382, %v1366
    %v1447 = vpack.c.b16 %v1383, %v1367
    %v1448 = vpack.c.b16 %v1384, %v1368
    %v1449 = vpack.c.b16 %v1385, %v1369
    %v1450 = vpack.c.b16 %v1386, %v1370
    %v1451 = vpack.c.b16 %v1387, %v1371
    %v1452 = vpack.c.b16 %v1388, %v1372
    %v1453 = vpack.c.b16 %v1389, %v1373
    %v1454 = vpack.c.b16 %v1390, %v1374
    %v1455 = vpack.c.b16 %v1391, %v1375
    %v1456 = vpack.c.b16 %v1392, %v1376
    %v1457 = vpack.c.b16 %v1393, %v1377
    %v1458 = vpack.c.b16 %v1394, %v1378
    %v1459 = vpack.c.b16 %v1395, %v1379
    %v1460 = vpack.c.b16 %v1396, %v1380
    %v1526 = vsel %vm723, %v1120, 0
    %1528 = vmatprep.subr.bf16.mxu0 %v1398
    %1529 = vmatpush1.bf16.msra.mxu0 %v1397
    %1530 = vmatprep.subr.bf16.mxu0 %v1414
    %1531 = vmatpush1.bf16.msra.mxu0 %v1413
    %1532 = vmatprep.subr.bf16.mxu0 %v1430
    %1533 = vmatpush1.bf16.msra.mxu0 %v1429
    %1534 = vmatprep.subr.bf16.mxu0 %v1446
    %1535 = vmatpush1.bf16.msra.mxu0 %v1445
    %1536 = vmatprep.subr.bf16.mxu0 0
    %1537 = vmatpush1.bf16.msra.mxu0 0
    %1538 = vmatprep.subr.bf16.mxu0 0
    %1539 = vmatpush1.bf16.msra.mxu0 0
    %1540 = vmatprep.subr.bf16.mxu0 0
    %1541 = vmatpush1.bf16.msra.mxu0 0
    %1542 = vmatprep.subr.bf16.mxu0 0
    %1543 = vmatpush1.bf16.msra.mxu0 0
    %1544 = vmatprep.subr.bf16.mxu0 0
    %1545 = vmatpush1.bf16.msra.mxu0 0
    %1546 = vmatprep.subr.bf16.mxu0 0
    %1547 = vmatpush1.bf16.msra.mxu0 0
    %1548 = vmatprep.subr.bf16.mxu0 0
    %1549 = vmatpush1.bf16.msra.mxu0 0
    %1550 = vmatprep.subr.bf16.mxu0 0
    %1551 = vmatpush1.bf16.msra.mxu0 0
    %1552 = vmatprep.subr.bf16.mxu0 0
    %1553 = vmatpush1.bf16.msra.mxu0 0
    %1554 = vmatprep.subr.bf16.mxu0 0
    %1555 = vmatpush1.bf16.msra.mxu0 0
    %1556 = vmatprep.subr.bf16.mxu0 0
    %1557 = vmatpush1.bf16.msra.mxu0 0
    %1558 = vmatprep.subr.bf16.mxu0 0
    %1559 = vmatpush1.bf16.msra.mxu0 0
    %1560 = vmatprep.mubr.bf16.mxu0 0
    %1561 = vmatmul.mubr.bf16.gmra.mrb[0].mxu0 %v1526
    %v1562 = vpop.f32.mrb[0].mxu0
    %v1563 = vadd.f32 %v1128, %v1562
    %v1564 = vpop.f32.mrb[0].mxu0
    %v1565 = vadd.f32 %v1132, %v1564
    %v1566 = vpop.f32.mrb[0].mxu0
    %v1567 = vpop.f32.mrb[0].mxu0
    %1568 = vdwg.mxu0
    %1569 = vmatprep.subr.bf16.mxu0 %v1400
    %1570 = vmatpush1.bf16.msra.mxu0 %v1399
    %1571 = vmatprep.subr.bf16.mxu0 %v1416
    %1572 = vmatpush1.bf16.msra.mxu0 %v1415
    %1573 = vmatprep.subr.bf16.mxu0 %v1432
    %1574 = vmatpush1.bf16.msra.mxu0 %v1431
    %1575 = vmatprep.subr.bf16.mxu0 %v1448
    %1576 = vmatpush1.bf16.msra.mxu0 %v1447
    %1577 = vmatprep.subr.bf16.mxu0 0
    %1578 = vmatpush1.bf16.msra.mxu0 0
    %1579 = vmatprep.subr.bf16.mxu0 0
    %1580 = vmatpush1.bf16.msra.mxu0 0
    %1581 = vmatprep.subr.bf16.mxu0 0
    %1582 = vmatpush1.bf16.msra.mxu0 0
    %1583 = vmatprep.subr.bf16.mxu0 0
    %1584 = vmatpush1.bf16.msra.mxu0 0
    %1585 = vmatprep.subr.bf16.mxu0 0
    %1586 = vmatpush1.bf16.msra.mxu0 0
    %1587 = vmatprep.subr.bf16.mxu0 0
    %1588 = vmatpush1.bf16.msra.mxu0 0
    %1589 = vmatprep.subr.bf16.mxu0 0
    %1590 = vmatpush1.bf16.msra.mxu0 0
    %1591 = vmatprep.subr.bf16.mxu0 0
    %1592 = vmatpush1.bf16.msra.mxu0 0
    %1593 = vmatprep.subr.bf16.mxu0 0
    %1594 = vmatpush1.bf16.msra.mxu0 0
    %1595 = vmatprep.subr.bf16.mxu0 0
    %1596 = vmatpush1.bf16.msra.mxu0 0
    %1597 = vmatprep.subr.bf16.mxu0 0
    %1598 = vmatpush1.bf16.msra.mxu0 0
    %1599 = vmatprep.subr.bf16.mxu0 0
    %1600 = vmatpush1.bf16.msra.mxu0 0
    %1601 = vmatprep.mubr.bf16.mxu0 0
    %1602 = vmatmul.mubr.bf16.gmra.mrb[0].mxu0 %v1526
    %v1603 = vpop.f32.mrb[0].mxu0
    %v1604 = vadd.f32 %v1136, %v1603
    %v1605 = vpop.f32.mrb[0].mxu0
    %v1606 = vadd.f32 %v1140, %v1605
    %v1607 = vpop.f32.mrb[0].mxu0
    %v1608 = vpop.f32.mrb[0].mxu0
    %1609 = vdwg.mxu0
    %1610 = vmatprep.subr.bf16.mxu0 %v1402
    %1611 = vmatpush1.bf16.msra.mxu0 %v1401
    %1612 = vmatprep.subr.bf16.mxu0 %v1418
    %1613 = vmatpush1.bf16.msra.mxu0 %v1417
    %1614 = vmatprep.subr.bf16.mxu0 %v1434
    %1615 = vmatpush1.bf16.msra.mxu0 %v1433
    %1616 = vmatprep.subr.bf16.mxu0 %v1450
    %1617 = vmatpush1.bf16.msra.mxu0 %v1449
    %1618 = vmatprep.subr.bf16.mxu0 0
    %1619 = vmatpush1.bf16.msra.mxu0 0
    %1620 = vmatprep.subr.bf16.mxu0 0
    %1621 = vmatpush1.bf16.msra.mxu0 0
    %1622 = vmatprep.subr.bf16.mxu0 0
    %1623 = vmatpush1.bf16.msra.mxu0 0
    %1624 = vmatprep.subr.bf16.mxu0 0
    %1625 = vmatpush1.bf16.msra.mxu0 0
    %1626 = vmatprep.subr.bf16.mxu0 0
    %1627 = vmatpush1.bf16.msra.mxu0 0
    %1628 = vmatprep.subr.bf16.mxu0 0
    %1629 = vmatpush1.bf16.msra.mxu0 0
    %1630 = vmatprep.subr.bf16.mxu0 0
    %1631 = vmatpush1.bf16.msra.mxu0 0
    %1632 = vmatprep.subr.bf16.mxu0 0
    %1633 = vmatpush1.bf16.msra.mxu0 0
    %1634 = vmatprep.subr.bf16.mxu0 0
    %1635 = vmatpush1.bf16.msra.mxu0 0
    %1636 = vmatprep.subr.bf16.mxu0 0
    %1637 = vmatpush1.bf16.msra.mxu0 0
    %1638 = vmatprep.subr.bf16.mxu0 0
    %1639 = vmatpush1.bf16.msra.mxu0 0
    %1640 = vmatprep.subr.bf16.mxu0 0
    %1641 = vmatpush1.bf16.msra.mxu0 0
    %1642 = vmatprep.mubr.bf16.mxu0 0
    %1643 = vmatmul.mubr.bf16.gmra.mrb[0].mxu0 %v1526
    %v1644 = vpop.f32.mrb[0].mxu0
    %v1645 = vadd.f32 %v1144, %v1644
    %v1646 = vpop.f32.mrb[0].mxu0
    %v1647 = vadd.f32 %v1148, %v1646
    %v1648 = vpop.f32.mrb[0].mxu0
    %v1649 = vpop.f32.mrb[0].mxu0
    %1650 = vdwg.mxu0
    %1651 = vmatprep.subr.bf16.mxu0 %v1404
    %1652 = vmatpush1.bf16.msra.mxu0 %v1403
    %1653 = vmatprep.subr.bf16.mxu0 %v1420
    %1654 = vmatpush1.bf16.msra.mxu0 %v1419
    %1655 = vmatprep.subr.bf16.mxu0 %v1436
    %1656 = vmatpush1.bf16.msra.mxu0 %v1435
    %1657 = vmatprep.subr.bf16.mxu0 %v1452
    %1658 = vmatpush1.bf16.msra.mxu0 %v1451
    %1659 = vmatprep.subr.bf16.mxu0 0
    %1660 = vmatpush1.bf16.msra.mxu0 0
    %1661 = vmatprep.subr.bf16.mxu0 0
    %1662 = vmatpush1.bf16.msra.mxu0 0
    %1663 = vmatprep.subr.bf16.mxu0 0
    %1664 = vmatpush1.bf16.msra.mxu0 0
    %1665 = vmatprep.subr.bf16.mxu0 0
    %1666 = vmatpush1.bf16.msra.mxu0 0
    %1667 = vmatprep.subr.bf16.mxu0 0
    %1668 = vmatpush1.bf16.msra.mxu0 0
    %1669 = vmatprep.subr.bf16.mxu0 0
    %1670 = vmatpush1.bf16.msra.mxu0 0
    %1671 = vmatprep.subr.bf16.mxu0 0
    %1672 = vmatpush1.bf16.msra.mxu0 0
    %1673 = vmatprep.subr.bf16.mxu0 0
    %1674 = vmatpush1.bf16.msra.mxu0 0
    %1675 = vmatprep.subr.bf16.mxu0 0
    %1676 = vmatpush1.bf16.msra.mxu0 0
    %1677 = vmatprep.subr.bf16.mxu0 0
    %1678 = vmatpush1.bf16.msra.mxu0 0
    %1679 = vmatprep.subr.bf16.mxu0 0
    %1680 = vmatpush1.bf16.msra.mxu0 0
    %1681 = vmatprep.subr.bf16.mxu0 0
    %1682 = vmatpush1.bf16.msra.mxu0 0
    %1683 = vmatprep.mubr.bf16.mxu0 0
    %1684 = vmatmul.mubr.bf16.gmra.mrb[0].mxu0 %v1526
    %v1685 = vpop.f32.mrb[0].mxu0
    %v1686 = vadd.f32 %v1152, %v1685
    %v1687 = vpop.f32.mrb[0].mxu0
    %v1688 = vadd.f32 %v1156, %v1687
    %v1689 = vpop.f32.mrb[0].mxu0
    %v1690 = vpop.f32.mrb[0].mxu0
    %1691 = vdwg.mxu0
    %1692 = vmatprep.subr.bf16.mxu0 %v1406
    %1693 = vmatpush1.bf16.msra.mxu0 %v1405
    %1694 = vmatprep.subr.bf16.mxu0 %v1422
    %1695 = vmatpush1.bf16.msra.mxu0 %v1421
    %1696 = vmatprep.subr.bf16.mxu0 %v1438
    %1697 = vmatpush1.bf16.msra.mxu0 %v1437
    %1698 = vmatprep.subr.bf16.mxu0 %v1454
    %1699 = vmatpush1.bf16.msra.mxu0 %v1453
    %1700 = vmatprep.subr.bf16.mxu0 0
    %1701 = vmatpush1.bf16.msra.mxu0 0
    %1702 = vmatprep.subr.bf16.mxu0 0
    %1703 = vmatpush1.bf16.msra.mxu0 0
    %1704 = vmatprep.subr.bf16.mxu0 0
    %1705 = vmatpush1.bf16.msra.mxu0 0
    %1706 = vmatprep.subr.bf16.mxu0 0
    %1707 = vmatpush1.bf16.msra.mxu0 0
    %1708 = vmatprep.subr.bf16.mxu0 0
    %1709 = vmatpush1.bf16.msra.mxu0 0
    %1710 = vmatprep.subr.bf16.mxu0 0
    %1711 = vmatpush1.bf16.msra.mxu0 0
    %1712 = vmatprep.subr.bf16.mxu0 0
    %1713 = vmatpush1.bf16.msra.mxu0 0
    %1714 = vmatprep.subr.bf16.mxu0 0
    %1715 = vmatpush1.bf16.msra.mxu0 0
    %1716 = vmatprep.subr.bf16.mxu0 0
    %1717 = vmatpush1.bf16.msra.mxu0 0
    %1718 = vmatprep.subr.bf16.mxu0 0
    %1719 = vmatpush1.bf16.msra.mxu0 0
    %1720 = vmatprep.subr.bf16.mxu0 0
    %1721 = vmatpush1.bf16.msra.mxu0 0
    %1722 = vmatprep.subr.bf16.mxu0 0
    %1723 = vmatpush1.bf16.msra.mxu0 0
    %1724 = vmatprep.mubr.bf16.mxu0 0
    %1725 = vmatmul.mubr.bf16.gmra.mrb[0].mxu0 %v1526
    %v1726 = vpop.f32.mrb[0].mxu0
    %v1727 = vadd.f32 %v1160, %v1726
    %v1728 = vpop.f32.mrb[0].mxu0
    %v1729 = vadd.f32 %v1164, %v1728
    %v1730 = vpop.f32.mrb[0].mxu0
    %v1731 = vpop.f32.mrb[0].mxu0
    %1732 = vdwg.mxu0
    %1733 = vmatprep.subr.bf16.mxu0 %v1408
    %1734 = vmatpush1.bf16.msra.mxu0 %v1407
    %1735 = vmatprep.subr.bf16.mxu0 %v1424
    %1736 = vmatpush1.bf16.msra.mxu0 %v1423
    %1737 = vmatprep.subr.bf16.mxu0 %v1440
    %1738 = vmatpush1.bf16.msra.mxu0 %v1439
    %1739 = vmatprep.subr.bf16.mxu0 %v1456
    %1740 = vmatpush1.bf16.msra.mxu0 %v1455
    %1741 = vmatprep.subr.bf16.mxu0 0
    %1742 = vmatpush1.bf16.msra.mxu0 0
    %1743 = vmatprep.subr.bf16.mxu0 0
    %1744 = vmatpush1.bf16.msra.mxu0 0
    %1745 = vmatprep.subr.bf16.mxu0 0
    %1746 = vmatpush1.bf16.msra.mxu0 0
    %1747 = vmatprep.subr.bf16.mxu0 0
    %1748 = vmatpush1.bf16.msra.mxu0 0
    %1749 = vmatprep.subr.bf16.mxu0 0
    %1750 = vmatpush1.bf16.msra.mxu0 0
    %1751 = vmatprep.subr.bf16.mxu0 0
    %1752 = vmatpush1.bf16.msra.mxu0 0
    %1753 = vmatprep.subr.bf16.mxu0 0
    %1754 = vmatpush1.bf16.msra.mxu0 0
    %1755 = vmatprep.subr.bf16.mxu0 0
    %1756 = vmatpush1.bf16.msra.mxu0 0
    %1757 = vmatprep.subr.bf16.mxu0 0
    %1758 = vmatpush1.bf16.msra.mxu0 0
    %1759 = vmatprep.subr.bf16.mxu0 0
    %1760 = vmatpush1.bf16.msra.mxu0 0
    %1761 = vmatprep.subr.bf16.mxu0 0
    %1762 = vmatpush1.bf16.msra.mxu0 0
    %1763 = vmatprep.subr.bf16.mxu0 0
    %1764 = vmatpush1.bf16.msra.mxu0 0
    %1765 = vmatprep.mubr.bf16.mxu0 0
    %1766 = vmatmul.mubr.bf16.gmra.mrb[0].mxu0 %v1526
    %v1767 = vpop.f32.mrb[0].mxu0
    %v1768 = vadd.f32 %v1168, %v1767
    %v1769 = vpop.f32.mrb[0].mxu0
    %v1770 = vadd.f32 %v1172, %v1769
    %v1771 = vpop.f32.mrb[0].mxu0
    %v1772 = vpop.f32.mrb[0].mxu0
    %1773 = vdwg.mxu0
    %1774 = vmatprep.subr.bf16.mxu0 %v1410
    %1775 = vmatpush1.bf16.msra.mxu0 %v1409
    %1776 = vmatprep.subr.bf16.mxu0 %v1426
    %1777 = vmatpush1.bf16.msra.mxu0 %v1425
    %1778 = vmatprep.subr.bf16.mxu0 %v1442
    %1779 = vmatpush1.bf16.msra.mxu0 %v1441
    %1780 = vmatprep.subr.bf16.mxu0 %v1458
    %1781 = vmatpush1.bf16.msra.mxu0 %v1457
    %1782 = vmatprep.subr.bf16.mxu0 0
    %1783 = vmatpush1.bf16.msra.mxu0 0
    %1784 = vmatprep.subr.bf16.mxu0 0
    %1785 = vmatpush1.bf16.msra.mxu0 0
    %1786 = vmatprep.subr.bf16.mxu0 0
    %1787 = vmatpush1.bf16.msra.mxu0 0
    %1788 = vmatprep.subr.bf16.mxu0 0
    %1789 = vmatpush1.bf16.msra.mxu0 0
    %1790 = vmatprep.subr.bf16.mxu0 0
    %1791 = vmatpush1.bf16.msra.mxu0 0
    %1792 = vmatprep.subr.bf16.mxu0 0
    %1793 = vmatpush1.bf16.msra.mxu0 0
    %1794 = vmatprep.subr.bf16.mxu0 0
    %1795 = vmatpush1.bf16.msra.mxu0 0
    %1796 = vmatprep.subr.bf16.mxu0 0
    %1797 = vmatpush1.bf16.msra.mxu0 0
    %1798 = vmatprep.subr.bf16.mxu0 0
    %1799 = vmatpush1.bf16.msra.mxu0 0
    %1800 = vmatprep.subr.bf16.mxu0 0
    %1801 = vmatpush1.bf16.msra.mxu0 0
    %1802 = vmatprep.subr.bf16.mxu0 0
    %1803 = vmatpush1.bf16.msra.mxu0 0
    %1804 = vmatprep.subr.bf16.mxu0 0
    %1805 = vmatpush1.bf16.msra.mxu0 0
    %1806 = vmatprep.mubr.bf16.mxu0 0
    %1807 = vmatmul.mubr.bf16.gmra.mrb[0].mxu0 %v1526
    %v1808 = vpop.f32.mrb[0].mxu0
    %v1809 = vadd.f32 %v1176, %v1808
    %v1810 = vpop.f32.mrb[0].mxu0
    %v1811 = vadd.f32 %v1180, %v1810
    %v1812 = vpop.f32.mrb[0].mxu0
    %v1813 = vpop.f32.mrb[0].mxu0
    %1814 = vdwg.mxu0
    %1815 = vmatprep.subr.bf16.mxu0 %v1412
    %1816 = vmatpush1.bf16.msra.mxu0 %v1411
    %1817 = vmatprep.subr.bf16.mxu0 %v1428
    %1818 = vmatpush1.bf16.msra.mxu0 %v1427
    %1819 = vmatprep.subr.bf16.mxu0 %v1444
    %1820 = vmatpush1.bf16.msra.mxu0 %v1443
    %1821 = vmatprep.subr.bf16.mxu0 %v1460
    %1822 = vmatpush1.bf16.msra.mxu0 %v1459
    %1823 = vmatprep.subr.bf16.mxu0 0
    %1824 = vmatpush1.bf16.msra.mxu0 0
    %1825 = vmatprep.subr.bf16.mxu0 0
    %1826 = vmatpush1.bf16.msra.mxu0 0
    %1827 = vmatprep.subr.bf16.mxu0 0
    %1828 = vmatpush1.bf16.msra.mxu0 0
    %1829 = vmatprep.subr.bf16.mxu0 0
    %1830 = vmatpush1.bf16.msra.mxu0 0
    %1831 = vmatprep.subr.bf16.mxu0 0
    %1832 = vmatpush1.bf16.msra.mxu0 0
    %1833 = vmatprep.subr.bf16.mxu0 0
    %1834 = vmatpush1.bf16.msra.mxu0 0
    %1835 = vmatprep.subr.bf16.mxu0 0
    %1836 = vmatpush1.bf16.msra.mxu0 0
    %1837 = vmatprep.subr.bf16.mxu0 0
    %1838 = vmatpush1.bf16.msra.mxu0 0
    %1839 = vmatprep.subr.bf16.mxu0 0
    %1840 = vmatpush1.bf16.msra.mxu0 0
    %1841 = vmatprep.subr.bf16.mxu0 0
    %1842 = vmatpush1.bf16.msra.mxu0 0
    %1843 = vmatprep.subr.bf16.mxu0 0
    %1844 = vmatpush1.bf16.msra.mxu0 0
    %1845 = vmatprep.subr.bf16.mxu0 0
    %1846 = vmatpush1.bf16.msra.mxu0 0
    %1847 = vmatprep.mubr.bf16.mxu0 0
    %1848 = vmatmul.mubr.bf16.gmra.mrb[0].mxu0 %v1526
    %v1849 = vpop.f32.mrb[0].mxu0
    %v1850 = vadd.f32 %v1184, %v1849
    %v1851 = vpop.f32.mrb[0].mxu0
    %v1852 = vadd.f32 %v1188, %v1851
    %v1853 = vpop.f32.mrb[0].mxu0
    %v1854 = vpop.f32.mrb[0].mxu0
    %1855 = vdwg.mxu0
    %v1856 = vld [vmem:[#allocation5] sm:$0xff]
    %s1857 = sld [smem:[#allocation2]]
    %vm1858 = vcmp.gt.f32.partialorder %v762, 0.0
    %vm1859 = vcmp.gt.f32.partialorder %v764, 0.0
    %vm1860 = vcmp.gt.f32.partialorder %v803, 0.0
    %vm1861 = vcmp.gt.f32.partialorder %v805, 0.0
    %vm1862 = vcmp.gt.f32.partialorder %v844, 0.0
    %vm1863 = vcmp.gt.f32.partialorder %v846, 0.0
    %vm1864 = vcmp.gt.f32.partialorder %v885, 0.0
    %vm1865 = vcmp.gt.f32.partialorder %v887, 0.0
    %v1866 = vstv %s1857
    %v1867 = vmul.f32 %v1866, %v762
    %v1868 = vmul.f32 %v1866, %v764
    %v1869 = vmul.f32 %v1866, %v803
    %v1870 = vmul.f32 %v1866, %v805
    %v1871 = vmul.f32 %v1866, %v844
    %v1872 = vmul.f32 %v1866, %v846
    %v1873 = vmul.f32 %v1866, %v885
    %v1874 = vmul.f32 %v1866, %v887
    %v1875 = vsel %vm1858, %v762, %v1867
    %v1876 = vsel %vm1859, %v764, %v1868
    %v1877 = vsel %vm1860, %v803, %v1869
    %v1878 = vsel %vm1861, %v805, %v1870
    %v1879 = vsel %vm1862, %v844, %v1871
    %v1880 = vsel %vm1863, %v846, %v1872
    %v1881 = vsel %vm1864, %v885, %v1873
    %v1882 = vsel %vm1865, %v887, %v1874
    %vm1883 = vcmp.gt.f32.partialorder %v1563, 0.0
    %vm1884 = vcmp.gt.f32.partialorder %v1565, 0.0
    %vm1885 = vcmp.gt.f32.partialorder %v1604, 0.0
    %vm1886 = vcmp.gt.f32.partialorder %v1606, 0.0
    %vm1887 = vcmp.gt.f32.partialorder %v1645, 0.0
    %vm1888 = vcmp.gt.f32.partialorder %v1647, 0.0
    %vm1889 = vcmp.gt.f32.partialorder %v1686, 0.0
    %vm1890 = vcmp.gt.f32.partialorder %v1688, 0.0
    %v1891 = vmul.f32 %v1866, %v1563
    %v1892 = vmul.f32 %v1866, %v1565
    %v1893 = vmul.f32 %v1866, %v1604
    %v1894 = vmul.f32 %v1866, %v1606
    %v1895 = vmul.f32 %v1866, %v1645
    %v1896 = vmul.f32 %v1866, %v1647
    %v1897 = vmul.f32 %v1866, %v1686
    %v1898 = vmul.f32 %v1866, %v1688
    %v1899 = vsel %vm1883, %v1563, %v1891
    %v1900 = vsel %vm1884, %v1565, %v1892
    %v1901 = vsel %vm1885, %v1604, %v1893
    %v1902 = vsel %vm1886, %v1606, %v1894
    %v1903 = vsel %vm1887, %v1645, %v1895
    %v1904 = vsel %vm1888, %v1647, %v1896
    %v1905 = vsel %vm1889, %v1686, %v1897
    %v1906 = vsel %vm1890, %v1688, %v1898
    %v1907 = vld [vmem:[#allocation8] sm:$0xf]
    %v1908 = vld [vmem:[#allocation8 + $0x4] sm:$0xf]
    %v1909 = vld [vmem:[#allocation8 + $0x8] sm:$0xf]
    %v1910 = vld [vmem:[#allocation8 + $0xc] sm:$0xf]
    %v1911 = vld [vmem:[#allocation8 + $0x10] sm:$0xf]
    %v1912 = vld [vmem:[#allocation8 + $0x14] sm:$0xf]
    %v1913 = vld [vmem:[#allocation8 + $0x18] sm:$0xf]
    %v1914 = vld [vmem:[#allocation8 + $0x1c] sm:$0xf]
    %v1915 = vld [vmem:[#allocation8 + $0x20] sm:$0xf]
    %v1916 = vld [vmem:[#allocation8 + $0x24] sm:$0xf]
    %v1917 = vld [vmem:[#allocation8 + $0x28] sm:$0xf]
    %v1918 = vld [vmem:[#allocation8 + $0x2c] sm:$0xf]
    %v1919 = vld [vmem:[#allocation8 + $0x30] sm:$0xf]
    %v1920 = vld [vmem:[#allocation8 + $0x34] sm:$0xf]
    %v1921 = vld [vmem:[#allocation8 + $0x38] sm:$0xf]
    %v1922 = vld [vmem:[#allocation8 + $0x3c] sm:$0xf]
    %v1923 = vld [vmem:[#allocation8 + $0x40] sm:$0xf]
    %v1924 = vld [vmem:[#allocation8 + $0x44] sm:$0xf]
    %v1925 = vld [vmem:[#allocation8 + $0x48] sm:$0xf]
    %v1926 = vld [vmem:[#allocation8 + $0x4c] sm:$0xf]
    %v1927 = vld [vmem:[#allocation8 + $0x50] sm:$0xf]
    %v1928 = vld [vmem:[#allocation8 + $0x54] sm:$0xf]
    %v1929 = vld [vmem:[#allocation8 + $0x58] sm:$0xf]
    %v1930 = vld [vmem:[#allocation8 + $0x5c] sm:$0xf]
    %v1931 = vld [vmem:[#allocation8 + $0x60] sm:$0xf]
    %v1932 = vld [vmem:[#allocation8 + $0x64] sm:$0xf]
    %v1933 = vld [vmem:[#allocation8 + $0x68] sm:$0xf]
    %v1934 = vld [vmem:[#allocation8 + $0x6c] sm:$0xf]
    %v1935 = vld [vmem:[#allocation8 + $0x70] sm:$0xf]
    %v1936 = vld [vmem:[#allocation8 + $0x74] sm:$0xf]
    %v1937 = vld [vmem:[#allocation8 + $0x78] sm:$0xf]
    %v1938 = vld [vmem:[#allocation8 + $0x7c] sm:$0xf]
    %v1939 = vld [vmem:[#allocation8 + $0x80] sm:$0xf]
    %v1940 = vld [vmem:[#allocation8 + $0x84] sm:$0xf]
    %v1941 = vld [vmem:[#allocation8 + $0x88] sm:$0xf]
    %v1942 = vld [vmem:[#allocation8 + $0x8c] sm:$0xf]
    %v1943 = vld [vmem:[#allocation8 + $0x90] sm:$0xf]
    %v1944 = vld [vmem:[#allocation8 + $0x94] sm:$0xf]
    %v1945 = vld [vmem:[#allocation8 + $0x98] sm:$0xf]
    %v1946 = vld [vmem:[#allocation8 + $0x9c] sm:$0xf]
    %v1947 = vld [vmem:[#allocation8 + $0xa0] sm:$0xf]
    %v1948 = vld [vmem:[#allocation8 + $0xa4] sm:$0xf]
    %v1949 = vld [vmem:[#allocation8 + $0xa8] sm:$0xf]
    %v1950 = vld [vmem:[#allocation8 + $0xac] sm:$0xf]
    %v1951 = vld [vmem:[#allocation8 + $0xb0] sm:$0xf]
    %v1952 = vld [vmem:[#allocation8 + $0xb4] sm:$0xf]
    %v1953 = vld [vmem:[#allocation8 + $0xb8] sm:$0xf]
    %v1954 = vld [vmem:[#allocation8 + $0xbc] sm:$0xf]
    %v1955 = vld [vmem:[#allocation8 + $0xc0] sm:$0xf]
    %v1956 = vld [vmem:[#allocation8 + $0xc4] sm:$0xf]
    %v1957 = vld [vmem:[#allocation8 + $0xc8] sm:$0xf]
    %v1958 = vld [vmem:[#allocation8 + $0xcc] sm:$0xf]
    %v1959 = vld [vmem:[#allocation8 + $0xd0] sm:$0xf]
    %v1960 = vld [vmem:[#allocation8 + $0xd4] sm:$0xf]
    %v1961 = vld [vmem:[#allocation8 + $0xd8] sm:$0xf]
    %v1962 = vld [vmem:[#allocation8 + $0xdc] sm:$0xf]
    %v1963 = vld [vmem:[#allocation8 + $0xe0] sm:$0xf]
    %v1964 = vld [vmem:[#allocation8 + $0xe4] sm:$0xf]
    %v1965 = vld [vmem:[#allocation8 + $0xe8] sm:$0xf]
    %v1966 = vld [vmem:[#allocation8 + $0xec] sm:$0xf]
    %v1967 = vld [vmem:[#allocation8 + $0xf0] sm:$0xf]
    %v1968 = vld [vmem:[#allocation8 + $0xf4] sm:$0xf]
    %v1969 = vld [vmem:[#allocation8 + $0xf8] sm:$0xf]
    %v1970 = vld [vmem:[#allocation8 + $0xfc] sm:$0xf]
    %v1971 = vld [vmem:[#allocation8 + $0x100] sm:$0xf]
    %v1972 = vld [vmem:[#allocation8 + $0x104] sm:$0xf]
    %v1973 = vld [vmem:[#allocation8 + $0x108] sm:$0xf]
    %v1974 = vld [vmem:[#allocation8 + $0x10c] sm:$0xf]
    %v1975 = vld [vmem:[#allocation8 + $0x110] sm:$0xf]
    %v1976 = vld [vmem:[#allocation8 + $0x114] sm:$0xf]
    %v1977 = vld [vmem:[#allocation8 + $0x118] sm:$0xf]
    %v1978 = vld [vmem:[#allocation8 + $0x11c] sm:$0xf]
    %v1979 = vld [vmem:[#allocation8 + $0x120] sm:$0xf]
    %v1980 = vld [vmem:[#allocation8 + $0x124] sm:$0xf]
    %v1981 = vld [vmem:[#allocation8 + $0x128] sm:$0xf]
    %v1982 = vld [vmem:[#allocation8 + $0x12c] sm:$0xf]
    %v1983 = vld [vmem:[#allocation8 + $0x130] sm:$0xf]
    %v1984 = vld [vmem:[#allocation8 + $0x134] sm:$0xf]
    %v1985 = vld [vmem:[#allocation8 + $0x138] sm:$0xf]
    %v1986 = vld [vmem:[#allocation8 + $0x13c] sm:$0xf]
    %v1987 = vld [vmem:[#allocation8 + $0x140] sm:$0xf]
    %v1988 = vld [vmem:[#allocation8 + $0x144] sm:$0xf]
    %v1989 = vld [vmem:[#allocation8 + $0x148] sm:$0xf]
    %v1990 = vld [vmem:[#allocation8 + $0x14c] sm:$0xf]
    %v1991 = vld [vmem:[#allocation8 + $0x150] sm:$0xf]
    %v1992 = vld [vmem:[#allocation8 + $0x154] sm:$0xf]
    %v1993 = vld [vmem:[#allocation8 + $0x158] sm:$0xf]
    %v1994 = vld [vmem:[#allocation8 + $0x15c] sm:$0xf]
    %v1995 = vld [vmem:[#allocation8 + $0x160] sm:$0xf]
    %v1996 = vld [vmem:[#allocation8 + $0x164] sm:$0xf]
    %v1997 = vld [vmem:[#allocation8 + $0x168] sm:$0xf]
    %v1998 = vld [vmem:[#allocation8 + $0x16c] sm:$0xf]
    %v1999 = vld [vmem:[#allocation8 + $0x170] sm:$0xf]
    %v2000 = vld [vmem:[#allocation8 + $0x174] sm:$0xf]
    %v2001 = vld [vmem:[#allocation8 + $0x178] sm:$0xf]
    %v2002 = vld [vmem:[#allocation8 + $0x17c] sm:$0xf]
    %v2003 = vld [vmem:[#allocation8 + $0x180] sm:$0xf]
    %v2004 = vld [vmem:[#allocation8 + $0x184] sm:$0xf]
    %v2005 = vld [vmem:[#allocation8 + $0x188] sm:$0xf]
    %v2006 = vld [vmem:[#allocation8 + $0x18c] sm:$0xf]
    %v2007 = vld [vmem:[#allocation8 + $0x190] sm:$0xf]
    %v2008 = vld [vmem:[#allocation8 + $0x194] sm:$0xf]
    %v2009 = vld [vmem:[#allocation8 + $0x198] sm:$0xf]
    %v2010 = vld [vmem:[#allocation8 + $0x19c] sm:$0xf]
    %v2011 = vld [vmem:[#allocation8 + $0x1a0] sm:$0xf]
    %v2012 = vld [vmem:[#allocation8 + $0x1a4] sm:$0xf]
    %v2013 = vld [vmem:[#allocation8 + $0x1a8] sm:$0xf]
    %v2014 = vld [vmem:[#allocation8 + $0x1ac] sm:$0xf]
    %v2015 = vld [vmem:[#allocation8 + $0x1b0] sm:$0xf]
    %v2016 = vld [vmem:[#allocation8 + $0x1b4] sm:$0xf]
    %v2017 = vld [vmem:[#allocation8 + $0x1b8] sm:$0xf]
    %v2018 = vld [vmem:[#allocation8 + $0x1bc] sm:$0xf]
    %v2019 = vld [vmem:[#allocation8 + $0x1c0] sm:$0xf]
    %v2020 = vld [vmem:[#allocation8 + $0x1c4] sm:$0xf]
    %v2021 = vld [vmem:[#allocation8 + $0x1c8] sm:$0xf]
    %v2022 = vld [vmem:[#allocation8 + $0x1cc] sm:$0xf]
    %v2023 = vld [vmem:[#allocation8 + $0x1d0] sm:$0xf]
    %v2024 = vld [vmem:[#allocation8 + $0x1d4] sm:$0xf]
    %v2025 = vld [vmem:[#allocation8 + $0x1d8] sm:$0xf]
    %v2026 = vld [vmem:[#allocation8 + $0x1dc] sm:$0xf]
    %v2027 = vld [vmem:[#allocation8 + $0x1e0] sm:$0xf]
    %v2028 = vld [vmem:[#allocation8 + $0x1e4] sm:$0xf]
    %v2029 = vld [vmem:[#allocation8 + $0x1e8] sm:$0xf]
    %v2030 = vld [vmem:[#allocation8 + $0x1ec] sm:$0xf]
    %v2031 = vld [vmem:[#allocation8 + $0x1f0] sm:$0xf]
    %v2032 = vld [vmem:[#allocation8 + $0x1f4] sm:$0xf]
    %v2033 = vld [vmem:[#allocation8 + $0x1f8] sm:$0xf]
    %v2034 = vld [vmem:[#allocation8 + $0x1fc] sm:$0xf]
    %v2035 = vld [vmem:[#allocation8 + $0x200] sm:$0xf]
    %v2036 = vld [vmem:[#allocation8 + $0x204] sm:$0xf]
    %v2037 = vld [vmem:[#allocation8 + $0x208] sm:$0xf]
    %v2038 = vld [vmem:[#allocation8 + $0x20c] sm:$0xf]
    %v2039 = vld [vmem:[#allocation8 + $0x210] sm:$0xf]
    %v2040 = vld [vmem:[#allocation8 + $0x214] sm:$0xf]
    %v2041 = vld [vmem:[#allocation8 + $0x218] sm:$0xf]
    %v2042 = vld [vmem:[#allocation8 + $0x21c] sm:$0xf]
    %v2043 = vld [vmem:[#allocation8 + $0x220] sm:$0xf]
    %v2044 = vld [vmem:[#allocation8 + $0x224] sm:$0xf]
    %v2045 = vld [vmem:[#allocation8 + $0x228] sm:$0xf]
    %v2046 = vld [vmem:[#allocation8 + $0x22c] sm:$0xf]
    %v2047 = vld [vmem:[#allocation8 + $0x230] sm:$0xf]
    %v2048 = vld [vmem:[#allocation8 + $0x234] sm:$0xf]
    %v2049 = vld [vmem:[#allocation8 + $0x238] sm:$0xf]
    %v2050 = vld [vmem:[#allocation8 + $0x23c] sm:$0xf]
    %v2051 = vld [vmem:[#allocation8 + $0x240] sm:$0xf]
    %v2052 = vld [vmem:[#allocation8 + $0x244] sm:$0xf]
    %v2053 = vld [vmem:[#allocation8 + $0x248] sm:$0xf]
    %v2054 = vld [vmem:[#allocation8 + $0x24c] sm:$0xf]
    %v2055 = vld [vmem:[#allocation8 + $0x250] sm:$0xf]
    %v2056 = vld [vmem:[#allocation8 + $0x254] sm:$0xf]
    %v2057 = vld [vmem:[#allocation8 + $0x258] sm:$0xf]
    %v2058 = vld [vmem:[#allocation8 + $0x25c] sm:$0xf]
    %v2059 = vld [vmem:[#allocation8 + $0x260] sm:$0xf]
    %v2060 = vld [vmem:[#allocation8 + $0x264] sm:$0xf]
    %v2061 = vld [vmem:[#allocation8 + $0x268] sm:$0xf]
    %v2062 = vld [vmem:[#allocation8 + $0x26c] sm:$0xf]
    %v2063 = vld [vmem:[#allocation8 + $0x270] sm:$0xf]
    %v2064 = vld [vmem:[#allocation8 + $0x274] sm:$0xf]
    %v2065 = vld [vmem:[#allocation8 + $0x278] sm:$0xf]
    %v2066 = vld [vmem:[#allocation8 + $0x27c] sm:$0xf]
    %v2067 = vld [vmem:[#allocation8 + $0x280] sm:$0xf]
    %v2068 = vld [vmem:[#allocation8 + $0x284] sm:$0xf]
    %v2069 = vld [vmem:[#allocation8 + $0x288] sm:$0xf]
    %v2070 = vld [vmem:[#allocation8 + $0x28c] sm:$0xf]
    %v2071 = vld [vmem:[#allocation8 + $0x290] sm:$0xf]
    %v2072 = vld [vmem:[#allocation8 + $0x294] sm:$0xf]
    %v2073 = vld [vmem:[#allocation8 + $0x298] sm:$0xf]
    %v2074 = vld [vmem:[#allocation8 + $0x29c] sm:$0xf]
    %v2075 = vld [vmem:[#allocation8 + $0x2a0] sm:$0xf]
    %v2076 = vld [vmem:[#allocation8 + $0x2a4] sm:$0xf]
    %v2077 = vld [vmem:[#allocation8 + $0x2a8] sm:$0xf]
    %v2078 = vld [vmem:[#allocation8 + $0x2ac] sm:$0xf]
    %v2079 = vld [vmem:[#allocation8 + $0x2b0] sm:$0xf]
    %v2080 = vld [vmem:[#allocation8 + $0x2b4] sm:$0xf]
    %v2081 = vld [vmem:[#allocation8 + $0x2b8] sm:$0xf]
    %v2082 = vld [vmem:[#allocation8 + $0x2bc] sm:$0xf]
    %v2083 = vld [vmem:[#allocation8 + $0x2c0] sm:$0xf]
    %v2084 = vld [vmem:[#allocation8 + $0x2c4] sm:$0xf]
    %v2085 = vld [vmem:[#allocation8 + $0x2c8] sm:$0xf]
    %v2086 = vld [vmem:[#allocation8 + $0x2cc] sm:$0xf]
    %v2087 = vld [vmem:[#allocation8 + $0x2d0] sm:$0xf]
    %v2088 = vld [vmem:[#allocation8 + $0x2d4] sm:$0xf]
    %v2089 = vld [vmem:[#allocation8 + $0x2d8] sm:$0xf]
    %v2090 = vld [vmem:[#allocation8 + $0x2dc] sm:$0xf]
    %v2091 = vld [vmem:[#allocation8 + $0x2e0] sm:$0xf]
    %v2092 = vld [vmem:[#allocation8 + $0x2e4] sm:$0xf]
    %v2093 = vld [vmem:[#allocation8 + $0x2e8] sm:$0xf]
    %v2094 = vld [vmem:[#allocation8 + $0x2ec] sm:$0xf]
    %v2095 = vld [vmem:[#allocation8 + $0x2f0] sm:$0xf]
    %v2096 = vld [vmem:[#allocation8 + $0x2f4] sm:$0xf]
    %v2097 = vld [vmem:[#allocation8 + $0x2f8] sm:$0xf]
    %v2098 = vld [vmem:[#allocation8 + $0x2fc] sm:$0xf]
    %v2099 = vld [vmem:[#allocation8 + $0x300] sm:$0xf]
    %v2100 = vld [vmem:[#allocation8 + $0x304] sm:$0xf]
    %v2101 = vld [vmem:[#allocation8 + $0x308] sm:$0xf]
    %v2102 = vld [vmem:[#allocation8 + $0x30c] sm:$0xf]
    %v2103 = vld [vmem:[#allocation8 + $0x310] sm:$0xf]
    %v2104 = vld [vmem:[#allocation8 + $0x314] sm:$0xf]
    %v2105 = vld [vmem:[#allocation8 + $0x318] sm:$0xf]
    %v2106 = vld [vmem:[#allocation8 + $0x31c] sm:$0xf]
    %v2107 = vld [vmem:[#allocation8 + $0x320] sm:$0xf]
    %v2108 = vld [vmem:[#allocation8 + $0x324] sm:$0xf]
    %v2109 = vld [vmem:[#allocation8 + $0x328] sm:$0xf]
    %v2110 = vld [vmem:[#allocation8 + $0x32c] sm:$0xf]
    %v2111 = vld [vmem:[#allocation8 + $0x330] sm:$0xf]
    %v2112 = vld [vmem:[#allocation8 + $0x334] sm:$0xf]
    %v2113 = vld [vmem:[#allocation8 + $0x338] sm:$0xf]
    %v2114 = vld [vmem:[#allocation8 + $0x33c] sm:$0xf]
    %v2115 = vld [vmem:[#allocation8 + $0x340] sm:$0xf]
    %v2116 = vld [vmem:[#allocation8 + $0x344] sm:$0xf]
    %v2117 = vld [vmem:[#allocation8 + $0x348] sm:$0xf]
    %v2118 = vld [vmem:[#allocation8 + $0x34c] sm:$0xf]
    %v2119 = vld [vmem:[#allocation8 + $0x350] sm:$0xf]
    %v2120 = vld [vmem:[#allocation8 + $0x354] sm:$0xf]
    %v2121 = vld [vmem:[#allocation8 + $0x358] sm:$0xf]
    %v2122 = vld [vmem:[#allocation8 + $0x35c] sm:$0xf]
    %v2123 = vld [vmem:[#allocation8 + $0x360] sm:$0xf]
    %v2124 = vld [vmem:[#allocation8 + $0x364] sm:$0xf]
    %v2125 = vld [vmem:[#allocation8 + $0x368] sm:$0xf]
    %v2126 = vld [vmem:[#allocation8 + $0x36c] sm:$0xf]
    %v2127 = vld [vmem:[#allocation8 + $0x370] sm:$0xf]
    %v2128 = vld [vmem:[#allocation8 + $0x374] sm:$0xf]
    %v2129 = vld [vmem:[#allocation8 + $0x378] sm:$0xf]
    %v2130 = vld [vmem:[#allocation8 + $0x37c] sm:$0xf]
    %v2131 = vld [vmem:[#allocation8 + $0x380] sm:$0xf]
    %v2132 = vld [vmem:[#allocation8 + $0x384] sm:$0xf]
    %v2133 = vld [vmem:[#allocation8 + $0x388] sm:$0xf]
    %v2134 = vld [vmem:[#allocation8 + $0x38c] sm:$0xf]
    %v2135 = vld [vmem:[#allocation8 + $0x390] sm:$0xf]
    %v2136 = vld [vmem:[#allocation8 + $0x394] sm:$0xf]
    %v2137 = vld [vmem:[#allocation8 + $0x398] sm:$0xf]
    %v2138 = vld [vmem:[#allocation8 + $0x39c] sm:$0xf]
    %v2139 = vld [vmem:[#allocation8 + $0x3a0] sm:$0xf]
    %v2140 = vld [vmem:[#allocation8 + $0x3a4] sm:$0xf]
    %v2141 = vld [vmem:[#allocation8 + $0x3a8] sm:$0xf]
    %v2142 = vld [vmem:[#allocation8 + $0x3ac] sm:$0xf]
    %v2143 = vld [vmem:[#allocation8 + $0x3b0] sm:$0xf]
    %v2144 = vld [vmem:[#allocation8 + $0x3b4] sm:$0xf]
    %v2145 = vld [vmem:[#allocation8 + $0x3b8] sm:$0xf]
    %v2146 = vld [vmem:[#allocation8 + $0x3bc] sm:$0xf]
    %v2147 = vld [vmem:[#allocation8 + $0x3c0] sm:$0xf]
    %v2148 = vld [vmem:[#allocation8 + $0x3c4] sm:$0xf]
    %v2149 = vld [vmem:[#allocation8 + $0x3c8] sm:$0xf]
    %v2150 = vld [vmem:[#allocation8 + $0x3cc] sm:$0xf]
    %v2151 = vld [vmem:[#allocation8 + $0x3d0] sm:$0xf]
    %v2152 = vld [vmem:[#allocation8 + $0x3d4] sm:$0xf]
    %v2153 = vld [vmem:[#allocation8 + $0x3d8] sm:$0xf]
    %v2154 = vld [vmem:[#allocation8 + $0x3dc] sm:$0xf]
    %v2155 = vld [vmem:[#allocation8 + $0x3e0] sm:$0xf]
    %v2156 = vld [vmem:[#allocation8 + $0x3e4] sm:$0xf]
    %v2157 = vld [vmem:[#allocation8 + $0x3e8] sm:$0xf]
    %v2158 = vld [vmem:[#allocation8 + $0x3ec] sm:$0xf]
    %v2159 = vld [vmem:[#allocation8 + $0x3f0] sm:$0xf]
    %v2160 = vld [vmem:[#allocation8 + $0x3f4] sm:$0xf]
    %v2161 = vld [vmem:[#allocation8 + $0x3f8] sm:$0xf]
    %v2162 = vld [vmem:[#allocation8 + $0x3fc] sm:$0xf]
    %v2163 = vpack.c.bf16 %v1875, %v1875
    %v2164 = vpack.c.bf16 %v1876, %v1876
    %v2165 = vpack.c.bf16 %v1877, %v1877
    %v2166 = vpack.c.bf16 %v1878, %v1878
    %v2167 = vpack.c.bf16 %v1879, %v1879
    %v2168 = vpack.c.bf16 %v1880, %v1880
    %v2169 = vpack.c.bf16 %v1881, %v1881
    %v2170 = vpack.c.bf16 %v1882, %v1882
    %v2171 = vpack.c.bf16 %v1899, %v1899
    %v2172 = vpack.c.bf16 %v1900, %v1900
    %v2173 = vpack.c.bf16 %v1901, %v1901
    %v2174 = vpack.c.bf16 %v1902, %v1902
    %v2175 = vpack.c.bf16 %v1903, %v1903
    %v2176 = vpack.c.bf16 %v1904, %v1904
    %v2177 = vpack.c.bf16 %v1905, %v1905
    %v2178 = vpack.c.bf16 %v1906, %v1906
    %vm2179 = vcmp.gt.f32.partialorder %v1856, 0.0
    %v2180 = vmul.f32 %v1866, %v1856
    %v2181 = vsel %vm2179, %v1856, %v2180
    %v2182 = vld [vmem:[%s10] sm:$0xf]
    %v2183 = vld [vmem:[%s10 + $0x4] sm:$0xf]
    %v2184 = vpack.c.bf16 %v2181, %v2181
    %v2187 = vunpack.c.l.b16 %v2182
    %v2188 = vunpack.c.l.b16 %v2183
    %v2189 = vpack.c.b16 %v2188, %v2187
    %vm2191 = vcmask 130048
    %v2193 = vsel %vm2191, %v2184, 0
    %2195 = vmatprep.subr.bf16.mxu0 0
    %2196 = vmatpush1.bf16.msra.mxu0 %v2189
    %2197 = vmatprep.subr.bf16.mxu0 0
    %2198 = vmatpush1.bf16.msra.mxu0 0
    %2199 = vmatprep.subr.bf16.mxu0 0
    %2200 = vmatpush1.bf16.msra.mxu0 0
    %2201 = vmatprep.subr.bf16.mxu0 0
    %2202 = vmatpush1.bf16.msra.mxu0 0
    %2203 = vmatprep.subr.bf16.mxu0 0
    %2204 = vmatpush1.bf16.msra.mxu0 0
    %2205 = vmatprep.subr.bf16.mxu0 0
    %2206 = vmatpush1.bf16.msra.mxu0 0
    %2207 = vmatprep.subr.bf16.mxu0 0
    %2208 = vmatpush1.bf16.msra.mxu0 0
    %2209 = vmatprep.subr.bf16.mxu0 0
    %2210 = vmatpush1.bf16.msra.mxu0 0
    %2211 = vmatprep.subr.bf16.mxu0 0
    %2212 = vmatpush1.bf16.msra.mxu0 0
    %2213 = vmatprep.subr.bf16.mxu0 0
    %2214 = vmatpush1.bf16.msra.mxu0 0
    %2215 = vmatprep.subr.bf16.mxu0 0
    %2216 = vmatpush1.bf16.msra.mxu0 0
    %2217 = vmatprep.subr.bf16.mxu0 0
    %2218 = vmatpush1.bf16.msra.mxu0 0
    %2219 = vmatprep.subr.bf16.mxu0 0
    %2220 = vmatpush1.bf16.msra.mxu0 0
    %2221 = vmatprep.subr.bf16.mxu0 0
    %2222 = vmatpush1.bf16.msra.mxu0 0
    %2223 = vmatprep.subr.bf16.mxu0 0
    %2224 = vmatpush1.bf16.msra.mxu0 0
    %2225 = vmatprep.subr.bf16.mxu0 0
    %2226 = vmatpush1.bf16.msra.mxu0 0
    %2227 = vmatprep.mubr.bf16.mxu0 0
    %2228 = vmatmul.mubr.bf16.gmra.mrb[0].mxu0 %v2193
    %v2229 = vpop.f32.mrb[0].mxu0
    %v2230 = vadd.f32 0.0, %v2229
    %v2231 = vpop.f32.mrb[0].mxu0
    %v2232 = vpop.f32.mrb[0].mxu0
    %v2233 = vpop.f32.mrb[0].mxu0
    %2234 = vdwg.mxu0
    %v2491 = vunpack.c.l.b16 %v1907
    %v2492 = vunpack.c.l.b16 %v1908
    %v2493 = vunpack.c.l.b16 %v1909
    %v2494 = vunpack.c.l.b16 %v1910
    %v2495 = vunpack.c.l.b16 %v1911
    %v2496 = vunpack.c.l.b16 %v1912
    %v2497 = vunpack.c.l.b16 %v1913
    %v2498 = vunpack.c.l.b16 %v1914
    %v2499 = vunpack.c.l.b16 %v1915
    %v2500 = vunpack.c.l.b16 %v1916
    %v2501 = vunpack.c.l.b16 %v1917
    %v2502 = vunpack.c.l.b16 %v1918
    %v2503 = vunpack.c.l.b16 %v1919
    %v2504 = vunpack.c.l.b16 %v1920
    %v2505 = vunpack.c.l.b16 %v1921
    %v2506 = vunpack.c.l.b16 %v1922
    %v2507 = vunpack.c.l.b16 %v1923
    %v2508 = vunpack.c.l.b16 %v1924
    %v2509 = vunpack.c.l.b16 %v1925
    %v2510 = vunpack.c.l.b16 %v1926
    %v2511 = vunpack.c.l.b16 %v1927
    %v2512 = vunpack.c.l.b16 %v1928
    %v2513 = vunpack.c.l.b16 %v1929
    %v2514 = vunpack.c.l.b16 %v1930
    %v2515 = vunpack.c.l.b16 %v1931
    %v2516 = vunpack.c.l.b16 %v1932
    %v2517 = vunpack.c.l.b16 %v1933
    %v2518 = vunpack.c.l.b16 %v1934
    %v2519 = vunpack.c.l.b16 %v1935
    %v2520 = vunpack.c.l.b16 %v1936
    %v2521 = vunpack.c.l.b16 %v1937
    %v2522 = vunpack.c.l.b16 %v1938
    %v2523 = vunpack.c.l.b16 %v1939
    %v2524 = vunpack.c.l.b16 %v1940
    %v2525 = vunpack.c.l.b16 %v1941
    %v2526 = vunpack.c.l.b16 %v1942
    %v2527 = vunpack.c.l.b16 %v1943
    %v2528 = vunpack.c.l.b16 %v1944
    %v2529 = vunpack.c.l.b16 %v1945
    %v2530 = vunpack.c.l.b16 %v1946
    %v2531 = vunpack.c.l.b16 %v1947
    %v2532 = vunpack.c.l.b16 %v1948
    %v2533 = vunpack.c.l.b16 %v1949
    %v2534 = vunpack.c.l.b16 %v1950
    %v2535 = vunpack.c.l.b16 %v1951
    %v2536 = vunpack.c.l.b16 %v1952
    %v2537 = vunpack.c.l.b16 %v1953
    %v2538 = vunpack.c.l.b16 %v1954
    %v2539 = vunpack.c.l.b16 %v1955
    %v2540 = vunpack.c.l.b16 %v1956
    %v2541 = vunpack.c.l.b16 %v1957
    %v2542 = vunpack.c.l.b16 %v1958
    %v2543 = vunpack.c.l.b16 %v1959
    %v2544 = vunpack.c.l.b16 %v1960
    %v2545 = vunpack.c.l.b16 %v1961
    %v2546 = vunpack.c.l.b16 %v1962
    %v2547 = vunpack.c.l.b16 %v1963
    %v2548 = vunpack.c.l.b16 %v1964
    %v2549 = vunpack.c.l.b16 %v1965
    %v2550 = vunpack.c.l.b16 %v1966
    %v2551 = vunpack.c.l.b16 %v1967
    %v2552 = vunpack.c.l.b16 %v1968
    %v2553 = vunpack.c.l.b16 %v1969
    %v2554 = vunpack.c.l.b16 %v1970
    %v2555 = vunpack.c.l.b16 %v1971
    %v2556 = vunpack.c.l.b16 %v1972
    %v2557 = vunpack.c.l.b16 %v1973
    %v2558 = vunpack.c.l.b16 %v1974
    %v2559 = vunpack.c.l.b16 %v1975
    %v2560 = vunpack.c.l.b16 %v1976
    %v2561 = vunpack.c.l.b16 %v1977
    %v2562 = vunpack.c.l.b16 %v1978
    %v2563 = vunpack.c.l.b16 %v1979
    %v2564 = vunpack.c.l.b16 %v1980
    %v2565 = vunpack.c.l.b16 %v1981
    %v2566 = vunpack.c.l.b16 %v1982
    %v2567 = vunpack.c.l.b16 %v1983
    %v2568 = vunpack.c.l.b16 %v1984
    %v2569 = vunpack.c.l.b16 %v1985
    %v2570 = vunpack.c.l.b16 %v1986
    %v2571 = vunpack.c.l.b16 %v1987
    %v2572 = vunpack.c.l.b16 %v1988
    %v2573 = vunpack.c.l.b16 %v1989
    %v2574 = vunpack.c.l.b16 %v1990
    %v2575 = vunpack.c.l.b16 %v1991
    %v2576 = vunpack.c.l.b16 %v1992
    %v2577 = vunpack.c.l.b16 %v1993
    %v2578 = vunpack.c.l.b16 %v1994
    %v2579 = vunpack.c.l.b16 %v1995
    %v2580 = vunpack.c.l.b16 %v1996
    %v2581 = vunpack.c.l.b16 %v1997
    %v2582 = vunpack.c.l.b16 %v1998
    %v2583 = vunpack.c.l.b16 %v1999
    %v2584 = vunpack.c.l.b16 %v2000
    %v2585 = vunpack.c.l.b16 %v2001
    %v2586 = vunpack.c.l.b16 %v2002
    %v2587 = vunpack.c.l.b16 %v2003
    %v2588 = vunpack.c.l.b16 %v2004
    %v2589 = vunpack.c.l.b16 %v2005
    %v2590 = vunpack.c.l.b16 %v2006
    %v2591 = vunpack.c.l.b16 %v2007
    %v2592 = vunpack.c.l.b16 %v2008
    %v2593 = vunpack.c.l.b16 %v2009
    %v2594 = vunpack.c.l.b16 %v2010
    %v2595 = vunpack.c.l.b16 %v2011
    %v2596 = vunpack.c.l.b16 %v2012
    %v2597 = vunpack.c.l.b16 %v2013
    %v2598 = vunpack.c.l.b16 %v2014
    %v2599 = vunpack.c.l.b16 %v2015
    %v2600 = vunpack.c.l.b16 %v2016
    %v2601 = vunpack.c.l.b16 %v2017
    %v2602 = vunpack.c.l.b16 %v2018
    %v2603 = vunpack.c.l.b16 %v2019
    %v2604 = vunpack.c.l.b16 %v2020
    %v2605 = vunpack.c.l.b16 %v2021
    %v2606 = vunpack.c.l.b16 %v2022
    %v2607 = vunpack.c.l.b16 %v2023
    %v2608 = vunpack.c.l.b16 %v2024
    %v2609 = vunpack.c.l.b16 %v2025
    %v2610 = vunpack.c.l.b16 %v2026
    %v2611 = vunpack.c.l.b16 %v2027
    %v2612 = vunpack.c.l.b16 %v2028
    %v2613 = vunpack.c.l.b16 %v2029
    %v2614 = vunpack.c.l.b16 %v2030
    %v2615 = vunpack.c.l.b16 %v2031
    %v2616 = vunpack.c.l.b16 %v2032
    %v2617 = vunpack.c.l.b16 %v2033
    %v2618 = vunpack.c.l.b16 %v2034
    %v2619 = vunpack.c.l.b16 %v2035
    %v2620 = vunpack.c.l.b16 %v2036
    %v2621 = vunpack.c.l.b16 %v2037
    %v2622 = vunpack.c.l.b16 %v2038
    %v2623 = vunpack.c.l.b16 %v2039
    %v2624 = vunpack.c.l.b16 %v2040
    %v2625 = vunpack.c.l.b16 %v2041
    %v2626 = vunpack.c.l.b16 %v2042
    %v2627 = vunpack.c.l.b16 %v2043
    %v2628 = vunpack.c.l.b16 %v2044
    %v2629 = vunpack.c.l.b16 %v2045
    %v2630 = vunpack.c.l.b16 %v2046
    %v2631 = vunpack.c.l.b16 %v2047
    %v2632 = vunpack.c.l.b16 %v2048
    %v2633 = vunpack.c.l.b16 %v2049
    %v2634 = vunpack.c.l.b16 %v2050
    %v2635 = vunpack.c.l.b16 %v2051
    %v2636 = vunpack.c.l.b16 %v2052
    %v2637 = vunpack.c.l.b16 %v2053
    %v2638 = vunpack.c.l.b16 %v2054
    %v2639 = vunpack.c.l.b16 %v2055
    %v2640 = vunpack.c.l.b16 %v2056
    %v2641 = vunpack.c.l.b16 %v2057
    %v2642 = vunpack.c.l.b16 %v2058
    %v2643 = vunpack.c.l.b16 %v2059
    %v2644 = vunpack.c.l.b16 %v2060
    %v2645 = vunpack.c.l.b16 %v2061
    %v2646 = vunpack.c.l.b16 %v2062
    %v2647 = vunpack.c.l.b16 %v2063
    %v2648 = vunpack.c.l.b16 %v2064
    %v2649 = vunpack.c.l.b16 %v2065
    %v2650 = vunpack.c.l.b16 %v2066
    %v2651 = vunpack.c.l.b16 %v2067
    %v2652 = vunpack.c.l.b16 %v2068
    %v2653 = vunpack.c.l.b16 %v2069
    %v2654 = vunpack.c.l.b16 %v2070
    %v2655 = vunpack.c.l.b16 %v2071
    %v2656 = vunpack.c.l.b16 %v2072
    %v2657 = vunpack.c.l.b16 %v2073
    %v2658 = vunpack.c.l.b16 %v2074
    %v2659 = vunpack.c.l.b16 %v2075
    %v2660 = vunpack.c.l.b16 %v2076
    %v2661 = vunpack.c.l.b16 %v2077
    %v2662 = vunpack.c.l.b16 %v2078
    %v2663 = vunpack.c.l.b16 %v2079
    %v2664 = vunpack.c.l.b16 %v2080
    %v2665 = vunpack.c.l.b16 %v2081
    %v2666 = vunpack.c.l.b16 %v2082
    %v2667 = vunpack.c.l.b16 %v2083
    %v2668 = vunpack.c.l.b16 %v2084
    %v2669 = vunpack.c.l.b16 %v2085
    %v2670 = vunpack.c.l.b16 %v2086
    %v2671 = vunpack.c.l.b16 %v2087
    %v2672 = vunpack.c.l.b16 %v2088
    %v2673 = vunpack.c.l.b16 %v2089
    %v2674 = vunpack.c.l.b16 %v2090
    %v2675 = vunpack.c.l.b16 %v2091
    %v2676 = vunpack.c.l.b16 %v2092
    %v2677 = vunpack.c.l.b16 %v2093
    %v2678 = vunpack.c.l.b16 %v2094
    %v2679 = vunpack.c.l.b16 %v2095
    %v2680 = vunpack.c.l.b16 %v2096
    %v2681 = vunpack.c.l.b16 %v2097
    %v2682 = vunpack.c.l.b16 %v2098
    %v2683 = vunpack.c.l.b16 %v2099
    %v2684 = vunpack.c.l.b16 %v2100
    %v2685 = vunpack.c.l.b16 %v2101
    %v2686 = vunpack.c.l.b16 %v2102
    %v2687 = vunpack.c.l.b16 %v2103
    %v2688 = vunpack.c.l.b16 %v2104
    %v2689 = vunpack.c.l.b16 %v2105
    %v2690 = vunpack.c.l.b16 %v2106
    %v2691 = vunpack.c.l.b16 %v2107
    %v2692 = vunpack.c.l.b16 %v2108
    %v2693 = vunpack.c.l.b16 %v2109
    %v2694 = vunpack.c.l.b16 %v2110
    %v2695 = vunpack.c.l.b16 %v2111
    %v2696 = vunpack.c.l.b16 %v2112
    %v2697 = vunpack.c.l.b16 %v2113
    %v2698 = vunpack.c.l.b16 %v2114
    %v2699 = vunpack.c.l.b16 %v2115
    %v2700 = vunpack.c.l.b16 %v2116
    %v2701 = vunpack.c.l.b16 %v2117
    %v2702 = vunpack.c.l.b16 %v2118
    %v2703 = vunpack.c.l.b16 %v2119
    %v2704 = vunpack.c.l.b16 %v2120
    %v2705 = vunpack.c.l.b16 %v2121
    %v2706 = vunpack.c.l.b16 %v2122
    %v2707 = vunpack.c.l.b16 %v2123
    %v2708 = vunpack.c.l.b16 %v2124
    %v2709 = vunpack.c.l.b16 %v2125
    %v2710 = vunpack.c.l.b16 %v2126
    %v2711 = vunpack.c.l.b16 %v2127
    %v2712 = vunpack.c.l.b16 %v2128
    %v2713 = vunpack.c.l.b16 %v2129
    %v2714 = vunpack.c.l.b16 %v2130
    %v2715 = vunpack.c.l.b16 %v2131
    %v2716 = vunpack.c.l.b16 %v2132
    %v2717 = vunpack.c.l.b16 %v2133
    %v2718 = vunpack.c.l.b16 %v2134
    %v2719 = vunpack.c.l.b16 %v2135
    %v2720 = vunpack.c.l.b16 %v2136
    %v2721 = vunpack.c.l.b16 %v2137
    %v2722 = vunpack.c.l.b16 %v2138
    %v2723 = vunpack.c.l.b16 %v2139
    %v2724 = vunpack.c.l.b16 %v2140
    %v2725 = vunpack.c.l.b16 %v2141
    %v2726 = vunpack.c.l.b16 %v2142
    %v2727 = vunpack.c.l.b16 %v2143
    %v2728 = vunpack.c.l.b16 %v2144
    %v2729 = vunpack.c.l.b16 %v2145
    %v2730 = vunpack.c.l.b16 %v2146
    %v2731 = vunpack.c.l.b16 %v2147
    %v2732 = vunpack.c.l.b16 %v2148
    %v2733 = vunpack.c.l.b16 %v2149
    %v2734 = vunpack.c.l.b16 %v2150
    %v2735 = vunpack.c.l.b16 %v2151
    %v2736 = vunpack.c.l.b16 %v2152
    %v2737 = vunpack.c.l.b16 %v2153
    %v2738 = vunpack.c.l.b16 %v2154
    %v2739 = vunpack.c.l.b16 %v2155
    %v2740 = vunpack.c.l.b16 %v2156
    %v2741 = vunpack.c.l.b16 %v2157
    %v2742 = vunpack.c.l.b16 %v2158
    %v2743 = vunpack.c.l.b16 %v2159
    %v2744 = vunpack.c.l.b16 %v2160
    %v2745 = vunpack.c.l.b16 %v2161
    %v2746 = vunpack.c.l.b16 %v2162
    %v2747 = vpack.c.b16 %v2492, %v2491
    %v2748 = vpack.c.b16 %v2494, %v2493
    %v2749 = vpack.c.b16 %v2496, %v2495
    %v2750 = vpack.c.b16 %v2498, %v2497
    %v2751 = vpack.c.b16 %v2500, %v2499
    %v2752 = vpack.c.b16 %v2502, %v2501
    %v2753 = vpack.c.b16 %v2504, %v2503
    %v2754 = vpack.c.b16 %v2506, %v2505
    %v2755 = vpack.c.b16 %v2508, %v2507
    %v2756 = vpack.c.b16 %v2510, %v2509
    %v2757 = vpack.c.b16 %v2512, %v2511
    %v2758 = vpack.c.b16 %v2514, %v2513
    %v2759 = vpack.c.b16 %v2516, %v2515
    %v2760 = vpack.c.b16 %v2518, %v2517
    %v2761 = vpack.c.b16 %v2520, %v2519
    %v2762 = vpack.c.b16 %v2522, %v2521
    %v2763 = vpack.c.b16 %v2524, %v2523
    %v2764 = vpack.c.b16 %v2526, %v2525
    %v2765 = vpack.c.b16 %v2528, %v2527
    %v2766 = vpack.c.b16 %v2530, %v2529
    %v2767 = vpack.c.b16 %v2532, %v2531
    %v2768 = vpack.c.b16 %v2534, %v2533
    %v2769 = vpack.c.b16 %v2536, %v2535
    %v2770 = vpack.c.b16 %v2538, %v2537
    %v2771 = vpack.c.b16 %v2540, %v2539
    %v2772 = vpack.c.b16 %v2542, %v2541
    %v2773 = vpack.c.b16 %v2544, %v2543
    %v2774 = vpack.c.b16 %v2546, %v2545
    %v2775 = vpack.c.b16 %v2548, %v2547
    %v2776 = vpack.c.b16 %v2550, %v2549
    %v2777 = vpack.c.b16 %v2552, %v2551
    %v2778 = vpack.c.b16 %v2554, %v2553
    %v2779 = vpack.c.b16 %v2556, %v2555
    %v2780 = vpack.c.b16 %v2558, %v2557
    %v2781 = vpack.c.b16 %v2560, %v2559
    %v2782 = vpack.c.b16 %v2562, %v2561
    %v2783 = vpack.c.b16 %v2564, %v2563
    %v2784 = vpack.c.b16 %v2566, %v2565
    %v2785 = vpack.c.b16 %v2568, %v2567
    %v2786 = vpack.c.b16 %v2570, %v2569
    %v2787 = vpack.c.b16 %v2572, %v2571
    %v2788 = vpack.c.b16 %v2574, %v2573
    %v2789 = vpack.c.b16 %v2576, %v2575
    %v2790 = vpack.c.b16 %v2578, %v2577
    %v2791 = vpack.c.b16 %v2580, %v2579
    %v2792 = vpack.c.b16 %v2582, %v2581
    %v2793 = vpack.c.b16 %v2584, %v2583
    %v2794 = vpack.c.b16 %v2586, %v2585
    %v2795 = vpack.c.b16 %v2588, %v2587
    %v2796 = vpack.c.b16 %v2590, %v2589
    %v2797 = vpack.c.b16 %v2592, %v2591
    %v2798 = vpack.c.b16 %v2594, %v2593
    %v2799 = vpack.c.b16 %v2596, %v2595
    %v2800 = vpack.c.b16 %v2598, %v2597
    %v2801 = vpack.c.b16 %v2600, %v2599
    %v2802 = vpack.c.b16 %v2602, %v2601
    %v2803 = vpack.c.b16 %v2604, %v2603
    %v2804 = vpack.c.b16 %v2606, %v2605
    %v2805 = vpack.c.b16 %v2608, %v2607
    %v2806 = vpack.c.b16 %v2610, %v2609
    %v2807 = vpack.c.b16 %v2612, %v2611
    %v2808 = vpack.c.b16 %v2614, %v2613
    %v2809 = vpack.c.b16 %v2616, %v2615
    %v2810 = vpack.c.b16 %v2618, %v2617
    %v2811 = vpack.c.b16 %v2620, %v2619
    %v2812 = vpack.c.b16 %v2622, %v2621
    %v2813 = vpack.c.b16 %v2624, %v2623
    %v2814 = vpack.c.b16 %v2626, %v2625
    %v2815 = vpack.c.b16 %v2628, %v2627
    %v2816 = vpack.c.b16 %v2630, %v2629
    %v2817 = vpack.c.b16 %v2632, %v2631
    %v2818 = vpack.c.b16 %v2634, %v2633
    %v2819 = vpack.c.b16 %v2636, %v2635
    %v2820 = vpack.c.b16 %v2638, %v2637
    %v2821 = vpack.c.b16 %v2640, %v2639
    %v2822 = vpack.c.b16 %v2642, %v2641
    %v2823 = vpack.c.b16 %v2644, %v2643
    %v2824 = vpack.c.b16 %v2646, %v2645
    %v2825 = vpack.c.b16 %v2648, %v2647
    %v2826 = vpack.c.b16 %v2650, %v2649
    %v2827 = vpack.c.b16 %v2652, %v2651
    %v2828 = vpack.c.b16 %v2654, %v2653
    %v2829 = vpack.c.b16 %v2656, %v2655
    %v2830 = vpack.c.b16 %v2658, %v2657
    %v2831 = vpack.c.b16 %v2660, %v2659
    %v2832 = vpack.c.b16 %v2662, %v2661
    %v2833 = vpack.c.b16 %v2664, %v2663
    %v2834 = vpack.c.b16 %v2666, %v2665
    %v2835 = vpack.c.b16 %v2668, %v2667
    %v2836 = vpack.c.b16 %v2670, %v2669
    %v2837 = vpack.c.b16 %v2672, %v2671
    %v2838 = vpack.c.b16 %v2674, %v2673
    %v2839 = vpack.c.b16 %v2676, %v2675
    %v2840 = vpack.c.b16 %v2678, %v2677
    %v2841 = vpack.c.b16 %v2680, %v2679
    %v2842 = vpack.c.b16 %v2682, %v2681
    %v2843 = vpack.c.b16 %v2684, %v2683
    %v2844 = vpack.c.b16 %v2686, %v2685
    %v2845 = vpack.c.b16 %v2688, %v2687
    %v2846 = vpack.c.b16 %v2690, %v2689
    %v2847 = vpack.c.b16 %v2692, %v2691
    %v2848 = vpack.c.b16 %v2694, %v2693
    %v2849 = vpack.c.b16 %v2696, %v2695
    %v2850 = vpack.c.b16 %v2698, %v2697
    %v2851 = vpack.c.b16 %v2700, %v2699
    %v2852 = vpack.c.b16 %v2702, %v2701
    %v2853 = vpack.c.b16 %v2704, %v2703
    %v2854 = vpack.c.b16 %v2706, %v2705
    %v2855 = vpack.c.b16 %v2708, %v2707
    %v2856 = vpack.c.b16 %v2710, %v2709
    %v2857 = vpack.c.b16 %v2712, %v2711
    %v2858 = vpack.c.b16 %v2714, %v2713
    %v2859 = vpack.c.b16 %v2716, %v2715
    %v2860 = vpack.c.b16 %v2718, %v2717
    %v2861 = vpack.c.b16 %v2720, %v2719
    %v2862 = vpack.c.b16 %v2722, %v2721
    %v2863 = vpack.c.b16 %v2724, %v2723
    %v2864 = vpack.c.b16 %v2726, %v2725
    %v2865 = vpack.c.b16 %v2728, %v2727
    %v2866 = vpack.c.b16 %v2730, %v2729
    %v2867 = vpack.c.b16 %v2732, %v2731
    %v2868 = vpack.c.b16 %v2734, %v2733
    %v2869 = vpack.c.b16 %v2736, %v2735
    %v2870 = vpack.c.b16 %v2738, %v2737
    %v2871 = vpack.c.b16 %v2740, %v2739
    %v2872 = vpack.c.b16 %v2742, %v2741
    %v2873 = vpack.c.b16 %v2744, %v2743
    %v2874 = vpack.c.b16 %v2746, %v2745
    %3003 = vmatprep.subr.bf16.mxu0 0
    %3004 = vmatpush1.bf16.msra.mxu0 %v2747
    %3005 = vmatprep.subr.bf16.mxu0 0
    %3006 = vmatpush1.bf16.msra.mxu0 %v2748
    %3007 = vmatprep.subr.bf16.mxu0 0
    %3008 = vmatpush1.bf16.msra.mxu0 %v2749
    %3009 = vmatprep.subr.bf16.mxu0 0
    %3010 = vmatpush1.bf16.msra.mxu0 %v2750
    %3011 = vmatprep.subr.bf16.mxu0 0
    %3012 = vmatpush1.bf16.msra.mxu0 %v2751
    %3013 = vmatprep.subr.bf16.mxu0 0
    %3014 = vmatpush1.bf16.msra.mxu0 %v2752
    %3015 = vmatprep.subr.bf16.mxu0 0
    %3016 = vmatpush1.bf16.msra.mxu0 %v2753
    %3017 = vmatprep.subr.bf16.mxu0 0
    %3018 = vmatpush1.bf16.msra.mxu0 %v2754
    %3019 = vmatprep.subr.bf16.mxu0 0
    %3020 = vmatpush1.bf16.msra.mxu0 %v2755
    %3021 = vmatprep.subr.bf16.mxu0 0
    %3022 = vmatpush1.bf16.msra.mxu0 %v2756
    %3023 = vmatprep.subr.bf16.mxu0 0
    %3024 = vmatpush1.bf16.msra.mxu0 %v2757
    %3025 = vmatprep.subr.bf16.mxu0 0
    %3026 = vmatpush1.bf16.msra.mxu0 %v2758
    %3027 = vmatprep.subr.bf16.mxu0 0
    %3028 = vmatpush1.bf16.msra.mxu0 %v2759
    %3029 = vmatprep.subr.bf16.mxu0 0
    %3030 = vmatpush1.bf16.msra.mxu0 %v2760
    %3031 = vmatprep.subr.bf16.mxu0 0
    %3032 = vmatpush1.bf16.msra.mxu0 %v2761
    %3033 = vmatprep.subr.bf16.mxu0 0
    %3034 = vmatpush1.bf16.msra.mxu0 %v2762
    %3035 = vmatprep.mubr.bf16.mxu0 %v2164
    %3036 = vmatmul.mubr.bf16.gmra.mrb[0].mxu0 %v2163
    %v3037 = vpop.f32.mrb[0].mxu0
    %v3038 = vadd.f32 %v2230, %v3037
    %v3039 = vpop.f32.mrb[0].mxu0
    %v3040 = vpop.f32.mrb[0].mxu0
    %v3041 = vpop.f32.mrb[0].mxu0
    %3042 = vdwg.mxu0
    %3043 = vmatprep.subr.bf16.mxu0 0
    %3044 = vmatpush1.bf16.msra.mxu0 %v2763
    %3045 = vmatprep.subr.bf16.mxu0 0
    %3046 = vmatpush1.bf16.msra.mxu0 %v2764
    %3047 = vmatprep.subr.bf16.mxu0 0
    %3048 = vmatpush1.bf16.msra.mxu0 %v2765
    %3049 = vmatprep.subr.bf16.mxu0 0
    %3050 = vmatpush1.bf16.msra.mxu0 %v2766
    %3051 = vmatprep.subr.bf16.mxu0 0
    %3052 = vmatpush1.bf16.msra.mxu0 %v2767
    %3053 = vmatprep.subr.bf16.mxu0 0
    %3054 = vmatpush1.bf16.msra.mxu0 %v2768
    %3055 = vmatprep.subr.bf16.mxu0 0
    %3056 = vmatpush1.bf16.msra.mxu0 %v2769
    %3057 = vmatprep.subr.bf16.mxu0 0
    %3058 = vmatpush1.bf16.msra.mxu0 %v2770
    %3059 = vmatprep.subr.bf16.mxu0 0
    %3060 = vmatpush1.bf16.msra.mxu0 %v2771
    %3061 = vmatprep.subr.bf16.mxu0 0
    %3062 = vmatpush1.bf16.msra.mxu0 %v2772
    %3063 = vmatprep.subr.bf16.mxu0 0
    %3064 = vmatpush1.bf16.msra.mxu0 %v2773
    %3065 = vmatprep.subr.bf16.mxu0 0
    %3066 = vmatpush1.bf16.msra.mxu0 %v2774
    %3067 = vmatprep.subr.bf16.mxu0 0
    %3068 = vmatpush1.bf16.msra.mxu0 %v2775
    %3069 = vmatprep.subr.bf16.mxu0 0
    %3070 = vmatpush1.bf16.msra.mxu0 %v2776
    %3071 = vmatprep.subr.bf16.mxu0 0
    %3072 = vmatpush1.bf16.msra.mxu0 %v2777
    %3073 = vmatprep.subr.bf16.mxu0 0
    %3074 = vmatpush1.bf16.msra.mxu0 %v2778
    %3075 = vmatprep.mubr.bf16.mxu0 %v2166
    %3076 = vmatmul.mubr.bf16.gmra.mrb[0].mxu0 %v2165
    %v3077 = vpop.f32.mrb[0].mxu0
    %v3078 = vadd.f32 %v3038, %v3077
    %v3079 = vpop.f32.mrb[0].mxu0
    %v3080 = vpop.f32.mrb[0].mxu0
    %v3081 = vpop.f32.mrb[0].mxu0
    %3082 = vdwg.mxu0
    %3083 = vmatprep.subr.bf16.mxu0 0
    %3084 = vmatpush1.bf16.msra.mxu0 %v2779
    %3085 = vmatprep.subr.bf16.mxu0 0
    %3086 = vmatpush1.bf16.msra.mxu0 %v2780
    %3087 = vmatprep.subr.bf16.mxu0 0
    %3088 = vmatpush1.bf16.msra.mxu0 %v2781
    %3089 = vmatprep.subr.bf16.mxu0 0
    %3090 = vmatpush1.bf16.msra.mxu0 %v2782
    %3091 = vmatprep.subr.bf16.mxu0 0
    %3092 = vmatpush1.bf16.msra.mxu0 %v2783
    %3093 = vmatprep.subr.bf16.mxu0 0
    %3094 = vmatpush1.bf16.msra.mxu0 %v2784
    %3095 = vmatprep.subr.bf16.mxu0 0
    %3096 = vmatpush1.bf16.msra.mxu0 %v2785
    %3097 = vmatprep.subr.bf16.mxu0 0
    %3098 = vmatpush1.bf16.msra.mxu0 %v2786
    %3099 = vmatprep.subr.bf16.mxu0 0
    %3100 = vmatpush1.bf16.msra.mxu0 %v2787
    %3101 = vmatprep.subr.bf16.mxu0 0
    %3102 = vmatpush1.bf16.msra.mxu0 %v2788
    %3103 = vmatprep.subr.bf16.mxu0 0
    %3104 = vmatpush1.bf16.msra.mxu0 %v2789
    %3105 = vmatprep.subr.bf16.mxu0 0
    %3106 = vmatpush1.bf16.msra.mxu0 %v2790
    %3107 = vmatprep.subr.bf16.mxu0 0
    %3108 = vmatpush1.bf16.msra.mxu0 %v2791
    %3109 = vmatprep.subr.bf16.mxu0 0
    %3110 = vmatpush1.bf16.msra.mxu0 %v2792
    %3111 = vmatprep.subr.bf16.mxu0 0
    %3112 = vmatpush1.bf16.msra.mxu0 %v2793
    %3113 = vmatprep.subr.bf16.mxu0 0
    %3114 = vmatpush1.bf16.msra.mxu0 %v2794
    %3115 = vmatprep.mubr.bf16.mxu0 %v2168
    %3116 = vmatmul.mubr.bf16.gmra.mrb[0].mxu0 %v2167
    %v3117 = vpop.f32.mrb[0].mxu0
    %v3118 = vadd.f32 %v3078, %v3117
    %v3119 = vpop.f32.mrb[0].mxu0
    %v3120 = vpop.f32.mrb[0].mxu0
    %v3121 = vpop.f32.mrb[0].mxu0
    %3122 = vdwg.mxu0
    %3123 = vmatprep.subr.bf16.mxu0 0
    %3124 = vmatpush1.bf16.msra.mxu0 %v2795
    %3125 = vmatprep.subr.bf16.mxu0 0
    %3126 = vmatpush1.bf16.msra.mxu0 %v2796
    %3127 = vmatprep.subr.bf16.mxu0 0
    %3128 = vmatpush1.bf16.msra.mxu0 %v2797
    %3129 = vmatprep.subr.bf16.mxu0 0
    %3130 = vmatpush1.bf16.msra.mxu0 %v2798
    %3131 = vmatprep.subr.bf16.mxu0 0
    %3132 = vmatpush1.bf16.msra.mxu0 %v2799
    %3133 = vmatprep.subr.bf16.mxu0 0
    %3134 = vmatpush1.bf16.msra.mxu0 %v2800
    %3135 = vmatprep.subr.bf16.mxu0 0
    %3136 = vmatpush1.bf16.msra.mxu0 %v2801
    %3137 = vmatprep.subr.bf16.mxu0 0
    %3138 = vmatpush1.bf16.msra.mxu0 %v2802
    %3139 = vmatprep.subr.bf16.mxu0 0
    %3140 = vmatpush1.bf16.msra.mxu0 %v2803
    %3141 = vmatprep.subr.bf16.mxu0 0
    %3142 = vmatpush1.bf16.msra.mxu0 %v2804
    %3143 = vmatprep.subr.bf16.mxu0 0
    %3144 = vmatpush1.bf16.msra.mxu0 %v2805
    %3145 = vmatprep.subr.bf16.mxu0 0
    %3146 = vmatpush1.bf16.msra.mxu0 %v2806
    %3147 = vmatprep.subr.bf16.mxu0 0
    %3148 = vmatpush1.bf16.msra.mxu0 %v2807
    %3149 = vmatprep.subr.bf16.mxu0 0
    %3150 = vmatpush1.bf16.msra.mxu0 %v2808
    %3151 = vmatprep.subr.bf16.mxu0 0
    %3152 = vmatpush1.bf16.msra.mxu0 %v2809
    %3153 = vmatprep.subr.bf16.mxu0 0
    %3154 = vmatpush1.bf16.msra.mxu0 %v2810
    %3155 = vmatprep.mubr.bf16.mxu0 %v2170
    %3156 = vmatmul.mubr.bf16.gmra.mrb[0].mxu0 %v2169
    %v3157 = vpop.f32.mrb[0].mxu0
    %v3158 = vadd.f32 %v3118, %v3157
    %v3159 = vpop.f32.mrb[0].mxu0
    %v3160 = vpop.f32.mrb[0].mxu0
    %v3161 = vpop.f32.mrb[0].mxu0
    %3162 = vdwg.mxu0
    %3163 = vmatprep.subr.bf16.mxu0 0
    %3164 = vmatpush1.bf16.msra.mxu0 %v2811
    %3165 = vmatprep.subr.bf16.mxu0 0
    %3166 = vmatpush1.bf16.msra.mxu0 %v2812
    %3167 = vmatprep.subr.bf16.mxu0 0
    %3168 = vmatpush1.bf16.msra.mxu0 %v2813
    %3169 = vmatprep.subr.bf16.mxu0 0
    %3170 = vmatpush1.bf16.msra.mxu0 %v2814
    %3171 = vmatprep.subr.bf16.mxu0 0
    %3172 = vmatpush1.bf16.msra.mxu0 %v2815
    %3173 = vmatprep.subr.bf16.mxu0 0
    %3174 = vmatpush1.bf16.msra.mxu0 %v2816
    %3175 = vmatprep.subr.bf16.mxu0 0
    %3176 = vmatpush1.bf16.msra.mxu0 %v2817
    %3177 = vmatprep.subr.bf16.mxu0 0
    %3178 = vmatpush1.bf16.msra.mxu0 %v2818
    %3179 = vmatprep.subr.bf16.mxu0 0
    %3180 = vmatpush1.bf16.msra.mxu0 %v2819
    %3181 = vmatprep.subr.bf16.mxu0 0
    %3182 = vmatpush1.bf16.msra.mxu0 %v2820
    %3183 = vmatprep.subr.bf16.mxu0 0
    %3184 = vmatpush1.bf16.msra.mxu0 %v2821
    %3185 = vmatprep.subr.bf16.mxu0 0
    %3186 = vmatpush1.bf16.msra.mxu0 %v2822
    %3187 = vmatprep.subr.bf16.mxu0 0
    %3188 = vmatpush1.bf16.msra.mxu0 %v2823
    %3189 = vmatprep.subr.bf16.mxu0 0
    %3190 = vmatpush1.bf16.msra.mxu0 %v2824
    %3191 = vmatprep.subr.bf16.mxu0 0
    %3192 = vmatpush1.bf16.msra.mxu0 %v2825
    %3193 = vmatprep.subr.bf16.mxu0 0
    %3194 = vmatpush1.bf16.msra.mxu0 %v2826
    %3195 = vmatprep.mubr.bf16.mxu0 %v2172
    %3196 = vmatmul.mubr.bf16.gmra.mrb[0].mxu0 %v2171
    %v3197 = vpop.f32.mrb[0].mxu0
    %v3198 = vadd.f32 %v3158, %v3197
    %v3199 = vpop.f32.mrb[0].mxu0
    %v3200 = vpop.f32.mrb[0].mxu0
    %v3201 = vpop.f32.mrb[0].mxu0
    %3202 = vdwg.mxu0
    %3203 = vmatprep.subr.bf16.mxu0 0
    %3204 = vmatpush1.bf16.msra.mxu0 %v2827
    %3205 = vmatprep.subr.bf16.mxu0 0
    %3206 = vmatpush1.bf16.msra.mxu0 %v2828
    %3207 = vmatprep.subr.bf16.mxu0 0
    %3208 = vmatpush1.bf16.msra.mxu0 %v2829
    %3209 = vmatprep.subr.bf16.mxu0 0
    %3210 = vmatpush1.bf16.msra.mxu0 %v2830
    %3211 = vmatprep.subr.bf16.mxu0 0
    %3212 = vmatpush1.bf16.msra.mxu0 %v2831
    %3213 = vmatprep.subr.bf16.mxu0 0
    %3214 = vmatpush1.bf16.msra.mxu0 %v2832
    %3215 = vmatprep.subr.bf16.mxu0 0
    %3216 = vmatpush1.bf16.msra.mxu0 %v2833
    %3217 = vmatprep.subr.bf16.mxu0 0
    %3218 = vmatpush1.bf16.msra.mxu0 %v2834
    %3219 = vmatprep.subr.bf16.mxu0 0
    %3220 = vmatpush1.bf16.msra.mxu0 %v2835
    %3221 = vmatprep.subr.bf16.mxu0 0
    %3222 = vmatpush1.bf16.msra.mxu0 %v2836
    %3223 = vmatprep.subr.bf16.mxu0 0
    %3224 = vmatpush1.bf16.msra.mxu0 %v2837
    %3225 = vmatprep.subr.bf16.mxu0 0
    %3226 = vmatpush1.bf16.msra.mxu0 %v2838
    %3227 = vmatprep.subr.bf16.mxu0 0
    %3228 = vmatpush1.bf16.msra.mxu0 %v2839
    %3229 = vmatprep.subr.bf16.mxu0 0
    %3230 = vmatpush1.bf16.msra.mxu0 %v2840
    %3231 = vmatprep.subr.bf16.mxu0 0
    %3232 = vmatpush1.bf16.msra.mxu0 %v2841
    %3233 = vmatprep.subr.bf16.mxu0 0
    %3234 = vmatpush1.bf16.msra.mxu0 %v2842
    %3235 = vmatprep.mubr.bf16.mxu0 %v2174
    %3236 = vmatmul.mubr.bf16.gmra.mrb[0].mxu0 %v2173
    %v3237 = vpop.f32.mrb[0].mxu0
    %v3238 = vadd.f32 %v3198, %v3237
    %v3239 = vpop.f32.mrb[0].mxu0
    %v3240 = vpop.f32.mrb[0].mxu0
    %v3241 = vpop.f32.mrb[0].mxu0
    %3242 = vdwg.mxu0
    %3243 = vmatprep.subr.bf16.mxu0 0
    %3244 = vmatpush1.bf16.msra.mxu0 %v2843
    %3245 = vmatprep.subr.bf16.mxu0 0
    %3246 = vmatpush1.bf16.msra.mxu0 %v2844
    %3247 = vmatprep.subr.bf16.mxu0 0
    %3248 = vmatpush1.bf16.msra.mxu0 %v2845
    %3249 = vmatprep.subr.bf16.mxu0 0
    %3250 = vmatpush1.bf16.msra.mxu0 %v2846
    %3251 = vmatprep.subr.bf16.mxu0 0
    %3252 = vmatpush1.bf16.msra.mxu0 %v2847
    %3253 = vmatprep.subr.bf16.mxu0 0
    %3254 = vmatpush1.bf16.msra.mxu0 %v2848
    %3255 = vmatprep.subr.bf16.mxu0 0
    %3256 = vmatpush1.bf16.msra.mxu0 %v2849
    %3257 = vmatprep.subr.bf16.mxu0 0
    %3258 = vmatpush1.bf16.msra.mxu0 %v2850
    %3259 = vmatprep.subr.bf16.mxu0 0
    %3260 = vmatpush1.bf16.msra.mxu0 %v2851
    %3261 = vmatprep.subr.bf16.mxu0 0
    %3262 = vmatpush1.bf16.msra.mxu0 %v2852
    %3263 = vmatprep.subr.bf16.mxu0 0
    %3264 = vmatpush1.bf16.msra.mxu0 %v2853
    %3265 = vmatprep.subr.bf16.mxu0 0
    %3266 = vmatpush1.bf16.msra.mxu0 %v2854
    %3267 = vmatprep.subr.bf16.mxu0 0
    %3268 = vmatpush1.bf16.msra.mxu0 %v2855
    %3269 = vmatprep.subr.bf16.mxu0 0
    %3270 = vmatpush1.bf16.msra.mxu0 %v2856
    %3271 = vmatprep.subr.bf16.mxu0 0
    %3272 = vmatpush1.bf16.msra.mxu0 %v2857
    %3273 = vmatprep.subr.bf16.mxu0 0
    %3274 = vmatpush1.bf16.msra.mxu0 %v2858
    %3275 = vmatprep.mubr.bf16.mxu0 %v2176
    %3276 = vmatmul.mubr.bf16.gmra.mrb[0].mxu0 %v2175
    %v3277 = vpop.f32.mrb[0].mxu0
    %v3278 = vadd.f32 %v3238, %v3277
    %v3279 = vpop.f32.mrb[0].mxu0
    %v3280 = vpop.f32.mrb[0].mxu0
    %v3281 = vpop.f32.mrb[0].mxu0
    %3282 = vdwg.mxu0
    %3283 = vmatprep.subr.bf16.mxu0 0
    %3284 = vmatpush1.bf16.msra.mxu0 %v2859
    %3285 = vmatprep.subr.bf16.mxu0 0
    %3286 = vmatpush1.bf16.msra.mxu0 %v2860
    %3287 = vmatprep.subr.bf16.mxu0 0
    %3288 = vmatpush1.bf16.msra.mxu0 %v2861
    %3289 = vmatprep.subr.bf16.mxu0 0
    %3290 = vmatpush1.bf16.msra.mxu0 %v2862
    %3291 = vmatprep.subr.bf16.mxu0 0
    %3292 = vmatpush1.bf16.msra.mxu0 %v2863
    %3293 = vmatprep.subr.bf16.mxu0 0
    %3294 = vmatpush1.bf16.msra.mxu0 %v2864
    %3295 = vmatprep.subr.bf16.mxu0 0
    %3296 = vmatpush1.bf16.msra.mxu0 %v2865
    %3297 = vmatprep.subr.bf16.mxu0 0
    %3298 = vmatpush1.bf16.msra.mxu0 %v2866
    %3299 = vmatprep.subr.bf16.mxu0 0
    %3300 = vmatpush1.bf16.msra.mxu0 %v2867
    %3301 = vmatprep.subr.bf16.mxu0 0
    %3302 = vmatpush1.bf16.msra.mxu0 %v2868
    %3303 = vmatprep.subr.bf16.mxu0 0
    %3304 = vmatpush1.bf16.msra.mxu0 %v2869
    %3305 = vmatprep.subr.bf16.mxu0 0
    %3306 = vmatpush1.bf16.msra.mxu0 %v2870
    %3307 = vmatprep.subr.bf16.mxu0 0
    %3308 = vmatpush1.bf16.msra.mxu0 %v2871
    %3309 = vmatprep.subr.bf16.mxu0 0
    %3310 = vmatpush1.bf16.msra.mxu0 %v2872
    %3311 = vmatprep.subr.bf16.mxu0 0
    %3312 = vmatpush1.bf16.msra.mxu0 %v2873
    %3313 = vmatprep.subr.bf16.mxu0 0
    %3314 = vmatpush1.bf16.msra.mxu0 %v2874
    %3315 = vmatprep.mubr.bf16.mxu0 %v2178
    %3316 = vmatmul.mubr.bf16.gmra.mrb[0].mxu0 %v2177
    %v3317 = vpop.f32.mrb[0].mxu0
    %v3318 = vadd.f32 %v3278, %v3317
    %v3319 = vpop.f32.mrb[0].mxu0
    %v3320 = vpop.f32.mrb[0].mxu0
    %v3321 = vpop.f32.mrb[0].mxu0
    %3322 = vdwg.mxu0
    %v3323 = vld [vmem:[#allocation9] sm:$0x1]
    %v3325 = vlaneseq
    %v3326 = vshrl.u32 %v3325, 7
    %v3327 = vsub.s32 0, %v3326
    %v3328 = vrot.slane %v3323, %v3327
    %v3330 = vadd.f32 %v3318, %v3328
    %s3331 = sld [smem:[#allocation2 + $0x1]]
    %vm3332 = vcmp.gt.f32.partialorder %v3330, 0.0
    %v3333 = vstv %s3331
    %v3334 = vmul.f32 %v3333, %v3330
    %v3335 = vsel %vm3332, %v3330, %v3334
    %v3336 = vld [vmem:[#allocation11] sm:$0xf]
    %v3337 = vld [vmem:[#allocation11 + $0x4] sm:$0xf]
    %v3338 = vld [vmem:[#allocation11 + $0x8] sm:$0xf]
    %v3339 = vld [vmem:[#allocation11 + $0xc] sm:$0xf]
    %v3340 = vld [vmem:[#allocation11 + $0x10] sm:$0xf]
    %v3341 = vld [vmem:[#allocation11 + $0x14] sm:$0xf]
    %v3342 = vld [vmem:[#allocation11 + $0x18] sm:$0xf]
    %v3343 = vld [vmem:[#allocation11 + $0x1c] sm:$0xf]
    %v3344 = vld [vmem:[#allocation11 + $0x20] sm:$0xf]
    %v3345 = vld [vmem:[#allocation11 + $0x24] sm:$0xf]
    %v3346 = vld [vmem:[#allocation11 + $0x28] sm:$0xf]
    %v3347 = vld [vmem:[#allocation11 + $0x2c] sm:$0xf]
    %v3348 = vld [vmem:[#allocation11 + $0x30] sm:$0xf]
    %v3349 = vld [vmem:[#allocation11 + $0x34] sm:$0xf]
    %v3350 = vld [vmem:[#allocation11 + $0x38] sm:$0xf]
    %v3351 = vld [vmem:[#allocation11 + $0x3c] sm:$0xf]
    %v3352 = vpack.c.bf16 %v3335, %v3335
    %v3353 = vld [vmem:[%s13] sm:$0x1]
    %v3355 = vlaneseq
    %v3356 = vshrl.u32 %v3355, 7
    %v3357 = vsub.s32 0, %v3356
    %v3358 = vrot.slane %v3353, %v3357
    %v3376 = vunpack.c.l.b16 %v3336
    %v3377 = vunpack.c.l.b16 %v3337
    %v3378 = vunpack.c.l.b16 %v3338
    %v3379 = vunpack.c.l.b16 %v3339
    %v3380 = vunpack.c.l.b16 %v3340
    %v3381 = vunpack.c.l.b16 %v3341
    %v3382 = vunpack.c.l.b16 %v3342
    %v3383 = vunpack.c.l.b16 %v3343
    %v3384 = vunpack.c.l.b16 %v3344
    %v3385 = vunpack.c.l.b16 %v3345
    %v3386 = vunpack.c.l.b16 %v3346
    %v3387 = vunpack.c.l.b16 %v3347
    %v3388 = vunpack.c.l.b16 %v3348
    %v3389 = vunpack.c.l.b16 %v3349
    %v3390 = vunpack.c.l.b16 %v3350
    %v3391 = vunpack.c.l.b16 %v3351
    %v3392 = vpack.c.b16 %v3377, %v3376
    %v3393 = vpack.c.b16 %v3379, %v3378
    %v3394 = vpack.c.b16 %v3381, %v3380
    %v3395 = vpack.c.b16 %v3383, %v3382
    %v3396 = vpack.c.b16 %v3385, %v3384
    %v3397 = vpack.c.b16 %v3387, %v3386
    %v3398 = vpack.c.b16 %v3389, %v3388
    %v3399 = vpack.c.b16 %v3391, %v3390
    %3408 = vmatprep.subr.bf16.mxu0 0
    %3409 = vmatpush1.bf16.msra.mxu0 %v3392
    %3410 = vmatprep.subr.bf16.mxu0 0
    %3411 = vmatpush1.bf16.msra.mxu0 %v3393
    %3412 = vmatprep.subr.bf16.mxu0 0
    %3413 = vmatpush1.bf16.msra.mxu0 %v3394
    %3414 = vmatprep.subr.bf16.mxu0 0
    %3415 = vmatpush1.bf16.msra.mxu0 %v3395
    %3416 = vmatprep.subr.bf16.mxu0 0
    %3417 = vmatpush1.bf16.msra.mxu0 %v3396
    %3418 = vmatprep.subr.bf16.mxu0 0
    %3419 = vmatpush1.bf16.msra.mxu0 %v3397
    %3420 = vmatprep.subr.bf16.mxu0 0
    %3421 = vmatpush1.bf16.msra.mxu0 %v3398
    %3422 = vmatprep.subr.bf16.mxu0 0
    %3423 = vmatpush1.bf16.msra.mxu0 %v3399
    %3424 = vmatprep.subr.bf16.mxu0 0
    %3425 = vmatpush1.bf16.msra.mxu0 0
    %3426 = vmatprep.subr.bf16.mxu0 0
    %3427 = vmatpush1.bf16.msra.mxu0 0
    %3428 = vmatprep.subr.bf16.mxu0 0
    %3429 = vmatpush1.bf16.msra.mxu0 0
    %3430 = vmatprep.subr.bf16.mxu0 0
    %3431 = vmatpush1.bf16.msra.mxu0 0
    %3432 = vmatprep.subr.bf16.mxu0 0
    %3433 = vmatpush1.bf16.msra.mxu0 0
    %3434 = vmatprep.subr.bf16.mxu0 0
    %3435 = vmatpush1.bf16.msra.mxu0 0
    %3436 = vmatprep.subr.bf16.mxu0 0
    %3437 = vmatpush1.bf16.msra.mxu0 0
    %3438 = vmatprep.subr.bf16.mxu0 0
    %3439 = vmatpush1.bf16.msra.mxu0 0
    %3440 = vmatprep.mubr.bf16.mxu0 0
    %3441 = vmatmul.mubr.bf16.gmra.mrb[0].mxu0 %v3352
    %v3442 = vpop.f32.mrb[0].mxu0
    %v3443 = vadd.f32 %v3358, %v3442
    %v3444 = vpop.f32.mrb[0].mxu0
    %v3445 = vpop.f32.mrb[0].mxu0
    %v3446 = vpop.f32.mrb[0].mxu0
    %3447 = vdwg.mxu0
    %s3448 = sld [smem:[#allocation2 + $0x2]]
    %vm3449 = vcmp.gt.f32.partialorder %v3443, 0.0
    %v3450 = vstv %s3448
    %v3451 = vmul.f32 %v3450, %v3443
    %v3452 = vsel %vm3449, %v3443, %v3451
    %s3453 = scalar_lea.vmem [#allocation11], 64
    %v3454 = vld [vmem:[%s3453] sm:$0xf]
    %v3455 = vld [vmem:[%s3453 + $0x4] sm:$0xf]
    %v3456 = vld [vmem:[%s3453 + $0x8] sm:$0xf]
    %v3457 = vld [vmem:[%s3453 + $0xc] sm:$0xf]
    %v3458 = vld [vmem:[%s3453 + $0x10] sm:$0xf]
    %v3459 = vld [vmem:[%s3453 + $0x14] sm:$0xf]
    %v3460 = vld [vmem:[%s3453 + $0x18] sm:$0xf]
    %v3461 = vld [vmem:[%s3453 + $0x1c] sm:$0xf]
    %v3462 = vld [vmem:[%s3453 + $0x20] sm:$0xf]
    %v3463 = vld [vmem:[%s3453 + $0x24] sm:$0xf]
    %v3464 = vld [vmem:[%s3453 + $0x28] sm:$0xf]
    %v3465 = vld [vmem:[%s3453 + $0x2c] sm:$0xf]
    %v3466 = vld [vmem:[%s3453 + $0x30] sm:$0xf]
    %v3467 = vld [vmem:[%s3453 + $0x34] sm:$0xf]
    %v3468 = vld [vmem:[%s3453 + $0x38] sm:$0xf]
    %v3469 = vld [vmem:[%s3453 + $0x3c] sm:$0xf]
    %v3470 = vpack.c.bf16 %v3452, %v3452
    %s3471 = scalar_lea.vmem %s13, 1
    %v3472 = vld [vmem:[%s3471] sm:$0x1]
    %v3474 = vlaneseq
    %v3475 = vshrl.u32 %v3474, 7
    %v3476 = vsub.s32 0, %v3475
    %v3477 = vrot.slane %v3472, %v3476
    %v3495 = vunpack.c.l.b16 %v3454
    %v3496 = vunpack.c.l.b16 %v3455
    %v3497 = vunpack.c.l.b16 %v3456
    %v3498 = vunpack.c.l.b16 %v3457
    %v3499 = vunpack.c.l.b16 %v3458
    %v3500 = vunpack.c.l.b16 %v3459
    %v3501 = vunpack.c.l.b16 %v3460
    %v3502 = vunpack.c.l.b16 %v3461
    %v3503 = vunpack.c.l.b16 %v3462
    %v3504 = vunpack.c.l.b16 %v3463
    %v3505 = vunpack.c.l.b16 %v3464
    %v3506 = vunpack.c.l.b16 %v3465
    %v3507 = vunpack.c.l.b16 %v3466
    %v3508 = vunpack.c.l.b16 %v3467
    %v3509 = vunpack.c.l.b16 %v3468
    %v3510 = vunpack.c.l.b16 %v3469
    %v3511 = vpack.c.b16 %v3496, %v3495
    %v3512 = vpack.c.b16 %v3498, %v3497
    %v3513 = vpack.c.b16 %v3500, %v3499
    %v3514 = vpack.c.b16 %v3502, %v3501
    %v3515 = vpack.c.b16 %v3504, %v3503
    %v3516 = vpack.c.b16 %v3506, %v3505
    %v3517 = vpack.c.b16 %v3508, %v3507
    %v3518 = vpack.c.b16 %v3510, %v3509
    %3527 = vmatprep.subr.bf16.mxu0 0
    %3528 = vmatpush1.bf16.msra.mxu0 %v3511
    %3529 = vmatprep.subr.bf16.mxu0 0
    %3530 = vmatpush1.bf16.msra.mxu0 %v3512
    %3531 = vmatprep.subr.bf16.mxu0 0
    %3532 = vmatpush1.bf16.msra.mxu0 %v3513
    %3533 = vmatprep.subr.bf16.mxu0 0
    %3534 = vmatpush1.bf16.msra.mxu0 %v3514
    %3535 = vmatprep.subr.bf16.mxu0 0
    %3536 = vmatpush1.bf16.msra.mxu0 %v3515
    %3537 = vmatprep.subr.bf16.mxu0 0
    %3538 = vmatpush1.bf16.msra.mxu0 %v3516
    %3539 = vmatprep.subr.bf16.mxu0 0
    %3540 = vmatpush1.bf16.msra.mxu0 %v3517
    %3541 = vmatprep.subr.bf16.mxu0 0
    %3542 = vmatpush1.bf16.msra.mxu0 %v3518
    %3543 = vmatprep.subr.bf16.mxu0 0
    %3544 = vmatpush1.bf16.msra.mxu0 0
    %3545 = vmatprep.subr.bf16.mxu0 0
    %3546 = vmatpush1.bf16.msra.mxu0 0
    %3547 = vmatprep.subr.bf16.mxu0 0
    %3548 = vmatpush1.bf16.msra.mxu0 0
    %3549 = vmatprep.subr.bf16.mxu0 0
    %3550 = vmatpush1.bf16.msra.mxu0 0
    %3551 = vmatprep.subr.bf16.mxu0 0
    %3552 = vmatpush1.bf16.msra.mxu0 0
    %3553 = vmatprep.subr.bf16.mxu0 0
    %3554 = vmatpush1.bf16.msra.mxu0 0
    %3555 = vmatprep.subr.bf16.mxu0 0
    %3556 = vmatpush1.bf16.msra.mxu0 0
    %3557 = vmatprep.subr.bf16.mxu0 0
    %3558 = vmatpush1.bf16.msra.mxu0 0
    %3559 = vmatprep.mubr.bf16.mxu0 0
    %3560 = vmatmul.mubr.bf16.gmra.mrb[0].mxu0 %v3470
    %v3561 = vpop.f32.mrb[0].mxu0
    %v3562 = vadd.f32 %v3477, %v3561
    %v3563 = vpop.f32.mrb[0].mxu0
    %v3564 = vpop.f32.mrb[0].mxu0
    %v3565 = vpop.f32.mrb[0].mxu0
    %3566 = vdwg.mxu0
    %s3567 = sld [smem:[#allocation2 + $0x3]]
    %vm3568 = vcmp.gt.f32.partialorder %v3562, 0.0
    %v3569 = vstv %s3567
    %v3570 = vmul.f32 %v3569, %v3562
    %v3571 = vsel %vm3568, %v3562, %v3570
    %s3572 = scalar_lea.vmem [#allocation11], 128
    %v3573 = vld [vmem:[%s3572] sm:$0xf]
    %v3574 = vld [vmem:[%s3572 + $0x4] sm:$0xf]
    %v3575 = vld [vmem:[%s3572 + $0x8] sm:$0xf]
    %v3576 = vld [vmem:[%s3572 + $0xc] sm:$0xf]
    %v3577 = vld [vmem:[%s3572 + $0x10] sm:$0xf]
    %v3578 = vld [vmem:[%s3572 + $0x14] sm:$0xf]
    %v3579 = vld [vmem:[%s3572 + $0x18] sm:$0xf]
    %v3580 = vld [vmem:[%s3572 + $0x1c] sm:$0xf]
    %v3581 = vld [vmem:[%s3572 + $0x20] sm:$0xf]
    %v3582 = vld [vmem:[%s3572 + $0x24] sm:$0xf]
    %v3583 = vld [vmem:[%s3572 + $0x28] sm:$0xf]
    %v3584 = vld [vmem:[%s3572 + $0x2c] sm:$0xf]
    %v3585 = vld [vmem:[%s3572 + $0x30] sm:$0xf]
    %v3586 = vld [vmem:[%s3572 + $0x34] sm:$0xf]
    %v3587 = vld [vmem:[%s3572 + $0x38] sm:$0xf]
    %v3588 = vld [vmem:[%s3572 + $0x3c] sm:$0xf]
    %v3589 = vpack.c.bf16 %v3571, %v3571
    %s3590 = scalar_lea.vmem %s13, 2
    %v3591 = vld [vmem:[%s3590] sm:$0x1]
    %v3593 = vlaneseq
    %v3594 = vshrl.u32 %v3593, 7
    %v3595 = vsub.s32 0, %v3594
    %v3596 = vrot.slane %v3591, %v3595
    %v3614 = vunpack.c.l.b16 %v3573
    %v3615 = vunpack.c.l.b16 %v3574
    %v3616 = vunpack.c.l.b16 %v3575
    %v3617 = vunpack.c.l.b16 %v3576
    %v3618 = vunpack.c.l.b16 %v3577
    %v3619 = vunpack.c.l.b16 %v3578
    %v3620 = vunpack.c.l.b16 %v3579
    %v3621 = vunpack.c.l.b16 %v3580
    %v3622 = vunpack.c.l.b16 %v3581
    %v3623 = vunpack.c.l.b16 %v3582
    %v3624 = vunpack.c.l.b16 %v3583
    %v3625 = vunpack.c.l.b16 %v3584
    %v3626 = vunpack.c.l.b16 %v3585
    %v3627 = vunpack.c.l.b16 %v3586
    %v3628 = vunpack.c.l.b16 %v3587
    %v3629 = vunpack.c.l.b16 %v3588
    %v3630 = vpack.c.b16 %v3615, %v3614
    %v3631 = vpack.c.b16 %v3617, %v3616
    %v3632 = vpack.c.b16 %v3619, %v3618
    %v3633 = vpack.c.b16 %v3621, %v3620
    %v3634 = vpack.c.b16 %v3623, %v3622
    %v3635 = vpack.c.b16 %v3625, %v3624
    %v3636 = vpack.c.b16 %v3627, %v3626
    %v3637 = vpack.c.b16 %v3629, %v3628
    %3646 = vmatprep.subr.bf16.mxu0 0
    %3647 = vmatpush1.bf16.msra.mxu0 %v3630
    %3648 = vmatprep.subr.bf16.mxu0 0
    %3649 = vmatpush1.bf16.msra.mxu0 %v3631
    %3650 = vmatprep.subr.bf16.mxu0 0
    %3651 = vmatpush1.bf16.msra.mxu0 %v3632
    %3652 = vmatprep.subr.bf16.mxu0 0
    %3653 = vmatpush1.bf16.msra.mxu0 %v3633
    %3654 = vmatprep.subr.bf16.mxu0 0
    %3655 = vmatpush1.bf16.msra.mxu0 %v3634
    %3656 = vmatprep.subr.bf16.mxu0 0
    %3657 = vmatpush1.bf16.msra.mxu0 %v3635
    %3658 = vmatprep.subr.bf16.mxu0 0
    %3659 = vmatpush1.bf16.msra.mxu0 %v3636
    %3660 = vmatprep.subr.bf16.mxu0 0
    %3661 = vmatpush1.bf16.msra.mxu0 %v3637
    %3662 = vmatprep.subr.bf16.mxu0 0
    %3663 = vmatpush1.bf16.msra.mxu0 0
    %3664 = vmatprep.subr.bf16.mxu0 0
    %3665 = vmatpush1.bf16.msra.mxu0 0
    %3666 = vmatprep.subr.bf16.mxu0 0
    %3667 = vmatpush1.bf16.msra.mxu0 0
    %3668 = vmatprep.subr.bf16.mxu0 0
    %3669 = vmatpush1.bf16.msra.mxu0 0
    %3670 = vmatprep.subr.bf16.mxu0 0
    %3671 = vmatpush1.bf16.msra.mxu0 0
    %3672 = vmatprep.subr.bf16.mxu0 0
    %3673 = vmatpush1.bf16.msra.mxu0 0
    %3674 = vmatprep.subr.bf16.mxu0 0
    %3675 = vmatpush1.bf16.msra.mxu0 0
    %3676 = vmatprep.subr.bf16.mxu0 0
    %3677 = vmatpush1.bf16.msra.mxu0 0
    %3678 = vmatprep.mubr.bf16.mxu0 0
    %3679 = vmatmul.mubr.bf16.gmra.mrb[0].mxu0 %v3589
    %v3680 = vpop.f32.mrb[0].mxu0
    %v3681 = vadd.f32 %v3596, %v3680
    %v3682 = vpop.f32.mrb[0].mxu0
    %v3683 = vpop.f32.mrb[0].mxu0
    %v3684 = vpop.f32.mrb[0].mxu0
    %3685 = vdwg.mxu0
    %s3686 = sld [smem:[#allocation2 + $0x4]]
    %vm3687 = vcmp.gt.f32.partialorder %v3681, 0.0
    %v3688 = vstv %s3686
    %v3689 = vmul.f32 %v3688, %v3681
    %v3690 = vsel %vm3687, %v3681, %v3689
    %s3691 = scalar_lea.vmem [#allocation11], 192
    %v3692 = vld [vmem:[%s3691] sm:$0xf]
    %v3693 = vld [vmem:[%s3691 + $0x4] sm:$0xf]
    %v3694 = vld [vmem:[%s3691 + $0x8] sm:$0xf]
    %v3695 = vld [vmem:[%s3691 + $0xc] sm:$0xf]
    %v3696 = vld [vmem:[%s3691 + $0x10] sm:$0xf]
    %v3697 = vld [vmem:[%s3691 + $0x14] sm:$0xf]
    %v3698 = vld [vmem:[%s3691 + $0x18] sm:$0xf]
    %v3699 = vld [vmem:[%s3691 + $0x1c] sm:$0xf]
    %v3700 = vld [vmem:[%s3691 + $0x20] sm:$0xf]
    %v3701 = vld [vmem:[%s3691 + $0x24] sm:$0xf]
    %v3702 = vld [vmem:[%s3691 + $0x28] sm:$0xf]
    %v3703 = vld [vmem:[%s3691 + $0x2c] sm:$0xf]
    %v3704 = vld [vmem:[%s3691 + $0x30] sm:$0xf]
    %v3705 = vld [vmem:[%s3691 + $0x34] sm:$0xf]
    %v3706 = vld [vmem:[%s3691 + $0x38] sm:$0xf]
    %v3707 = vld [vmem:[%s3691 + $0x3c] sm:$0xf]
    %v3708 = vpack.c.bf16 %v3690, %v3690
    %s3709 = scalar_lea.vmem %s13, 3
    %v3710 = vld [vmem:[%s3709] sm:$0x1]
    %v3712 = vlaneseq
    %v3713 = vshrl.u32 %v3712, 7
    %v3714 = vsub.s32 0, %v3713
    %v3715 = vrot.slane %v3710, %v3714
    %v3733 = vunpack.c.l.b16 %v3692
    %v3734 = vunpack.c.l.b16 %v3693
    %v3735 = vunpack.c.l.b16 %v3694
    %v3736 = vunpack.c.l.b16 %v3695
    %v3737 = vunpack.c.l.b16 %v3696
    %v3738 = vunpack.c.l.b16 %v3697
    %v3739 = vunpack.c.l.b16 %v3698
    %v3740 = vunpack.c.l.b16 %v3699
    %v3741 = vunpack.c.l.b16 %v3700
    %v3742 = vunpack.c.l.b16 %v3701
    %v3743 = vunpack.c.l.b16 %v3702
    %v3744 = vunpack.c.l.b16 %v3703
    %v3745 = vunpack.c.l.b16 %v3704
    %v3746 = vunpack.c.l.b16 %v3705
    %v3747 = vunpack.c.l.b16 %v3706
    %v3748 = vunpack.c.l.b16 %v3707
    %v3749 = vpack.c.b16 %v3734, %v3733
    %v3750 = vpack.c.b16 %v3736, %v3735
    %v3751 = vpack.c.b16 %v3738, %v3737
    %v3752 = vpack.c.b16 %v3740, %v3739
    %v3753 = vpack.c.b16 %v3742, %v3741
    %v3754 = vpack.c.b16 %v3744, %v3743
    %v3755 = vpack.c.b16 %v3746, %v3745
    %v3756 = vpack.c.b16 %v3748, %v3747
    %3765 = vmatprep.subr.bf16.mxu0 0
    %3766 = vmatpush1.bf16.msra.mxu0 %v3749
    %3767 = vmatprep.subr.bf16.mxu0 0
    %3768 = vmatpush1.bf16.msra.mxu0 %v3750
    %3769 = vmatprep.subr.bf16.mxu0 0
    %3770 = vmatpush1.bf16.msra.mxu0 %v3751
    %3771 = vmatprep.subr.bf16.mxu0 0
    %3772 = vmatpush1.bf16.msra.mxu0 %v3752
    %3773 = vmatprep.subr.bf16.mxu0 0
    %3774 = vmatpush1.bf16.msra.mxu0 %v3753
    %3775 = vmatprep.subr.bf16.mxu0 0
    %3776 = vmatpush1.bf16.msra.mxu0 %v3754
    %3777 = vmatprep.subr.bf16.mxu0 0
    %3778 = vmatpush1.bf16.msra.mxu0 %v3755
    %3779 = vmatprep.subr.bf16.mxu0 0
    %3780 = vmatpush1.bf16.msra.mxu0 %v3756
    %3781 = vmatprep.subr.bf16.mxu0 0
    %3782 = vmatpush1.bf16.msra.mxu0 0
    %3783 = vmatprep.subr.bf16.mxu0 0
    %3784 = vmatpush1.bf16.msra.mxu0 0
    %3785 = vmatprep.subr.bf16.mxu0 0
    %3786 = vmatpush1.bf16.msra.mxu0 0
    %3787 = vmatprep.subr.bf16.mxu0 0
    %3788 = vmatpush1.bf16.msra.mxu0 0
    %3789 = vmatprep.subr.bf16.mxu0 0
    %3790 = vmatpush1.bf16.msra.mxu0 0
    %3791 = vmatprep.subr.bf16.mxu0 0
    %3792 = vmatpush1.bf16.msra.mxu0 0
    %3793 = vmatprep.subr.bf16.mxu0 0
    %3794 = vmatpush1.bf16.msra.mxu0 0
    %3795 = vmatprep.subr.bf16.mxu0 0
    %3796 = vmatpush1.bf16.msra.mxu0 0
    %3797 = vmatprep.mubr.bf16.mxu0 0
    %3798 = vmatmul.mubr.bf16.gmra.mrb[0].mxu0 %v3708
    %v3799 = vpop.f32.mrb[0].mxu0
    %v3800 = vadd.f32 %v3715, %v3799
    %v3801 = vpop.f32.mrb[0].mxu0
    %v3802 = vpop.f32.mrb[0].mxu0
    %v3803 = vpop.f32.mrb[0].mxu0
    %3804 = vdwg.mxu0
    %s3805 = sld [smem:[#allocation2 + $0x5]]
    %vm3806 = vcmp.gt.f32.partialorder %v926, 0.0
    %vm3807 = vcmp.gt.f32.partialorder %v928, 0.0
    %vm3808 = vcmp.gt.f32.partialorder %v967, 0.0
    %vm3809 = vcmp.gt.f32.partialorder %v969, 0.0
    %vm3810 = vcmp.gt.f32.partialorder %v1008, 0.0
    %vm3811 = vcmp.gt.f32.partialorder %v1010, 0.0
    %vm3812 = vcmp.gt.f32.partialorder %v1049, 0.0
    %vm3813 = vcmp.gt.f32.partialorder %v1051, 0.0
    %v3814 = vstv %s3805
    %v3815 = vmul.f32 %v3814, %v926
    %v3816 = vmul.f32 %v3814, %v928
    %v3817 = vmul.f32 %v3814, %v967
    %v3818 = vmul.f32 %v3814, %v969
    %v3819 = vmul.f32 %v3814, %v1008
    %v3820 = vmul.f32 %v3814, %v1010
    %v3821 = vmul.f32 %v3814, %v1049
    %v3822 = vmul.f32 %v3814, %v1051
    %v3823 = vsel %vm3806, %v926, %v3815
    %v3824 = vsel %vm3807, %v928, %v3816
    %v3825 = vsel %vm3808, %v967, %v3817
    %v3826 = vsel %vm3809, %v969, %v3818
    %v3827 = vsel %vm3810, %v1008, %v3819
    %v3828 = vsel %vm3811, %v1010, %v3820
    %v3829 = vsel %vm3812, %v1049, %v3821
    %v3830 = vsel %vm3813, %v1051, %v3822
    %vm3831 = vcmp.gt.f32.partialorder %v1727, 0.0
    %vm3832 = vcmp.gt.f32.partialorder %v1729, 0.0
    %vm3833 = vcmp.gt.f32.partialorder %v1768, 0.0
    %vm3834 = vcmp.gt.f32.partialorder %v1770, 0.0
    %vm3835 = vcmp.gt.f32.partialorder %v1809, 0.0
    %vm3836 = vcmp.gt.f32.partialorder %v1811, 0.0
    %vm3837 = vcmp.gt.f32.partialorder %v1850, 0.0
    %vm3838 = vcmp.gt.f32.partialorder %v1852, 0.0
    %v3839 = vmul.f32 %v3814, %v1727
    %v3840 = vmul.f32 %v3814, %v1729
    %v3841 = vmul.f32 %v3814, %v1768
    %v3842 = vmul.f32 %v3814, %v1770
    %v3843 = vmul.f32 %v3814, %v1809
    %v3844 = vmul.f32 %v3814, %v1811
    %v3845 = vmul.f32 %v3814, %v1850
    %v3846 = vmul.f32 %v3814, %v1852
    %v3847 = vsel %vm3831, %v1727, %v3839
    %v3848 = vsel %vm3832, %v1729, %v3840
    %v3849 = vsel %vm3833, %v1768, %v3841
    %v3850 = vsel %vm3834, %v1770, %v3842
    %v3851 = vsel %vm3835, %v1809, %v3843
    %v3852 = vsel %vm3836, %v1811, %v3844
    %v3853 = vsel %vm3837, %v1850, %v3845
    %v3854 = vsel %vm3838, %v1852, %v3846
    %s3855 = scalar_lea.vmem [#allocation8], 1024
    %v3856 = vld [vmem:[%s3855] sm:$0xf]
    %v3857 = vld [vmem:[%s3855 + $0x4] sm:$0xf]
    %v3858 = vld [vmem:[%s3855 + $0x8] sm:$0xf]
    %v3859 = vld [vmem:[%s3855 + $0xc] sm:$0xf]
    %v3860 = vld [vmem:[%s3855 + $0x10] sm:$0xf]
    %v3861 = vld [vmem:[%s3855 + $0x14] sm:$0xf]
    %v3862 = vld [vmem:[%s3855 + $0x18] sm:$0xf]
    %v3863 = vld [vmem:[%s3855 + $0x1c] sm:$0xf]
    %v3864 = vld [vmem:[%s3855 + $0x20] sm:$0xf]
    %v3865 = vld [vmem:[%s3855 + $0x24] sm:$0xf]
    %v3866 = vld [vmem:[%s3855 + $0x28] sm:$0xf]
    %v3867 = vld [vmem:[%s3855 + $0x2c] sm:$0xf]
    %v3868 = vld [vmem:[%s3855 + $0x30] sm:$0xf]
    %v3869 = vld [vmem:[%s3855 + $0x34] sm:$0xf]
    %v3870 = vld [vmem:[%s3855 + $0x38] sm:$0xf]
    %v3871 = vld [vmem:[%s3855 + $0x3c] sm:$0xf]
    %v3872 = vld [vmem:[%s3855 + $0x40] sm:$0xf]
    %v3873 = vld [vmem:[%s3855 + $0x44] sm:$0xf]
    %v3874 = vld [vmem:[%s3855 + $0x48] sm:$0xf]
    %v3875 = vld [vmem:[%s3855 + $0x4c] sm:$0xf]
    %v3876 = vld [vmem:[%s3855 + $0x50] sm:$0xf]
    %v3877 = vld [vmem:[%s3855 + $0x54] sm:$0xf]
    %v3878 = vld [vmem:[%s3855 + $0x58] sm:$0xf]
    %v3879 = vld [vmem:[%s3855 + $0x5c] sm:$0xf]
    %v3880 = vld [vmem:[%s3855 + $0x60] sm:$0xf]
    %v3881 = vld [vmem:[%s3855 + $0x64] sm:$0xf]
    %v3882 = vld [vmem:[%s3855 + $0x68] sm:$0xf]
    %v3883 = vld [vmem:[%s3855 + $0x6c] sm:$0xf]
    %v3884 = vld [vmem:[%s3855 + $0x70] sm:$0xf]
    %v3885 = vld [vmem:[%s3855 + $0x74] sm:$0xf]
    %v3886 = vld [vmem:[%s3855 + $0x78] sm:$0xf]
    %v3887 = vld [vmem:[%s3855 + $0x7c] sm:$0xf]
    %v3888 = vld [vmem:[%s3855 + $0x80] sm:$0xf]
    %v3889 = vld [vmem:[%s3855 + $0x84] sm:$0xf]
    %v3890 = vld [vmem:[%s3855 + $0x88] sm:$0xf]
    %v3891 = vld [vmem:[%s3855 + $0x8c] sm:$0xf]
    %v3892 = vld [vmem:[%s3855 + $0x90] sm:$0xf]
    %v3893 = vld [vmem:[%s3855 + $0x94] sm:$0xf]
    %v3894 = vld [vmem:[%s3855 + $0x98] sm:$0xf]
    %v3895 = vld [vmem:[%s3855 + $0x9c] sm:$0xf]
    %v3896 = vld [vmem:[%s3855 + $0xa0] sm:$0xf]
    %v3897 = vld [vmem:[%s3855 + $0xa4] sm:$0xf]
    %v3898 = vld [vmem:[%s3855 + $0xa8] sm:$0xf]
    %v3899 = vld [vmem:[%s3855 + $0xac] sm:$0xf]
    %v3900 = vld [vmem:[%s3855 + $0xb0] sm:$0xf]
    %v3901 = vld [vmem:[%s3855 + $0xb4] sm:$0xf]
    %v3902 = vld [vmem:[%s3855 + $0xb8] sm:$0xf]
    %v3903 = vld [vmem:[%s3855 + $0xbc] sm:$0xf]
    %v3904 = vld [vmem:[%s3855 + $0xc0] sm:$0xf]
    %v3905 = vld [vmem:[%s3855 + $0xc4] sm:$0xf]
    %v3906 = vld [vmem:[%s3855 + $0xc8] sm:$0xf]
    %v3907 = vld [vmem:[%s3855 + $0xcc] sm:$0xf]
    %v3908 = vld [vmem:[%s3855 + $0xd0] sm:$0xf]
    %v3909 = vld [vmem:[%s3855 + $0xd4] sm:$0xf]
    %v3910 = vld [vmem:[%s3855 + $0xd8] sm:$0xf]
    %v3911 = vld [vmem:[%s3855 + $0xdc] sm:$0xf]
    %v3912 = vld [vmem:[%s3855 + $0xe0] sm:$0xf]
    %v3913 = vld [vmem:[%s3855 + $0xe4] sm:$0xf]
    %v3914 = vld [vmem:[%s3855 + $0xe8] sm:$0xf]
    %v3915 = vld [vmem:[%s3855 + $0xec] sm:$0xf]
    %v3916 = vld [vmem:[%s3855 + $0xf0] sm:$0xf]
    %v3917 = vld [vmem:[%s3855 + $0xf4] sm:$0xf]
    %v3918 = vld [vmem:[%s3855 + $0xf8] sm:$0xf]
    %v3919 = vld [vmem:[%s3855 + $0xfc] sm:$0xf]
    %v3920 = vld [vmem:[%s3855 + $0x100] sm:$0xf]
    %v3921 = vld [vmem:[%s3855 + $0x104] sm:$0xf]
    %v3922 = vld [vmem:[%s3855 + $0x108] sm:$0xf]
    %v3923 = vld [vmem:[%s3855 + $0x10c] sm:$0xf]
    %v3924 = vld [vmem:[%s3855 + $0x110] sm:$0xf]
    %v3925 = vld [vmem:[%s3855 + $0x114] sm:$0xf]
    %v3926 = vld [vmem:[%s3855 + $0x118] sm:$0xf]
    %v3927 = vld [vmem:[%s3855 + $0x11c] sm:$0xf]
    %v3928 = vld [vmem:[%s3855 + $0x120] sm:$0xf]
    %v3929 = vld [vmem:[%s3855 + $0x124] sm:$0xf]
    %v3930 = vld [vmem:[%s3855 + $0x128] sm:$0xf]
    %v3931 = vld [vmem:[%s3855 + $0x12c] sm:$0xf]
    %v3932 = vld [vmem:[%s3855 + $0x130] sm:$0xf]
    %v3933 = vld [vmem:[%s3855 + $0x134] sm:$0xf]
    %v3934 = vld [vmem:[%s3855 + $0x138] sm:$0xf]
    %v3935 = vld [vmem:[%s3855 + $0x13c] sm:$0xf]
    %v3936 = vld [vmem:[%s3855 + $0x140] sm:$0xf]
    %v3937 = vld [vmem:[%s3855 + $0x144] sm:$0xf]
    %v3938 = vld [vmem:[%s3855 + $0x148] sm:$0xf]
    %v3939 = vld [vmem:[%s3855 + $0x14c] sm:$0xf]
    %v3940 = vld [vmem:[%s3855 + $0x150] sm:$0xf]
    %v3941 = vld [vmem:[%s3855 + $0x154] sm:$0xf]
    %v3942 = vld [vmem:[%s3855 + $0x158] sm:$0xf]
    %v3943 = vld [vmem:[%s3855 + $0x15c] sm:$0xf]
    %v3944 = vld [vmem:[%s3855 + $0x160] sm:$0xf]
    %v3945 = vld [vmem:[%s3855 + $0x164] sm:$0xf]
    %v3946 = vld [vmem:[%s3855 + $0x168] sm:$0xf]
    %v3947 = vld [vmem:[%s3855 + $0x16c] sm:$0xf]
    %v3948 = vld [vmem:[%s3855 + $0x170] sm:$0xf]
    %v3949 = vld [vmem:[%s3855 + $0x174] sm:$0xf]
    %v3950 = vld [vmem:[%s3855 + $0x178] sm:$0xf]
    %v3951 = vld [vmem:[%s3855 + $0x17c] sm:$0xf]
    %v3952 = vld [vmem:[%s3855 + $0x180] sm:$0xf]
    %v3953 = vld [vmem:[%s3855 + $0x184] sm:$0xf]
    %v3954 = vld [vmem:[%s3855 + $0x188] sm:$0xf]
    %v3955 = vld [vmem:[%s3855 + $0x18c] sm:$0xf]
    %v3956 = vld [vmem:[%s3855 + $0x190] sm:$0xf]
    %v3957 = vld [vmem:[%s3855 + $0x194] sm:$0xf]
    %v3958 = vld [vmem:[%s3855 + $0x198] sm:$0xf]
    %v3959 = vld [vmem:[%s3855 + $0x19c] sm:$0xf]
    %v3960 = vld [vmem:[%s3855 + $0x1a0] sm:$0xf]
    %v3961 = vld [vmem:[%s3855 + $0x1a4] sm:$0xf]
    %v3962 = vld [vmem:[%s3855 + $0x1a8] sm:$0xf]
    %v3963 = vld [vmem:[%s3855 + $0x1ac] sm:$0xf]
    %v3964 = vld [vmem:[%s3855 + $0x1b0] sm:$0xf]
    %v3965 = vld [vmem:[%s3855 + $0x1b4] sm:$0xf]
    %v3966 = vld [vmem:[%s3855 + $0x1b8] sm:$0xf]
    %v3967 = vld [vmem:[%s3855 + $0x1bc] sm:$0xf]
    %v3968 = vld [vmem:[%s3855 + $0x1c0] sm:$0xf]
    %v3969 = vld [vmem:[%s3855 + $0x1c4] sm:$0xf]
    %v3970 = vld [vmem:[%s3855 + $0x1c8] sm:$0xf]
    %v3971 = vld [vmem:[%s3855 + $0x1cc] sm:$0xf]
    %v3972 = vld [vmem:[%s3855 + $0x1d0] sm:$0xf]
    %v3973 = vld [vmem:[%s3855 + $0x1d4] sm:$0xf]
    %v3974 = vld [vmem:[%s3855 + $0x1d8] sm:$0xf]
    %v3975 = vld [vmem:[%s3855 + $0x1dc] sm:$0xf]
    %v3976 = vld [vmem:[%s3855 + $0x1e0] sm:$0xf]
    %v3977 = vld [vmem:[%s3855 + $0x1e4] sm:$0xf]
    %v3978 = vld [vmem:[%s3855 + $0x1e8] sm:$0xf]
    %v3979 = vld [vmem:[%s3855 + $0x1ec] sm:$0xf]
    %v3980 = vld [vmem:[%s3855 + $0x1f0] sm:$0xf]
    %v3981 = vld [vmem:[%s3855 + $0x1f4] sm:$0xf]
    %v3982 = vld [vmem:[%s3855 + $0x1f8] sm:$0xf]
    %v3983 = vld [vmem:[%s3855 + $0x1fc] sm:$0xf]
    %v3984 = vld [vmem:[%s3855 + $0x200] sm:$0xf]
    %v3985 = vld [vmem:[%s3855 + $0x204] sm:$0xf]
    %v3986 = vld [vmem:[%s3855 + $0x208] sm:$0xf]
    %v3987 = vld [vmem:[%s3855 + $0x20c] sm:$0xf]
    %v3988 = vld [vmem:[%s3855 + $0x210] sm:$0xf]
    %v3989 = vld [vmem:[%s3855 + $0x214] sm:$0xf]
    %v3990 = vld [vmem:[%s3855 + $0x218] sm:$0xf]
    %v3991 = vld [vmem:[%s3855 + $0x21c] sm:$0xf]
    %v3992 = vld [vmem:[%s3855 + $0x220] sm:$0xf]
    %v3993 = vld [vmem:[%s3855 + $0x224] sm:$0xf]
    %v3994 = vld [vmem:[%s3855 + $0x228] sm:$0xf]
    %v3995 = vld [vmem:[%s3855 + $0x22c] sm:$0xf]
    %v3996 = vld [vmem:[%s3855 + $0x230] sm:$0xf]
    %v3997 = vld [vmem:[%s3855 + $0x234] sm:$0xf]
    %v3998 = vld [vmem:[%s3855 + $0x238] sm:$0xf]
    %v3999 = vld [vmem:[%s3855 + $0x23c] sm:$0xf]
    %v4000 = vld [vmem:[%s3855 + $0x240] sm:$0xf]
    %v4001 = vld [vmem:[%s3855 + $0x244] sm:$0xf]
    %v4002 = vld [vmem:[%s3855 + $0x248] sm:$0xf]
    %v4003 = vld [vmem:[%s3855 + $0x24c] sm:$0xf]
    %v4004 = vld [vmem:[%s3855 + $0x250] sm:$0xf]
    %v4005 = vld [vmem:[%s3855 + $0x254] sm:$0xf]
    %v4006 = vld [vmem:[%s3855 + $0x258] sm:$0xf]
    %v4007 = vld [vmem:[%s3855 + $0x25c] sm:$0xf]
    %v4008 = vld [vmem:[%s3855 + $0x260] sm:$0xf]
    %v4009 = vld [vmem:[%s3855 + $0x264] sm:$0xf]
    %v4010 = vld [vmem:[%s3855 + $0x268] sm:$0xf]
    %v4011 = vld [vmem:[%s3855 + $0x26c] sm:$0xf]
    %v4012 = vld [vmem:[%s3855 + $0x270] sm:$0xf]
    %v4013 = vld [vmem:[%s3855 + $0x274] sm:$0xf]
    %v4014 = vld [vmem:[%s3855 + $0x278] sm:$0xf]
    %v4015 = vld [vmem:[%s3855 + $0x27c] sm:$0xf]
    %v4016 = vld [vmem:[%s3855 + $0x280] sm:$0xf]
    %v4017 = vld [vmem:[%s3855 + $0x284] sm:$0xf]
    %v4018 = vld [vmem:[%s3855 + $0x288] sm:$0xf]
    %v4019 = vld [vmem:[%s3855 + $0x28c] sm:$0xf]
    %v4020 = vld [vmem:[%s3855 + $0x290] sm:$0xf]
    %v4021 = vld [vmem:[%s3855 + $0x294] sm:$0xf]
    %v4022 = vld [vmem:[%s3855 + $0x298] sm:$0xf]
    %v4023 = vld [vmem:[%s3855 + $0x29c] sm:$0xf]
    %v4024 = vld [vmem:[%s3855 + $0x2a0] sm:$0xf]
    %v4025 = vld [vmem:[%s3855 + $0x2a4] sm:$0xf]
    %v4026 = vld [vmem:[%s3855 + $0x2a8] sm:$0xf]
    %v4027 = vld [vmem:[%s3855 + $0x2ac] sm:$0xf]
    %v4028 = vld [vmem:[%s3855 + $0x2b0] sm:$0xf]
    %v4029 = vld [vmem:[%s3855 + $0x2b4] sm:$0xf]
    %v4030 = vld [vmem:[%s3855 + $0x2b8] sm:$0xf]
    %v4031 = vld [vmem:[%s3855 + $0x2bc] sm:$0xf]
    %v4032 = vld [vmem:[%s3855 + $0x2c0] sm:$0xf]
    %v4033 = vld [vmem:[%s3855 + $0x2c4] sm:$0xf]
    %v4034 = vld [vmem:[%s3855 + $0x2c8] sm:$0xf]
    %v4035 = vld [vmem:[%s3855 + $0x2cc] sm:$0xf]
    %v4036 = vld [vmem:[%s3855 + $0x2d0] sm:$0xf]
    %v4037 = vld [vmem:[%s3855 + $0x2d4] sm:$0xf]
    %v4038 = vld [vmem:[%s3855 + $0x2d8] sm:$0xf]
    %v4039 = vld [vmem:[%s3855 + $0x2dc] sm:$0xf]
    %v4040 = vld [vmem:[%s3855 + $0x2e0] sm:$0xf]
    %v4041 = vld [vmem:[%s3855 + $0x2e4] sm:$0xf]
    %v4042 = vld [vmem:[%s3855 + $0x2e8] sm:$0xf]
    %v4043 = vld [vmem:[%s3855 + $0x2ec] sm:$0xf]
    %v4044 = vld [vmem:[%s3855 + $0x2f0] sm:$0xf]
    %v4045 = vld [vmem:[%s3855 + $0x2f4] sm:$0xf]
    %v4046 = vld [vmem:[%s3855 + $0x2f8] sm:$0xf]
    %v4047 = vld [vmem:[%s3855 + $0x2fc] sm:$0xf]
    %v4048 = vld [vmem:[%s3855 + $0x300] sm:$0xf]
    %v4049 = vld [vmem:[%s3855 + $0x304] sm:$0xf]
    %v4050 = vld [vmem:[%s3855 + $0x308] sm:$0xf]
    %v4051 = vld [vmem:[%s3855 + $0x30c] sm:$0xf]
    %v4052 = vld [vmem:[%s3855 + $0x310] sm:$0xf]
    %v4053 = vld [vmem:[%s3855 + $0x314] sm:$0xf]
    %v4054 = vld [vmem:[%s3855 + $0x318] sm:$0xf]
    %v4055 = vld [vmem:[%s3855 + $0x31c] sm:$0xf]
    %v4056 = vld [vmem:[%s3855 + $0x320] sm:$0xf]
    %v4057 = vld [vmem:[%s3855 + $0x324] sm:$0xf]
    %v4058 = vld [vmem:[%s3855 + $0x328] sm:$0xf]
    %v4059 = vld [vmem:[%s3855 + $0x32c] sm:$0xf]
    %v4060 = vld [vmem:[%s3855 + $0x330] sm:$0xf]
    %v4061 = vld [vmem:[%s3855 + $0x334] sm:$0xf]
    %v4062 = vld [vmem:[%s3855 + $0x338] sm:$0xf]
    %v4063 = vld [vmem:[%s3855 + $0x33c] sm:$0xf]
    %v4064 = vld [vmem:[%s3855 + $0x340] sm:$0xf]
    %v4065 = vld [vmem:[%s3855 + $0x344] sm:$0xf]
    %v4066 = vld [vmem:[%s3855 + $0x348] sm:$0xf]
    %v4067 = vld [vmem:[%s3855 + $0x34c] sm:$0xf]
    %v4068 = vld [vmem:[%s3855 + $0x350] sm:$0xf]
    %v4069 = vld [vmem:[%s3855 + $0x354] sm:$0xf]
    %v4070 = vld [vmem:[%s3855 + $0x358] sm:$0xf]
    %v4071 = vld [vmem:[%s3855 + $0x35c] sm:$0xf]
    %v4072 = vld [vmem:[%s3855 + $0x360] sm:$0xf]
    %v4073 = vld [vmem:[%s3855 + $0x364] sm:$0xf]
    %v4074 = vld [vmem:[%s3855 + $0x368] sm:$0xf]
    %v4075 = vld [vmem:[%s3855 + $0x36c] sm:$0xf]
    %v4076 = vld [vmem:[%s3855 + $0x370] sm:$0xf]
    %v4077 = vld [vmem:[%s3855 + $0x374] sm:$0xf]
    %v4078 = vld [vmem:[%s3855 + $0x378] sm:$0xf]
    %v4079 = vld [vmem:[%s3855 + $0x37c] sm:$0xf]
    %v4080 = vld [vmem:[%s3855 + $0x380] sm:$0xf]
    %v4081 = vld [vmem:[%s3855 + $0x384] sm:$0xf]
    %v4082 = vld [vmem:[%s3855 + $0x388] sm:$0xf]
    %v4083 = vld [vmem:[%s3855 + $0x38c] sm:$0xf]
    %v4084 = vld [vmem:[%s3855 + $0x390] sm:$0xf]
    %v4085 = vld [vmem:[%s3855 + $0x394] sm:$0xf]
    %v4086 = vld [vmem:[%s3855 + $0x398] sm:$0xf]
    %v4087 = vld [vmem:[%s3855 + $0x39c] sm:$0xf]
    %v4088 = vld [vmem:[%s3855 + $0x3a0] sm:$0xf]
    %v4089 = vld [vmem:[%s3855 + $0x3a4] sm:$0xf]
    %v4090 = vld [vmem:[%s3855 + $0x3a8] sm:$0xf]
    %v4091 = vld [vmem:[%s3855 + $0x3ac] sm:$0xf]
    %v4092 = vld [vmem:[%s3855 + $0x3b0] sm:$0xf]
    %v4093 = vld [vmem:[%s3855 + $0x3b4] sm:$0xf]
    %v4094 = vld [vmem:[%s3855 + $0x3b8] sm:$0xf]
    %v4095 = vld [vmem:[%s3855 + $0x3bc] sm:$0xf]
    %v4096 = vld [vmem:[%s3855 + $0x3c0] sm:$0xf]
    %v4097 = vld [vmem:[%s3855 + $0x3c4] sm:$0xf]
    %v4098 = vld [vmem:[%s3855 + $0x3c8] sm:$0xf]
    %v4099 = vld [vmem:[%s3855 + $0x3cc] sm:$0xf]
    %v4100 = vld [vmem:[%s3855 + $0x3d0] sm:$0xf]
    %v4101 = vld [vmem:[%s3855 + $0x3d4] sm:$0xf]
    %v4102 = vld [vmem:[%s3855 + $0x3d8] sm:$0xf]
    %v4103 = vld [vmem:[%s3855 + $0x3dc] sm:$0xf]
    %v4104 = vld [vmem:[%s3855 + $0x3e0] sm:$0xf]
    %v4105 = vld [vmem:[%s3855 + $0x3e4] sm:$0xf]
    %v4106 = vld [vmem:[%s3855 + $0x3e8] sm:$0xf]
    %v4107 = vld [vmem:[%s3855 + $0x3ec] sm:$0xf]
    %v4108 = vld [vmem:[%s3855 + $0x3f0] sm:$0xf]
    %v4109 = vld [vmem:[%s3855 + $0x3f4] sm:$0xf]
    %v4110 = vld [vmem:[%s3855 + $0x3f8] sm:$0xf]
    %v4111 = vld [vmem:[%s3855 + $0x3fc] sm:$0xf]
    %v4112 = vpack.c.bf16 %v3823, %v3823
    %v4113 = vpack.c.bf16 %v3824, %v3824
    %v4114 = vpack.c.bf16 %v3825, %v3825
    %v4115 = vpack.c.bf16 %v3826, %v3826
    %v4116 = vpack.c.bf16 %v3827, %v3827
    %v4117 = vpack.c.bf16 %v3828, %v3828
    %v4118 = vpack.c.bf16 %v3829, %v3829
    %v4119 = vpack.c.bf16 %v3830, %v3830
    %v4120 = vpack.c.bf16 %v3847, %v3847
    %v4121 = vpack.c.bf16 %v3848, %v3848
    %v4122 = vpack.c.bf16 %v3849, %v3849
    %v4123 = vpack.c.bf16 %v3850, %v3850
    %v4124 = vpack.c.bf16 %v3851, %v3851
    %v4125 = vpack.c.bf16 %v3852, %v3852
    %v4126 = vpack.c.bf16 %v3853, %v3853
    %v4127 = vpack.c.bf16 %v3854, %v3854
    %v4128 = vmul.f32 %v3814, %v1856
    %v4129 = vsel %vm2179, %v1856, %v4128
    %s4130 = scalar_lea.vmem %s10, 8
    %v4131 = vld [vmem:[%s4130] sm:$0xf]
    %v4132 = vld [vmem:[%s4130 + $0x4] sm:$0xf]
    %v4133 = vpack.c.bf16 %v4129, %v4129
    %v4136 = vunpack.c.l.b16 %v4131
    %v4137 = vunpack.c.l.b16 %v4132
    %v4138 = vpack.c.b16 %v4137, %v4136
    %v4141 = vsel %vm2191, %v4133, 0
    %4143 = vmatprep.subr.bf16.mxu0 0
    %4144 = vmatpush1.bf16.msra.mxu0 %v4138
    %4145 = vmatprep.subr.bf16.mxu0 0
    %4146 = vmatpush1.bf16.msra.mxu0 0
    %4147 = vmatprep.subr.bf16.mxu0 0
    %4148 = vmatpush1.bf16.msra.mxu0 0
    %4149 = vmatprep.subr.bf16.mxu0 0
    %4150 = vmatpush1.bf16.msra.mxu0 0
    %4151 = vmatprep.subr.bf16.mxu0 0
    %4152 = vmatpush1.bf16.msra.mxu0 0
    %4153 = vmatprep.subr.bf16.mxu0 0
    %4154 = vmatpush1.bf16.msra.mxu0 0
    %4155 = vmatprep.subr.bf16.mxu0 0
    %4156 = vmatpush1.bf16.msra.mxu0 0
    %4157 = vmatprep.subr.bf16.mxu0 0
    %4158 = vmatpush1.bf16.msra.mxu0 0
    %4159 = vmatprep.subr.bf16.mxu0 0
    %4160 = vmatpush1.bf16.msra.mxu0 0
    %4161 = vmatprep.subr.bf16.mxu0 0
    %4162 = vmatpush1.bf16.msra.mxu0 0
    %4163 = vmatprep.subr.bf16.mxu0 0
    %4164 = vmatpush1.bf16.msra.mxu0 0
    %4165 = vmatprep.subr.bf16.mxu0 0
    %4166 = vmatpush1.bf16.msra.mxu0 0
    %4167 = vmatprep.subr.bf16.mxu0 0
    %4168 = vmatpush1.bf16.msra.mxu0 0
    %4169 = vmatprep.subr.bf16.mxu0 0
    %4170 = vmatpush1.bf16.msra.mxu0 0
    %4171 = vmatprep.subr.bf16.mxu0 0
    %4172 = vmatpush1.bf16.msra.mxu0 0
    %4173 = vmatprep.subr.bf16.mxu0 0
    %4174 = vmatpush1.bf16.msra.mxu0 0
    %4175 = vmatprep.mubr.bf16.mxu0 0
    %4176 = vmatmul.mubr.bf16.gmra.mrb[0].mxu0 %v4141
    %v4177 = vpop.f32.mrb[0].mxu0
    %v4178 = vadd.f32 0.0, %v4177
    %v4179 = vpop.f32.mrb[0].mxu0
    %v4180 = vpop.f32.mrb[0].mxu0
    %v4181 = vpop.f32.mrb[0].mxu0
    %4182 = vdwg.mxu0
    %v4439 = vunpack.c.l.b16 %v3856
    %v4440 = vunpack.c.l.b16 %v3857
    %v4441 = vunpack.c.l.b16 %v3858
    %v4442 = vunpack.c.l.b16 %v3859
    %v4443 = vunpack.c.l.b16 %v3860
    %v4444 = vunpack.c.l.b16 %v3861
    %v4445 = vunpack.c.l.b16 %v3862
    %v4446 = vunpack.c.l.b16 %v3863
    %v4447 = vunpack.c.l.b16 %v3864
    %v4448 = vunpack.c.l.b16 %v3865
    %v4449 = vunpack.c.l.b16 %v3866
    %v4450 = vunpack.c.l.b16 %v3867
    %v4451 = vunpack.c.l.b16 %v3868
    %v4452 = vunpack.c.l.b16 %v3869
    %v4453 = vunpack.c.l.b16 %v3870
    %v4454 = vunpack.c.l.b16 %v3871
    %v4455 = vunpack.c.l.b16 %v3872
    %v4456 = vunpack.c.l.b16 %v3873
    %v4457 = vunpack.c.l.b16 %v3874
    %v4458 = vunpack.c.l.b16 %v3875
    %v4459 = vunpack.c.l.b16 %v3876
    %v4460 = vunpack.c.l.b16 %v3877
    %v4461 = vunpack.c.l.b16 %v3878
    %v4462 = vunpack.c.l.b16 %v3879
    %v4463 = vunpack.c.l.b16 %v3880
    %v4464 = vunpack.c.l.b16 %v3881
    %v4465 = vunpack.c.l.b16 %v3882
    %v4466 = vunpack.c.l.b16 %v3883
    %v4467 = vunpack.c.l.b16 %v3884
    %v4468 = vunpack.c.l.b16 %v3885
    %v4469 = vunpack.c.l.b16 %v3886
    %v4470 = vunpack.c.l.b16 %v3887
    %v4471 = vunpack.c.l.b16 %v3888
    %v4472 = vunpack.c.l.b16 %v3889
    %v4473 = vunpack.c.l.b16 %v3890
    %v4474 = vunpack.c.l.b16 %v3891
    %v4475 = vunpack.c.l.b16 %v3892
    %v4476 = vunpack.c.l.b16 %v3893
    %v4477 = vunpack.c.l.b16 %v3894
    %v4478 = vunpack.c.l.b16 %v3895
    %v4479 = vunpack.c.l.b16 %v3896
    %v4480 = vunpack.c.l.b16 %v3897
    %v4481 = vunpack.c.l.b16 %v3898
    %v4482 = vunpack.c.l.b16 %v3899
    %v4483 = vunpack.c.l.b16 %v3900
    %v4484 = vunpack.c.l.b16 %v3901
    %v4485 = vunpack.c.l.b16 %v3902
    %v4486 = vunpack.c.l.b16 %v3903
    %v4487 = vunpack.c.l.b16 %v3904
    %v4488 = vunpack.c.l.b16 %v3905
    %v4489 = vunpack.c.l.b16 %v3906
    %v4490 = vunpack.c.l.b16 %v3907
    %v4491 = vunpack.c.l.b16 %v3908
    %v4492 = vunpack.c.l.b16 %v3909
    %v4493 = vunpack.c.l.b16 %v3910
    %v4494 = vunpack.c.l.b16 %v3911
    %v4495 = vunpack.c.l.b16 %v3912
    %v4496 = vunpack.c.l.b16 %v3913
    %v4497 = vunpack.c.l.b16 %v3914
    %v4498 = vunpack.c.l.b16 %v3915
    %v4499 = vunpack.c.l.b16 %v3916
    %v4500 = vunpack.c.l.b16 %v3917
    %v4501 = vunpack.c.l.b16 %v3918
    %v4502 = vunpack.c.l.b16 %v3919
    %v4503 = vunpack.c.l.b16 %v3920
    %v4504 = vunpack.c.l.b16 %v3921
    %v4505 = vunpack.c.l.b16 %v3922
    %v4506 = vunpack.c.l.b16 %v3923
    %v4507 = vunpack.c.l.b16 %v3924
    %v4508 = vunpack.c.l.b16 %v3925
    %v4509 = vunpack.c.l.b16 %v3926
    %v4510 = vunpack.c.l.b16 %v3927
    %v4511 = vunpack.c.l.b16 %v3928
    %v4512 = vunpack.c.l.b16 %v3929
    %v4513 = vunpack.c.l.b16 %v3930
    %v4514 = vunpack.c.l.b16 %v3931
    %v4515 = vunpack.c.l.b16 %v3932
    %v4516 = vunpack.c.l.b16 %v3933
    %v4517 = vunpack.c.l.b16 %v3934
    %v4518 = vunpack.c.l.b16 %v3935
    %v4519 = vunpack.c.l.b16 %v3936
    %v4520 = vunpack.c.l.b16 %v3937
    %v4521 = vunpack.c.l.b16 %v3938
    %v4522 = vunpack.c.l.b16 %v3939
    %v4523 = vunpack.c.l.b16 %v3940
    %v4524 = vunpack.c.l.b16 %v3941
    %v4525 = vunpack.c.l.b16 %v3942
    %v4526 = vunpack.c.l.b16 %v3943
    %v4527 = vunpack.c.l.b16 %v3944
    %v4528 = vunpack.c.l.b16 %v3945
    %v4529 = vunpack.c.l.b16 %v3946
    %v4530 = vunpack.c.l.b16 %v3947
    %v4531 = vunpack.c.l.b16 %v3948
    %v4532 = vunpack.c.l.b16 %v3949
    %v4533 = vunpack.c.l.b16 %v3950
    %v4534 = vunpack.c.l.b16 %v3951
    %v4535 = vunpack.c.l.b16 %v3952
    %v4536 = vunpack.c.l.b16 %v3953
    %v4537 = vunpack.c.l.b16 %v3954
    %v4538 = vunpack.c.l.b16 %v3955
    %v4539 = vunpack.c.l.b16 %v3956
    %v4540 = vunpack.c.l.b16 %v3957
    %v4541 = vunpack.c.l.b16 %v3958
    %v4542 = vunpack.c.l.b16 %v3959
    %v4543 = vunpack.c.l.b16 %v3960
    %v4544 = vunpack.c.l.b16 %v3961
    %v4545 = vunpack.c.l.b16 %v3962
    %v4546 = vunpack.c.l.b16 %v3963
    %v4547 = vunpack.c.l.b16 %v3964
    %v4548 = vunpack.c.l.b16 %v3965
    %v4549 = vunpack.c.l.b16 %v3966
    %v4550 = vunpack.c.l.b16 %v3967
    %v4551 = vunpack.c.l.b16 %v3968
    %v4552 = vunpack.c.l.b16 %v3969
    %v4553 = vunpack.c.l.b16 %v3970
    %v4554 = vunpack.c.l.b16 %v3971
    %v4555 = vunpack.c.l.b16 %v3972
    %v4556 = vunpack.c.l.b16 %v3973
    %v4557 = vunpack.c.l.b16 %v3974
    %v4558 = vunpack.c.l.b16 %v3975
    %v4559 = vunpack.c.l.b16 %v3976
    %v4560 = vunpack.c.l.b16 %v3977
    %v4561 = vunpack.c.l.b16 %v3978
    %v4562 = vunpack.c.l.b16 %v3979
    %v4563 = vunpack.c.l.b16 %v3980
    %v4564 = vunpack.c.l.b16 %v3981
    %v4565 = vunpack.c.l.b16 %v3982
    %v4566 = vunpack.c.l.b16 %v3983
    %v4567 = vunpack.c.l.b16 %v3984
    %v4568 = vunpack.c.l.b16 %v3985
    %v4569 = vunpack.c.l.b16 %v3986
    %v4570 = vunpack.c.l.b16 %v3987
    %v4571 = vunpack.c.l.b16 %v3988
    %v4572 = vunpack.c.l.b16 %v3989
    %v4573 = vunpack.c.l.b16 %v3990
    %v4574 = vunpack.c.l.b16 %v3991
    %v4575 = vunpack.c.l.b16 %v3992
    %v4576 = vunpack.c.l.b16 %v3993
    %v4577 = vunpack.c.l.b16 %v3994
    %v4578 = vunpack.c.l.b16 %v3995
    %v4579 = vunpack.c.l.b16 %v3996
    %v4580 = vunpack.c.l.b16 %v3997
    %v4581 = vunpack.c.l.b16 %v3998
    %v4582 = vunpack.c.l.b16 %v3999
    %v4583 = vunpack.c.l.b16 %v4000
    %v4584 = vunpack.c.l.b16 %v4001
    %v4585 = vunpack.c.l.b16 %v4002
    %v4586 = vunpack.c.l.b16 %v4003
    %v4587 = vunpack.c.l.b16 %v4004
    %v4588 = vunpack.c.l.b16 %v4005
    %v4589 = vunpack.c.l.b16 %v4006
    %v4590 = vunpack.c.l.b16 %v4007
    %v4591 = vunpack.c.l.b16 %v4008
    %v4592 = vunpack.c.l.b16 %v4009
    %v4593 = vunpack.c.l.b16 %v4010
    %v4594 = vunpack.c.l.b16 %v4011
    %v4595 = vunpack.c.l.b16 %v4012
    %v4596 = vunpack.c.l.b16 %v4013
    %v4597 = vunpack.c.l.b16 %v4014
    %v4598 = vunpack.c.l.b16 %v4015
    %v4599 = vunpack.c.l.b16 %v4016
    %v4600 = vunpack.c.l.b16 %v4017
    %v4601 = vunpack.c.l.b16 %v4018
    %v4602 = vunpack.c.l.b16 %v4019
    %v4603 = vunpack.c.l.b16 %v4020
    %v4604 = vunpack.c.l.b16 %v4021
    %v4605 = vunpack.c.l.b16 %v4022
    %v4606 = vunpack.c.l.b16 %v4023
    %v4607 = vunpack.c.l.b16 %v4024
    %v4608 = vunpack.c.l.b16 %v4025
    %v4609 = vunpack.c.l.b16 %v4026
    %v4610 = vunpack.c.l.b16 %v4027
    %v4611 = vunpack.c.l.b16 %v4028
    %v4612 = vunpack.c.l.b16 %v4029
    %v4613 = vunpack.c.l.b16 %v4030
    %v4614 = vunpack.c.l.b16 %v4031
    %v4615 = vunpack.c.l.b16 %v4032
    %v4616 = vunpack.c.l.b16 %v4033
    %v4617 = vunpack.c.l.b16 %v4034
    %v4618 = vunpack.c.l.b16 %v4035
    %v4619 = vunpack.c.l.b16 %v4036
    %v4620 = vunpack.c.l.b16 %v4037
    %v4621 = vunpack.c.l.b16 %v4038
    %v4622 = vunpack.c.l.b16 %v4039
    %v4623 = vunpack.c.l.b16 %v4040
    %v4624 = vunpack.c.l.b16 %v4041
    %v4625 = vunpack.c.l.b16 %v4042
    %v4626 = vunpack.c.l.b16 %v4043
    %v4627 = vunpack.c.l.b16 %v4044
    %v4628 = vunpack.c.l.b16 %v4045
    %v4629 = vunpack.c.l.b16 %v4046
    %v4630 = vunpack.c.l.b16 %v4047
    %v4631 = vunpack.c.l.b16 %v4048
    %v4632 = vunpack.c.l.b16 %v4049
    %v4633 = vunpack.c.l.b16 %v4050
    %v4634 = vunpack.c.l.b16 %v4051
    %v4635 = vunpack.c.l.b16 %v4052
    %v4636 = vunpack.c.l.b16 %v4053
    %v4637 = vunpack.c.l.b16 %v4054
    %v4638 = vunpack.c.l.b16 %v4055
    %v4639 = vunpack.c.l.b16 %v4056
    %v4640 = vunpack.c.l.b16 %v4057
    %v4641 = vunpack.c.l.b16 %v4058
    %v4642 = vunpack.c.l.b16 %v4059
    %v4643 = vunpack.c.l.b16 %v4060
    %v4644 = vunpack.c.l.b16 %v4061
    %v4645 = vunpack.c.l.b16 %v4062
    %v4646 = vunpack.c.l.b16 %v4063
    %v4647 = vunpack.c.l.b16 %v4064
    %v4648 = vunpack.c.l.b16 %v4065
    %v4649 = vunpack.c.l.b16 %v4066
    %v4650 = vunpack.c.l.b16 %v4067
    %v4651 = vunpack.c.l.b16 %v4068
    %v4652 = vunpack.c.l.b16 %v4069
    %v4653 = vunpack.c.l.b16 %v4070
    %v4654 = vunpack.c.l.b16 %v4071
    %v4655 = vunpack.c.l.b16 %v4072
    %v4656 = vunpack.c.l.b16 %v4073
    %v4657 = vunpack.c.l.b16 %v4074
    %v4658 = vunpack.c.l.b16 %v4075
    %v4659 = vunpack.c.l.b16 %v4076
    %v4660 = vunpack.c.l.b16 %v4077
    %v4661 = vunpack.c.l.b16 %v4078
    %v4662 = vunpack.c.l.b16 %v4079
    %v4663 = vunpack.c.l.b16 %v4080
    %v4664 = vunpack.c.l.b16 %v4081
    %v4665 = vunpack.c.l.b16 %v4082
    %v4666 = vunpack.c.l.b16 %v4083
    %v4667 = vunpack.c.l.b16 %v4084
    %v4668 = vunpack.c.l.b16 %v4085
    %v4669 = vunpack.c.l.b16 %v4086
    %v4670 = vunpack.c.l.b16 %v4087
    %v4671 = vunpack.c.l.b16 %v4088
    %v4672 = vunpack.c.l.b16 %v4089
    %v4673 = vunpack.c.l.b16 %v4090
    %v4674 = vunpack.c.l.b16 %v4091
    %v4675 = vunpack.c.l.b16 %v4092
    %v4676 = vunpack.c.l.b16 %v4093
    %v4677 = vunpack.c.l.b16 %v4094
    %v4678 = vunpack.c.l.b16 %v4095
    %v4679 = vunpack.c.l.b16 %v4096
    %v4680 = vunpack.c.l.b16 %v4097
    %v4681 = vunpack.c.l.b16 %v4098
    %v4682 = vunpack.c.l.b16 %v4099
    %v4683 = vunpack.c.l.b16 %v4100
    %v4684 = vunpack.c.l.b16 %v4101
    %v4685 = vunpack.c.l.b16 %v4102
    %v4686 = vunpack.c.l.b16 %v4103
    %v4687 = vunpack.c.l.b16 %v4104
    %v4688 = vunpack.c.l.b16 %v4105
    %v4689 = vunpack.c.l.b16 %v4106
    %v4690 = vunpack.c.l.b16 %v4107
    %v4691 = vunpack.c.l.b16 %v4108
    %v4692 = vunpack.c.l.b16 %v4109
    %v4693 = vunpack.c.l.b16 %v4110
    %v4694 = vunpack.c.l.b16 %v4111
    %v4695 = vpack.c.b16 %v4440, %v4439
    %v4696 = vpack.c.b16 %v4442, %v4441
    %v4697 = vpack.c.b16 %v4444, %v4443
    %v4698 = vpack.c.b16 %v4446, %v4445
    %v4699 = vpack.c.b16 %v4448, %v4447
    %v4700 = vpack.c.b16 %v4450, %v4449
    %v4701 = vpack.c.b16 %v4452, %v4451
    %v4702 = vpack.c.b16 %v4454, %v4453
    %v4703 = vpack.c.b16 %v4456, %v4455
    %v4704 = vpack.c.b16 %v4458, %v4457
    %v4705 = vpack.c.b16 %v4460, %v4459
    %v4706 = vpack.c.b16 %v4462, %v4461
    %v4707 = vpack.c.b16 %v4464, %v4463
    %v4708 = vpack.c.b16 %v4466, %v4465
    %v4709 = vpack.c.b16 %v4468, %v4467
    %v4710 = vpack.c.b16 %v4470, %v4469
    %v4711 = vpack.c.b16 %v4472, %v4471
    %v4712 = vpack.c.b16 %v4474, %v4473
    %v4713 = vpack.c.b16 %v4476, %v4475
    %v4714 = vpack.c.b16 %v4478, %v4477
    %v4715 = vpack.c.b16 %v4480, %v4479
    %v4716 = vpack.c.b16 %v4482, %v4481
    %v4717 = vpack.c.b16 %v4484, %v4483
    %v4718 = vpack.c.b16 %v4486, %v4485
    %v4719 = vpack.c.b16 %v4488, %v4487
    %v4720 = vpack.c.b16 %v4490, %v4489
    %v4721 = vpack.c.b16 %v4492, %v4491
    %v4722 = vpack.c.b16 %v4494, %v4493
    %v4723 = vpack.c.b16 %v4496, %v4495
    %v4724 = vpack.c.b16 %v4498, %v4497
    %v4725 = vpack.c.b16 %v4500, %v4499
    %v4726 = vpack.c.b16 %v4502, %v4501
    %v4727 = vpack.c.b16 %v4504, %v4503
    %v4728 = vpack.c.b16 %v4506, %v4505
    %v4729 = vpack.c.b16 %v4508, %v4507
    %v4730 = vpack.c.b16 %v4510, %v4509
    %v4731 = vpack.c.b16 %v4512, %v4511
    %v4732 = vpack.c.b16 %v4514, %v4513
    %v4733 = vpack.c.b16 %v4516, %v4515
    %v4734 = vpack.c.b16 %v4518, %v4517
    %v4735 = vpack.c.b16 %v4520, %v4519
    %v4736 = vpack.c.b16 %v4522, %v4521
    %v4737 = vpack.c.b16 %v4524, %v4523
    %v4738 = vpack.c.b16 %v4526, %v4525
    %v4739 = vpack.c.b16 %v4528, %v4527
    %v4740 = vpack.c.b16 %v4530, %v4529
    %v4741 = vpack.c.b16 %v4532, %v4531
    %v4742 = vpack.c.b16 %v4534, %v4533
    %v4743 = vpack.c.b16 %v4536, %v4535
    %v4744 = vpack.c.b16 %v4538, %v4537
    %v4745 = vpack.c.b16 %v4540, %v4539
    %v4746 = vpack.c.b16 %v4542, %v4541
    %v4747 = vpack.c.b16 %v4544, %v4543
    %v4748 = vpack.c.b16 %v4546, %v4545
    %v4749 = vpack.c.b16 %v4548, %v4547
    %v4750 = vpack.c.b16 %v4550, %v4549
    %v4751 = vpack.c.b16 %v4552, %v4551
    %v4752 = vpack.c.b16 %v4554, %v4553
    %v4753 = vpack.c.b16 %v4556, %v4555
    %v4754 = vpack.c.b16 %v4558, %v4557
    %v4755 = vpack.c.b16 %v4560, %v4559
    %v4756 = vpack.c.b16 %v4562, %v4561
    %v4757 = vpack.c.b16 %v4564, %v4563
    %v4758 = vpack.c.b16 %v4566, %v4565
    %v4759 = vpack.c.b16 %v4568, %v4567
    %v4760 = vpack.c.b16 %v4570, %v4569
    %v4761 = vpack.c.b16 %v4572, %v4571
    %v4762 = vpack.c.b16 %v4574, %v4573
    %v4763 = vpack.c.b16 %v4576, %v4575
    %v4764 = vpack.c.b16 %v4578, %v4577
    %v4765 = vpack.c.b16 %v4580, %v4579
    %v4766 = vpack.c.b16 %v4582, %v4581
    %v4767 = vpack.c.b16 %v4584, %v4583
    %v4768 = vpack.c.b16 %v4586, %v4585
    %v4769 = vpack.c.b16 %v4588, %v4587
    %v4770 = vpack.c.b16 %v4590, %v4589
    %v4771 = vpack.c.b16 %v4592, %v4591
    %v4772 = vpack.c.b16 %v4594, %v4593
    %v4773 = vpack.c.b16 %v4596, %v4595
    %v4774 = vpack.c.b16 %v4598, %v4597
    %v4775 = vpack.c.b16 %v4600, %v4599
    %v4776 = vpack.c.b16 %v4602, %v4601
    %v4777 = vpack.c.b16 %v4604, %v4603
    %v4778 = vpack.c.b16 %v4606, %v4605
    %v4779 = vpack.c.b16 %v4608, %v4607
    %v4780 = vpack.c.b16 %v4610, %v4609
    %v4781 = vpack.c.b16 %v4612, %v4611
    %v4782 = vpack.c.b16 %v4614, %v4613
    %v4783 = vpack.c.b16 %v4616, %v4615
    %v4784 = vpack.c.b16 %v4618, %v4617
    %v4785 = vpack.c.b16 %v4620, %v4619
    %v4786 = vpack.c.b16 %v4622, %v4621
    %v4787 = vpack.c.b16 %v4624, %v4623
    %v4788 = vpack.c.b16 %v4626, %v4625
    %v4789 = vpack.c.b16 %v4628, %v4627
    %v4790 = vpack.c.b16 %v4630, %v4629
    %v4791 = vpack.c.b16 %v4632, %v4631
    %v4792 = vpack.c.b16 %v4634, %v4633
    %v4793 = vpack.c.b16 %v4636, %v4635
    %v4794 = vpack.c.b16 %v4638, %v4637
    %v4795 = vpack.c.b16 %v4640, %v4639
    %v4796 = vpack.c.b16 %v4642, %v4641
    %v4797 = vpack.c.b16 %v4644, %v4643
    %v4798 = vpack.c.b16 %v4646, %v4645
    %v4799 = vpack.c.b16 %v4648, %v4647
    %v4800 = vpack.c.b16 %v4650, %v4649
    %v4801 = vpack.c.b16 %v4652, %v4651
    %v4802 = vpack.c.b16 %v4654, %v4653
    %v4803 = vpack.c.b16 %v4656, %v4655
    %v4804 = vpack.c.b16 %v4658, %v4657
    %v4805 = vpack.c.b16 %v4660, %v4659
    %v4806 = vpack.c.b16 %v4662, %v4661
    %v4807 = vpack.c.b16 %v4664, %v4663
    %v4808 = vpack.c.b16 %v4666, %v4665
    %v4809 = vpack.c.b16 %v4668, %v4667
    %v4810 = vpack.c.b16 %v4670, %v4669
    %v4811 = vpack.c.b16 %v4672, %v4671
    %v4812 = vpack.c.b16 %v4674, %v4673
    %v4813 = vpack.c.b16 %v4676, %v4675
    %v4814 = vpack.c.b16 %v4678, %v4677
    %v4815 = vpack.c.b16 %v4680, %v4679
    %v4816 = vpack.c.b16 %v4682, %v4681
    %v4817 = vpack.c.b16 %v4684, %v4683
    %v4818 = vpack.c.b16 %v4686, %v4685
    %v4819 = vpack.c.b16 %v4688, %v4687
    %v4820 = vpack.c.b16 %v4690, %v4689
    %v4821 = vpack.c.b16 %v4692, %v4691
    %v4822 = vpack.c.b16 %v4694, %v4693
    %4951 = vmatprep.subr.bf16.mxu0 0
    %4952 = vmatpush1.bf16.msra.mxu0 %v4695
    %4953 = vmatprep.subr.bf16.mxu0 0
    %4954 = vmatpush1.bf16.msra.mxu0 %v4696
    %4955 = vmatprep.subr.bf16.mxu0 0
    %4956 = vmatpush1.bf16.msra.mxu0 %v4697
    %4957 = vmatprep.subr.bf16.mxu0 0
    %4958 = vmatpush1.bf16.msra.mxu0 %v4698
    %4959 = vmatprep.subr.bf16.mxu0 0
    %4960 = vmatpush1.bf16.msra.mxu0 %v4699
    %4961 = vmatprep.subr.bf16.mxu0 0
    %4962 = vmatpush1.bf16.msra.mxu0 %v4700
    %4963 = vmatprep.subr.bf16.mxu0 0
    %4964 = vmatpush1.bf16.msra.mxu0 %v4701
    %4965 = vmatprep.subr.bf16.mxu0 0
    %4966 = vmatpush1.bf16.msra.mxu0 %v4702
    %4967 = vmatprep.subr.bf16.mxu0 0
    %4968 = vmatpush1.bf16.msra.mxu0 %v4703
    %4969 = vmatprep.subr.bf16.mxu0 0
    %4970 = vmatpush1.bf16.msra.mxu0 %v4704
    %4971 = vmatprep.subr.bf16.mxu0 0
    %4972 = vmatpush1.bf16.msra.mxu0 %v4705
    %4973 = vmatprep.subr.bf16.mxu0 0
    %4974 = vmatpush1.bf16.msra.mxu0 %v4706
    %4975 = vmatprep.subr.bf16.mxu0 0
    %4976 = vmatpush1.bf16.msra.mxu0 %v4707
    %4977 = vmatprep.subr.bf16.mxu0 0
    %4978 = vmatpush1.bf16.msra.mxu0 %v4708
    %4979 = vmatprep.subr.bf16.mxu0 0
    %4980 = vmatpush1.bf16.msra.mxu0 %v4709
    %4981 = vmatprep.subr.bf16.mxu0 0
    %4982 = vmatpush1.bf16.msra.mxu0 %v4710
    %4983 = vmatprep.mubr.bf16.mxu0 %v4113
    %4984 = vmatmul.mubr.bf16.gmra.mrb[0].mxu0 %v4112
    %v4985 = vpop.f32.mrb[0].mxu0
    %v4986 = vadd.f32 %v4178, %v4985
    %v4987 = vpop.f32.mrb[0].mxu0
    %v4988 = vpop.f32.mrb[0].mxu0
    %v4989 = vpop.f32.mrb[0].mxu0
    %4990 = vdwg.mxu0
    %4991 = vmatprep.subr.bf16.mxu0 0
    %4992 = vmatpush1.bf16.msra.mxu0 %v4711
    %4993 = vmatprep.subr.bf16.mxu0 0
    %4994 = vmatpush1.bf16.msra.mxu0 %v4712
    %4995 = vmatprep.subr.bf16.mxu0 0
    %4996 = vmatpush1.bf16.msra.mxu0 %v4713
    %4997 = vmatprep.subr.bf16.mxu0 0
    %4998 = vmatpush1.bf16.msra.mxu0 %v4714
    %4999 = vmatprep.subr.bf16.mxu0 0
    %5000 = vmatpush1.bf16.msra.mxu0 %v4715
    %5001 = vmatprep.subr.bf16.mxu0 0
    %5002 = vmatpush1.bf16.msra.mxu0 %v4716
    %5003 = vmatprep.subr.bf16.mxu0 0
    %5004 = vmatpush1.bf16.msra.mxu0 %v4717
    %5005 = vmatprep.subr.bf16.mxu0 0
    %5006 = vmatpush1.bf16.msra.mxu0 %v4718
    %5007 = vmatprep.subr.bf16.mxu0 0
    %5008 = vmatpush1.bf16.msra.mxu0 %v4719
    %5009 = vmatprep.subr.bf16.mxu0 0
    %5010 = vmatpush1.bf16.msra.mxu0 %v4720
    %5011 = vmatprep.subr.bf16.mxu0 0
    %5012 = vmatpush1.bf16.msra.mxu0 %v4721
    %5013 = vmatprep.subr.bf16.mxu0 0
    %5014 = vmatpush1.bf16.msra.mxu0 %v4722
    %5015 = vmatprep.subr.bf16.mxu0 0
    %5016 = vmatpush1.bf16.msra.mxu0 %v4723
    %5017 = vmatprep.subr.bf16.mxu0 0
    %5018 = vmatpush1.bf16.msra.mxu0 %v4724
    %5019 = vmatprep.subr.bf16.mxu0 0
    %5020 = vmatpush1.bf16.msra.mxu0 %v4725
    %5021 = vmatprep.subr.bf16.mxu0 0
    %5022 = vmatpush1.bf16.msra.mxu0 %v4726
    %5023 = vmatprep.mubr.bf16.mxu0 %v4115
    %5024 = vmatmul.mubr.bf16.gmra.mrb[0].mxu0 %v4114
    %v5025 = vpop.f32.mrb[0].mxu0
    %v5026 = vadd.f32 %v4986, %v5025
    %v5027 = vpop.f32.mrb[0].mxu0
    %v5028 = vpop.f32.mrb[0].mxu0
    %v5029 = vpop.f32.mrb[0].mxu0
    %5030 = vdwg.mxu0
    %5031 = vmatprep.subr.bf16.mxu0 0
    %5032 = vmatpush1.bf16.msra.mxu0 %v4727
    %5033 = vmatprep.subr.bf16.mxu0 0
    %5034 = vmatpush1.bf16.msra.mxu0 %v4728
    %5035 = vmatprep.subr.bf16.mxu0 0
    %5036 = vmatpush1.bf16.msra.mxu0 %v4729
    %5037 = vmatprep.subr.bf16.mxu0 0
    %5038 = vmatpush1.bf16.msra.mxu0 %v4730
    %5039 = vmatprep.subr.bf16.mxu0 0
    %5040 = vmatpush1.bf16.msra.mxu0 %v4731
    %5041 = vmatprep.subr.bf16.mxu0 0
    %5042 = vmatpush1.bf16.msra.mxu0 %v4732
    %5043 = vmatprep.subr.bf16.mxu0 0
    %5044 = vmatpush1.bf16.msra.mxu0 %v4733
    %5045 = vmatprep.subr.bf16.mxu0 0
    %5046 = vmatpush1.bf16.msra.mxu0 %v4734
    %5047 = vmatprep.subr.bf16.mxu0 0
    %5048 = vmatpush1.bf16.msra.mxu0 %v4735
    %5049 = vmatprep.subr.bf16.mxu0 0
    %5050 = vmatpush1.bf16.msra.mxu0 %v4736
    %5051 = vmatprep.subr.bf16.mxu0 0
    %5052 = vmatpush1.bf16.msra.mxu0 %v4737
    %5053 = vmatprep.subr.bf16.mxu0 0
    %5054 = vmatpush1.bf16.msra.mxu0 %v4738
    %5055 = vmatprep.subr.bf16.mxu0 0
    %5056 = vmatpush1.bf16.msra.mxu0 %v4739
    %5057 = vmatprep.subr.bf16.mxu0 0
    %5058 = vmatpush1.bf16.msra.mxu0 %v4740
    %5059 = vmatprep.subr.bf16.mxu0 0
    %5060 = vmatpush1.bf16.msra.mxu0 %v4741
    %5061 = vmatprep.subr.bf16.mxu0 0
    %5062 = vmatpush1.bf16.msra.mxu0 %v4742
    %5063 = vmatprep.mubr.bf16.mxu0 %v4117
    %5064 = vmatmul.mubr.bf16.gmra.mrb[0].mxu0 %v4116
    %v5065 = vpop.f32.mrb[0].mxu0
    %v5066 = vadd.f32 %v5026, %v5065
    %v5067 = vpop.f32.mrb[0].mxu0
    %v5068 = vpop.f32.mrb[0].mxu0
    %v5069 = vpop.f32.mrb[0].mxu0
    %5070 = vdwg.mxu0
    %5071 = vmatprep.subr.bf16.mxu0 0
    %5072 = vmatpush1.bf16.msra.mxu0 %v4743
    %5073 = vmatprep.subr.bf16.mxu0 0
    %5074 = vmatpush1.bf16.msra.mxu0 %v4744
    %5075 = vmatprep.subr.bf16.mxu0 0
    %5076 = vmatpush1.bf16.msra.mxu0 %v4745
    %5077 = vmatprep.subr.bf16.mxu0 0
    %5078 = vmatpush1.bf16.msra.mxu0 %v4746
    %5079 = vmatprep.subr.bf16.mxu0 0
    %5080 = vmatpush1.bf16.msra.mxu0 %v4747
    %5081 = vmatprep.subr.bf16.mxu0 0
    %5082 = vmatpush1.bf16.msra.mxu0 %v4748
    %5083 = vmatprep.subr.bf16.mxu0 0
    %5084 = vmatpush1.bf16.msra.mxu0 %v4749
    %5085 = vmatprep.subr.bf16.mxu0 0
    %5086 = vmatpush1.bf16.msra.mxu0 %v4750
    %5087 = vmatprep.subr.bf16.mxu0 0
    %5088 = vmatpush1.bf16.msra.mxu0 %v4751
    %5089 = vmatprep.subr.bf16.mxu0 0
    %5090 = vmatpush1.bf16.msra.mxu0 %v4752
    %5091 = vmatprep.subr.bf16.mxu0 0
    %5092 = vmatpush1.bf16.msra.mxu0 %v4753
    %5093 = vmatprep.subr.bf16.mxu0 0
    %5094 = vmatpush1.bf16.msra.mxu0 %v4754
    %5095 = vmatprep.subr.bf16.mxu0 0
    %5096 = vmatpush1.bf16.msra.mxu0 %v4755
    %5097 = vmatprep.subr.bf16.mxu0 0
    %5098 = vmatpush1.bf16.msra.mxu0 %v4756
    %5099 = vmatprep.subr.bf16.mxu0 0
    %5100 = vmatpush1.bf16.msra.mxu0 %v4757
    %5101 = vmatprep.subr.bf16.mxu0 0
    %5102 = vmatpush1.bf16.msra.mxu0 %v4758
    %5103 = vmatprep.mubr.bf16.mxu0 %v4119
    %5104 = vmatmul.mubr.bf16.gmra.mrb[0].mxu0 %v4118
    %v5105 = vpop.f32.mrb[0].mxu0
    %v5106 = vadd.f32 %v5066, %v5105
    %v5107 = vpop.f32.mrb[0].mxu0
    %v5108 = vpop.f32.mrb[0].mxu0
    %v5109 = vpop.f32.mrb[0].mxu0
    %5110 = vdwg.mxu0
    %5111 = vmatprep.subr.bf16.mxu0 0
    %5112 = vmatpush1.bf16.msra.mxu0 %v4759
    %5113 = vmatprep.subr.bf16.mxu0 0
    %5114 = vmatpush1.bf16.msra.mxu0 %v4760
    %5115 = vmatprep.subr.bf16.mxu0 0
    %5116 = vmatpush1.bf16.msra.mxu0 %v4761
    %5117 = vmatprep.subr.bf16.mxu0 0
    %5118 = vmatpush1.bf16.msra.mxu0 %v4762
    %5119 = vmatprep.subr.bf16.mxu0 0
    %5120 = vmatpush1.bf16.msra.mxu0 %v4763
    %5121 = vmatprep.subr.bf16.mxu0 0
    %5122 = vmatpush1.bf16.msra.mxu0 %v4764
    %5123 = vmatprep.subr.bf16.mxu0 0
    %5124 = vmatpush1.bf16.msra.mxu0 %v4765
    %5125 = vmatprep.subr.bf16.mxu0 0
    %5126 = vmatpush1.bf16.msra.mxu0 %v4766
    %5127 = vmatprep.subr.bf16.mxu0 0
    %5128 = vmatpush1.bf16.msra.mxu0 %v4767
    %5129 = vmatprep.subr.bf16.mxu0 0
    %5130 = vmatpush1.bf16.msra.mxu0 %v4768
    %5131 = vmatprep.subr.bf16.mxu0 0
    %5132 = vmatpush1.bf16.msra.mxu0 %v4769
    %5133 = vmatprep.subr.bf16.mxu0 0
    %5134 = vmatpush1.bf16.msra.mxu0 %v4770
    %5135 = vmatprep.subr.bf16.mxu0 0
    %5136 = vmatpush1.bf16.msra.mxu0 %v4771
    %5137 = vmatprep.subr.bf16.mxu0 0
    %5138 = vmatpush1.bf16.msra.mxu0 %v4772
    %5139 = vmatprep.subr.bf16.mxu0 0
    %5140 = vmatpush1.bf16.msra.mxu0 %v4773
    %5141 = vmatprep.subr.bf16.mxu0 0
    %5142 = vmatpush1.bf16.msra.mxu0 %v4774
    %5143 = vmatprep.mubr.bf16.mxu0 %v4121
    %5144 = vmatmul.mubr.bf16.gmra.mrb[0].mxu0 %v4120
    %v5145 = vpop.f32.mrb[0].mxu0
    %v5146 = vadd.f32 %v5106, %v5145
    %v5147 = vpop.f32.mrb[0].mxu0
    %v5148 = vpop.f32.mrb[0].mxu0
    %v5149 = vpop.f32.mrb[0].mxu0
    %5150 = vdwg.mxu0
    %5151 = vmatprep.subr.bf16.mxu0 0
    %5152 = vmatpush1.bf16.msra.mxu0 %v4775
    %5153 = vmatprep.subr.bf16.mxu0 0
    %5154 = vmatpush1.bf16.msra.mxu0 %v4776
    %5155 = vmatprep.subr.bf16.mxu0 0
    %5156 = vmatpush1.bf16.msra.mxu0 %v4777
    %5157 = vmatprep.subr.bf16.mxu0 0
    %5158 = vmatpush1.bf16.msra.mxu0 %v4778
    %5159 = vmatprep.subr.bf16.mxu0 0
    %5160 = vmatpush1.bf16.msra.mxu0 %v4779
    %5161 = vmatprep.subr.bf16.mxu0 0
    %5162 = vmatpush1.bf16.msra.mxu0 %v4780
    %5163 = vmatprep.subr.bf16.mxu0 0
    %5164 = vmatpush1.bf16.msra.mxu0 %v4781
    %5165 = vmatprep.subr.bf16.mxu0 0
    %5166 = vmatpush1.bf16.msra.mxu0 %v4782
    %5167 = vmatprep.subr.bf16.mxu0 0
    %5168 = vmatpush1.bf16.msra.mxu0 %v4783
    %5169 = vmatprep.subr.bf16.mxu0 0
    %5170 = vmatpush1.bf16.msra.mxu0 %v4784
    %5171 = vmatprep.subr.bf16.mxu0 0
    %5172 = vmatpush1.bf16.msra.mxu0 %v4785
    %5173 = vmatprep.subr.bf16.mxu0 0
    %5174 = vmatpush1.bf16.msra.mxu0 %v4786
    %5175 = vmatprep.subr.bf16.mxu0 0
    %5176 = vmatpush1.bf16.msra.mxu0 %v4787
    %5177 = vmatprep.subr.bf16.mxu0 0
    %5178 = vmatpush1.bf16.msra.mxu0 %v4788
    %5179 = vmatprep.subr.bf16.mxu0 0
    %5180 = vmatpush1.bf16.msra.mxu0 %v4789
    %5181 = vmatprep.subr.bf16.mxu0 0
    %5182 = vmatpush1.bf16.msra.mxu0 %v4790
    %5183 = vmatprep.mubr.bf16.mxu0 %v4123
    %5184 = vmatmul.mubr.bf16.gmra.mrb[0].mxu0 %v4122
    %v5185 = vpop.f32.mrb[0].mxu0
    %v5186 = vadd.f32 %v5146, %v5185
    %v5187 = vpop.f32.mrb[0].mxu0
    %v5188 = vpop.f32.mrb[0].mxu0
    %v5189 = vpop.f32.mrb[0].mxu0
    %5190 = vdwg.mxu0
    %5191 = vmatprep.subr.bf16.mxu0 0
    %5192 = vmatpush1.bf16.msra.mxu0 %v4791
    %5193 = vmatprep.subr.bf16.mxu0 0
    %5194 = vmatpush1.bf16.msra.mxu0 %v4792
    %5195 = vmatprep.subr.bf16.mxu0 0
    %5196 = vmatpush1.bf16.msra.mxu0 %v4793
    %5197 = vmatprep.subr.bf16.mxu0 0
    %5198 = vmatpush1.bf16.msra.mxu0 %v4794
    %5199 = vmatprep.subr.bf16.mxu0 0
    %5200 = vmatpush1.bf16.msra.mxu0 %v4795
    %5201 = vmatprep.subr.bf16.mxu0 0
    %5202 = vmatpush1.bf16.msra.mxu0 %v4796
    %5203 = vmatprep.subr.bf16.mxu0 0
    %5204 = vmatpush1.bf16.msra.mxu0 %v4797
    %5205 = vmatprep.subr.bf16.mxu0 0
    %5206 = vmatpush1.bf16.msra.mxu0 %v4798
    %5207 = vmatprep.subr.bf16.mxu0 0
    %5208 = vmatpush1.bf16.msra.mxu0 %v4799
    %5209 = vmatprep.subr.bf16.mxu0 0
    %5210 = vmatpush1.bf16.msra.mxu0 %v4800
    %5211 = vmatprep.subr.bf16.mxu0 0
    %5212 = vmatpush1.bf16.msra.mxu0 %v4801
    %5213 = vmatprep.subr.bf16.mxu0 0
    %5214 = vmatpush1.bf16.msra.mxu0 %v4802
    %5215 = vmatprep.subr.bf16.mxu0 0
    %5216 = vmatpush1.bf16.msra.mxu0 %v4803
    %5217 = vmatprep.subr.bf16.mxu0 0
    %5218 = vmatpush1.bf16.msra.mxu0 %v4804
    %5219 = vmatprep.subr.bf16.mxu0 0
    %5220 = vmatpush1.bf16.msra.mxu0 %v4805
    %5221 = vmatprep.subr.bf16.mxu0 0
    %5222 = vmatpush1.bf16.msra.mxu0 %v4806
    %5223 = vmatprep.mubr.bf16.mxu0 %v4125
    %5224 = vmatmul.mubr.bf16.gmra.mrb[0].mxu0 %v4124
    %v5225 = vpop.f32.mrb[0].mxu0
    %v5226 = vadd.f32 %v5186, %v5225
    %v5227 = vpop.f32.mrb[0].mxu0
    %v5228 = vpop.f32.mrb[0].mxu0
    %v5229 = vpop.f32.mrb[0].mxu0
    %5230 = vdwg.mxu0
    %5231 = vmatprep.subr.bf16.mxu0 0
    %5232 = vmatpush1.bf16.msra.mxu0 %v4807
    %5233 = vmatprep.subr.bf16.mxu0 0
    %5234 = vmatpush1.bf16.msra.mxu0 %v4808
    %5235 = vmatprep.subr.bf16.mxu0 0
    %5236 = vmatpush1.bf16.msra.mxu0 %v4809
    %5237 = vmatprep.subr.bf16.mxu0 0
    %5238 = vmatpush1.bf16.msra.mxu0 %v4810
    %5239 = vmatprep.subr.bf16.mxu0 0
    %5240 = vmatpush1.bf16.msra.mxu0 %v4811
    %5241 = vmatprep.subr.bf16.mxu0 0
    %5242 = vmatpush1.bf16.msra.mxu0 %v4812
    %5243 = vmatprep.subr.bf16.mxu0 0
    %5244 = vmatpush1.bf16.msra.mxu0 %v4813
    %5245 = vmatprep.subr.bf16.mxu0 0
    %5246 = vmatpush1.bf16.msra.mxu0 %v4814
    %5247 = vmatprep.subr.bf16.mxu0 0
    %5248 = vmatpush1.bf16.msra.mxu0 %v4815
    %5249 = vmatprep.subr.bf16.mxu0 0
    %5250 = vmatpush1.bf16.msra.mxu0 %v4816
    %5251 = vmatprep.subr.bf16.mxu0 0
    %5252 = vmatpush1.bf16.msra.mxu0 %v4817
    %5253 = vmatprep.subr.bf16.mxu0 0
    %5254 = vmatpush1.bf16.msra.mxu0 %v4818
    %5255 = vmatprep.subr.bf16.mxu0 0
    %5256 = vmatpush1.bf16.msra.mxu0 %v4819
    %5257 = vmatprep.subr.bf16.mxu0 0
    %5258 = vmatpush1.bf16.msra.mxu0 %v4820
    %5259 = vmatprep.subr.bf16.mxu0 0
    %5260 = vmatpush1.bf16.msra.mxu0 %v4821
    %5261 = vmatprep.subr.bf16.mxu0 0
    %5262 = vmatpush1.bf16.msra.mxu0 %v4822
    %5263 = vmatprep.mubr.bf16.mxu0 %v4127
    %5264 = vmatmul.mubr.bf16.gmra.mrb[0].mxu0 %v4126
    %v5265 = vpop.f32.mrb[0].mxu0
    %v5266 = vadd.f32 %v5226, %v5265
    %v5267 = vpop.f32.mrb[0].mxu0
    %v5268 = vpop.f32.mrb[0].mxu0
    %v5269 = vpop.f32.mrb[0].mxu0
    %5270 = vdwg.mxu0
    %s5271 = scalar_lea.vmem [#allocation9], 1
    %v5272 = vld [vmem:[%s5271] sm:$0x1]
    %v5274 = vlaneseq
    %v5275 = vshrl.u32 %v5274, 7
    %v5276 = vsub.s32 0, %v5275
    %v5277 = vrot.slane %v5272, %v5276
    %v5279 = vadd.f32 %v5266, %v5277
    %s5280 = sld [smem:[#allocation2 + $0x6]]
    %vm5281 = vcmp.gt.f32.partialorder %v5279, 0.0
    %v5282 = vstv %s5280
    %v5283 = vmul.f32 %v5282, %v5279
    %v5284 = vsel %vm5281, %v5279, %v5283
    %s5285 = scalar_lea.vmem [#allocation11], 256
    %v5286 = vld [vmem:[%s5285] sm:$0xf]
    %v5287 = vld [vmem:[%s5285 + $0x4] sm:$0xf]
    %v5288 = vld [vmem:[%s5285 + $0x8] sm:$0xf]
    %v5289 = vld [vmem:[%s5285 + $0xc] sm:$0xf]
    %v5290 = vld [vmem:[%s5285 + $0x10] sm:$0xf]
    %v5291 = vld [vmem:[%s5285 + $0x14] sm:$0xf]
    %v5292 = vld [vmem:[%s5285 + $0x18] sm:$0xf]
    %v5293 = vld [vmem:[%s5285 + $0x1c] sm:$0xf]
    %v5294 = vld [vmem:[%s5285 + $0x20] sm:$0xf]
    %v5295 = vld [vmem:[%s5285 + $0x24] sm:$0xf]
    %v5296 = vld [vmem:[%s5285 + $0x28] sm:$0xf]
    %v5297 = vld [vmem:[%s5285 + $0x2c] sm:$0xf]
    %v5298 = vld [vmem:[%s5285 + $0x30] sm:$0xf]
    %v5299 = vld [vmem:[%s5285 + $0x34] sm:$0xf]
    %v5300 = vld [vmem:[%s5285 + $0x38] sm:$0xf]
    %v5301 = vld [vmem:[%s5285 + $0x3c] sm:$0xf]
    %v5302 = vpack.c.bf16 %v5284, %v5284
    %s5303 = scalar_lea.vmem %s13, 4
    %v5304 = vld [vmem:[%s5303] sm:$0x1]
    %v5306 = vlaneseq
    %v5307 = vshrl.u32 %v5306, 7
    %v5308 = vsub.s32 0, %v5307
    %v5309 = vrot.slane %v5304, %v5308
    %v5327 = vunpack.c.l.b16 %v5286
    %v5328 = vunpack.c.l.b16 %v5287
    %v5329 = vunpack.c.l.b16 %v5288
    %v5330 = vunpack.c.l.b16 %v5289
    %v5331 = vunpack.c.l.b16 %v5290
    %v5332 = vunpack.c.l.b16 %v5291
    %v5333 = vunpack.c.l.b16 %v5292
    %v5334 = vunpack.c.l.b16 %v5293
    %v5335 = vunpack.c.l.b16 %v5294
    %v5336 = vunpack.c.l.b16 %v5295
    %v5337 = vunpack.c.l.b16 %v5296
    %v5338 = vunpack.c.l.b16 %v5297
    %v5339 = vunpack.c.l.b16 %v5298
    %v5340 = vunpack.c.l.b16 %v5299
    %v5341 = vunpack.c.l.b16 %v5300
    %v5342 = vunpack.c.l.b16 %v5301
    %v5343 = vpack.c.b16 %v5328, %v5327
    %v5344 = vpack.c.b16 %v5330, %v5329
    %v5345 = vpack.c.b16 %v5332, %v5331
    %v5346 = vpack.c.b16 %v5334, %v5333
    %v5347 = vpack.c.b16 %v5336, %v5335
    %v5348 = vpack.c.b16 %v5338, %v5337
    %v5349 = vpack.c.b16 %v5340, %v5339
    %v5350 = vpack.c.b16 %v5342, %v5341
    %5359 = vmatprep.subr.bf16.mxu0 0
    %5360 = vmatpush1.bf16.msra.mxu0 %v5343
    %5361 = vmatprep.subr.bf16.mxu0 0
    %5362 = vmatpush1.bf16.msra.mxu0 %v5344
    %5363 = vmatprep.subr.bf16.mxu0 0
    %5364 = vmatpush1.bf16.msra.mxu0 %v5345
    %5365 = vmatprep.subr.bf16.mxu0 0
    %5366 = vmatpush1.bf16.msra.mxu0 %v5346
    %5367 = vmatprep.subr.bf16.mxu0 0
    %5368 = vmatpush1.bf16.msra.mxu0 %v5347
    %5369 = vmatprep.subr.bf16.mxu0 0
    %5370 = vmatpush1.bf16.msra.mxu0 %v5348
    %5371 = vmatprep.subr.bf16.mxu0 0
    %5372 = vmatpush1.bf16.msra.mxu0 %v5349
    %5373 = vmatprep.subr.bf16.mxu0 0
    %5374 = vmatpush1.bf16.msra.mxu0 %v5350
    %5375 = vmatprep.subr.bf16.mxu0 0
    %5376 = vmatpush1.bf16.msra.mxu0 0
    %5377 = vmatprep.subr.bf16.mxu0 0
    %5378 = vmatpush1.bf16.msra.mxu0 0
    %5379 = vmatprep.subr.bf16.mxu0 0
    %5380 = vmatpush1.bf16.msra.mxu0 0
    %5381 = vmatprep.subr.bf16.mxu0 0
    %5382 = vmatpush1.bf16.msra.mxu0 0
    %5383 = vmatprep.subr.bf16.mxu0 0
    %5384 = vmatpush1.bf16.msra.mxu0 0
    %5385 = vmatprep.subr.bf16.mxu0 0
    %5386 = vmatpush1.bf16.msra.mxu0 0
    %5387 = vmatprep.subr.bf16.mxu0 0
    %5388 = vmatpush1.bf16.msra.mxu0 0
    %5389 = vmatprep.subr.bf16.mxu0 0
    %5390 = vmatpush1.bf16.msra.mxu0 0
    %5391 = vmatprep.mubr.bf16.mxu0 0
    %5392 = vmatmul.mubr.bf16.gmra.mrb[0].mxu0 %v5302
    %v5393 = vpop.f32.mrb[0].mxu0
    %v5394 = vadd.f32 %v5309, %v5393
    %v5395 = vpop.f32.mrb[0].mxu0
    %v5396 = vpop.f32.mrb[0].mxu0
    %v5397 = vpop.f32.mrb[0].mxu0
    %5398 = vdwg.mxu0
    %s5399 = sld [smem:[#allocation2 + $0x7]]
    %vm5400 = vcmp.gt.f32.partialorder %v5394, 0.0
    %v5401 = vstv %s5399
    %v5402 = vmul.f32 %v5401, %v5394
    %v5403 = vsel %vm5400, %v5394, %v5402
    %s5404 = scalar_lea.vmem [#allocation11], 320
    %v5405 = vld [vmem:[%s5404] sm:$0xf]
    %v5406 = vld [vmem:[%s5404 + $0x4] sm:$0xf]
    %v5407 = vld [vmem:[%s5404 + $0x8] sm:$0xf]
    %v5408 = vld [vmem:[%s5404 + $0xc] sm:$0xf]
    %v5409 = vld [vmem:[%s5404 + $0x10] sm:$0xf]
    %v5410 = vld [vmem:[%s5404 + $0x14] sm:$0xf]
    %v5411 = vld [vmem:[%s5404 + $0x18] sm:$0xf]
    %v5412 = vld [vmem:[%s5404 + $0x1c] sm:$0xf]
    %v5413 = vld [vmem:[%s5404 + $0x20] sm:$0xf]
    %v5414 = vld [vmem:[%s5404 + $0x24] sm:$0xf]
    %v5415 = vld [vmem:[%s5404 + $0x28] sm:$0xf]
    %v5416 = vld [vmem:[%s5404 + $0x2c] sm:$0xf]
    %v5417 = vld [vmem:[%s5404 + $0x30] sm:$0xf]
    %v5418 = vld [vmem:[%s5404 + $0x34] sm:$0xf]
    %v5419 = vld [vmem:[%s5404 + $0x38] sm:$0xf]
    %v5420 = vld [vmem:[%s5404 + $0x3c] sm:$0xf]
    %v5421 = vpack.c.bf16 %v5403, %v5403
    %s5422 = scalar_lea.vmem %s13, 5
    %v5423 = vld [vmem:[%s5422] sm:$0x1]
    %v5425 = vlaneseq
    %v5426 = vshrl.u32 %v5425, 7
    %v5427 = vsub.s32 0, %v5426
    %v5428 = vrot.slane %v5423, %v5427
    %v5446 = vunpack.c.l.b16 %v5405
    %v5447 = vunpack.c.l.b16 %v5406
    %v5448 = vunpack.c.l.b16 %v5407
    %v5449 = vunpack.c.l.b16 %v5408
    %v5450 = vunpack.c.l.b16 %v5409
    %v5451 = vunpack.c.l.b16 %v5410
    %v5452 = vunpack.c.l.b16 %v5411
    %v5453 = vunpack.c.l.b16 %v5412
    %v5454 = vunpack.c.l.b16 %v5413
    %v5455 = vunpack.c.l.b16 %v5414
    %v5456 = vunpack.c.l.b16 %v5415
    %v5457 = vunpack.c.l.b16 %v5416
    %v5458 = vunpack.c.l.b16 %v5417
    %v5459 = vunpack.c.l.b16 %v5418
    %v5460 = vunpack.c.l.b16 %v5419
    %v5461 = vunpack.c.l.b16 %v5420
    %v5462 = vpack.c.b16 %v5447, %v5446
    %v5463 = vpack.c.b16 %v5449, %v5448
    %v5464 = vpack.c.b16 %v5451, %v5450
    %v5465 = vpack.c.b16 %v5453, %v5452
    %v5466 = vpack.c.b16 %v5455, %v5454
    %v5467 = vpack.c.b16 %v5457, %v5456
    %v5468 = vpack.c.b16 %v5459, %v5458
    %v5469 = vpack.c.b16 %v5461, %v5460
    %5478 = vmatprep.subr.bf16.mxu0 0
    %5479 = vmatpush1.bf16.msra.mxu0 %v5462
    %5480 = vmatprep.subr.bf16.mxu0 0
    %5481 = vmatpush1.bf16.msra.mxu0 %v5463
    %5482 = vmatprep.subr.bf16.mxu0 0
    %5483 = vmatpush1.bf16.msra.mxu0 %v5464
    %5484 = vmatprep.subr.bf16.mxu0 0
    %5485 = vmatpush1.bf16.msra.mxu0 %v5465
    %5486 = vmatprep.subr.bf16.mxu0 0
    %5487 = vmatpush1.bf16.msra.mxu0 %v5466
    %5488 = vmatprep.subr.bf16.mxu0 0
    %5489 = vmatpush1.bf16.msra.mxu0 %v5467
    %5490 = vmatprep.subr.bf16.mxu0 0
    %5491 = vmatpush1.bf16.msra.mxu0 %v5468
    %5492 = vmatprep.subr.bf16.mxu0 0
    %5493 = vmatpush1.bf16.msra.mxu0 %v5469
    %5494 = vmatprep.subr.bf16.mxu0 0
    %5495 = vmatpush1.bf16.msra.mxu0 0
    %5496 = vmatprep.subr.bf16.mxu0 0
    %5497 = vmatpush1.bf16.msra.mxu0 0
    %5498 = vmatprep.subr.bf16.mxu0 0
    %5499 = vmatpush1.bf16.msra.mxu0 0
    %5500 = vmatprep.subr.bf16.mxu0 0
    %5501 = vmatpush1.bf16.msra.mxu0 0
    %5502 = vmatprep.subr.bf16.mxu0 0
    %5503 = vmatpush1.bf16.msra.mxu0 0
    %5504 = vmatprep.subr.bf16.mxu0 0
    %5505 = vmatpush1.bf16.msra.mxu0 0
    %5506 = vmatprep.subr.bf16.mxu0 0
    %5507 = vmatpush1.bf16.msra.mxu0 0
    %5508 = vmatprep.subr.bf16.mxu0 0
    %5509 = vmatpush1.bf16.msra.mxu0 0
    %5510 = vmatprep.mubr.bf16.mxu0 0
    %5511 = vmatmul.mubr.bf16.gmra.mrb[0].mxu0 %v5421
    %v5512 = vpop.f32.mrb[0].mxu0
    %v5513 = vadd.f32 %v5428, %v5512
    %v5514 = vpop.f32.mrb[0].mxu0
    %v5515 = vpop.f32.mrb[0].mxu0
    %v5516 = vpop.f32.mrb[0].mxu0
    %5517 = vdwg.mxu0
    %s5518 = sld [smem:[#allocation2 + $0x8]]
    %vm5519 = vcmp.gt.f32.partialorder %v5513, 0.0
    %v5520 = vstv %s5518
    %v5521 = vmul.f32 %v5520, %v5513
    %v5522 = vsel %vm5519, %v5513, %v5521
    %s5523 = scalar_lea.vmem [#allocation11], 384
    %v5524 = vld [vmem:[%s5523] sm:$0xf]
    %v5525 = vld [vmem:[%s5523 + $0x4] sm:$0xf]
    %v5526 = vld [vmem:[%s5523 + $0x8] sm:$0xf]
    %v5527 = vld [vmem:[%s5523 + $0xc] sm:$0xf]
    %v5528 = vld [vmem:[%s5523 + $0x10] sm:$0xf]
    %v5529 = vld [vmem:[%s5523 + $0x14] sm:$0xf]
    %v5530 = vld [vmem:[%s5523 + $0x18] sm:$0xf]
    %v5531 = vld [vmem:[%s5523 + $0x1c] sm:$0xf]
    %v5532 = vld [vmem:[%s5523 + $0x20] sm:$0xf]
    %v5533 = vld [vmem:[%s5523 + $0x24] sm:$0xf]
    %v5534 = vld [vmem:[%s5523 + $0x28] sm:$0xf]
    %v5535 = vld [vmem:[%s5523 + $0x2c] sm:$0xf]
    %v5536 = vld [vmem:[%s5523 + $0x30] sm:$0xf]
    %v5537 = vld [vmem:[%s5523 + $0x34] sm:$0xf]
    %v5538 = vld [vmem:[%s5523 + $0x38] sm:$0xf]
    %v5539 = vld [vmem:[%s5523 + $0x3c] sm:$0xf]
    %v5540 = vpack.c.bf16 %v5522, %v5522
    %s5541 = scalar_lea.vmem %s13, 6
    %v5542 = vld [vmem:[%s5541] sm:$0x1]
    %v5544 = vlaneseq
    %v5545 = vshrl.u32 %v5544, 7
    %v5546 = vsub.s32 0, %v5545
    %v5547 = vrot.slane %v5542, %v5546
    %v5565 = vunpack.c.l.b16 %v5524
    %v5566 = vunpack.c.l.b16 %v5525
    %v5567 = vunpack.c.l.b16 %v5526
    %v5568 = vunpack.c.l.b16 %v5527
    %v5569 = vunpack.c.l.b16 %v5528
    %v5570 = vunpack.c.l.b16 %v5529
    %v5571 = vunpack.c.l.b16 %v5530
    %v5572 = vunpack.c.l.b16 %v5531
    %v5573 = vunpack.c.l.b16 %v5532
    %v5574 = vunpack.c.l.b16 %v5533
    %v5575 = vunpack.c.l.b16 %v5534
    %v5576 = vunpack.c.l.b16 %v5535
    %v5577 = vunpack.c.l.b16 %v5536
    %v5578 = vunpack.c.l.b16 %v5537
    %v5579 = vunpack.c.l.b16 %v5538
    %v5580 = vunpack.c.l.b16 %v5539
    %v5581 = vpack.c.b16 %v5566, %v5565
    %v5582 = vpack.c.b16 %v5568, %v5567
    %v5583 = vpack.c.b16 %v5570, %v5569
    %v5584 = vpack.c.b16 %v5572, %v5571
    %v5585 = vpack.c.b16 %v5574, %v5573
    %v5586 = vpack.c.b16 %v5576, %v5575
    %v5587 = vpack.c.b16 %v5578, %v5577
    %v5588 = vpack.c.b16 %v5580, %v5579
    %5597 = vmatprep.subr.bf16.mxu0 0
    %5598 = vmatpush1.bf16.msra.mxu0 %v5581
    %5599 = vmatprep.subr.bf16.mxu0 0
    %5600 = vmatpush1.bf16.msra.mxu0 %v5582
    %5601 = vmatprep.subr.bf16.mxu0 0
    %5602 = vmatpush1.bf16.msra.mxu0 %v5583
    %5603 = vmatprep.subr.bf16.mxu0 0
    %5604 = vmatpush1.bf16.msra.mxu0 %v5584
    %5605 = vmatprep.subr.bf16.mxu0 0
    %5606 = vmatpush1.bf16.msra.mxu0 %v5585
    %5607 = vmatprep.subr.bf16.mxu0 0
    %5608 = vmatpush1.bf16.msra.mxu0 %v5586
    %5609 = vmatprep.subr.bf16.mxu0 0
    %5610 = vmatpush1.bf16.msra.mxu0 %v5587
    %5611 = vmatprep.subr.bf16.mxu0 0
    %5612 = vmatpush1.bf16.msra.mxu0 %v5588
    %5613 = vmatprep.subr.bf16.mxu0 0
    %5614 = vmatpush1.bf16.msra.mxu0 0
    %5615 = vmatprep.subr.bf16.mxu0 0
    %5616 = vmatpush1.bf16.msra.mxu0 0
    %5617 = vmatprep.subr.bf16.mxu0 0
    %5618 = vmatpush1.bf16.msra.mxu0 0
    %5619 = vmatprep.subr.bf16.mxu0 0
    %5620 = vmatpush1.bf16.msra.mxu0 0
    %5621 = vmatprep.subr.bf16.mxu0 0
    %5622 = vmatpush1.bf16.msra.mxu0 0
    %5623 = vmatprep.subr.bf16.mxu0 0
    %5624 = vmatpush1.bf16.msra.mxu0 0
    %5625 = vmatprep.subr.bf16.mxu0 0
    %5626 = vmatpush1.bf16.msra.mxu0 0
    %5627 = vmatprep.subr.bf16.mxu0 0
    %5628 = vmatpush1.bf16.msra.mxu0 0
    %5629 = vmatprep.mubr.bf16.mxu0 0
    %5630 = vmatmul.mubr.bf16.gmra.mrb[0].mxu0 %v5540
    %v5631 = vpop.f32.mrb[0].mxu0
    %v5632 = vadd.f32 %v5547, %v5631
    %v5633 = vpop.f32.mrb[0].mxu0
    %v5634 = vpop.f32.mrb[0].mxu0
    %v5635 = vpop.f32.mrb[0].mxu0
    %5636 = vdwg.mxu0
    %s5637 = sld [smem:[#allocation2 + $0x9]]
    %vm5638 = vcmp.gt.f32.partialorder %v5632, 0.0
    %v5639 = vstv %s5637
    %v5640 = vmul.f32 %v5639, %v5632
    %v5641 = vsel %vm5638, %v5632, %v5640
    %s5642 = scalar_lea.vmem [#allocation11], 448
    %v5643 = vld [vmem:[%s5642] sm:$0xf]
    %v5644 = vld [vmem:[%s5642 + $0x4] sm:$0xf]
    %v5645 = vld [vmem:[%s5642 + $0x8] sm:$0xf]
    %v5646 = vld [vmem:[%s5642 + $0xc] sm:$0xf]
    %v5647 = vld [vmem:[%s5642 + $0x10] sm:$0xf]
    %v5648 = vld [vmem:[%s5642 + $0x14] sm:$0xf]
    %v5649 = vld [vmem:[%s5642 + $0x18] sm:$0xf]
    %v5650 = vld [vmem:[%s5642 + $0x1c] sm:$0xf]
    %v5651 = vld [vmem:[%s5642 + $0x20] sm:$0xf]
    %v5652 = vld [vmem:[%s5642 + $0x24] sm:$0xf]
    %v5653 = vld [vmem:[%s5642 + $0x28] sm:$0xf]
    %v5654 = vld [vmem:[%s5642 + $0x2c] sm:$0xf]
    %v5655 = vld [vmem:[%s5642 + $0x30] sm:$0xf]
    %v5656 = vld [vmem:[%s5642 + $0x34] sm:$0xf]
    %v5657 = vld [vmem:[%s5642 + $0x38] sm:$0xf]
    %v5658 = vld [vmem:[%s5642 + $0x3c] sm:$0xf]
    %v5659 = vpack.c.bf16 %v5641, %v5641
    %s5660 = scalar_lea.vmem %s13, 7
    %v5661 = vld [vmem:[%s5660] sm:$0x1]
    %v5663 = vlaneseq
    %v5664 = vshrl.u32 %v5663, 7
    %v5665 = vsub.s32 0, %v5664
    %v5666 = vrot.slane %v5661, %v5665
    %v5684 = vunpack.c.l.b16 %v5643
    %v5685 = vunpack.c.l.b16 %v5644
    %v5686 = vunpack.c.l.b16 %v5645
    %v5687 = vunpack.c.l.b16 %v5646
    %v5688 = vunpack.c.l.b16 %v5647
    %v5689 = vunpack.c.l.b16 %v5648
    %v5690 = vunpack.c.l.b16 %v5649
    %v5691 = vunpack.c.l.b16 %v5650
    %v5692 = vunpack.c.l.b16 %v5651
    %v5693 = vunpack.c.l.b16 %v5652
    %v5694 = vunpack.c.l.b16 %v5653
    %v5695 = vunpack.c.l.b16 %v5654
    %v5696 = vunpack.c.l.b16 %v5655
    %v5697 = vunpack.c.l.b16 %v5656
    %v5698 = vunpack.c.l.b16 %v5657
    %v5699 = vunpack.c.l.b16 %v5658
    %v5700 = vpack.c.b16 %v5685, %v5684
    %v5701 = vpack.c.b16 %v5687, %v5686
    %v5702 = vpack.c.b16 %v5689, %v5688
    %v5703 = vpack.c.b16 %v5691, %v5690
    %v5704 = vpack.c.b16 %v5693, %v5692
    %v5705 = vpack.c.b16 %v5695, %v5694
    %v5706 = vpack.c.b16 %v5697, %v5696
    %v5707 = vpack.c.b16 %v5699, %v5698
    %5716 = vmatprep.subr.bf16.mxu0 0
    %5717 = vmatpush1.bf16.msra.mxu0 %v5700
    %5718 = vmatprep.subr.bf16.mxu0 0
    %5719 = vmatpush1.bf16.msra.mxu0 %v5701
    %5720 = vmatprep.subr.bf16.mxu0 0
    %5721 = vmatpush1.bf16.msra.mxu0 %v5702
    %5722 = vmatprep.subr.bf16.mxu0 0
    %5723 = vmatpush1.bf16.msra.mxu0 %v5703
    %5724 = vmatprep.subr.bf16.mxu0 0
    %5725 = vmatpush1.bf16.msra.mxu0 %v5704
    %5726 = vmatprep.subr.bf16.mxu0 0
    %5727 = vmatpush1.bf16.msra.mxu0 %v5705
    %5728 = vmatprep.subr.bf16.mxu0 0
    %5729 = vmatpush1.bf16.msra.mxu0 %v5706
    %5730 = vmatprep.subr.bf16.mxu0 0
    %5731 = vmatpush1.bf16.msra.mxu0 %v5707
    %5732 = vmatprep.subr.bf16.mxu0 0
    %5733 = vmatpush1.bf16.msra.mxu0 0
    %5734 = vmatprep.subr.bf16.mxu0 0
    %5735 = vmatpush1.bf16.msra.mxu0 0
    %5736 = vmatprep.subr.bf16.mxu0 0
    %5737 = vmatpush1.bf16.msra.mxu0 0
    %5738 = vmatprep.subr.bf16.mxu0 0
    %5739 = vmatpush1.bf16.msra.mxu0 0
    %5740 = vmatprep.subr.bf16.mxu0 0
    %5741 = vmatpush1.bf16.msra.mxu0 0
    %5742 = vmatprep.subr.bf16.mxu0 0
    %5743 = vmatpush1.bf16.msra.mxu0 0
    %5744 = vmatprep.subr.bf16.mxu0 0
    %5745 = vmatpush1.bf16.msra.mxu0 0
    %5746 = vmatprep.subr.bf16.mxu0 0
    %5747 = vmatpush1.bf16.msra.mxu0 0
    %5748 = vmatprep.mubr.bf16.mxu0 0
    %5749 = vmatmul.mubr.bf16.gmra.mrb[0].mxu0 %v5659
    %v5750 = vpop.f32.mrb[0].mxu0
    %v5751 = vadd.f32 %v5666, %v5750
    %v5752 = vpop.f32.mrb[0].mxu0
    %v5753 = vpop.f32.mrb[0].mxu0
    %v5754 = vpop.f32.mrb[0].mxu0
    %5755 = vdwg.mxu0
    %v5756 = vmax.f32 %v3800, 0.0
    %v5757 = vmin.f32 %v3800, 0.0
    %v5758 = vld [vmem:[#allocation12] sm:$0xff]
    %v5759 = vld [vmem:[#allocation12 + $0x8] sm:$0xff]
    %v5760 = vld [vmem:[#allocation12 + $0x10] sm:$0xff]
    %v5761 = vld [vmem:[#allocation12 + $0x18] sm:$0xf]
    %v5762 = vld [vmem:[#allocation12 + $0x1c] sm:$0xff]
    %v5763 = vld [vmem:[#allocation12 + $0x24] sm:$0xff]
    %v5764 = vld [vmem:[#allocation12 + $0x2c] sm:$0xff]
    %v5765 = vld [vmem:[#allocation12 + $0x34] sm:$0xf]
    %v5766 = vld [vmem:[#allocation12 + $0x38] sm:$0xff]
    %v5767 = vld [vmem:[#allocation12 + $0x40] sm:$0xff]
    %v5768 = vld [vmem:[#allocation12 + $0x48] sm:$0xff]
    %v5769 = vld [vmem:[#allocation12 + $0x50] sm:$0xf]
    %v5770 = vld [vmem:[#allocation12 + $0x54] sm:$0xff]
    %v5771 = vld [vmem:[#allocation12 + $0x5c] sm:$0xff]
    %v5772 = vld [vmem:[#allocation12 + $0x64] sm:$0xff]
    %v5773 = vld [vmem:[#allocation12 + $0x6c] sm:$0xf]
    %v5774 = vld [vmem:[#allocation12 + $0x70] sm:$0xff]
    %v5775 = vld [vmem:[#allocation12 + $0x78] sm:$0xff]
    %v5776 = vld [vmem:[#allocation12 + $0x80] sm:$0xff]
    %v5777 = vld [vmem:[#allocation12 + $0x88] sm:$0xf]
    %v5778 = vld [vmem:[#allocation12 + $0x8c] sm:$0xff]
    %v5779 = vld [vmem:[#allocation12 + $0x94] sm:$0xff]
    %v5780 = vld [vmem:[#allocation12 + $0x9c] sm:$0xff]
    %v5781 = vld [vmem:[#allocation12 + $0xa4] sm:$0xf]
    %v5782 = vld [vmem:[#allocation12 + $0xa8] sm:$0xff]
    %v5783 = vld [vmem:[#allocation12 + $0xb0] sm:$0xff]
    %v5784 = vld [vmem:[#allocation12 + $0xb8] sm:$0xff]
    %v5785 = vld [vmem:[#allocation12 + $0xc0] sm:$0xf]
    %v5786 = vld [vmem:[#allocation12 + $0xc4] sm:$0xff]
    %v5787 = vld [vmem:[#allocation12 + $0xcc] sm:$0xff]
    %v5788 = vld [vmem:[#allocation12 + $0xd4] sm:$0xff]
    %v5789 = vld [vmem:[#allocation12 + $0xdc] sm:$0xf]
    %v5790 = vld [vmem:[#allocation12 + $0xe0] sm:$0xff]
    %v5791 = vld [vmem:[#allocation12 + $0xe8] sm:$0xff]
    %v5792 = vld [vmem:[#allocation12 + $0xf0] sm:$0xff]
    %v5793 = vld [vmem:[#allocation12 + $0xf8] sm:$0xf]
    %v5794 = vld [vmem:[#allocation12 + $0xfc] sm:$0xff]
    %v5795 = vld [vmem:[#allocation12 + $0x104] sm:$0xff]
    %v5796 = vld [vmem:[#allocation12 + $0x10c] sm:$0xff]
    %v5797 = vld [vmem:[#allocation12 + $0x114] sm:$0xf]
    %v5798 = vld [vmem:[#allocation12 + $0x118] sm:$0xff]
    %v5799 = vld [vmem:[#allocation12 + $0x120] sm:$0xff]
    %v5800 = vld [vmem:[#allocation12 + $0x128] sm:$0xff]
    %v5801 = vld [vmem:[#allocation12 + $0x130] sm:$0xf]
    %v5802 = vld [vmem:[#allocation12 + $0x134] sm:$0xff]
    %v5803 = vld [vmem:[#allocation12 + $0x13c] sm:$0xff]
    %v5804 = vld [vmem:[#allocation12 + $0x144] sm:$0xff]
    %v5805 = vld [vmem:[#allocation12 + $0x14c] sm:$0xf]
    %v5806 = vld [vmem:[#allocation12 + $0x150] sm:$0xff]
    %v5807 = vld [vmem:[#allocation12 + $0x158] sm:$0xff]
    %v5808 = vld [vmem:[#allocation12 + $0x160] sm:$0xff]
    %v5809 = vld [vmem:[#allocation12 + $0x168] sm:$0xf]
    %v5810 = vld [vmem:[#allocation12 + $0x16c] sm:$0xff]
    %v5811 = vld [vmem:[#allocation12 + $0x174] sm:$0xff]
    %v5812 = vld [vmem:[#allocation12 + $0x17c] sm:$0xff]
    %v5813 = vld [vmem:[#allocation12 + $0x184] sm:$0xf]
    %v5814 = vld [vmem:[#allocation12 + $0x188] sm:$0xff]
    %v5815 = vld [vmem:[#allocation12 + $0x190] sm:$0xff]
    %v5816 = vld [vmem:[#allocation12 + $0x198] sm:$0xff]
    %v5817 = vld [vmem:[#allocation12 + $0x1a0] sm:$0xf]
    %v5818 = vld [vmem:[#allocation12 + $0x1a4] sm:$0xff]
    %v5819 = vld [vmem:[#allocation12 + $0x1ac] sm:$0xff]
    %v5820 = vld [vmem:[#allocation12 + $0x1b4] sm:$0xff]
    %v5821 = vld [vmem:[#allocation12 + $0x1bc] sm:$0xf]
    %v5822 = vpack.c.bf16 %v5756, %v5756
    %v5887 = vunpack.c.l.b16 %v5758
    %v5888 = vunpack.c.h.b16 %v5758
    %v5889 = vunpack.c.l.b16 %v5759
    %v5890 = vunpack.c.h.b16 %v5759
    %v5891 = vunpack.c.l.b16 %v5760
    %v5892 = vunpack.c.h.b16 %v5760
    %v5893 = vunpack.c.l.b16 %v5761
    %v5894 = vunpack.c.l.b16 %v5762
    %v5895 = vunpack.c.h.b16 %v5762
    %v5896 = vunpack.c.l.b16 %v5763
    %v5897 = vunpack.c.h.b16 %v5763
    %v5898 = vunpack.c.l.b16 %v5764
    %v5899 = vunpack.c.h.b16 %v5764
    %v5900 = vunpack.c.l.b16 %v5765
    %v5901 = vunpack.c.l.b16 %v5766
    %v5902 = vunpack.c.h.b16 %v5766
    %v5903 = vunpack.c.l.b16 %v5767
    %v5904 = vunpack.c.h.b16 %v5767
    %v5905 = vunpack.c.l.b16 %v5768
    %v5906 = vunpack.c.h.b16 %v5768
    %v5907 = vunpack.c.l.b16 %v5769
    %v5908 = vunpack.c.l.b16 %v5770
    %v5909 = vunpack.c.h.b16 %v5770
    %v5910 = vunpack.c.l.b16 %v5771
    %v5911 = vunpack.c.h.b16 %v5771
    %v5912 = vunpack.c.l.b16 %v5772
    %v5913 = vunpack.c.h.b16 %v5772
    %v5914 = vunpack.c.l.b16 %v5773
    %v5915 = vunpack.c.l.b16 %v5774
    %v5916 = vunpack.c.h.b16 %v5774
    %v5917 = vunpack.c.l.b16 %v5775
    %v5918 = vunpack.c.h.b16 %v5775
    %v5919 = vunpack.c.l.b16 %v5776
    %v5920 = vunpack.c.h.b16 %v5776
    %v5921 = vunpack.c.l.b16 %v5777
    %v5922 = vunpack.c.l.b16 %v5778
    %v5923 = vunpack.c.h.b16 %v5778
    %v5924 = vunpack.c.l.b16 %v5779
    %v5925 = vunpack.c.h.b16 %v5779
    %v5926 = vunpack.c.l.b16 %v5780
    %v5927 = vunpack.c.h.b16 %v5780
    %v5928 = vunpack.c.l.b16 %v5781
    %v5929 = vunpack.c.l.b16 %v5782
    %v5930 = vunpack.c.h.b16 %v5782
    %v5931 = vunpack.c.l.b16 %v5783
    %v5932 = vunpack.c.h.b16 %v5783
    %v5933 = vunpack.c.l.b16 %v5784
    %v5934 = vunpack.c.h.b16 %v5784
    %v5935 = vunpack.c.l.b16 %v5785
    %v5936 = vunpack.c.l.b16 %v5786
    %v5937 = vunpack.c.h.b16 %v5786
    %v5938 = vunpack.c.l.b16 %v5787
    %v5939 = vunpack.c.h.b16 %v5787
    %v5940 = vunpack.c.l.b16 %v5788
    %v5941 = vunpack.c.h.b16 %v5788
    %v5942 = vunpack.c.l.b16 %v5789
    %v5943 = vunpack.c.l.b16 %v5790
    %v5944 = vunpack.c.h.b16 %v5790
    %v5945 = vunpack.c.l.b16 %v5791
    %v5946 = vunpack.c.h.b16 %v5791
    %v5947 = vunpack.c.l.b16 %v5792
    %v5948 = vunpack.c.h.b16 %v5792
    %v5949 = vunpack.c.l.b16 %v5793
    %v5950 = vunpack.c.l.b16 %v5794
    %v5951 = vunpack.c.h.b16 %v5794
    %v5952 = vunpack.c.l.b16 %v5795
    %v5953 = vunpack.c.h.b16 %v5795
    %v5954 = vunpack.c.l.b16 %v5796
    %v5955 = vunpack.c.h.b16 %v5796
    %v5956 = vunpack.c.l.b16 %v5797
    %v5957 = vunpack.c.l.b16 %v5798
    %v5958 = vunpack.c.h.b16 %v5798
    %v5959 = vunpack.c.l.b16 %v5799
    %v5960 = vunpack.c.h.b16 %v5799
    %v5961 = vunpack.c.l.b16 %v5800
    %v5962 = vunpack.c.h.b16 %v5800
    %v5963 = vunpack.c.l.b16 %v5801
    %v5964 = vunpack.c.l.b16 %v5802
    %v5965 = vunpack.c.h.b16 %v5802
    %v5966 = vunpack.c.l.b16 %v5803
    %v5967 = vunpack.c.h.b16 %v5803
    %v5968 = vunpack.c.l.b16 %v5804
    %v5969 = vunpack.c.h.b16 %v5804
    %v5970 = vunpack.c.l.b16 %v5805
    %v5971 = vunpack.c.l.b16 %v5806
    %v5972 = vunpack.c.h.b16 %v5806
    %v5973 = vunpack.c.l.b16 %v5807
    %v5974 = vunpack.c.h.b16 %v5807
    %v5975 = vunpack.c.l.b16 %v5808
    %v5976 = vunpack.c.h.b16 %v5808
    %v5977 = vunpack.c.l.b16 %v5809
    %v5978 = vunpack.c.l.b16 %v5810
    %v5979 = vunpack.c.h.b16 %v5810
    %v5980 = vunpack.c.l.b16 %v5811
    %v5981 = vunpack.c.h.b16 %v5811
    %v5982 = vunpack.c.l.b16 %v5812
    %v5983 = vunpack.c.h.b16 %v5812
    %v5984 = vunpack.c.l.b16 %v5813
    %v5985 = vunpack.c.l.b16 %v5814
    %v5986 = vunpack.c.h.b16 %v5814
    %v5987 = vunpack.c.l.b16 %v5815
    %v5988 = vunpack.c.h.b16 %v5815
    %v5989 = vunpack.c.l.b16 %v5816
    %v5990 = vunpack.c.h.b16 %v5816
    %v5991 = vunpack.c.l.b16 %v5817
    %v5992 = vunpack.c.l.b16 %v5818
    %v5993 = vunpack.c.h.b16 %v5818
    %v5994 = vunpack.c.l.b16 %v5819
    %v5995 = vunpack.c.h.b16 %v5819
    %v5996 = vunpack.c.l.b16 %v5820
    %v5997 = vunpack.c.h.b16 %v5820
    %v5998 = vunpack.c.l.b16 %v5821
    %v5999 = vpack.c.b16 %v5894, %v5887
    %v6000 = vpack.c.b16 %v5895, %v5888
    %v6001 = vpack.c.b16 %v5896, %v5889
    %v6002 = vpack.c.b16 %v5897, %v5890
    %v6003 = vpack.c.b16 %v5898, %v5891
    %v6004 = vpack.c.b16 %v5899, %v5892
    %v6005 = vpack.c.b16 %v5900, %v5893
    %v6006 = vpack.c.b16 %v5908, %v5901
    %v6007 = vpack.c.b16 %v5909, %v5902
    %v6008 = vpack.c.b16 %v5910, %v5903
    %v6009 = vpack.c.b16 %v5911, %v5904
    %v6010 = vpack.c.b16 %v5912, %v5905
    %v6011 = vpack.c.b16 %v5913, %v5906
    %v6012 = vpack.c.b16 %v5914, %v5907
    %v6013 = vpack.c.b16 %v5922, %v5915
    %v6014 = vpack.c.b16 %v5923, %v5916
    %v6015 = vpack.c.b16 %v5924, %v5917
    %v6016 = vpack.c.b16 %v5925, %v5918
    %v6017 = vpack.c.b16 %v5926, %v5919
    %v6018 = vpack.c.b16 %v5927, %v5920
    %v6019 = vpack.c.b16 %v5928, %v5921
    %v6020 = vpack.c.b16 %v5936, %v5929
    %v6021 = vpack.c.b16 %v5937, %v5930
    %v6022 = vpack.c.b16 %v5938, %v5931
    %v6023 = vpack.c.b16 %v5939, %v5932
    %v6024 = vpack.c.b16 %v5940, %v5933
    %v6025 = vpack.c.b16 %v5941, %v5934
    %v6026 = vpack.c.b16 %v5942, %v5935
    %v6027 = vpack.c.b16 %v5950, %v5943
    %v6028 = vpack.c.b16 %v5951, %v5944
    %v6029 = vpack.c.b16 %v5952, %v5945
    %v6030 = vpack.c.b16 %v5953, %v5946
    %v6031 = vpack.c.b16 %v5954, %v5947
    %v6032 = vpack.c.b16 %v5955, %v5948
    %v6033 = vpack.c.b16 %v5956, %v5949
    %v6034 = vpack.c.b16 %v5964, %v5957
    %v6035 = vpack.c.b16 %v5965, %v5958
    %v6036 = vpack.c.b16 %v5966, %v5959
    %v6037 = vpack.c.b16 %v5967, %v5960
    %v6038 = vpack.c.b16 %v5968, %v5961
    %v6039 = vpack.c.b16 %v5969, %v5962
    %v6040 = vpack.c.b16 %v5970, %v5963
    %v6041 = vpack.c.b16 %v5978, %v5971
    %v6042 = vpack.c.b16 %v5979, %v5972
    %v6043 = vpack.c.b16 %v5980, %v5973
    %v6044 = vpack.c.b16 %v5981, %v5974
    %v6045 = vpack.c.b16 %v5982, %v5975
    %v6046 = vpack.c.b16 %v5983, %v5976
    %v6047 = vpack.c.b16 %v5984, %v5977
    %v6048 = vpack.c.b16 %v5992, %v5985
    %v6049 = vpack.c.b16 %v5993, %v5986
    %v6050 = vpack.c.b16 %v5994, %v5987
    %v6051 = vpack.c.b16 %v5995, %v5988
    %v6052 = vpack.c.b16 %v5996, %v5989
    %v6053 = vpack.c.b16 %v5997, %v5990
    %v6054 = vpack.c.b16 %v5998, %v5991
    %6111 = vmatprep.subr.bf16.mxu0 %v6000
    %6112 = vmatpush1.bf16.msra.mxu0 %v5999
    %6113 = vmatprep.subr.bf16.mxu0 %v6007
    %6114 = vmatpush1.bf16.msra.mxu0 %v6006
    %6115 = vmatprep.subr.bf16.mxu0 %v6014
    %6116 = vmatpush1.bf16.msra.mxu0 %v6013
    %6117 = vmatprep.subr.bf16.mxu0 %v6021
    %6118 = vmatpush1.bf16.msra.mxu0 %v6020
    %6119 = vmatprep.subr.bf16.mxu0 %v6028
    %6120 = vmatpush1.bf16.msra.mxu0 %v6027
    %6121 = vmatprep.subr.bf16.mxu0 %v6035
    %6122 = vmatpush1.bf16.msra.mxu0 %v6034
    %6123 = vmatprep.subr.bf16.mxu0 %v6042
    %6124 = vmatpush1.bf16.msra.mxu0 %v6041
    %6125 = vmatprep.subr.bf16.mxu0 %v6049
    %6126 = vmatpush1.bf16.msra.mxu0 %v6048
    %6127 = vmatprep.subr.bf16.mxu0 0
    %6128 = vmatpush1.bf16.msra.mxu0 0
    %6129 = vmatprep.subr.bf16.mxu0 0
    %6130 = vmatpush1.bf16.msra.mxu0 0
    %6131 = vmatprep.subr.bf16.mxu0 0
    %6132 = vmatpush1.bf16.msra.mxu0 0
    %6133 = vmatprep.subr.bf16.mxu0 0
    %6134 = vmatpush1.bf16.msra.mxu0 0
    %6135 = vmatprep.subr.bf16.mxu0 0
    %6136 = vmatpush1.bf16.msra.mxu0 0
    %6137 = vmatprep.subr.bf16.mxu0 0
    %6138 = vmatpush1.bf16.msra.mxu0 0
    %6139 = vmatprep.subr.bf16.mxu0 0
    %6140 = vmatpush1.bf16.msra.mxu0 0
    %6141 = vmatprep.subr.bf16.mxu0 0
    %6142 = vmatpush1.bf16.msra.mxu0 0
    %6143 = vmatprep.mubr.bf16.mxu0 0
    %6144 = vmatmul.mubr.bf16.gmra.mrb[0].mxu0 %v5822
    %v6145 = vpop.f32.mrb[0].mxu0
    %v6146 = vadd.f32 0.0, %v6145
    %v6147 = vpop.f32.mrb[0].mxu0
    %v6148 = vadd.f32 0.0, %v6147
    %v6149 = vpop.f32.mrb[0].mxu0
    %v6150 = vpop.f32.mrb[0].mxu0
    %6151 = vdwg.mxu0
    %6152 = vmatprep.subr.bf16.mxu0 %v6002
    %6153 = vmatpush1.bf16.msra.mxu0 %v6001
    %6154 = vmatprep.subr.bf16.mxu0 %v6009
    %6155 = vmatpush1.bf16.msra.mxu0 %v6008
    %6156 = vmatprep.subr.bf16.mxu0 %v6016
    %6157 = vmatpush1.bf16.msra.mxu0 %v6015
    %6158 = vmatprep.subr.bf16.mxu0 %v6023
    %6159 = vmatpush1.bf16.msra.mxu0 %v6022
    %6160 = vmatprep.subr.bf16.mxu0 %v6030
    %6161 = vmatpush1.bf16.msra.mxu0 %v6029
    %6162 = vmatprep.subr.bf16.mxu0 %v6037
    %6163 = vmatpush1.bf16.msra.mxu0 %v6036
    %6164 = vmatprep.subr.bf16.mxu0 %v6044
    %6165 = vmatpush1.bf16.msra.mxu0 %v6043
    %6166 = vmatprep.subr.bf16.mxu0 %v6051
    %6167 = vmatpush1.bf16.msra.mxu0 %v6050
    %6168 = vmatprep.subr.bf16.mxu0 0
    %6169 = vmatpush1.bf16.msra.mxu0 0
    %6170 = vmatprep.subr.bf16.mxu0 0
    %6171 = vmatpush1.bf16.msra.mxu0 0
    %6172 = vmatprep.subr.bf16.mxu0 0
    %6173 = vmatpush1.bf16.msra.mxu0 0
    %6174 = vmatprep.subr.bf16.mxu0 0
    %6175 = vmatpush1.bf16.msra.mxu0 0
    %6176 = vmatprep.subr.bf16.mxu0 0
    %6177 = vmatpush1.bf16.msra.mxu0 0
    %6178 = vmatprep.subr.bf16.mxu0 0
    %6179 = vmatpush1.bf16.msra.mxu0 0
    %6180 = vmatprep.subr.bf16.mxu0 0
    %6181 = vmatpush1.bf16.msra.mxu0 0
    %6182 = vmatprep.subr.bf16.mxu0 0
    %6183 = vmatpush1.bf16.msra.mxu0 0
    %6184 = vmatprep.mubr.bf16.mxu0 0
    %6185 = vmatmul.mubr.bf16.gmra.mrb[0].mxu0 %v5822
    %v6186 = vpop.f32.mrb[0].mxu0
    %v6187 = vadd.f32 0.0, %v6186
    %v6188 = vpop.f32.mrb[0].mxu0
    %v6189 = vadd.f32 0.0, %v6188
    %v6190 = vpop.f32.mrb[0].mxu0
    %v6191 = vpop.f32.mrb[0].mxu0
    %6192 = vdwg.mxu0
    %6193 = vmatprep.subr.bf16.mxu0 %v6004
    %6194 = vmatpush1.bf16.msra.mxu0 %v6003
    %6195 = vmatprep.subr.bf16.mxu0 %v6011
    %6196 = vmatpush1.bf16.msra.mxu0 %v6010
    %6197 = vmatprep.subr.bf16.mxu0 %v6018
    %6198 = vmatpush1.bf16.msra.mxu0 %v6017
    %6199 = vmatprep.subr.bf16.mxu0 %v6025
    %6200 = vmatpush1.bf16.msra.mxu0 %v6024
    %6201 = vmatprep.subr.bf16.mxu0 %v6032
    %6202 = vmatpush1.bf16.msra.mxu0 %v6031
    %6203 = vmatprep.subr.bf16.mxu0 %v6039
    %6204 = vmatpush1.bf16.msra.mxu0 %v6038
    %6205 = vmatprep.subr.bf16.mxu0 %v6046
    %6206 = vmatpush1.bf16.msra.mxu0 %v6045
    %6207 = vmatprep.subr.bf16.mxu0 %v6053
    %6208 = vmatpush1.bf16.msra.mxu0 %v6052
    %6209 = vmatprep.subr.bf16.mxu0 0
    %6210 = vmatpush1.bf16.msra.mxu0 0
    %6211 = vmatprep.subr.bf16.mxu0 0
    %6212 = vmatpush1.bf16.msra.mxu0 0
    %6213 = vmatprep.subr.bf16.mxu0 0
    %6214 = vmatpush1.bf16.msra.mxu0 0
    %6215 = vmatprep.subr.bf16.mxu0 0
    %6216 = vmatpush1.bf16.msra.mxu0 0
    %6217 = vmatprep.subr.bf16.mxu0 0
    %6218 = vmatpush1.bf16.msra.mxu0 0
    %6219 = vmatprep.subr.bf16.mxu0 0
    %6220 = vmatpush1.bf16.msra.mxu0 0
    %6221 = vmatprep.subr.bf16.mxu0 0
    %6222 = vmatpush1.bf16.msra.mxu0 0
    %6223 = vmatprep.subr.bf16.mxu0 0
    %6224 = vmatpush1.bf16.msra.mxu0 0
    %6225 = vmatprep.mubr.bf16.mxu0 0
    %6226 = vmatmul.mubr.bf16.gmra.mrb[0].mxu0 %v5822
    %v6227 = vpop.f32.mrb[0].mxu0
    %v6228 = vadd.f32 0.0, %v6227
    %v6229 = vpop.f32.mrb[0].mxu0
    %v6230 = vadd.f32 0.0, %v6229
    %v6231 = vpop.f32.mrb[0].mxu0
    %v6232 = vpop.f32.mrb[0].mxu0
    %6233 = vdwg.mxu0
    %6234 = vmatprep.subr.bf16.mxu0 0
    %6235 = vmatpush1.bf16.msra.mxu0 %v6005
    %6236 = vmatprep.subr.bf16.mxu0 0
    %6237 = vmatpush1.bf16.msra.mxu0 %v6012
    %6238 = vmatprep.subr.bf16.mxu0 0
    %6239 = vmatpush1.bf16.msra.mxu0 %v6019
    %6240 = vmatprep.subr.bf16.mxu0 0
    %6241 = vmatpush1.bf16.msra.mxu0 %v6026
    %6242 = vmatprep.subr.bf16.mxu0 0
    %6243 = vmatpush1.bf16.msra.mxu0 %v6033
    %6244 = vmatprep.subr.bf16.mxu0 0
    %6245 = vmatpush1.bf16.msra.mxu0 %v6040
    %6246 = vmatprep.subr.bf16.mxu0 0
    %6247 = vmatpush1.bf16.msra.mxu0 %v6047
    %6248 = vmatprep.subr.bf16.mxu0 0
    %6249 = vmatpush1.bf16.msra.mxu0 %v6054
    %6250 = vmatprep.subr.bf16.mxu0 0
    %6251 = vmatpush1.bf16.msra.mxu0 0
    %6252 = vmatprep.subr.bf16.mxu0 0
    %6253 = vmatpush1.bf16.msra.mxu0 0
    %6254 = vmatprep.subr.bf16.mxu0 0
    %6255 = vmatpush1.bf16.msra.mxu0 0
    %6256 = vmatprep.subr.bf16.mxu0 0
    %6257 = vmatpush1.bf16.msra.mxu0 0
    %6258 = vmatprep.subr.bf16.mxu0 0
    %6259 = vmatpush1.bf16.msra.mxu0 0
    %6260 = vmatprep.subr.bf16.mxu0 0
    %6261 = vmatpush1.bf16.msra.mxu0 0
    %6262 = vmatprep.subr.bf16.mxu0 0
    %6263 = vmatpush1.bf16.msra.mxu0 0
    %6264 = vmatprep.subr.bf16.mxu0 0
    %6265 = vmatpush1.bf16.msra.mxu0 0
    %6266 = vmatprep.mubr.bf16.mxu0 0
    %6267 = vmatmul.mubr.bf16.gmra.mrb[0].mxu0 %v5822
    %v6268 = vpop.f32.mrb[0].mxu0
    %v6269 = vadd.f32 0.0, %v6268
    %v6270 = vpop.f32.mrb[0].mxu0
    %v6271 = vpop.f32.mrb[0].mxu0
    %v6272 = vpop.f32.mrb[0].mxu0
    %6273 = vdwg.mxu0
    %v6274 = vpack.c.bf16 %v5757, %v5757
    %6275 = vmatprep.subr.bf16.mxu0 %v6000
    %6276 = vmatpush1.bf16.msra.mxu0 %v5999
    %6277 = vmatprep.subr.bf16.mxu0 %v6007
    %6278 = vmatpush1.bf16.msra.mxu0 %v6006
    %6279 = vmatprep.subr.bf16.mxu0 %v6014
    %6280 = vmatpush1.bf16.msra.mxu0 %v6013
    %6281 = vmatprep.subr.bf16.mxu0 %v6021
    %6282 = vmatpush1.bf16.msra.mxu0 %v6020
    %6283 = vmatprep.subr.bf16.mxu0 %v6028
    %6284 = vmatpush1.bf16.msra.mxu0 %v6027
    %6285 = vmatprep.subr.bf16.mxu0 %v6035
    %6286 = vmatpush1.bf16.msra.mxu0 %v6034
    %6287 = vmatprep.subr.bf16.mxu0 %v6042
    %6288 = vmatpush1.bf16.msra.mxu0 %v6041
    %6289 = vmatprep.subr.bf16.mxu0 %v6049
    %6290 = vmatpush1.bf16.msra.mxu0 %v6048
    %6291 = vmatprep.subr.bf16.mxu0 0
    %6292 = vmatpush1.bf16.msra.mxu0 0
    %6293 = vmatprep.subr.bf16.mxu0 0
    %6294 = vmatpush1.bf16.msra.mxu0 0
    %6295 = vmatprep.subr.bf16.mxu0 0
    %6296 = vmatpush1.bf16.msra.mxu0 0
    %6297 = vmatprep.subr.bf16.mxu0 0
    %6298 = vmatpush1.bf16.msra.mxu0 0
    %6299 = vmatprep.subr.bf16.mxu0 0
    %6300 = vmatpush1.bf16.msra.mxu0 0
    %6301 = vmatprep.subr.bf16.mxu0 0
    %6302 = vmatpush1.bf16.msra.mxu0 0
    %6303 = vmatprep.subr.bf16.mxu0 0
    %6304 = vmatpush1.bf16.msra.mxu0 0
    %6305 = vmatprep.subr.bf16.mxu0 0
    %6306 = vmatpush1.bf16.msra.mxu0 0
    %6307 = vmatprep.mubr.bf16.mxu0 0
    %6308 = vmatmul.mubr.bf16.gmra.mrb[0].mxu0 %v6274
    %v6309 = vpop.f32.mrb[0].mxu0
    %v6310 = vadd.f32 0.0, %v6309
    %v6311 = vpop.f32.mrb[0].mxu0
    %v6312 = vadd.f32 0.0, %v6311
    %v6313 = vpop.f32.mrb[0].mxu0
    %v6314 = vpop.f32.mrb[0].mxu0
    %6315 = vdwg.mxu0
    %6316 = vmatprep.subr.bf16.mxu0 %v6002
    %6317 = vmatpush1.bf16.msra.mxu0 %v6001
    %6318 = vmatprep.subr.bf16.mxu0 %v6009
    %6319 = vmatpush1.bf16.msra.mxu0 %v6008
    %6320 = vmatprep.subr.bf16.mxu0 %v6016
    %6321 = vmatpush1.bf16.msra.mxu0 %v6015
    %6322 = vmatprep.subr.bf16.mxu0 %v6023
    %6323 = vmatpush1.bf16.msra.mxu0 %v6022
    %6324 = vmatprep.subr.bf16.mxu0 %v6030
    %6325 = vmatpush1.bf16.msra.mxu0 %v6029
    %6326 = vmatprep.subr.bf16.mxu0 %v6037
    %6327 = vmatpush1.bf16.msra.mxu0 %v6036
    %6328 = vmatprep.subr.bf16.mxu0 %v6044
    %6329 = vmatpush1.bf16.msra.mxu0 %v6043
    %6330 = vmatprep.subr.bf16.mxu0 %v6051
    %6331 = vmatpush1.bf16.msra.mxu0 %v6050
    %6332 = vmatprep.subr.bf16.mxu0 0
    %6333 = vmatpush1.bf16.msra.mxu0 0
    %6334 = vmatprep.subr.bf16.mxu0 0
    %6335 = vmatpush1.bf16.msra.mxu0 0
    %6336 = vmatprep.subr.bf16.mxu0 0
    %6337 = vmatpush1.bf16.msra.mxu0 0
    %6338 = vmatprep.subr.bf16.mxu0 0
    %6339 = vmatpush1.bf16.msra.mxu0 0
    %6340 = vmatprep.subr.bf16.mxu0 0
    %6341 = vmatpush1.bf16.msra.mxu0 0
    %6342 = vmatprep.subr.bf16.mxu0 0
    %6343 = vmatpush1.bf16.msra.mxu0 0
    %6344 = vmatprep.subr.bf16.mxu0 0
    %6345 = vmatpush1.bf16.msra.mxu0 0
    %6346 = vmatprep.subr.bf16.mxu0 0
    %6347 = vmatpush1.bf16.msra.mxu0 0
    %6348 = vmatprep.mubr.bf16.mxu0 0
    %6349 = vmatmul.mubr.bf16.gmra.mrb[0].mxu0 %v6274
    %v6350 = vpop.f32.mrb[0].mxu0
    %v6351 = vadd.f32 0.0, %v6350
    %v6352 = vpop.f32.mrb[0].mxu0
    %v6353 = vadd.f32 0.0, %v6352
    %v6354 = vpop.f32.mrb[0].mxu0
    %v6355 = vpop.f32.mrb[0].mxu0
    %6356 = vdwg.mxu0
    %6357 = vmatprep.subr.bf16.mxu0 %v6004
    %6358 = vmatpush1.bf16.msra.mxu0 %v6003
    %6359 = vmatprep.subr.bf16.mxu0 %v6011
    %6360 = vmatpush1.bf16.msra.mxu0 %v6010
    %6361 = vmatprep.subr.bf16.mxu0 %v6018
    %6362 = vmatpush1.bf16.msra.mxu0 %v6017
    %6363 = vmatprep.subr.bf16.mxu0 %v6025
    %6364 = vmatpush1.bf16.msra.mxu0 %v6024
    %6365 = vmatprep.subr.bf16.mxu0 %v6032
    %6366 = vmatpush1.bf16.msra.mxu0 %v6031
    %6367 = vmatprep.subr.bf16.mxu0 %v6039
    %6368 = vmatpush1.bf16.msra.mxu0 %v6038
    %6369 = vmatprep.subr.bf16.mxu0 %v6046
    %6370 = vmatpush1.bf16.msra.mxu0 %v6045
    %6371 = vmatprep.subr.bf16.mxu0 %v6053
    %6372 = vmatpush1.bf16.msra.mxu0 %v6052
    %6373 = vmatprep.subr.bf16.mxu0 0
    %6374 = vmatpush1.bf16.msra.mxu0 0
    %6375 = vmatprep.subr.bf16.mxu0 0
    %6376 = vmatpush1.bf16.msra.mxu0 0
    %6377 = vmatprep.subr.bf16.mxu0 0
    %6378 = vmatpush1.bf16.msra.mxu0 0
    %6379 = vmatprep.subr.bf16.mxu0 0
    %6380 = vmatpush1.bf16.msra.mxu0 0
    %6381 = vmatprep.subr.bf16.mxu0 0
    %6382 = vmatpush1.bf16.msra.mxu0 0
    %6383 = vmatprep.subr.bf16.mxu0 0
    %6384 = vmatpush1.bf16.msra.mxu0 0
    %6385 = vmatprep.subr.bf16.mxu0 0
    %6386 = vmatpush1.bf16.msra.mxu0 0
    %6387 = vmatprep.subr.bf16.mxu0 0
    %6388 = vmatpush1.bf16.msra.mxu0 0
    %6389 = vmatprep.mubr.bf16.mxu0 0
    %6390 = vmatmul.mubr.bf16.gmra.mrb[0].mxu0 %v6274
    %v6391 = vpop.f32.mrb[0].mxu0
    %v6392 = vadd.f32 0.0, %v6391
    %v6393 = vpop.f32.mrb[0].mxu0
    %v6394 = vadd.f32 0.0, %v6393
    %v6395 = vpop.f32.mrb[0].mxu0
    %v6396 = vpop.f32.mrb[0].mxu0
    %6397 = vdwg.mxu0
    %6398 = vmatprep.subr.bf16.mxu0 0
    %6399 = vmatpush1.bf16.msra.mxu0 %v6005
    %6400 = vmatprep.subr.bf16.mxu0 0
    %6401 = vmatpush1.bf16.msra.mxu0 %v6012
    %6402 = vmatprep.subr.bf16.mxu0 0
    %6403 = vmatpush1.bf16.msra.mxu0 %v6019
    %6404 = vmatprep.subr.bf16.mxu0 0
    %6405 = vmatpush1.bf16.msra.mxu0 %v6026
    %6406 = vmatprep.subr.bf16.mxu0 0
    %6407 = vmatpush1.bf16.msra.mxu0 %v6033
    %6408 = vmatprep.subr.bf16.mxu0 0
    %6409 = vmatpush1.bf16.msra.mxu0 %v6040
    %6410 = vmatprep.subr.bf16.mxu0 0
    %6411 = vmatpush1.bf16.msra.mxu0 %v6047
    %6412 = vmatprep.subr.bf16.mxu0 0
    %6413 = vmatpush1.bf16.msra.mxu0 %v6054
    %6414 = vmatprep.subr.bf16.mxu0 0
    %6415 = vmatpush1.bf16.msra.mxu0 0
    %6416 = vmatprep.subr.bf16.mxu0 0
    %6417 = vmatpush1.bf16.msra.mxu0 0
    %6418 = vmatprep.subr.bf16.mxu0 0
    %6419 = vmatpush1.bf16.msra.mxu0 0
    %6420 = vmatprep.subr.bf16.mxu0 0
    %6421 = vmatpush1.bf16.msra.mxu0 0
    %6422 = vmatprep.subr.bf16.mxu0 0
    %6423 = vmatpush1.bf16.msra.mxu0 0
    %6424 = vmatprep.subr.bf16.mxu0 0
    %6425 = vmatpush1.bf16.msra.mxu0 0
    %6426 = vmatprep.subr.bf16.mxu0 0
    %6427 = vmatpush1.bf16.msra.mxu0 0
    %6428 = vmatprep.subr.bf16.mxu0 0
    %6429 = vmatpush1.bf16.msra.mxu0 0
    %6430 = vmatprep.mubr.bf16.mxu0 0
    %6431 = vmatmul.mubr.bf16.gmra.mrb[0].mxu0 %v6274
    %v6432 = vpop.f32.mrb[0].mxu0
    %v6433 = vadd.f32 0.0, %v6432
    %v6434 = vpop.f32.mrb[0].mxu0
    %v6435 = vpop.f32.mrb[0].mxu0
    %v6436 = vpop.f32.mrb[0].mxu0
    %6437 = vdwg.mxu0
    %s6438 = sld [smem:[#allocation2 + $0xa]]
    %v6439 = vstv %s6438
    %v6440 = vmul.f32 %v6439, %v6310
    %v6441 = vadd.f32 %v6146, %v6440
    %v6442 = vld [vmem:[#allocation14] sm:$0x1]
    %v6444 = vlaneseq
    %v6445 = vshrl.u32 %v6444, 7
    %v6446 = vsub.s32 0, %v6445
    %v6447 = vrot.slane %v6442, %v6446
    %v6449 = vadd.f32 %v6441, %v6447
    %s6450 = sld [smem:[#allocation2 + $0xb]]
    %vm6451 = vcmp.gt.f32.partialorder %v6449, 0.0
    %v6452 = vstv %s6450
    %v6453 = vmul.f32 %v6452, %v6449
    %v6454 = vsel %vm6451, %v6449, %v6453
    %v6455 = vld [vmem:[#allocation15] sm:$0xf]
    %v6456 = vld [vmem:[#allocation15 + $0x4] sm:$0xf]
    %v6457 = vld [vmem:[#allocation15 + $0x8] sm:$0xf]
    %v6458 = vld [vmem:[#allocation15 + $0xc] sm:$0xf]
    %v6459 = vld [vmem:[#allocation15 + $0x10] sm:$0xf]
    %v6460 = vld [vmem:[#allocation15 + $0x14] sm:$0xf]
    %v6461 = vld [vmem:[#allocation15 + $0x18] sm:$0xf]
    %v6462 = vld [vmem:[#allocation15 + $0x1c] sm:$0xf]
    %v6463 = vld [vmem:[#allocation15 + $0x20] sm:$0xf]
    %v6464 = vld [vmem:[#allocation15 + $0x24] sm:$0xf]
    %v6465 = vld [vmem:[#allocation15 + $0x28] sm:$0xf]
    %v6466 = vld [vmem:[#allocation15 + $0x2c] sm:$0xf]
    %v6467 = vld [vmem:[#allocation15 + $0x30] sm:$0xf]
    %v6468 = vld [vmem:[#allocation15 + $0x34] sm:$0xf]
    %v6469 = vld [vmem:[#allocation15 + $0x38] sm:$0xf]
    %v6470 = vld [vmem:[#allocation15 + $0x3c] sm:$0xf]
    %v6471 = vpack.c.bf16 %v6454, %v6454
    %v6472 = vld [vmem:[#allocation17] sm:$0x1]
    %v6474 = vlaneseq
    %v6475 = vshrl.u32 %v6474, 7
    %v6476 = vsub.s32 0, %v6475
    %v6477 = vrot.slane %v6472, %v6476
    %v6495 = vunpack.c.l.b16 %v6455
    %v6496 = vunpack.c.l.b16 %v6456
    %v6497 = vunpack.c.l.b16 %v6457
    %v6498 = vunpack.c.l.b16 %v6458
    %v6499 = vunpack.c.l.b16 %v6459
    %v6500 = vunpack.c.l.b16 %v6460
    %v6501 = vunpack.c.l.b16 %v6461
    %v6502 = vunpack.c.l.b16 %v6462
    %v6503 = vunpack.c.l.b16 %v6463
    %v6504 = vunpack.c.l.b16 %v6464
    %v6505 = vunpack.c.l.b16 %v6465
    %v6506 = vunpack.c.l.b16 %v6466
    %v6507 = vunpack.c.l.b16 %v6467
    %v6508 = vunpack.c.l.b16 %v6468
    %v6509 = vunpack.c.l.b16 %v6469
    %v6510 = vunpack.c.l.b16 %v6470
    %v6511 = vpack.c.b16 %v6496, %v6495
    %v6512 = vpack.c.b16 %v6498, %v6497
    %v6513 = vpack.c.b16 %v6500, %v6499
    %v6514 = vpack.c.b16 %v6502, %v6501
    %v6515 = vpack.c.b16 %v6504, %v6503
    %v6516 = vpack.c.b16 %v6506, %v6505
    %v6517 = vpack.c.b16 %v6508, %v6507
    %v6518 = vpack.c.b16 %v6510, %v6509
    %6527 = vmatprep.subr.bf16.mxu0 0
    %6528 = vmatpush1.bf16.msra.mxu0 %v6511
    %6529 = vmatprep.subr.bf16.mxu0 0
    %6530 = vmatpush1.bf16.msra.mxu0 %v6512
    %6531 = vmatprep.subr.bf16.mxu0 0
    %6532 = vmatpush1.bf16.msra.mxu0 %v6513
    %6533 = vmatprep.subr.bf16.mxu0 0
    %6534 = vmatpush1.bf16.msra.mxu0 %v6514
    %6535 = vmatprep.subr.bf16.mxu0 0
    %6536 = vmatpush1.bf16.msra.mxu0 %v6515
    %6537 = vmatprep.subr.bf16.mxu0 0
    %6538 = vmatpush1.bf16.msra.mxu0 %v6516
    %6539 = vmatprep.subr.bf16.mxu0 0
    %6540 = vmatpush1.bf16.msra.mxu0 %v6517
    %6541 = vmatprep.subr.bf16.mxu0 0
    %6542 = vmatpush1.bf16.msra.mxu0 %v6518
    %6543 = vmatprep.subr.bf16.mxu0 0
    %6544 = vmatpush1.bf16.msra.mxu0 0
    %6545 = vmatprep.subr.bf16.mxu0 0
    %6546 = vmatpush1.bf16.msra.mxu0 0
    %6547 = vmatprep.subr.bf16.mxu0 0
    %6548 = vmatpush1.bf16.msra.mxu0 0
    %6549 = vmatprep.subr.bf16.mxu0 0
    %6550 = vmatpush1.bf16.msra.mxu0 0
    %6551 = vmatprep.subr.bf16.mxu0 0
    %6552 = vmatpush1.bf16.msra.mxu0 0
    %6553 = vmatprep.subr.bf16.mxu0 0
    %6554 = vmatpush1.bf16.msra.mxu0 0
    %6555 = vmatprep.subr.bf16.mxu0 0
    %6556 = vmatpush1.bf16.msra.mxu0 0
    %6557 = vmatprep.subr.bf16.mxu0 0
    %6558 = vmatpush1.bf16.msra.mxu0 0
    %6559 = vmatprep.mubr.bf16.mxu0 0
    %6560 = vmatmul.mubr.bf16.gmra.mrb[0].mxu0 %v6471
    %v6561 = vpop.f32.mrb[0].mxu0
    %v6562 = vadd.f32 %v6477, %v6561
    %v6563 = vpop.f32.mrb[0].mxu0
    %v6564 = vpop.f32.mrb[0].mxu0
    %v6565 = vpop.f32.mrb[0].mxu0
    %6566 = vdwg.mxu0
    %s6567 = sld [smem:[#allocation2 + $0xc]]
    %vm6568 = vcmp.gt.f32.partialorder %v6562, 0.0
    %v6569 = vstv %s6567
    %v6570 = vmul.f32 %v6569, %v6562
    %v6571 = vsel %vm6568, %v6562, %v6570
    %s6572 = scalar_lea.vmem [#allocation15], 448
    %v6573 = vld [vmem:[%s6572] sm:$0xf]
    %v6574 = vld [vmem:[%s6572 + $0x4] sm:$0xf]
    %v6575 = vld [vmem:[%s6572 + $0x8] sm:$0xf]
    %v6576 = vld [vmem:[%s6572 + $0xc] sm:$0xf]
    %v6577 = vld [vmem:[%s6572 + $0x10] sm:$0xf]
    %v6578 = vld [vmem:[%s6572 + $0x14] sm:$0xf]
    %v6579 = vld [vmem:[%s6572 + $0x18] sm:$0xf]
    %v6580 = vld [vmem:[%s6572 + $0x1c] sm:$0xf]
    %v6581 = vld [vmem:[%s6572 + $0x20] sm:$0xf]
    %v6582 = vld [vmem:[%s6572 + $0x24] sm:$0xf]
    %v6583 = vld [vmem:[%s6572 + $0x28] sm:$0xf]
    %v6584 = vld [vmem:[%s6572 + $0x2c] sm:$0xf]
    %v6585 = vld [vmem:[%s6572 + $0x30] sm:$0xf]
    %v6586 = vld [vmem:[%s6572 + $0x34] sm:$0xf]
    %v6587 = vld [vmem:[%s6572 + $0x38] sm:$0xf]
    %v6588 = vld [vmem:[%s6572 + $0x3c] sm:$0xf]
    %v6589 = vpack.c.bf16 %v6571, %v6571
    %s6590 = scalar_lea.vmem [#allocation17], 7
    %v6591 = vld [vmem:[%s6590] sm:$0x1]
    %v6593 = vlaneseq
    %v6594 = vshrl.u32 %v6593, 7
    %v6595 = vsub.s32 0, %v6594
    %v6596 = vrot.slane %v6591, %v6595
    %v6614 = vunpack.c.l.b16 %v6573
    %v6615 = vunpack.c.l.b16 %v6574
    %v6616 = vunpack.c.l.b16 %v6575
    %v6617 = vunpack.c.l.b16 %v6576
    %v6618 = vunpack.c.l.b16 %v6577
    %v6619 = vunpack.c.l.b16 %v6578
    %v6620 = vunpack.c.l.b16 %v6579
    %v6621 = vunpack.c.l.b16 %v6580
    %v6622 = vunpack.c.l.b16 %v6581
    %v6623 = vunpack.c.l.b16 %v6582
    %v6624 = vunpack.c.l.b16 %v6583
    %v6625 = vunpack.c.l.b16 %v6584
    %v6626 = vunpack.c.l.b16 %v6585
    %v6627 = vunpack.c.l.b16 %v6586
    %v6628 = vunpack.c.l.b16 %v6587
    %v6629 = vunpack.c.l.b16 %v6588
    %v6630 = vpack.c.b16 %v6615, %v6614
    %v6631 = vpack.c.b16 %v6617, %v6616
    %v6632 = vpack.c.b16 %v6619, %v6618
    %v6633 = vpack.c.b16 %v6621, %v6620
    %v6634 = vpack.c.b16 %v6623, %v6622
    %v6635 = vpack.c.b16 %v6625, %v6624
    %v6636 = vpack.c.b16 %v6627, %v6626
    %v6637 = vpack.c.b16 %v6629, %v6628
    %6646 = vmatprep.subr.bf16.mxu0 0
    %6647 = vmatpush1.bf16.msra.mxu0 %v6630
    %6648 = vmatprep.subr.bf16.mxu0 0
    %6649 = vmatpush1.bf16.msra.mxu0 %v6631
    %6650 = vmatprep.subr.bf16.mxu0 0
    %6651 = vmatpush1.bf16.msra.mxu0 %v6632
    %6652 = vmatprep.subr.bf16.mxu0 0
    %6653 = vmatpush1.bf16.msra.mxu0 %v6633
    %6654 = vmatprep.subr.bf16.mxu0 0
    %6655 = vmatpush1.bf16.msra.mxu0 %v6634
    %6656 = vmatprep.subr.bf16.mxu0 0
    %6657 = vmatpush1.bf16.msra.mxu0 %v6635
    %6658 = vmatprep.subr.bf16.mxu0 0
    %6659 = vmatpush1.bf16.msra.mxu0 %v6636
    %6660 = vmatprep.subr.bf16.mxu0 0
    %6661 = vmatpush1.bf16.msra.mxu0 %v6637
    %6662 = vmatprep.subr.bf16.mxu0 0
    %6663 = vmatpush1.bf16.msra.mxu0 0
    %6664 = vmatprep.subr.bf16.mxu0 0
    %6665 = vmatpush1.bf16.msra.mxu0 0
    %6666 = vmatprep.subr.bf16.mxu0 0
    %6667 = vmatpush1.bf16.msra.mxu0 0
    %6668 = vmatprep.subr.bf16.mxu0 0
    %6669 = vmatpush1.bf16.msra.mxu0 0
    %6670 = vmatprep.subr.bf16.mxu0 0
    %6671 = vmatpush1.bf16.msra.mxu0 0
    %6672 = vmatprep.subr.bf16.mxu0 0
    %6673 = vmatpush1.bf16.msra.mxu0 0
    %6674 = vmatprep.subr.bf16.mxu0 0
    %6675 = vmatpush1.bf16.msra.mxu0 0
    %6676 = vmatprep.subr.bf16.mxu0 0
    %6677 = vmatpush1.bf16.msra.mxu0 0
    %6678 = vmatprep.mubr.bf16.mxu0 0
    %6679 = vmatmul.mubr.bf16.gmra.mrb[0].mxu0 %v6589
    %v6680 = vpop.f32.mrb[0].mxu0
    %v6681 = vadd.f32 %v6596, %v6680
    %v6682 = vpop.f32.mrb[0].mxu0
    %v6683 = vpop.f32.mrb[0].mxu0
    %v6684 = vpop.f32.mrb[0].mxu0
    %6685 = vdwg.mxu0
    %s6686 = sld [smem:[#allocation2 + $0xd]]
    %vm6687 = vcmp.gt.f32.partialorder %v6681, 0.0
    %v6688 = vstv %s6686
    %v6689 = vmul.f32 %v6688, %v6681
    %v6690 = vsel %vm6687, %v6681, %v6689
    %s6691 = sld [smem:[#allocation2 + $0xe]]
    %v6692 = vstv %s6691
    %v6693 = vmul.f32 %v6692, %v6312
    %v6694 = vadd.f32 %v6148, %v6693
    %v6695 = vld [vmem:[#allocation14 + $0x1] sm:$0x1]
    %v6697 = vlaneseq
    %v6698 = vshrl.u32 %v6697, 7
    %v6699 = vsub.s32 0, %v6698
    %v6700 = vrot.slane %v6695, %v6699
    %v6702 = vadd.f32 %v6694, %v6700
    %s6703 = sld [smem:[#allocation2 + $0xf]]
    %vm6704 = vcmp.gt.f32.partialorder %v6702, 0.0
    %v6705 = vstv %s6703
    %v6706 = vmul.f32 %v6705, %v6702
    %v6707 = vsel %vm6704, %v6702, %v6706
    %s6708 = scalar_lea.vmem [#allocation15], 64
    %v6709 = vld [vmem:[%s6708] sm:$0xf]
    %v6710 = vld [vmem:[%s6708 + $0x4] sm:$0xf]
    %v6711 = vld [vmem:[%s6708 + $0x8] sm:$0xf]
    %v6712 = vld [vmem:[%s6708 + $0xc] sm:$0xf]
    %v6713 = vld [vmem:[%s6708 + $0x10] sm:$0xf]
    %v6714 = vld [vmem:[%s6708 + $0x14] sm:$0xf]
    %v6715 = vld [vmem:[%s6708 + $0x18] sm:$0xf]
    %v6716 = vld [vmem:[%s6708 + $0x1c] sm:$0xf]
    %v6717 = vld [vmem:[%s6708 + $0x20] sm:$0xf]
    %v6718 = vld [vmem:[%s6708 + $0x24] sm:$0xf]
    %v6719 = vld [vmem:[%s6708 + $0x28] sm:$0xf]
    %v6720 = vld [vmem:[%s6708 + $0x2c] sm:$0xf]
    %v6721 = vld [vmem:[%s6708 + $0x30] sm:$0xf]
    %v6722 = vld [vmem:[%s6708 + $0x34] sm:$0xf]
    %v6723 = vld [vmem:[%s6708 + $0x38] sm:$0xf]
    %v6724 = vld [vmem:[%s6708 + $0x3c] sm:$0xf]
    %v6725 = vpack.c.bf16 %v6707, %v6707
    %s6726 = scalar_lea.vmem [#allocation17], 1
    %v6727 = vld [vmem:[%s6726] sm:$0x1]
    %v6729 = vlaneseq
    %v6730 = vshrl.u32 %v6729, 7
    %v6731 = vsub.s32 0, %v6730
    %v6732 = vrot.slane %v6727, %v6731
    %v6750 = vunpack.c.l.b16 %v6709
    %v6751 = vunpack.c.l.b16 %v6710
    %v6752 = vunpack.c.l.b16 %v6711
    %v6753 = vunpack.c.l.b16 %v6712
    %v6754 = vunpack.c.l.b16 %v6713
    %v6755 = vunpack.c.l.b16 %v6714
    %v6756 = vunpack.c.l.b16 %v6715
    %v6757 = vunpack.c.l.b16 %v6716
    %v6758 = vunpack.c.l.b16 %v6717
    %v6759 = vunpack.c.l.b16 %v6718
    %v6760 = vunpack.c.l.b16 %v6719
    %v6761 = vunpack.c.l.b16 %v6720
    %v6762 = vunpack.c.l.b16 %v6721
    %v6763 = vunpack.c.l.b16 %v6722
    %v6764 = vunpack.c.l.b16 %v6723
    %v6765 = vunpack.c.l.b16 %v6724
    %v6766 = vpack.c.b16 %v6751, %v6750
    %v6767 = vpack.c.b16 %v6753, %v6752
    %v6768 = vpack.c.b16 %v6755, %v6754
    %v6769 = vpack.c.b16 %v6757, %v6756
    %v6770 = vpack.c.b16 %v6759, %v6758
    %v6771 = vpack.c.b16 %v6761, %v6760
    %v6772 = vpack.c.b16 %v6763, %v6762
    %v6773 = vpack.c.b16 %v6765, %v6764
    %6782 = vmatprep.subr.bf16.mxu0 0
    %6783 = vmatpush1.bf16.msra.mxu0 %v6766
    %6784 = vmatprep.subr.bf16.mxu0 0
    %6785 = vmatpush1.bf16.msra.mxu0 %v6767
    %6786 = vmatprep.subr.bf16.mxu0 0
    %6787 = vmatpush1.bf16.msra.mxu0 %v6768
    %6788 = vmatprep.subr.bf16.mxu0 0
    %6789 = vmatpush1.bf16.msra.mxu0 %v6769
    %6790 = vmatprep.subr.bf16.mxu0 0
    %6791 = vmatpush1.bf16.msra.mxu0 %v6770
    %6792 = vmatprep.subr.bf16.mxu0 0
    %6793 = vmatpush1.bf16.msra.mxu0 %v6771
    %6794 = vmatprep.subr.bf16.mxu0 0
    %6795 = vmatpush1.bf16.msra.mxu0 %v6772
    %6796 = vmatprep.subr.bf16.mxu0 0
    %6797 = vmatpush1.bf16.msra.mxu0 %v6773
    %6798 = vmatprep.subr.bf16.mxu0 0
    %6799 = vmatpush1.bf16.msra.mxu0 0
    %6800 = vmatprep.subr.bf16.mxu0 0
    %6801 = vmatpush1.bf16.msra.mxu0 0
    %6802 = vmatprep.subr.bf16.mxu0 0
    %6803 = vmatpush1.bf16.msra.mxu0 0
    %6804 = vmatprep.subr.bf16.mxu0 0
    %6805 = vmatpush1.bf16.msra.mxu0 0
    %6806 = vmatprep.subr.bf16.mxu0 0
    %6807 = vmatpush1.bf16.msra.mxu0 0
    %6808 = vmatprep.subr.bf16.mxu0 0
    %6809 = vmatpush1.bf16.msra.mxu0 0
    %6810 = vmatprep.subr.bf16.mxu0 0
    %6811 = vmatpush1.bf16.msra.mxu0 0
    %6812 = vmatprep.subr.bf16.mxu0 0
    %6813 = vmatpush1.bf16.msra.mxu0 0
    %6814 = vmatprep.mubr.bf16.mxu0 0
    %6815 = vmatmul.mubr.bf16.gmra.mrb[0].mxu0 %v6725
    %v6816 = vpop.f32.mrb[0].mxu0
    %v6817 = vadd.f32 %v6732, %v6816
    %v6818 = vpop.f32.mrb[0].mxu0
    %v6819 = vpop.f32.mrb[0].mxu0
    %v6820 = vpop.f32.mrb[0].mxu0
    %6821 = vdwg.mxu0
    %s6822 = sld [smem:[#allocation2 + $0x10]]
    %vm6823 = vcmp.gt.f32.partialorder %v6817, 0.0
    %v6824 = vstv %s6822
    %v6825 = vmul.f32 %v6824, %v6817
    %v6826 = vsel %vm6823, %v6817, %v6825
    %s6827 = scalar_lea.vmem [#allocation15], 512
    %v6828 = vld [vmem:[%s6827] sm:$0xf]
    %v6829 = vld [vmem:[%s6827 + $0x4] sm:$0xf]
    %v6830 = vld [vmem:[%s6827 + $0x8] sm:$0xf]
    %v6831 = vld [vmem:[%s6827 + $0xc] sm:$0xf]
    %v6832 = vld [vmem:[%s6827 + $0x10] sm:$0xf]
    %v6833 = vld [vmem:[%s6827 + $0x14] sm:$0xf]
    %v6834 = vld [vmem:[%s6827 + $0x18] sm:$0xf]
    %v6835 = vld [vmem:[%s6827 + $0x1c] sm:$0xf]
    %v6836 = vld [vmem:[%s6827 + $0x20] sm:$0xf]
    %v6837 = vld [vmem:[%s6827 + $0x24] sm:$0xf]
    %v6838 = vld [vmem:[%s6827 + $0x28] sm:$0xf]
    %v6839 = vld [vmem:[%s6827 + $0x2c] sm:$0xf]
    %v6840 = vld [vmem:[%s6827 + $0x30] sm:$0xf]
    %v6841 = vld [vmem:[%s6827 + $0x34] sm:$0xf]
    %v6842 = vld [vmem:[%s6827 + $0x38] sm:$0xf]
    %v6843 = vld [vmem:[%s6827 + $0x3c] sm:$0xf]
    %v6844 = vpack.c.bf16 %v6826, %v6826
    %s6845 = scalar_lea.vmem [#allocation17], 8
    %v6846 = vld [vmem:[%s6845] sm:$0x1]
    %v6848 = vlaneseq
    %v6849 = vshrl.u32 %v6848, 7
    %v6850 = vsub.s32 0, %v6849
    %v6851 = vrot.slane %v6846, %v6850
    %v6869 = vunpack.c.l.b16 %v6828
    %v6870 = vunpack.c.l.b16 %v6829
    %v6871 = vunpack.c.l.b16 %v6830
    %v6872 = vunpack.c.l.b16 %v6831
    %v6873 = vunpack.c.l.b16 %v6832
    %v6874 = vunpack.c.l.b16 %v6833
    %v6875 = vunpack.c.l.b16 %v6834
    %v6876 = vunpack.c.l.b16 %v6835
    %v6877 = vunpack.c.l.b16 %v6836
    %v6878 = vunpack.c.l.b16 %v6837
    %v6879 = vunpack.c.l.b16 %v6838
    %v6880 = vunpack.c.l.b16 %v6839
    %v6881 = vunpack.c.l.b16 %v6840
    %v6882 = vunpack.c.l.b16 %v6841
    %v6883 = vunpack.c.l.b16 %v6842
    %v6884 = vunpack.c.l.b16 %v6843
    %v6885 = vpack.c.b16 %v6870, %v6869
    %v6886 = vpack.c.b16 %v6872, %v6871
    %v6887 = vpack.c.b16 %v6874, %v6873
    %v6888 = vpack.c.b16 %v6876, %v6875
    %v6889 = vpack.c.b16 %v6878, %v6877
    %v6890 = vpack.c.b16 %v6880, %v6879
    %v6891 = vpack.c.b16 %v6882, %v6881
    %v6892 = vpack.c.b16 %v6884, %v6883
    %6901 = vmatprep.subr.bf16.mxu0 0
    %6902 = vmatpush1.bf16.msra.mxu0 %v6885
    %6903 = vmatprep.subr.bf16.mxu0 0
    %6904 = vmatpush1.bf16.msra.mxu0 %v6886
    %6905 = vmatprep.subr.bf16.mxu0 0
    %6906 = vmatpush1.bf16.msra.mxu0 %v6887
    %6907 = vmatprep.subr.bf16.mxu0 0
    %6908 = vmatpush1.bf16.msra.mxu0 %v6888
    %6909 = vmatprep.subr.bf16.mxu0 0
    %6910 = vmatpush1.bf16.msra.mxu0 %v6889
    %6911 = vmatprep.subr.bf16.mxu0 0
    %6912 = vmatpush1.bf16.msra.mxu0 %v6890
    %6913 = vmatprep.subr.bf16.mxu0 0
    %6914 = vmatpush1.bf16.msra.mxu0 %v6891
    %6915 = vmatprep.subr.bf16.mxu0 0
    %6916 = vmatpush1.bf16.msra.mxu0 %v6892
    %6917 = vmatprep.subr.bf16.mxu0 0
    %6918 = vmatpush1.bf16.msra.mxu0 0
    %6919 = vmatprep.subr.bf16.mxu0 0
    %6920 = vmatpush1.bf16.msra.mxu0 0
    %6921 = vmatprep.subr.bf16.mxu0 0
    %6922 = vmatpush1.bf16.msra.mxu0 0
    %6923 = vmatprep.subr.bf16.mxu0 0
    %6924 = vmatpush1.bf16.msra.mxu0 0
    %6925 = vmatprep.subr.bf16.mxu0 0
    %6926 = vmatpush1.bf16.msra.mxu0 0
    %6927 = vmatprep.subr.bf16.mxu0 0
    %6928 = vmatpush1.bf16.msra.mxu0 0
    %6929 = vmatprep.subr.bf16.mxu0 0
    %6930 = vmatpush1.bf16.msra.mxu0 0
    %6931 = vmatprep.subr.bf16.mxu0 0
    %6932 = vmatpush1.bf16.msra.mxu0 0
    %6933 = vmatprep.mubr.bf16.mxu0 0
    %6934 = vmatmul.mubr.bf16.gmra.mrb[0].mxu0 %v6844
    %v6935 = vpop.f32.mrb[0].mxu0
    %v6936 = vadd.f32 %v6851, %v6935
    %v6937 = vpop.f32.mrb[0].mxu0
    %v6938 = vpop.f32.mrb[0].mxu0
    %v6939 = vpop.f32.mrb[0].mxu0
    %6940 = vdwg.mxu0
    %s6941 = sld [smem:[#allocation2 + $0x11]]
    %vm6942 = vcmp.gt.f32.partialorder %v6936, 0.0
    %v6943 = vstv %s6941
    %v6944 = vmul.f32 %v6943, %v6936
    %v6945 = vsel %vm6942, %v6936, %v6944
    %s6946 = sld [smem:[#allocation2 + $0x12]]
    %v6947 = vstv %s6946
    %v6948 = vmul.f32 %v6947, %v6351
    %v6949 = vadd.f32 %v6187, %v6948
    %v6950 = vld [vmem:[#allocation14 + $0x2] sm:$0x1]
    %v6952 = vlaneseq
    %v6953 = vshrl.u32 %v6952, 7
    %v6954 = vsub.s32 0, %v6953
    %v6955 = vrot.slane %v6950, %v6954
    %v6957 = vadd.f32 %v6949, %v6955
    %s6958 = sld [smem:[#allocation2 + $0x13]]
    %vm6959 = vcmp.gt.f32.partialorder %v6957, 0.0
    %v6960 = vstv %s6958
    %v6961 = vmul.f32 %v6960, %v6957
    %v6962 = vsel %vm6959, %v6957, %v6961
    %s6963 = scalar_lea.vmem [#allocation15], 128
    %v6964 = vld [vmem:[%s6963] sm:$0xf]
    %v6965 = vld [vmem:[%s6963 + $0x4] sm:$0xf]
    %v6966 = vld [vmem:[%s6963 + $0x8] sm:$0xf]
    %v6967 = vld [vmem:[%s6963 + $0xc] sm:$0xf]
    %v6968 = vld [vmem:[%s6963 + $0x10] sm:$0xf]
    %v6969 = vld [vmem:[%s6963 + $0x14] sm:$0xf]
    %v6970 = vld [vmem:[%s6963 + $0x18] sm:$0xf]
    %v6971 = vld [vmem:[%s6963 + $0x1c] sm:$0xf]
    %v6972 = vld [vmem:[%s6963 + $0x20] sm:$0xf]
    %v6973 = vld [vmem:[%s6963 + $0x24] sm:$0xf]
    %v6974 = vld [vmem:[%s6963 + $0x28] sm:$0xf]
    %v6975 = vld [vmem:[%s6963 + $0x2c] sm:$0xf]
    %v6976 = vld [vmem:[%s6963 + $0x30] sm:$0xf]
    %v6977 = vld [vmem:[%s6963 + $0x34] sm:$0xf]
    %v6978 = vld [vmem:[%s6963 + $0x38] sm:$0xf]
    %v6979 = vld [vmem:[%s6963 + $0x3c] sm:$0xf]
    %v6980 = vpack.c.bf16 %v6962, %v6962
    %s6981 = scalar_lea.vmem [#allocation17], 2
    %v6982 = vld [vmem:[%s6981] sm:$0x1]
    %v6984 = vlaneseq
    %v6985 = vshrl.u32 %v6984, 7
    %v6986 = vsub.s32 0, %v6985
    %v6987 = vrot.slane %v6982, %v6986
    %v7005 = vunpack.c.l.b16 %v6964
    %v7006 = vunpack.c.l.b16 %v6965
    %v7007 = vunpack.c.l.b16 %v6966
    %v7008 = vunpack.c.l.b16 %v6967
    %v7009 = vunpack.c.l.b16 %v6968
    %v7010 = vunpack.c.l.b16 %v6969
    %v7011 = vunpack.c.l.b16 %v6970
    %v7012 = vunpack.c.l.b16 %v6971
    %v7013 = vunpack.c.l.b16 %v6972
    %v7014 = vunpack.c.l.b16 %v6973
    %v7015 = vunpack.c.l.b16 %v6974
    %v7016 = vunpack.c.l.b16 %v6975
    %v7017 = vunpack.c.l.b16 %v6976
    %v7018 = vunpack.c.l.b16 %v6977
    %v7019 = vunpack.c.l.b16 %v6978
    %v7020 = vunpack.c.l.b16 %v6979
    %v7021 = vpack.c.b16 %v7006, %v7005
    %v7022 = vpack.c.b16 %v7008, %v7007
    %v7023 = vpack.c.b16 %v7010, %v7009
    %v7024 = vpack.c.b16 %v7012, %v7011
    %v7025 = vpack.c.b16 %v7014, %v7013
    %v7026 = vpack.c.b16 %v7016, %v7015
    %v7027 = vpack.c.b16 %v7018, %v7017
    %v7028 = vpack.c.b16 %v7020, %v7019
    %7037 = vmatprep.subr.bf16.mxu0 0
    %7038 = vmatpush1.bf16.msra.mxu0 %v7021
    %7039 = vmatprep.subr.bf16.mxu0 0
    %7040 = vmatpush1.bf16.msra.mxu0 %v7022
    %7041 = vmatprep.subr.bf16.mxu0 0
    %7042 = vmatpush1.bf16.msra.mxu0 %v7023
    %7043 = vmatprep.subr.bf16.mxu0 0
    %7044 = vmatpush1.bf16.msra.mxu0 %v7024
    %7045 = vmatprep.subr.bf16.mxu0 0
    %7046 = vmatpush1.bf16.msra.mxu0 %v7025
    %7047 = vmatprep.subr.bf16.mxu0 0
    %7048 = vmatpush1.bf16.msra.mxu0 %v7026
    %7049 = vmatprep.subr.bf16.mxu0 0
    %7050 = vmatpush1.bf16.msra.mxu0 %v7027
    %7051 = vmatprep.subr.bf16.mxu0 0
    %7052 = vmatpush1.bf16.msra.mxu0 %v7028
    %7053 = vmatprep.subr.bf16.mxu0 0
    %7054 = vmatpush1.bf16.msra.mxu0 0
    %7055 = vmatprep.subr.bf16.mxu0 0
    %7056 = vmatpush1.bf16.msra.mxu0 0
    %7057 = vmatprep.subr.bf16.mxu0 0
    %7058 = vmatpush1.bf16.msra.mxu0 0
    %7059 = vmatprep.subr.bf16.mxu0 0
    %7060 = vmatpush1.bf16.msra.mxu0 0
    %7061 = vmatprep.subr.bf16.mxu0 0
    %7062 = vmatpush1.bf16.msra.mxu0 0
    %7063 = vmatprep.subr.bf16.mxu0 0
    %7064 = vmatpush1.bf16.msra.mxu0 0
    %7065 = vmatprep.subr.bf16.mxu0 0
    %7066 = vmatpush1.bf16.msra.mxu0 0
    %7067 = vmatprep.subr.bf16.mxu0 0
    %7068 = vmatpush1.bf16.msra.mxu0 0
    %7069 = vmatprep.mubr.bf16.mxu0 0
    %7070 = vmatmul.mubr.bf16.gmra.mrb[0].mxu0 %v6980
    %v7071 = vpop.f32.mrb[0].mxu0
    %v7072 = vadd.f32 %v6987, %v7071
    %v7073 = vpop.f32.mrb[0].mxu0
    %v7074 = vpop.f32.mrb[0].mxu0
    %v7075 = vpop.f32.mrb[0].mxu0
    %7076 = vdwg.mxu0
    %s7077 = sld [smem:[#allocation2 + $0x14]]
    %vm7078 = vcmp.gt.f32.partialorder %v7072, 0.0
    %v7079 = vstv %s7077
    %v7080 = vmul.f32 %v7079, %v7072
    %v7081 = vsel %vm7078, %v7072, %v7080
    %s7082 = scalar_lea.vmem [#allocation15], 576
    %v7083 = vld [vmem:[%s7082] sm:$0xf]
    %v7084 = vld [vmem:[%s7082 + $0x4] sm:$0xf]
    %v7085 = vld [vmem:[%s7082 + $0x8] sm:$0xf]
    %v7086 = vld [vmem:[%s7082 + $0xc] sm:$0xf]
    %v7087 = vld [vmem:[%s7082 + $0x10] sm:$0xf]
    %v7088 = vld [vmem:[%s7082 + $0x14] sm:$0xf]
    %v7089 = vld [vmem:[%s7082 + $0x18] sm:$0xf]
    %v7090 = vld [vmem:[%s7082 + $0x1c] sm:$0xf]
    %v7091 = vld [vmem:[%s7082 + $0x20] sm:$0xf]
    %v7092 = vld [vmem:[%s7082 + $0x24] sm:$0xf]
    %v7093 = vld [vmem:[%s7082 + $0x28] sm:$0xf]
    %v7094 = vld [vmem:[%s7082 + $0x2c] sm:$0xf]
    %v7095 = vld [vmem:[%s7082 + $0x30] sm:$0xf]
    %v7096 = vld [vmem:[%s7082 + $0x34] sm:$0xf]
    %v7097 = vld [vmem:[%s7082 + $0x38] sm:$0xf]
    %v7098 = vld [vmem:[%s7082 + $0x3c] sm:$0xf]
    %v7099 = vpack.c.bf16 %v7081, %v7081
    %s7100 = scalar_lea.vmem [#allocation17], 9
    %v7101 = vld [vmem:[%s7100] sm:$0x1]
    %v7103 = vlaneseq
    %v7104 = vshrl.u32 %v7103, 7
    %v7105 = vsub.s32 0, %v7104
    %v7106 = vrot.slane %v7101, %v7105
    %v7124 = vunpack.c.l.b16 %v7083
    %v7125 = vunpack.c.l.b16 %v7084
    %v7126 = vunpack.c.l.b16 %v7085
    %v7127 = vunpack.c.l.b16 %v7086
    %v7128 = vunpack.c.l.b16 %v7087
    %v7129 = vunpack.c.l.b16 %v7088
    %v7130 = vunpack.c.l.b16 %v7089
    %v7131 = vunpack.c.l.b16 %v7090
    %v7132 = vunpack.c.l.b16 %v7091
    %v7133 = vunpack.c.l.b16 %v7092
    %v7134 = vunpack.c.l.b16 %v7093
    %v7135 = vunpack.c.l.b16 %v7094
    %v7136 = vunpack.c.l.b16 %v7095
    %v7137 = vunpack.c.l.b16 %v7096
    %v7138 = vunpack.c.l.b16 %v7097
    %v7139 = vunpack.c.l.b16 %v7098
    %v7140 = vpack.c.b16 %v7125, %v7124
    %v7141 = vpack.c.b16 %v7127, %v7126
    %v7142 = vpack.c.b16 %v7129, %v7128
    %v7143 = vpack.c.b16 %v7131, %v7130
    %v7144 = vpack.c.b16 %v7133, %v7132
    %v7145 = vpack.c.b16 %v7135, %v7134
    %v7146 = vpack.c.b16 %v7137, %v7136
    %v7147 = vpack.c.b16 %v7139, %v7138
    %7156 = vmatprep.subr.bf16.mxu0 0
    %7157 = vmatpush1.bf16.msra.mxu0 %v7140
    %7158 = vmatprep.subr.bf16.mxu0 0
    %7159 = vmatpush1.bf16.msra.mxu0 %v7141
    %7160 = vmatprep.subr.bf16.mxu0 0
    %7161 = vmatpush1.bf16.msra.mxu0 %v7142
    %7162 = vmatprep.subr.bf16.mxu0 0
    %7163 = vmatpush1.bf16.msra.mxu0 %v7143
    %7164 = vmatprep.subr.bf16.mxu0 0
    %7165 = vmatpush1.bf16.msra.mxu0 %v7144
    %7166 = vmatprep.subr.bf16.mxu0 0
    %7167 = vmatpush1.bf16.msra.mxu0 %v7145
    %7168 = vmatprep.subr.bf16.mxu0 0
    %7169 = vmatpush1.bf16.msra.mxu0 %v7146
    %7170 = vmatprep.subr.bf16.mxu0 0
    %7171 = vmatpush1.bf16.msra.mxu0 %v7147
    %7172 = vmatprep.subr.bf16.mxu0 0
    %7173 = vmatpush1.bf16.msra.mxu0 0
    %7174 = vmatprep.subr.bf16.mxu0 0
    %7175 = vmatpush1.bf16.msra.mxu0 0
    %7176 = vmatprep.subr.bf16.mxu0 0
    %7177 = vmatpush1.bf16.msra.mxu0 0
    %7178 = vmatprep.subr.bf16.mxu0 0
    %7179 = vmatpush1.bf16.msra.mxu0 0
    %7180 = vmatprep.subr.bf16.mxu0 0
    %7181 = vmatpush1.bf16.msra.mxu0 0
    %7182 = vmatprep.subr.bf16.mxu0 0
    %7183 = vmatpush1.bf16.msra.mxu0 0
    %7184 = vmatprep.subr.bf16.mxu0 0
    %7185 = vmatpush1.bf16.msra.mxu0 0
    %7186 = vmatprep.subr.bf16.mxu0 0
    %7187 = vmatpush1.bf16.msra.mxu0 0
    %7188 = vmatprep.mubr.bf16.mxu0 0
    %7189 = vmatmul.mubr.bf16.gmra.mrb[0].mxu0 %v7099
    %v7190 = vpop.f32.mrb[0].mxu0
    %v7191 = vadd.f32 %v7106, %v7190
    %v7192 = vpop.f32.mrb[0].mxu0
    %v7193 = vpop.f32.mrb[0].mxu0
    %v7194 = vpop.f32.mrb[0].mxu0
    %7195 = vdwg.mxu0
    %s7196 = sld [smem:[#allocation2 + $0x15]]
    %vm7197 = vcmp.gt.f32.partialorder %v7191, 0.0
    %v7198 = vstv %s7196
    %v7199 = vmul.f32 %v7198, %v7191
    %v7200 = vsel %vm7197, %v7191, %v7199
    %s7201 = sld [smem:[#allocation2 + $0x16]]
    %v7202 = vstv %s7201
    %v7203 = vmul.f32 %v7202, %v6353
    %v7204 = vadd.f32 %v6189, %v7203
    %v7205 = vld [vmem:[#allocation14 + $0x3] sm:$0x1]
    %v7207 = vlaneseq
    %v7208 = vshrl.u32 %v7207, 7
    %v7209 = vsub.s32 0, %v7208
    %v7210 = vrot.slane %v7205, %v7209
    %v7212 = vadd.f32 %v7204, %v7210
    %s7213 = sld [smem:[#allocation2 + $0x17]]
    %vm7214 = vcmp.gt.f32.partialorder %v7212, 0.0
    %v7215 = vstv %s7213
    %v7216 = vmul.f32 %v7215, %v7212
    %v7217 = vsel %vm7214, %v7212, %v7216
    %s7218 = scalar_lea.vmem [#allocation15], 192
    %v7219 = vld [vmem:[%s7218] sm:$0xf]
    %v7220 = vld [vmem:[%s7218 + $0x4] sm:$0xf]
    %v7221 = vld [vmem:[%s7218 + $0x8] sm:$0xf]
    %v7222 = vld [vmem:[%s7218 + $0xc] sm:$0xf]
    %v7223 = vld [vmem:[%s7218 + $0x10] sm:$0xf]
    %v7224 = vld [vmem:[%s7218 + $0x14] sm:$0xf]
    %v7225 = vld [vmem:[%s7218 + $0x18] sm:$0xf]
    %v7226 = vld [vmem:[%s7218 + $0x1c] sm:$0xf]
    %v7227 = vld [vmem:[%s7218 + $0x20] sm:$0xf]
    %v7228 = vld [vmem:[%s7218 + $0x24] sm:$0xf]
    %v7229 = vld [vmem:[%s7218 + $0x28] sm:$0xf]
    %v7230 = vld [vmem:[%s7218 + $0x2c] sm:$0xf]
    %v7231 = vld [vmem:[%s7218 + $0x30] sm:$0xf]
    %v7232 = vld [vmem:[%s7218 + $0x34] sm:$0xf]
    %v7233 = vld [vmem:[%s7218 + $0x38] sm:$0xf]
    %v7234 = vld [vmem:[%s7218 + $0x3c] sm:$0xf]
    %v7235 = vpack.c.bf16 %v7217, %v7217
    %s7236 = scalar_lea.vmem [#allocation17], 3
    %v7237 = vld [vmem:[%s7236] sm:$0x1]
    %v7239 = vlaneseq
    %v7240 = vshrl.u32 %v7239, 7
    %v7241 = vsub.s32 0, %v7240
    %v7242 = vrot.slane %v7237, %v7241
    %v7260 = vunpack.c.l.b16 %v7219
    %v7261 = vunpack.c.l.b16 %v7220
    %v7262 = vunpack.c.l.b16 %v7221
    %v7263 = vunpack.c.l.b16 %v7222
    %v7264 = vunpack.c.l.b16 %v7223
    %v7265 = vunpack.c.l.b16 %v7224
    %v7266 = vunpack.c.l.b16 %v7225
    %v7267 = vunpack.c.l.b16 %v7226
    %v7268 = vunpack.c.l.b16 %v7227
    %v7269 = vunpack.c.l.b16 %v7228
    %v7270 = vunpack.c.l.b16 %v7229
    %v7271 = vunpack.c.l.b16 %v7230
    %v7272 = vunpack.c.l.b16 %v7231
    %v7273 = vunpack.c.l.b16 %v7232
    %v7274 = vunpack.c.l.b16 %v7233
    %v7275 = vunpack.c.l.b16 %v7234
    %v7276 = vpack.c.b16 %v7261, %v7260
    %v7277 = vpack.c.b16 %v7263, %v7262
    %v7278 = vpack.c.b16 %v7265, %v7264
    %v7279 = vpack.c.b16 %v7267, %v7266
    %v7280 = vpack.c.b16 %v7269, %v7268
    %v7281 = vpack.c.b16 %v7271, %v7270
    %v7282 = vpack.c.b16 %v7273, %v7272
    %v7283 = vpack.c.b16 %v7275, %v7274
    %7292 = vmatprep.subr.bf16.mxu0 0
    %7293 = vmatpush1.bf16.msra.mxu0 %v7276
    %7294 = vmatprep.subr.bf16.mxu0 0
    %7295 = vmatpush1.bf16.msra.mxu0 %v7277
    %7296 = vmatprep.subr.bf16.mxu0 0
    %7297 = vmatpush1.bf16.msra.mxu0 %v7278
    %7298 = vmatprep.subr.bf16.mxu0 0
    %7299 = vmatpush1.bf16.msra.mxu0 %v7279
    %7300 = vmatprep.subr.bf16.mxu0 0
    %7301 = vmatpush1.bf16.msra.mxu0 %v7280
    %7302 = vmatprep.subr.bf16.mxu0 0
    %7303 = vmatpush1.bf16.msra.mxu0 %v7281
    %7304 = vmatprep.subr.bf16.mxu0 0
    %7305 = vmatpush1.bf16.msra.mxu0 %v7282
    %7306 = vmatprep.subr.bf16.mxu0 0
    %7307 = vmatpush1.bf16.msra.mxu0 %v7283
    %7308 = vmatprep.subr.bf16.mxu0 0
    %7309 = vmatpush1.bf16.msra.mxu0 0
    %7310 = vmatprep.subr.bf16.mxu0 0
    %7311 = vmatpush1.bf16.msra.mxu0 0
    %7312 = vmatprep.subr.bf16.mxu0 0
    %7313 = vmatpush1.bf16.msra.mxu0 0
    %7314 = vmatprep.subr.bf16.mxu0 0
    %7315 = vmatpush1.bf16.msra.mxu0 0
    %7316 = vmatprep.subr.bf16.mxu0 0
    %7317 = vmatpush1.bf16.msra.mxu0 0
    %7318 = vmatprep.subr.bf16.mxu0 0
    %7319 = vmatpush1.bf16.msra.mxu0 0
    %7320 = vmatprep.subr.bf16.mxu0 0
    %7321 = vmatpush1.bf16.msra.mxu0 0
    %7322 = vmatprep.subr.bf16.mxu0 0
    %7323 = vmatpush1.bf16.msra.mxu0 0
    %7324 = vmatprep.mubr.bf16.mxu0 0
    %7325 = vmatmul.mubr.bf16.gmra.mrb[0].mxu0 %v7235
    %v7326 = vpop.f32.mrb[0].mxu0
    %v7327 = vadd.f32 %v7242, %v7326
    %v7328 = vpop.f32.mrb[0].mxu0
    %v7329 = vpop.f32.mrb[0].mxu0
    %v7330 = vpop.f32.mrb[0].mxu0
    %7331 = vdwg.mxu0
    %s7332 = sld [smem:[#allocation2 + $0x18]]
    %vm7333 = vcmp.gt.f32.partialorder %v7327, 0.0
    %v7334 = vstv %s7332
    %v7335 = vmul.f32 %v7334, %v7327
    %v7336 = vsel %vm7333, %v7327, %v7335
    %s7337 = scalar_lea.vmem [#allocation15], 640
    %v7338 = vld [vmem:[%s7337] sm:$0xf]
    %v7339 = vld [vmem:[%s7337 + $0x4] sm:$0xf]
    %v7340 = vld [vmem:[%s7337 + $0x8] sm:$0xf]
    %v7341 = vld [vmem:[%s7337 + $0xc] sm:$0xf]
    %v7342 = vld [vmem:[%s7337 + $0x10] sm:$0xf]
    %v7343 = vld [vmem:[%s7337 + $0x14] sm:$0xf]
    %v7344 = vld [vmem:[%s7337 + $0x18] sm:$0xf]
    %v7345 = vld [vmem:[%s7337 + $0x1c] sm:$0xf]
    %v7346 = vld [vmem:[%s7337 + $0x20] sm:$0xf]
    %v7347 = vld [vmem:[%s7337 + $0x24] sm:$0xf]
    %v7348 = vld [vmem:[%s7337 + $0x28] sm:$0xf]
    %v7349 = vld [vmem:[%s7337 + $0x2c] sm:$0xf]
    %v7350 = vld [vmem:[%s7337 + $0x30] sm:$0xf]
    %v7351 = vld [vmem:[%s7337 + $0x34] sm:$0xf]
    %v7352 = vld [vmem:[%s7337 + $0x38] sm:$0xf]
    %v7353 = vld [vmem:[%s7337 + $0x3c] sm:$0xf]
    %v7354 = vpack.c.bf16 %v7336, %v7336
    %s7355 = scalar_lea.vmem [#allocation17], 10
    %v7356 = vld [vmem:[%s7355] sm:$0x1]
    %v7358 = vlaneseq
    %v7359 = vshrl.u32 %v7358, 7
    %v7360 = vsub.s32 0, %v7359
    %v7361 = vrot.slane %v7356, %v7360
    %v7379 = vunpack.c.l.b16 %v7338
    %v7380 = vunpack.c.l.b16 %v7339
    %v7381 = vunpack.c.l.b16 %v7340
    %v7382 = vunpack.c.l.b16 %v7341
    %v7383 = vunpack.c.l.b16 %v7342
    %v7384 = vunpack.c.l.b16 %v7343
    %v7385 = vunpack.c.l.b16 %v7344
    %v7386 = vunpack.c.l.b16 %v7345
    %v7387 = vunpack.c.l.b16 %v7346
    %v7388 = vunpack.c.l.b16 %v7347
    %v7389 = vunpack.c.l.b16 %v7348
    %v7390 = vunpack.c.l.b16 %v7349
    %v7391 = vunpack.c.l.b16 %v7350
    %v7392 = vunpack.c.l.b16 %v7351
    %v7393 = vunpack.c.l.b16 %v7352
    %v7394 = vunpack.c.l.b16 %v7353
    %v7395 = vpack.c.b16 %v7380, %v7379
    %v7396 = vpack.c.b16 %v7382, %v7381
    %v7397 = vpack.c.b16 %v7384, %v7383
    %v7398 = vpack.c.b16 %v7386, %v7385
    %v7399 = vpack.c.b16 %v7388, %v7387
    %v7400 = vpack.c.b16 %v7390, %v7389
    %v7401 = vpack.c.b16 %v7392, %v7391
    %v7402 = vpack.c.b16 %v7394, %v7393
    %7411 = vmatprep.subr.bf16.mxu0 0
    %7412 = vmatpush1.bf16.msra.mxu0 %v7395
    %7413 = vmatprep.subr.bf16.mxu0 0
    %7414 = vmatpush1.bf16.msra.mxu0 %v7396
    %7415 = vmatprep.subr.bf16.mxu0 0
    %7416 = vmatpush1.bf16.msra.mxu0 %v7397
    %7417 = vmatprep.subr.bf16.mxu0 0
    %7418 = vmatpush1.bf16.msra.mxu0 %v7398
    %7419 = vmatprep.subr.bf16.mxu0 0
    %7420 = vmatpush1.bf16.msra.mxu0 %v7399
    %7421 = vmatprep.subr.bf16.mxu0 0
    %7422 = vmatpush1.bf16.msra.mxu0 %v7400
    %7423 = vmatprep.subr.bf16.mxu0 0
    %7424 = vmatpush1.bf16.msra.mxu0 %v7401
    %7425 = vmatprep.subr.bf16.mxu0 0
    %7426 = vmatpush1.bf16.msra.mxu0 %v7402
    %7427 = vmatprep.subr.bf16.mxu0 0
    %7428 = vmatpush1.bf16.msra.mxu0 0
    %7429 = vmatprep.subr.bf16.mxu0 0
    %7430 = vmatpush1.bf16.msra.mxu0 0
    %7431 = vmatprep.subr.bf16.mxu0 0
    %7432 = vmatpush1.bf16.msra.mxu0 0
    %7433 = vmatprep.subr.bf16.mxu0 0
    %7434 = vmatpush1.bf16.msra.mxu0 0
    %7435 = vmatprep.subr.bf16.mxu0 0
    %7436 = vmatpush1.bf16.msra.mxu0 0
    %7437 = vmatprep.subr.bf16.mxu0 0
    %7438 = vmatpush1.bf16.msra.mxu0 0
    %7439 = vmatprep.subr.bf16.mxu0 0
    %7440 = vmatpush1.bf16.msra.mxu0 0
    %7441 = vmatprep.subr.bf16.mxu0 0
    %7442 = vmatpush1.bf16.msra.mxu0 0
    %7443 = vmatprep.mubr.bf16.mxu0 0
    %7444 = vmatmul.mubr.bf16.gmra.mrb[0].mxu0 %v7354
    %v7445 = vpop.f32.mrb[0].mxu0
    %v7446 = vadd.f32 %v7361, %v7445
    %v7447 = vpop.f32.mrb[0].mxu0
    %v7448 = vpop.f32.mrb[0].mxu0
    %v7449 = vpop.f32.mrb[0].mxu0
    %7450 = vdwg.mxu0
    %s7451 = sld [smem:[#allocation2 + $0x19]]
    %vm7452 = vcmp.gt.f32.partialorder %v7446, 0.0
    %v7453 = vstv %s7451
    %v7454 = vmul.f32 %v7453, %v7446
    %v7455 = vsel %vm7452, %v7446, %v7454
    %s7456 = sld [smem:[#allocation2 + $0x1a]]
    %v7457 = vstv %s7456
    %v7458 = vmul.f32 %v7457, %v6392
    %v7459 = vadd.f32 %v6228, %v7458
    %v7460 = vld [vmem:[#allocation14 + $0x4] sm:$0x1]
    %v7462 = vlaneseq
    %v7463 = vshrl.u32 %v7462, 7
    %v7464 = vsub.s32 0, %v7463
    %v7465 = vrot.slane %v7460, %v7464
    %v7467 = vadd.f32 %v7459, %v7465
    %s7468 = sld [smem:[#allocation2 + $0x1b]]
    %vm7469 = vcmp.gt.f32.partialorder %v7467, 0.0
    %v7470 = vstv %s7468
    %v7471 = vmul.f32 %v7470, %v7467
    %v7472 = vsel %vm7469, %v7467, %v7471
    %s7473 = scalar_lea.vmem [#allocation15], 256
    %v7474 = vld [vmem:[%s7473] sm:$0xf]
    %v7475 = vld [vmem:[%s7473 + $0x4] sm:$0xf]
    %v7476 = vld [vmem:[%s7473 + $0x8] sm:$0xf]
    %v7477 = vld [vmem:[%s7473 + $0xc] sm:$0xf]
    %v7478 = vld [vmem:[%s7473 + $0x10] sm:$0xf]
    %v7479 = vld [vmem:[%s7473 + $0x14] sm:$0xf]
    %v7480 = vld [vmem:[%s7473 + $0x18] sm:$0xf]
    %v7481 = vld [vmem:[%s7473 + $0x1c] sm:$0xf]
    %v7482 = vld [vmem:[%s7473 + $0x20] sm:$0xf]
    %v7483 = vld [vmem:[%s7473 + $0x24] sm:$0xf]
    %v7484 = vld [vmem:[%s7473 + $0x28] sm:$0xf]
    %v7485 = vld [vmem:[%s7473 + $0x2c] sm:$0xf]
    %v7486 = vld [vmem:[%s7473 + $0x30] sm:$0xf]
    %v7487 = vld [vmem:[%s7473 + $0x34] sm:$0xf]
    %v7488 = vld [vmem:[%s7473 + $0x38] sm:$0xf]
    %v7489 = vld [vmem:[%s7473 + $0x3c] sm:$0xf]
    %v7490 = vpack.c.bf16 %v7472, %v7472
    %s7491 = scalar_lea.vmem [#allocation17], 4
    %v7492 = vld [vmem:[%s7491] sm:$0x1]
    %v7494 = vlaneseq
    %v7495 = vshrl.u32 %v7494, 7
    %v7496 = vsub.s32 0, %v7495
    %v7497 = vrot.slane %v7492, %v7496
    %v7515 = vunpack.c.l.b16 %v7474
    %v7516 = vunpack.c.l.b16 %v7475
    %v7517 = vunpack.c.l.b16 %v7476
    %v7518 = vunpack.c.l.b16 %v7477
    %v7519 = vunpack.c.l.b16 %v7478
    %v7520 = vunpack.c.l.b16 %v7479
    %v7521 = vunpack.c.l.b16 %v7480
    %v7522 = vunpack.c.l.b16 %v7481
    %v7523 = vunpack.c.l.b16 %v7482
    %v7524 = vunpack.c.l.b16 %v7483
    %v7525 = vunpack.c.l.b16 %v7484
    %v7526 = vunpack.c.l.b16 %v7485
    %v7527 = vunpack.c.l.b16 %v7486
    %v7528 = vunpack.c.l.b16 %v7487
    %v7529 = vunpack.c.l.b16 %v7488
    %v7530 = vunpack.c.l.b16 %v7489
    %v7531 = vpack.c.b16 %v7516, %v7515
    %v7532 = vpack.c.b16 %v7518, %v7517
    %v7533 = vpack.c.b16 %v7520, %v7519
    %v7534 = vpack.c.b16 %v7522, %v7521
    %v7535 = vpack.c.b16 %v7524, %v7523
    %v7536 = vpack.c.b16 %v7526, %v7525
    %v7537 = vpack.c.b16 %v7528, %v7527
    %v7538 = vpack.c.b16 %v7530, %v7529
    %7547 = vmatprep.subr.bf16.mxu0 0
    %7548 = vmatpush1.bf16.msra.mxu0 %v7531
    %7549 = vmatprep.subr.bf16.mxu0 0
    %7550 = vmatpush1.bf16.msra.mxu0 %v7532
    %7551 = vmatprep.subr.bf16.mxu0 0
    %7552 = vmatpush1.bf16.msra.mxu0 %v7533
    %7553 = vmatprep.subr.bf16.mxu0 0
    %7554 = vmatpush1.bf16.msra.mxu0 %v7534
    %7555 = vmatprep.subr.bf16.mxu0 0
    %7556 = vmatpush1.bf16.msra.mxu0 %v7535
    %7557 = vmatprep.subr.bf16.mxu0 0
    %7558 = vmatpush1.bf16.msra.mxu0 %v7536
    %7559 = vmatprep.subr.bf16.mxu0 0
    %7560 = vmatpush1.bf16.msra.mxu0 %v7537
    %7561 = vmatprep.subr.bf16.mxu0 0
    %7562 = vmatpush1.bf16.msra.mxu0 %v7538
    %7563 = vmatprep.subr.bf16.mxu0 0
    %7564 = vmatpush1.bf16.msra.mxu0 0
    %7565 = vmatprep.subr.bf16.mxu0 0
    %7566 = vmatpush1.bf16.msra.mxu0 0
    %7567 = vmatprep.subr.bf16.mxu0 0
    %7568 = vmatpush1.bf16.msra.mxu0 0
    %7569 = vmatprep.subr.bf16.mxu0 0
    %7570 = vmatpush1.bf16.msra.mxu0 0
    %7571 = vmatprep.subr.bf16.mxu0 0
    %7572 = vmatpush1.bf16.msra.mxu0 0
    %7573 = vmatprep.subr.bf16.mxu0 0
    %7574 = vmatpush1.bf16.msra.mxu0 0
    %7575 = vmatprep.subr.bf16.mxu0 0
    %7576 = vmatpush1.bf16.msra.mxu0 0
    %7577 = vmatprep.subr.bf16.mxu0 0
    %7578 = vmatpush1.bf16.msra.mxu0 0
    %7579 = vmatprep.mubr.bf16.mxu0 0
    %7580 = vmatmul.mubr.bf16.gmra.mrb[0].mxu0 %v7490
    %v7581 = vpop.f32.mrb[0].mxu0
    %v7582 = vadd.f32 %v7497, %v7581
    %v7583 = vpop.f32.mrb[0].mxu0
    %v7584 = vpop.f32.mrb[0].mxu0
    %v7585 = vpop.f32.mrb[0].mxu0
    %7586 = vdwg.mxu0
    %s7587 = sld [smem:[#allocation2 + $0x1c]]
    %vm7588 = vcmp.gt.f32.partialorder %v7582, 0.0
    %v7589 = vstv %s7587
    %v7590 = vmul.f32 %v7589, %v7582
    %v7591 = vsel %vm7588, %v7582, %v7590
    %s7592 = scalar_lea.vmem [#allocation15], 704
    %v7593 = vld [vmem:[%s7592] sm:$0xf]
    %v7594 = vld [vmem:[%s7592 + $0x4] sm:$0xf]
    %v7595 = vld [vmem:[%s7592 + $0x8] sm:$0xf]
    %v7596 = vld [vmem:[%s7592 + $0xc] sm:$0xf]
    %v7597 = vld [vmem:[%s7592 + $0x10] sm:$0xf]
    %v7598 = vld [vmem:[%s7592 + $0x14] sm:$0xf]
    %v7599 = vld [vmem:[%s7592 + $0x18] sm:$0xf]
    %v7600 = vld [vmem:[%s7592 + $0x1c] sm:$0xf]
    %v7601 = vld [vmem:[%s7592 + $0x20] sm:$0xf]
    %v7602 = vld [vmem:[%s7592 + $0x24] sm:$0xf]
    %v7603 = vld [vmem:[%s7592 + $0x28] sm:$0xf]
    %v7604 = vld [vmem:[%s7592 + $0x2c] sm:$0xf]
    %v7605 = vld [vmem:[%s7592 + $0x30] sm:$0xf]
    %v7606 = vld [vmem:[%s7592 + $0x34] sm:$0xf]
    %v7607 = vld [vmem:[%s7592 + $0x38] sm:$0xf]
    %v7608 = vld [vmem:[%s7592 + $0x3c] sm:$0xf]
    %v7609 = vpack.c.bf16 %v7591, %v7591
    %s7610 = scalar_lea.vmem [#allocation17], 11
    %v7611 = vld [vmem:[%s7610] sm:$0x1]
    %v7613 = vlaneseq
    %v7614 = vshrl.u32 %v7613, 7
    %v7615 = vsub.s32 0, %v7614
    %v7616 = vrot.slane %v7611, %v7615
    %v7634 = vunpack.c.l.b16 %v7593
    %v7635 = vunpack.c.l.b16 %v7594
    %v7636 = vunpack.c.l.b16 %v7595
    %v7637 = vunpack.c.l.b16 %v7596
    %v7638 = vunpack.c.l.b16 %v7597
    %v7639 = vunpack.c.l.b16 %v7598
    %v7640 = vunpack.c.l.b16 %v7599
    %v7641 = vunpack.c.l.b16 %v7600
    %v7642 = vunpack.c.l.b16 %v7601
    %v7643 = vunpack.c.l.b16 %v7602
    %v7644 = vunpack.c.l.b16 %v7603
    %v7645 = vunpack.c.l.b16 %v7604
    %v7646 = vunpack.c.l.b16 %v7605
    %v7647 = vunpack.c.l.b16 %v7606
    %v7648 = vunpack.c.l.b16 %v7607
    %v7649 = vunpack.c.l.b16 %v7608
    %v7650 = vpack.c.b16 %v7635, %v7634
    %v7651 = vpack.c.b16 %v7637, %v7636
    %v7652 = vpack.c.b16 %v7639, %v7638
    %v7653 = vpack.c.b16 %v7641, %v7640
    %v7654 = vpack.c.b16 %v7643, %v7642
    %v7655 = vpack.c.b16 %v7645, %v7644
    %v7656 = vpack.c.b16 %v7647, %v7646
    %v7657 = vpack.c.b16 %v7649, %v7648
    %7666 = vmatprep.subr.bf16.mxu0 0
    %7667 = vmatpush1.bf16.msra.mxu0 %v7650
    %7668 = vmatprep.subr.bf16.mxu0 0
    %7669 = vmatpush1.bf16.msra.mxu0 %v7651
    %7670 = vmatprep.subr.bf16.mxu0 0
    %7671 = vmatpush1.bf16.msra.mxu0 %v7652
    %7672 = vmatprep.subr.bf16.mxu0 0
    %7673 = vmatpush1.bf16.msra.mxu0 %v7653
    %7674 = vmatprep.subr.bf16.mxu0 0
    %7675 = vmatpush1.bf16.msra.mxu0 %v7654
    %7676 = vmatprep.subr.bf16.mxu0 0
    %7677 = vmatpush1.bf16.msra.mxu0 %v7655
    %7678 = vmatprep.subr.bf16.mxu0 0
    %7679 = vmatpush1.bf16.msra.mxu0 %v7656
    %7680 = vmatprep.subr.bf16.mxu0 0
    %7681 = vmatpush1.bf16.msra.mxu0 %v7657
    %7682 = vmatprep.subr.bf16.mxu0 0
    %7683 = vmatpush1.bf16.msra.mxu0 0
    %7684 = vmatprep.subr.bf16.mxu0 0
    %7685 = vmatpush1.bf16.msra.mxu0 0
    %7686 = vmatprep.subr.bf16.mxu0 0
    %7687 = vmatpush1.bf16.msra.mxu0 0
    %7688 = vmatprep.subr.bf16.mxu0 0
    %7689 = vmatpush1.bf16.msra.mxu0 0
    %7690 = vmatprep.subr.bf16.mxu0 0
    %7691 = vmatpush1.bf16.msra.mxu0 0
    %7692 = vmatprep.subr.bf16.mxu0 0
    %7693 = vmatpush1.bf16.msra.mxu0 0
    %7694 = vmatprep.subr.bf16.mxu0 0
    %7695 = vmatpush1.bf16.msra.mxu0 0
    %7696 = vmatprep.subr.bf16.mxu0 0
    %7697 = vmatpush1.bf16.msra.mxu0 0
    %7698 = vmatprep.mubr.bf16.mxu0 0
    %7699 = vmatmul.mubr.bf16.gmra.mrb[0].mxu0 %v7609
    %v7700 = vpop.f32.mrb[0].mxu0
    %v7701 = vadd.f32 %v7616, %v7700
    %v7702 = vpop.f32.mrb[0].mxu0
    %v7703 = vpop.f32.mrb[0].mxu0
    %v7704 = vpop.f32.mrb[0].mxu0
    %7705 = vdwg.mxu0
    %s7706 = sld [smem:[#allocation2 + $0x1d]]
    %vm7707 = vcmp.gt.f32.partialorder %v7701, 0.0
    %v7708 = vstv %s7706
    %v7709 = vmul.f32 %v7708, %v7701
    %v7710 = vsel %vm7707, %v7701, %v7709
    %s7711 = sld [smem:[#allocation2 + $0x1e]]
    %v7712 = vstv %s7711
    %v7713 = vmul.f32 %v7712, %v6394
    %v7714 = vadd.f32 %v6230, %v7713
    %v7715 = vld [vmem:[#allocation14 + $0x5] sm:$0x1]
    %v7717 = vlaneseq
    %v7718 = vshrl.u32 %v7717, 7
    %v7719 = vsub.s32 0, %v7718
    %v7720 = vrot.slane %v7715, %v7719
    %v7722 = vadd.f32 %v7714, %v7720
    %s7723 = sld [smem:[#allocation2 + $0x1f]]
    %vm7724 = vcmp.gt.f32.partialorder %v7722, 0.0
    %v7725 = vstv %s7723
    %v7726 = vmul.f32 %v7725, %v7722
    %v7727 = vsel %vm7724, %v7722, %v7726
    %s7728 = scalar_lea.vmem [#allocation15], 320
    %v7729 = vld [vmem:[%s7728] sm:$0xf]
    %v7730 = vld [vmem:[%s7728 + $0x4] sm:$0xf]
    %v7731 = vld [vmem:[%s7728 + $0x8] sm:$0xf]
    %v7732 = vld [vmem:[%s7728 + $0xc] sm:$0xf]
    %v7733 = vld [vmem:[%s7728 + $0x10] sm:$0xf]
    %v7734 = vld [vmem:[%s7728 + $0x14] sm:$0xf]
    %v7735 = vld [vmem:[%s7728 + $0x18] sm:$0xf]
    %v7736 = vld [vmem:[%s7728 + $0x1c] sm:$0xf]
    %v7737 = vld [vmem:[%s7728 + $0x20] sm:$0xf]
    %v7738 = vld [vmem:[%s7728 + $0x24] sm:$0xf]
    %v7739 = vld [vmem:[%s7728 + $0x28] sm:$0xf]
    %v7740 = vld [vmem:[%s7728 + $0x2c] sm:$0xf]
    %v7741 = vld [vmem:[%s7728 + $0x30] sm:$0xf]
    %v7742 = vld [vmem:[%s7728 + $0x34] sm:$0xf]
    %v7743 = vld [vmem:[%s7728 + $0x38] sm:$0xf]
    %v7744 = vld [vmem:[%s7728 + $0x3c] sm:$0xf]
    %v7745 = vpack.c.bf16 %v7727, %v7727
    %s7746 = scalar_lea.vmem [#allocation17], 5
    %v7747 = vld [vmem:[%s7746] sm:$0x1]
    %v7749 = vlaneseq
    %v7750 = vshrl.u32 %v7749, 7
    %v7751 = vsub.s32 0, %v7750
    %v7752 = vrot.slane %v7747, %v7751
    %v7770 = vunpack.c.l.b16 %v7729
    %v7771 = vunpack.c.l.b16 %v7730
    %v7772 = vunpack.c.l.b16 %v7731
    %v7773 = vunpack.c.l.b16 %v7732
    %v7774 = vunpack.c.l.b16 %v7733
    %v7775 = vunpack.c.l.b16 %v7734
    %v7776 = vunpack.c.l.b16 %v7735
    %v7777 = vunpack.c.l.b16 %v7736
    %v7778 = vunpack.c.l.b16 %v7737
    %v7779 = vunpack.c.l.b16 %v7738
    %v7780 = vunpack.c.l.b16 %v7739
    %v7781 = vunpack.c.l.b16 %v7740
    %v7782 = vunpack.c.l.b16 %v7741
    %v7783 = vunpack.c.l.b16 %v7742
    %v7784 = vunpack.c.l.b16 %v7743
    %v7785 = vunpack.c.l.b16 %v7744
    %v7786 = vpack.c.b16 %v7771, %v7770
    %v7787 = vpack.c.b16 %v7773, %v7772
    %v7788 = vpack.c.b16 %v7775, %v7774
    %v7789 = vpack.c.b16 %v7777, %v7776
    %v7790 = vpack.c.b16 %v7779, %v7778
    %v7791 = vpack.c.b16 %v7781, %v7780
    %v7792 = vpack.c.b16 %v7783, %v7782
    %v7793 = vpack.c.b16 %v7785, %v7784
    %7802 = vmatprep.subr.bf16.mxu0 0
    %7803 = vmatpush1.bf16.msra.mxu0 %v7786
    %7804 = vmatprep.subr.bf16.mxu0 0
    %7805 = vmatpush1.bf16.msra.mxu0 %v7787
    %7806 = vmatprep.subr.bf16.mxu0 0
    %7807 = vmatpush1.bf16.msra.mxu0 %v7788
    %7808 = vmatprep.subr.bf16.mxu0 0
    %7809 = vmatpush1.bf16.msra.mxu0 %v7789
    %7810 = vmatprep.subr.bf16.mxu0 0
    %7811 = vmatpush1.bf16.msra.mxu0 %v7790
    %7812 = vmatprep.subr.bf16.mxu0 0
    %7813 = vmatpush1.bf16.msra.mxu0 %v7791
    %7814 = vmatprep.subr.bf16.mxu0 0
    %7815 = vmatpush1.bf16.msra.mxu0 %v7792
    %7816 = vmatprep.subr.bf16.mxu0 0
    %7817 = vmatpush1.bf16.msra.mxu0 %v7793
    %7818 = vmatprep.subr.bf16.mxu0 0
    %7819 = vmatpush1.bf16.msra.mxu0 0
    %7820 = vmatprep.subr.bf16.mxu0 0
    %7821 = vmatpush1.bf16.msra.mxu0 0
    %7822 = vmatprep.subr.bf16.mxu0 0
    %7823 = vmatpush1.bf16.msra.mxu0 0
    %7824 = vmatprep.subr.bf16.mxu0 0
    %7825 = vmatpush1.bf16.msra.mxu0 0
    %7826 = vmatprep.subr.bf16.mxu0 0
    %7827 = vmatpush1.bf16.msra.mxu0 0
    %7828 = vmatprep.subr.bf16.mxu0 0
    %7829 = vmatpush1.bf16.msra.mxu0 0
    %7830 = vmatprep.subr.bf16.mxu0 0
    %7831 = vmatpush1.bf16.msra.mxu0 0
    %7832 = vmatprep.subr.bf16.mxu0 0
    %7833 = vmatpush1.bf16.msra.mxu0 0
    %7834 = vmatprep.mubr.bf16.mxu0 0
    %7835 = vmatmul.mubr.bf16.gmra.mrb[0].mxu0 %v7745
    %v7836 = vpop.f32.mrb[0].mxu0
    %v7837 = vadd.f32 %v7752, %v7836
    %v7838 = vpop.f32.mrb[0].mxu0
    %v7839 = vpop.f32.mrb[0].mxu0
    %v7840 = vpop.f32.mrb[0].mxu0
    %7841 = vdwg.mxu0
    %s7842 = sld [smem:[#allocation2 + $0x20]]
    %vm7843 = vcmp.gt.f32.partialorder %v7837, 0.0
    %v7844 = vstv %s7842
    %v7845 = vmul.f32 %v7844, %v7837
    %v7846 = vsel %vm7843, %v7837, %v7845
    %s7847 = scalar_lea.vmem [#allocation15], 768
    %v7848 = vld [vmem:[%s7847] sm:$0xf]
    %v7849 = vld [vmem:[%s7847 + $0x4] sm:$0xf]
    %v7850 = vld [vmem:[%s7847 + $0x8] sm:$0xf]
    %v7851 = vld [vmem:[%s7847 + $0xc] sm:$0xf]
    %v7852 = vld [vmem:[%s7847 + $0x10] sm:$0xf]
    %v7853 = vld [vmem:[%s7847 + $0x14] sm:$0xf]
    %v7854 = vld [vmem:[%s7847 + $0x18] sm:$0xf]
    %v7855 = vld [vmem:[%s7847 + $0x1c] sm:$0xf]
    %v7856 = vld [vmem:[%s7847 + $0x20] sm:$0xf]
    %v7857 = vld [vmem:[%s7847 + $0x24] sm:$0xf]
    %v7858 = vld [vmem:[%s7847 + $0x28] sm:$0xf]
    %v7859 = vld [vmem:[%s7847 + $0x2c] sm:$0xf]
    %v7860 = vld [vmem:[%s7847 + $0x30] sm:$0xf]
    %v7861 = vld [vmem:[%s7847 + $0x34] sm:$0xf]
    %v7862 = vld [vmem:[%s7847 + $0x38] sm:$0xf]
    %v7863 = vld [vmem:[%s7847 + $0x3c] sm:$0xf]
    %v7864 = vpack.c.bf16 %v7846, %v7846
    %s7865 = scalar_lea.vmem [#allocation17], 12
    %v7866 = vld [vmem:[%s7865] sm:$0x1]
    %v7868 = vlaneseq
    %v7869 = vshrl.u32 %v7868, 7
    %v7870 = vsub.s32 0, %v7869
    %v7871 = vrot.slane %v7866, %v7870
    %v7889 = vunpack.c.l.b16 %v7848
    %v7890 = vunpack.c.l.b16 %v7849
    %v7891 = vunpack.c.l.b16 %v7850
    %v7892 = vunpack.c.l.b16 %v7851
    %v7893 = vunpack.c.l.b16 %v7852
    %v7894 = vunpack.c.l.b16 %v7853
    %v7895 = vunpack.c.l.b16 %v7854
    %v7896 = vunpack.c.l.b16 %v7855
    %v7897 = vunpack.c.l.b16 %v7856
    %v7898 = vunpack.c.l.b16 %v7857
    %v7899 = vunpack.c.l.b16 %v7858
    %v7900 = vunpack.c.l.b16 %v7859
    %v7901 = vunpack.c.l.b16 %v7860
    %v7902 = vunpack.c.l.b16 %v7861
    %v7903 = vunpack.c.l.b16 %v7862
    %v7904 = vunpack.c.l.b16 %v7863
    %v7905 = vpack.c.b16 %v7890, %v7889
    %v7906 = vpack.c.b16 %v7892, %v7891
    %v7907 = vpack.c.b16 %v7894, %v7893
    %v7908 = vpack.c.b16 %v7896, %v7895
    %v7909 = vpack.c.b16 %v7898, %v7897
    %v7910 = vpack.c.b16 %v7900, %v7899
    %v7911 = vpack.c.b16 %v7902, %v7901
    %v7912 = vpack.c.b16 %v7904, %v7903
    %7921 = vmatprep.subr.bf16.mxu0 0
    %7922 = vmatpush1.bf16.msra.mxu0 %v7905
    %7923 = vmatprep.subr.bf16.mxu0 0
    %7924 = vmatpush1.bf16.msra.mxu0 %v7906
    %7925 = vmatprep.subr.bf16.mxu0 0
    %7926 = vmatpush1.bf16.msra.mxu0 %v7907
    %7927 = vmatprep.subr.bf16.mxu0 0
    %7928 = vmatpush1.bf16.msra.mxu0 %v7908
    %7929 = vmatprep.subr.bf16.mxu0 0
    %7930 = vmatpush1.bf16.msra.mxu0 %v7909
    %7931 = vmatprep.subr.bf16.mxu0 0
    %7932 = vmatpush1.bf16.msra.mxu0 %v7910
    %7933 = vmatprep.subr.bf16.mxu0 0
    %7934 = vmatpush1.bf16.msra.mxu0 %v7911
    %7935 = vmatprep.subr.bf16.mxu0 0
    %7936 = vmatpush1.bf16.msra.mxu0 %v7912
    %7937 = vmatprep.subr.bf16.mxu0 0
    %7938 = vmatpush1.bf16.msra.mxu0 0
    %7939 = vmatprep.subr.bf16.mxu0 0
    %7940 = vmatpush1.bf16.msra.mxu0 0
    %7941 = vmatprep.subr.bf16.mxu0 0
    %7942 = vmatpush1.bf16.msra.mxu0 0
    %7943 = vmatprep.subr.bf16.mxu0 0
    %7944 = vmatpush1.bf16.msra.mxu0 0
    %7945 = vmatprep.subr.bf16.mxu0 0
    %7946 = vmatpush1.bf16.msra.mxu0 0
    %7947 = vmatprep.subr.bf16.mxu0 0
    %7948 = vmatpush1.bf16.msra.mxu0 0
    %7949 = vmatprep.subr.bf16.mxu0 0
    %7950 = vmatpush1.bf16.msra.mxu0 0
    %7951 = vmatprep.subr.bf16.mxu0 0
    %7952 = vmatpush1.bf16.msra.mxu0 0
    %7953 = vmatprep.mubr.bf16.mxu0 0
    %7954 = vmatmul.mubr.bf16.gmra.mrb[0].mxu0 %v7864
    %v7955 = vpop.f32.mrb[0].mxu0
    %v7956 = vadd.f32 %v7871, %v7955
    %v7957 = vpop.f32.mrb[0].mxu0
    %v7958 = vpop.f32.mrb[0].mxu0
    %v7959 = vpop.f32.mrb[0].mxu0
    %7960 = vdwg.mxu0
    %s7961 = sld [smem:[#allocation2 + $0x21]]
    %vm7962 = vcmp.gt.f32.partialorder %v7956, 0.0
    %v7963 = vstv %s7961
    %v7964 = vmul.f32 %v7963, %v7956
    %v7965 = vsel %vm7962, %v7956, %v7964
    %s7966 = sld [smem:[#allocation2 + $0x22]]
    %v7967 = vstv %s7966
    %v7968 = vmul.f32 %v7967, %v6433
    %v7969 = vadd.f32 %v6269, %v7968
    %v7970 = vld [vmem:[#allocation14 + $0x6] sm:$0x1]
    %v7972 = vlaneseq
    %v7973 = vshrl.u32 %v7972, 7
    %v7974 = vsub.s32 0, %v7973
    %v7975 = vrot.slane %v7970, %v7974
    %v7977 = vadd.f32 %v7969, %v7975
    %s7978 = sld [smem:[#allocation2 + $0x23]]
    %vm7979 = vcmp.gt.f32.partialorder %v7977, 0.0
    %v7980 = vstv %s7978
    %v7981 = vmul.f32 %v7980, %v7977
    %v7982 = vsel %vm7979, %v7977, %v7981
    %s7983 = scalar_lea.vmem [#allocation15], 384
    %v7984 = vld [vmem:[%s7983] sm:$0xf]
    %v7985 = vld [vmem:[%s7983 + $0x4] sm:$0xf]
    %v7986 = vld [vmem:[%s7983 + $0x8] sm:$0xf]
    %v7987 = vld [vmem:[%s7983 + $0xc] sm:$0xf]
    %v7988 = vld [vmem:[%s7983 + $0x10] sm:$0xf]
    %v7989 = vld [vmem:[%s7983 + $0x14] sm:$0xf]
    %v7990 = vld [vmem:[%s7983 + $0x18] sm:$0xf]
    %v7991 = vld [vmem:[%s7983 + $0x1c] sm:$0xf]
    %v7992 = vld [vmem:[%s7983 + $0x20] sm:$0xf]
    %v7993 = vld [vmem:[%s7983 + $0x24] sm:$0xf]
    %v7994 = vld [vmem:[%s7983 + $0x28] sm:$0xf]
    %v7995 = vld [vmem:[%s7983 + $0x2c] sm:$0xf]
    %v7996 = vld [vmem:[%s7983 + $0x30] sm:$0xf]
    %v7997 = vld [vmem:[%s7983 + $0x34] sm:$0xf]
    %v7998 = vld [vmem:[%s7983 + $0x38] sm:$0xf]
    %v7999 = vld [vmem:[%s7983 + $0x3c] sm:$0xf]
    %v8000 = vpack.c.bf16 %v7982, %v7982
    %s8001 = scalar_lea.vmem [#allocation17], 6
    %v8002 = vld [vmem:[%s8001] sm:$0x1]
    %v8004 = vlaneseq
    %v8005 = vshrl.u32 %v8004, 7
    %v8006 = vsub.s32 0, %v8005
    %v8007 = vrot.slane %v8002, %v8006
    %v8025 = vunpack.c.l.b16 %v7984
    %v8026 = vunpack.c.l.b16 %v7985
    %v8027 = vunpack.c.l.b16 %v7986
    %v8028 = vunpack.c.l.b16 %v7987
    %v8029 = vunpack.c.l.b16 %v7988
    %v8030 = vunpack.c.l.b16 %v7989
    %v8031 = vunpack.c.l.b16 %v7990
    %v8032 = vunpack.c.l.b16 %v7991
    %v8033 = vunpack.c.l.b16 %v7992
    %v8034 = vunpack.c.l.b16 %v7993
    %v8035 = vunpack.c.l.b16 %v7994
    %v8036 = vunpack.c.l.b16 %v7995
    %v8037 = vunpack.c.l.b16 %v7996
    %v8038 = vunpack.c.l.b16 %v7997
    %v8039 = vunpack.c.l.b16 %v7998
    %v8040 = vunpack.c.l.b16 %v7999
    %v8041 = vpack.c.b16 %v8026, %v8025
    %v8042 = vpack.c.b16 %v8028, %v8027
    %v8043 = vpack.c.b16 %v8030, %v8029
    %v8044 = vpack.c.b16 %v8032, %v8031
    %v8045 = vpack.c.b16 %v8034, %v8033
    %v8046 = vpack.c.b16 %v8036, %v8035
    %v8047 = vpack.c.b16 %v8038, %v8037
    %v8048 = vpack.c.b16 %v8040, %v8039
    %8057 = vmatprep.subr.bf16.mxu0 0
    %8058 = vmatpush1.bf16.msra.mxu0 %v8041
    %8059 = vmatprep.subr.bf16.mxu0 0
    %8060 = vmatpush1.bf16.msra.mxu0 %v8042
    %8061 = vmatprep.subr.bf16.mxu0 0
    %8062 = vmatpush1.bf16.msra.mxu0 %v8043
    %8063 = vmatprep.subr.bf16.mxu0 0
    %8064 = vmatpush1.bf16.msra.mxu0 %v8044
    %8065 = vmatprep.subr.bf16.mxu0 0
    %8066 = vmatpush1.bf16.msra.mxu0 %v8045
    %8067 = vmatprep.subr.bf16.mxu0 0
    %8068 = vmatpush1.bf16.msra.mxu0 %v8046
    %8069 = vmatprep.subr.bf16.mxu0 0
    %8070 = vmatpush1.bf16.msra.mxu0 %v8047
    %8071 = vmatprep.subr.bf16.mxu0 0
    %8072 = vmatpush1.bf16.msra.mxu0 %v8048
    %8073 = vmatprep.subr.bf16.mxu0 0
    %8074 = vmatpush1.bf16.msra.mxu0 0
    %8075 = vmatprep.subr.bf16.mxu0 0
    %8076 = vmatpush1.bf16.msra.mxu0 0
    %8077 = vmatprep.subr.bf16.mxu0 0
    %8078 = vmatpush1.bf16.msra.mxu0 0
    %8079 = vmatprep.subr.bf16.mxu0 0
    %8080 = vmatpush1.bf16.msra.mxu0 0
    %8081 = vmatprep.subr.bf16.mxu0 0
    %8082 = vmatpush1.bf16.msra.mxu0 0
    %8083 = vmatprep.subr.bf16.mxu0 0
    %8084 = vmatpush1.bf16.msra.mxu0 0
    %8085 = vmatprep.subr.bf16.mxu0 0
    %8086 = vmatpush1.bf16.msra.mxu0 0
    %8087 = vmatprep.subr.bf16.mxu0 0
    %8088 = vmatpush1.bf16.msra.mxu0 0
    %8089 = vmatprep.mubr.bf16.mxu0 0
    %8090 = vmatmul.mubr.bf16.gmra.mrb[0].mxu0 %v8000
    %v8091 = vpop.f32.mrb[0].mxu0
    %v8092 = vadd.f32 %v8007, %v8091
    %v8093 = vpop.f32.mrb[0].mxu0
    %v8094 = vpop.f32.mrb[0].mxu0
    %v8095 = vpop.f32.mrb[0].mxu0
    %8096 = vdwg.mxu0
    %s8097 = sld [smem:[#allocation2 + $0x24]]
    %vm8098 = vcmp.gt.f32.partialorder %v8092, 0.0
    %v8099 = vstv %s8097
    %v8100 = vmul.f32 %v8099, %v8092
    %v8101 = vsel %vm8098, %v8092, %v8100
    %s8102 = scalar_lea.vmem [#allocation15], 832
    %v8103 = vld [vmem:[%s8102] sm:$0xf]
    %v8104 = vld [vmem:[%s8102 + $0x4] sm:$0xf]
    %v8105 = vld [vmem:[%s8102 + $0x8] sm:$0xf]
    %v8106 = vld [vmem:[%s8102 + $0xc] sm:$0xf]
    %v8107 = vld [vmem:[%s8102 + $0x10] sm:$0xf]
    %v8108 = vld [vmem:[%s8102 + $0x14] sm:$0xf]
    %v8109 = vld [vmem:[%s8102 + $0x18] sm:$0xf]
    %v8110 = vld [vmem:[%s8102 + $0x1c] sm:$0xf]
    %v8111 = vld [vmem:[%s8102 + $0x20] sm:$0xf]
    %v8112 = vld [vmem:[%s8102 + $0x24] sm:$0xf]
    %v8113 = vld [vmem:[%s8102 + $0x28] sm:$0xf]
    %v8114 = vld [vmem:[%s8102 + $0x2c] sm:$0xf]
    %v8115 = vld [vmem:[%s8102 + $0x30] sm:$0xf]
    %v8116 = vld [vmem:[%s8102 + $0x34] sm:$0xf]
    %v8117 = vld [vmem:[%s8102 + $0x38] sm:$0xf]
    %v8118 = vld [vmem:[%s8102 + $0x3c] sm:$0xf]
    %v8119 = vpack.c.bf16 %v8101, %v8101
    %s8120 = scalar_lea.vmem [#allocation17], 13
    %v8121 = vld [vmem:[%s8120] sm:$0x1]
    %v8123 = vlaneseq
    %v8124 = vshrl.u32 %v8123, 7
    %v8125 = vsub.s32 0, %v8124
    %v8126 = vrot.slane %v8121, %v8125
    %v8144 = vunpack.c.l.b16 %v8103
    %v8145 = vunpack.c.l.b16 %v8104
    %v8146 = vunpack.c.l.b16 %v8105
    %v8147 = vunpack.c.l.b16 %v8106
    %v8148 = vunpack.c.l.b16 %v8107
    %v8149 = vunpack.c.l.b16 %v8108
    %v8150 = vunpack.c.l.b16 %v8109
    %v8151 = vunpack.c.l.b16 %v8110
    %v8152 = vunpack.c.l.b16 %v8111
    %v8153 = vunpack.c.l.b16 %v8112
    %v8154 = vunpack.c.l.b16 %v8113
    %v8155 = vunpack.c.l.b16 %v8114
    %v8156 = vunpack.c.l.b16 %v8115
    %v8157 = vunpack.c.l.b16 %v8116
    %v8158 = vunpack.c.l.b16 %v8117
    %v8159 = vunpack.c.l.b16 %v8118
    %v8160 = vpack.c.b16 %v8145, %v8144
    %v8161 = vpack.c.b16 %v8147, %v8146
    %v8162 = vpack.c.b16 %v8149, %v8148
    %v8163 = vpack.c.b16 %v8151, %v8150
    %v8164 = vpack.c.b16 %v8153, %v8152
    %v8165 = vpack.c.b16 %v8155, %v8154
    %v8166 = vpack.c.b16 %v8157, %v8156
    %v8167 = vpack.c.b16 %v8159, %v8158
    %8176 = vmatprep.subr.bf16.mxu0 0
    %8177 = vmatpush1.bf16.msra.mxu0 %v8160
    %8178 = vmatprep.subr.bf16.mxu0 0
    %8179 = vmatpush1.bf16.msra.mxu0 %v8161
    %8180 = vmatprep.subr.bf16.mxu0 0
    %8181 = vmatpush1.bf16.msra.mxu0 %v8162
    %8182 = vmatprep.subr.bf16.mxu0 0
    %8183 = vmatpush1.bf16.msra.mxu0 %v8163
    %8184 = vmatprep.subr.bf16.mxu0 0
    %8185 = vmatpush1.bf16.msra.mxu0 %v8164
    %8186 = vmatprep.subr.bf16.mxu0 0
    %8187 = vmatpush1.bf16.msra.mxu0 %v8165
    %8188 = vmatprep.subr.bf16.mxu0 0
    %8189 = vmatpush1.bf16.msra.mxu0 %v8166
    %8190 = vmatprep.subr.bf16.mxu0 0
    %8191 = vmatpush1.bf16.msra.mxu0 %v8167
    %8192 = vmatprep.subr.bf16.mxu0 0
    %8193 = vmatpush1.bf16.msra.mxu0 0
    %8194 = vmatprep.subr.bf16.mxu0 0
    %8195 = vmatpush1.bf16.msra.mxu0 0
    %8196 = vmatprep.subr.bf16.mxu0 0
    %8197 = vmatpush1.bf16.msra.mxu0 0
    %8198 = vmatprep.subr.bf16.mxu0 0
    %8199 = vmatpush1.bf16.msra.mxu0 0
    %8200 = vmatprep.subr.bf16.mxu0 0
    %8201 = vmatpush1.bf16.msra.mxu0 0
    %8202 = vmatprep.subr.bf16.mxu0 0
    %8203 = vmatpush1.bf16.msra.mxu0 0
    %8204 = vmatprep.subr.bf16.mxu0 0
    %8205 = vmatpush1.bf16.msra.mxu0 0
    %8206 = vmatprep.subr.bf16.mxu0 0
    %8207 = vmatpush1.bf16.msra.mxu0 0
    %8208 = vmatprep.mubr.bf16.mxu0 0
    %8209 = vmatmul.mubr.bf16.gmra.mrb[0].mxu0 %v8119
    %v8210 = vpop.f32.mrb[0].mxu0
    %v8211 = vadd.f32 %v8126, %v8210
    %v8212 = vpop.f32.mrb[0].mxu0
    %v8213 = vpop.f32.mrb[0].mxu0
    %v8214 = vpop.f32.mrb[0].mxu0
    %8215 = vdwg.mxu0
    %s8216 = sld [smem:[#allocation2 + $0x25]]
    %vm8217 = vcmp.gt.f32.partialorder %v8211, 0.0
    %v8218 = vstv %s8216
    %v8219 = vmul.f32 %v8218, %v8211
    %v8220 = vsel %vm8217, %v8211, %v8219
    %s8221 = sld [smem:[#allocation2 + $0x26]]
    %vm8222 = vcmp.gt.f32.partialorder %v5751, 0.0
    %v8223 = vstv %s8221
    %v8224 = vmul.f32 %v8223, %v5751
    %v8225 = vsel %vm8222, %v5751, %v8224
    %v8226 = vld [vmem:[#allocation18] sm:$0xf]
    %v8227 = vld [vmem:[#allocation18 + $0x4] sm:$0xf]
    %v8228 = vld [vmem:[#allocation18 + $0x8] sm:$0xf]
    %v8229 = vld [vmem:[#allocation18 + $0xc] sm:$0xf]
    %v8230 = vld [vmem:[#allocation18 + $0x10] sm:$0xf]
    %v8231 = vld [vmem:[#allocation18 + $0x14] sm:$0xf]
    %v8232 = vld [vmem:[#allocation18 + $0x18] sm:$0xf]
    %v8233 = vld [vmem:[#allocation18 + $0x1c] sm:$0xf]
    %v8234 = vld [vmem:[#allocation18 + $0x20] sm:$0xf]
    %v8235 = vld [vmem:[#allocation18 + $0x24] sm:$0xf]
    %v8236 = vld [vmem:[#allocation18 + $0x28] sm:$0xf]
    %v8237 = vld [vmem:[#allocation18 + $0x2c] sm:$0xf]
    %v8238 = vld [vmem:[#allocation18 + $0x30] sm:$0xf]
    %v8239 = vld [vmem:[#allocation18 + $0x34] sm:$0xf]
    %v8240 = vld [vmem:[#allocation18 + $0x38] sm:$0xf]
    %v8241 = vld [vmem:[#allocation18 + $0x3c] sm:$0xf]
    %v8242 = vpack.c.bf16 %v8225, %v8225
    %v8243 = vld [vmem:[#allocation20] sm:$0x1]
    %v8245 = vlaneseq
    %v8246 = vshrl.u32 %v8245, 7
    %v8247 = vsub.s32 0, %v8246
    %v8248 = vrot.slane %v8243, %v8247
    %v8266 = vunpack.c.l.b16 %v8226
    %v8267 = vunpack.c.l.b16 %v8227
    %v8268 = vunpack.c.l.b16 %v8228
    %v8269 = vunpack.c.l.b16 %v8229
    %v8270 = vunpack.c.l.b16 %v8230
    %v8271 = vunpack.c.l.b16 %v8231
    %v8272 = vunpack.c.l.b16 %v8232
    %v8273 = vunpack.c.l.b16 %v8233
    %v8274 = vunpack.c.l.b16 %v8234
    %v8275 = vunpack.c.l.b16 %v8235
    %v8276 = vunpack.c.l.b16 %v8236
    %v8277 = vunpack.c.l.b16 %v8237
    %v8278 = vunpack.c.l.b16 %v8238
    %v8279 = vunpack.c.l.b16 %v8239
    %v8280 = vunpack.c.l.b16 %v8240
    %v8281 = vunpack.c.l.b16 %v8241
    %v8282 = vpack.c.b16 %v8267, %v8266
    %v8283 = vpack.c.b16 %v8269, %v8268
    %v8284 = vpack.c.b16 %v8271, %v8270
    %v8285 = vpack.c.b16 %v8273, %v8272
    %v8286 = vpack.c.b16 %v8275, %v8274
    %v8287 = vpack.c.b16 %v8277, %v8276
    %v8288 = vpack.c.b16 %v8279, %v8278
    %v8289 = vpack.c.b16 %v8281, %v8280
    %8298 = vmatprep.subr.bf16.mxu0 0
    %8299 = vmatpush1.bf16.msra.mxu0 %v8282
    %8300 = vmatprep.subr.bf16.mxu0 0
    %8301 = vmatpush1.bf16.msra.mxu0 %v8283
    %8302 = vmatprep.subr.bf16.mxu0 0
    %8303 = vmatpush1.bf16.msra.mxu0 %v8284
    %8304 = vmatprep.subr.bf16.mxu0 0
    %8305 = vmatpush1.bf16.msra.mxu0 %v8285
    %8306 = vmatprep.subr.bf16.mxu0 0
    %8307 = vmatpush1.bf16.msra.mxu0 %v8286
    %8308 = vmatprep.subr.bf16.mxu0 0
    %8309 = vmatpush1.bf16.msra.mxu0 %v8287
    %8310 = vmatprep.subr.bf16.mxu0 0
    %8311 = vmatpush1.bf16.msra.mxu0 %v8288
    %8312 = vmatprep.subr.bf16.mxu0 0
    %8313 = vmatpush1.bf16.msra.mxu0 %v8289
    %8314 = vmatprep.subr.bf16.mxu0 0
    %8315 = vmatpush1.bf16.msra.mxu0 0
    %8316 = vmatprep.subr.bf16.mxu0 0
    %8317 = vmatpush1.bf16.msra.mxu0 0
    %8318 = vmatprep.subr.bf16.mxu0 0
    %8319 = vmatpush1.bf16.msra.mxu0 0
    %8320 = vmatprep.subr.bf16.mxu0 0
    %8321 = vmatpush1.bf16.msra.mxu0 0
    %8322 = vmatprep.subr.bf16.mxu0 0
    %8323 = vmatpush1.bf16.msra.mxu0 0
    %8324 = vmatprep.subr.bf16.mxu0 0
    %8325 = vmatpush1.bf16.msra.mxu0 0
    %8326 = vmatprep.subr.bf16.mxu0 0
    %8327 = vmatpush1.bf16.msra.mxu0 0
    %8328 = vmatprep.subr.bf16.mxu0 0
    %8329 = vmatpush1.bf16.msra.mxu0 0
    %8330 = vmatprep.mubr.bf16.mxu0 0
    %8331 = vmatmul.mubr.bf16.gmra.mrb[0].mxu0 %v8242
    %v8332 = vpop.f32.mrb[0].mxu0
    %v8333 = vadd.f32 %v8248, %v8332
    %v8334 = vpop.f32.mrb[0].mxu0
    %v8335 = vpop.f32.mrb[0].mxu0
    %v8336 = vpop.f32.mrb[0].mxu0
    %8337 = vdwg.mxu0
    %s8338 = sld [smem:[#allocation2 + $0x27]]
    %vm8339 = vcmp.gt.f32.partialorder %v8333, 0.0
    %v8340 = vstv %s8338
    %v8341 = vmul.f32 %v8340, %v8333
    %v8342 = vsel %vm8339, %v8333, %v8341
    %s8343 = scalar_lea.vmem [#allocation18], 64
    %v8344 = vld [vmem:[%s8343] sm:$0xf]
    %v8345 = vld [vmem:[%s8343 + $0x4] sm:$0xf]
    %v8346 = vld [vmem:[%s8343 + $0x8] sm:$0xf]
    %v8347 = vld [vmem:[%s8343 + $0xc] sm:$0xf]
    %v8348 = vld [vmem:[%s8343 + $0x10] sm:$0xf]
    %v8349 = vld [vmem:[%s8343 + $0x14] sm:$0xf]
    %v8350 = vld [vmem:[%s8343 + $0x18] sm:$0xf]
    %v8351 = vld [vmem:[%s8343 + $0x1c] sm:$0xf]
    %v8352 = vld [vmem:[%s8343 + $0x20] sm:$0xf]
    %v8353 = vld [vmem:[%s8343 + $0x24] sm:$0xf]
    %v8354 = vld [vmem:[%s8343 + $0x28] sm:$0xf]
    %v8355 = vld [vmem:[%s8343 + $0x2c] sm:$0xf]
    %v8356 = vld [vmem:[%s8343 + $0x30] sm:$0xf]
    %v8357 = vld [vmem:[%s8343 + $0x34] sm:$0xf]
    %v8358 = vld [vmem:[%s8343 + $0x38] sm:$0xf]
    %v8359 = vld [vmem:[%s8343 + $0x3c] sm:$0xf]
    %v8360 = vpack.c.bf16 %v8342, %v8342
    %s8361 = scalar_lea.vmem [#allocation20], 1
    %v8362 = vld [vmem:[%s8361] sm:$0x1]
    %v8364 = vlaneseq
    %v8365 = vshrl.u32 %v8364, 7
    %v8366 = vsub.s32 0, %v8365
    %v8367 = vrot.slane %v8362, %v8366
    %v8385 = vunpack.c.l.b16 %v8344
    %v8386 = vunpack.c.l.b16 %v8345
    %v8387 = vunpack.c.l.b16 %v8346
    %v8388 = vunpack.c.l.b16 %v8347
    %v8389 = vunpack.c.l.b16 %v8348
    %v8390 = vunpack.c.l.b16 %v8349
    %v8391 = vunpack.c.l.b16 %v8350
    %v8392 = vunpack.c.l.b16 %v8351
    %v8393 = vunpack.c.l.b16 %v8352
    %v8394 = vunpack.c.l.b16 %v8353
    %v8395 = vunpack.c.l.b16 %v8354
    %v8396 = vunpack.c.l.b16 %v8355
    %v8397 = vunpack.c.l.b16 %v8356
    %v8398 = vunpack.c.l.b16 %v8357
    %v8399 = vunpack.c.l.b16 %v8358
    %v8400 = vunpack.c.l.b16 %v8359
    %v8401 = vpack.c.b16 %v8386, %v8385
    %v8402 = vpack.c.b16 %v8388, %v8387
    %v8403 = vpack.c.b16 %v8390, %v8389
    %v8404 = vpack.c.b16 %v8392, %v8391
    %v8405 = vpack.c.b16 %v8394, %v8393
    %v8406 = vpack.c.b16 %v8396, %v8395
    %v8407 = vpack.c.b16 %v8398, %v8397
    %v8408 = vpack.c.b16 %v8400, %v8399
    %8417 = vmatprep.subr.bf16.mxu0 0
    %8418 = vmatpush1.bf16.msra.mxu0 %v8401
    %8419 = vmatprep.subr.bf16.mxu0 0
    %8420 = vmatpush1.bf16.msra.mxu0 %v8402
    %8421 = vmatprep.subr.bf16.mxu0 0
    %8422 = vmatpush1.bf16.msra.mxu0 %v8403
    %8423 = vmatprep.subr.bf16.mxu0 0
    %8424 = vmatpush1.bf16.msra.mxu0 %v8404
    %8425 = vmatprep.subr.bf16.mxu0 0
    %8426 = vmatpush1.bf16.msra.mxu0 %v8405
    %8427 = vmatprep.subr.bf16.mxu0 0
    %8428 = vmatpush1.bf16.msra.mxu0 %v8406
    %8429 = vmatprep.subr.bf16.mxu0 0
    %8430 = vmatpush1.bf16.msra.mxu0 %v8407
    %8431 = vmatprep.subr.bf16.mxu0 0
    %8432 = vmatpush1.bf16.msra.mxu0 %v8408
    %8433 = vmatprep.subr.bf16.mxu0 0
    %8434 = vmatpush1.bf16.msra.mxu0 0
    %8435 = vmatprep.subr.bf16.mxu0 0
    %8436 = vmatpush1.bf16.msra.mxu0 0
    %8437 = vmatprep.subr.bf16.mxu0 0
    %8438 = vmatpush1.bf16.msra.mxu0 0
    %8439 = vmatprep.subr.bf16.mxu0 0
    %8440 = vmatpush1.bf16.msra.mxu0 0
    %8441 = vmatprep.subr.bf16.mxu0 0
    %8442 = vmatpush1.bf16.msra.mxu0 0
    %8443 = vmatprep.subr.bf16.mxu0 0
    %8444 = vmatpush1.bf16.msra.mxu0 0
    %8445 = vmatprep.subr.bf16.mxu0 0
    %8446 = vmatpush1.bf16.msra.mxu0 0
    %8447 = vmatprep.subr.bf16.mxu0 0
    %8448 = vmatpush1.bf16.msra.mxu0 0
    %8449 = vmatprep.mubr.bf16.mxu0 0
    %8450 = vmatmul.mubr.bf16.gmra.mrb[0].mxu0 %v8360
    %v8451 = vpop.f32.mrb[0].mxu0
    %v8452 = vadd.f32 %v8367, %v8451
    %v8453 = vpop.f32.mrb[0].mxu0
    %v8454 = vpop.f32.mrb[0].mxu0
    %v8455 = vpop.f32.mrb[0].mxu0
    %8456 = vdwg.mxu0
    %s8457 = sld [smem:[#allocation2 + $0x28]]
    %vm8458 = vcmp.gt.f32.partialorder %v8452, 0.0
    %v8459 = vstv %s8457
    %v8460 = vmul.f32 %v8459, %v8452
    %v8461 = vsel %vm8458, %v8452, %v8460
    %v8462 = vld [vmem:[#allocation21] sm:$0xf]
    %v8463 = vld [vmem:[#allocation21 + $0x4] sm:$0xf]
    %v8464 = vld [vmem:[#allocation21 + $0x8] sm:$0xf]
    %v8465 = vld [vmem:[#allocation21 + $0xc] sm:$0xf]
    %v8466 = vld [vmem:[#allocation21 + $0x10] sm:$0xf]
    %v8467 = vld [vmem:[#allocation21 + $0x14] sm:$0xf]
    %v8468 = vld [vmem:[#allocation21 + $0x18] sm:$0xf]
    %v8469 = vld [vmem:[#allocation21 + $0x1c] sm:$0xf]
    %v8470 = vld [vmem:[#allocation21 + $0x20] sm:$0xf]
    %v8471 = vld [vmem:[#allocation21 + $0x24] sm:$0xf]
    %v8472 = vld [vmem:[#allocation21 + $0x28] sm:$0xf]
    %v8473 = vld [vmem:[#allocation21 + $0x2c] sm:$0xf]
    %v8474 = vld [vmem:[#allocation21 + $0x30] sm:$0xf]
    %v8475 = vld [vmem:[#allocation21 + $0x34] sm:$0xf]
    %v8476 = vld [vmem:[#allocation21 + $0x38] sm:$0xf]
    %v8477 = vld [vmem:[#allocation21 + $0x3c] sm:$0xf]
    %v8478 = vld [vmem:[#allocation21 + $0x40] sm:$0xf]
    %v8479 = vld [vmem:[#allocation21 + $0x44] sm:$0xf]
    %v8480 = vld [vmem:[#allocation21 + $0x48] sm:$0xf]
    %v8481 = vld [vmem:[#allocation21 + $0x4c] sm:$0xf]
    %v8482 = vld [vmem:[#allocation21 + $0x50] sm:$0xf]
    %v8483 = vld [vmem:[#allocation21 + $0x54] sm:$0xf]
    %v8484 = vld [vmem:[#allocation21 + $0x58] sm:$0xf]
    %v8485 = vld [vmem:[#allocation21 + $0x5c] sm:$0xf]
    %v8486 = vld [vmem:[#allocation21 + $0x60] sm:$0xf]
    %v8487 = vld [vmem:[#allocation21 + $0x64] sm:$0xf]
    %v8488 = vld [vmem:[#allocation21 + $0x68] sm:$0xf]
    %v8489 = vld [vmem:[#allocation21 + $0x6c] sm:$0xf]
    %v8490 = vld [vmem:[#allocation21 + $0x70] sm:$0xf]
    %v8491 = vld [vmem:[#allocation21 + $0x74] sm:$0xf]
    %v8492 = vld [vmem:[#allocation21 + $0x78] sm:$0xf]
    %v8493 = vld [vmem:[#allocation21 + $0x7c] sm:$0xf]
    %v8494 = vld [vmem:[#allocation21 + $0x80] sm:$0xf]
    %v8495 = vld [vmem:[#allocation21 + $0x84] sm:$0xf]
    %v8496 = vld [vmem:[#allocation21 + $0x88] sm:$0xf]
    %v8497 = vld [vmem:[#allocation21 + $0x8c] sm:$0xf]
    %v8498 = vld [vmem:[#allocation21 + $0x90] sm:$0xf]
    %v8499 = vld [vmem:[#allocation21 + $0x94] sm:$0xf]
    %v8500 = vld [vmem:[#allocation21 + $0x98] sm:$0xf]
    %v8501 = vld [vmem:[#allocation21 + $0x9c] sm:$0xf]
    %v8502 = vld [vmem:[#allocation21 + $0xa0] sm:$0xf]
    %v8503 = vld [vmem:[#allocation21 + $0xa4] sm:$0xf]
    %v8504 = vld [vmem:[#allocation21 + $0xa8] sm:$0xf]
    %v8505 = vld [vmem:[#allocation21 + $0xac] sm:$0xf]
    %v8506 = vld [vmem:[#allocation21 + $0xb0] sm:$0xf]
    %v8507 = vld [vmem:[#allocation21 + $0xb4] sm:$0xf]
    %v8508 = vld [vmem:[#allocation21 + $0xb8] sm:$0xf]
    %v8509 = vld [vmem:[#allocation21 + $0xbc] sm:$0xf]
    %v8510 = vld [vmem:[#allocation21 + $0xc0] sm:$0xf]
    %v8511 = vld [vmem:[#allocation21 + $0xc4] sm:$0xf]
    %v8512 = vld [vmem:[#allocation21 + $0xc8] sm:$0xf]
    %v8513 = vld [vmem:[#allocation21 + $0xcc] sm:$0xf]
    %v8514 = vld [vmem:[#allocation21 + $0xd0] sm:$0xf]
    %v8515 = vld [vmem:[#allocation21 + $0xd4] sm:$0xf]
    %v8516 = vld [vmem:[#allocation21 + $0xd8] sm:$0xf]
    %v8517 = vld [vmem:[#allocation21 + $0xdc] sm:$0xf]
    %v8518 = vld [vmem:[#allocation21 + $0xe0] sm:$0xf]
    %v8519 = vld [vmem:[#allocation21 + $0xe4] sm:$0xf]
    %v8520 = vld [vmem:[#allocation21 + $0xe8] sm:$0xf]
    %v8521 = vld [vmem:[#allocation21 + $0xec] sm:$0xf]
    %v8522 = vld [vmem:[#allocation21 + $0xf0] sm:$0xf]
    %v8523 = vld [vmem:[#allocation21 + $0xf4] sm:$0xf]
    %v8524 = vld [vmem:[#allocation21 + $0xf8] sm:$0xf]
    %v8525 = vld [vmem:[#allocation21 + $0xfc] sm:$0xf]
    %v8526 = vld [vmem:[#allocation21 + $0x100] sm:$0xf]
    %v8527 = vld [vmem:[#allocation21 + $0x104] sm:$0xf]
    %v8528 = vld [vmem:[#allocation21 + $0x108] sm:$0xf]
    %v8529 = vld [vmem:[#allocation21 + $0x10c] sm:$0xf]
    %v8530 = vld [vmem:[#allocation21 + $0x110] sm:$0xf]
    %v8531 = vld [vmem:[#allocation21 + $0x114] sm:$0xf]
    %v8532 = vld [vmem:[#allocation21 + $0x118] sm:$0xf]
    %v8533 = vld [vmem:[#allocation21 + $0x11c] sm:$0xf]
    %v8534 = vld [vmem:[#allocation21 + $0x120] sm:$0xf]
    %v8535 = vld [vmem:[#allocation21 + $0x124] sm:$0xf]
    %v8536 = vld [vmem:[#allocation21 + $0x128] sm:$0xf]
    %v8537 = vld [vmem:[#allocation21 + $0x12c] sm:$0xf]
    %v8538 = vld [vmem:[#allocation21 + $0x130] sm:$0xf]
    %v8539 = vld [vmem:[#allocation21 + $0x134] sm:$0xf]
    %v8540 = vld [vmem:[#allocation21 + $0x138] sm:$0xf]
    %v8541 = vld [vmem:[#allocation21 + $0x13c] sm:$0xf]
    %v8542 = vld [vmem:[#allocation21 + $0x140] sm:$0xf]
    %v8543 = vld [vmem:[#allocation21 + $0x144] sm:$0xf]
    %v8544 = vld [vmem:[#allocation21 + $0x148] sm:$0xf]
    %v8545 = vld [vmem:[#allocation21 + $0x14c] sm:$0xf]
    %v8546 = vld [vmem:[#allocation21 + $0x150] sm:$0xf]
    %v8547 = vld [vmem:[#allocation21 + $0x154] sm:$0xf]
    %v8548 = vld [vmem:[#allocation21 + $0x158] sm:$0xf]
    %v8549 = vld [vmem:[#allocation21 + $0x15c] sm:$0xf]
    %v8550 = vld [vmem:[#allocation21 + $0x160] sm:$0xf]
    %v8551 = vld [vmem:[#allocation21 + $0x164] sm:$0xf]
    %v8552 = vld [vmem:[#allocation21 + $0x168] sm:$0xf]
    %v8553 = vld [vmem:[#allocation21 + $0x16c] sm:$0xf]
    %v8554 = vld [vmem:[#allocation21 + $0x170] sm:$0xf]
    %v8555 = vld [vmem:[#allocation21 + $0x174] sm:$0xf]
    %v8556 = vld [vmem:[#allocation21 + $0x178] sm:$0xf]
    %v8557 = vld [vmem:[#allocation21 + $0x17c] sm:$0xf]
    %v8558 = vld [vmem:[#allocation21 + $0x180] sm:$0xf]
    %v8559 = vld [vmem:[#allocation21 + $0x184] sm:$0xf]
    %v8560 = vld [vmem:[#allocation21 + $0x188] sm:$0xf]
    %v8561 = vld [vmem:[#allocation21 + $0x18c] sm:$0xf]
    %v8562 = vld [vmem:[#allocation21 + $0x190] sm:$0xf]
    %v8563 = vld [vmem:[#allocation21 + $0x194] sm:$0xf]
    %v8564 = vld [vmem:[#allocation21 + $0x198] sm:$0xf]
    %v8565 = vld [vmem:[#allocation21 + $0x19c] sm:$0xf]
    %v8566 = vld [vmem:[#allocation21 + $0x1a0] sm:$0xf]
    %v8567 = vld [vmem:[#allocation21 + $0x1a4] sm:$0xf]
    %v8568 = vld [vmem:[#allocation21 + $0x1a8] sm:$0xf]
    %v8569 = vld [vmem:[#allocation21 + $0x1ac] sm:$0xf]
    %v8570 = vld [vmem:[#allocation21 + $0x1b0] sm:$0xf]
    %v8571 = vld [vmem:[#allocation21 + $0x1b4] sm:$0xf]
    %v8572 = vld [vmem:[#allocation21 + $0x1b8] sm:$0xf]
    %v8573 = vld [vmem:[#allocation21 + $0x1bc] sm:$0xf]
    %v8574 = vld [vmem:[#allocation21 + $0x1c0] sm:$0xf]
    %v8575 = vld [vmem:[#allocation21 + $0x1c4] sm:$0xf]
    %v8576 = vld [vmem:[#allocation21 + $0x1c8] sm:$0xf]
    %v8577 = vld [vmem:[#allocation21 + $0x1cc] sm:$0xf]
    %v8578 = vld [vmem:[#allocation21 + $0x1d0] sm:$0xf]
    %v8579 = vld [vmem:[#allocation21 + $0x1d4] sm:$0xf]
    %v8580 = vld [vmem:[#allocation21 + $0x1d8] sm:$0xf]
    %v8581 = vld [vmem:[#allocation21 + $0x1dc] sm:$0xf]
    %v8582 = vld [vmem:[#allocation21 + $0x1e0] sm:$0xf]
    %v8583 = vld [vmem:[#allocation21 + $0x1e4] sm:$0xf]
    %v8584 = vld [vmem:[#allocation21 + $0x1e8] sm:$0xf]
    %v8585 = vld [vmem:[#allocation21 + $0x1ec] sm:$0xf]
    %v8586 = vld [vmem:[#allocation21 + $0x1f0] sm:$0xf]
    %v8587 = vld [vmem:[#allocation21 + $0x1f4] sm:$0xf]
    %v8588 = vld [vmem:[#allocation21 + $0x1f8] sm:$0xf]
    %v8589 = vld [vmem:[#allocation21 + $0x1fc] sm:$0xf]
    %v8590 = vpack.c.bf16 %v6690, %v6690
    %v8591 = vpack.c.bf16 %v6945, %v6945
    %v8592 = vpack.c.bf16 %v7200, %v7200
    %v8593 = vpack.c.bf16 %v7455, %v7455
    %v8594 = vpack.c.bf16 %v7710, %v7710
    %v8595 = vpack.c.bf16 %v7965, %v7965
    %v8596 = vpack.c.bf16 %v8220, %v8220
    %v8597 = vpack.c.bf16 %v8461, %v8461
    %v8598 = vld [vmem:[#allocation23] sm:$0x1]
    %v8600 = vlaneseq
    %v8601 = vshrl.u32 %v8600, 7
    %v8602 = vsub.s32 0, %v8601
    %v8603 = vrot.slane %v8598, %v8602
    %v8733 = vunpack.c.l.b16 %v8462
    %v8734 = vunpack.c.l.b16 %v8463
    %v8735 = vunpack.c.l.b16 %v8464
    %v8736 = vunpack.c.l.b16 %v8465
    %v8737 = vunpack.c.l.b16 %v8466
    %v8738 = vunpack.c.l.b16 %v8467
    %v8739 = vunpack.c.l.b16 %v8468
    %v8740 = vunpack.c.l.b16 %v8469
    %v8741 = vunpack.c.l.b16 %v8470
    %v8742 = vunpack.c.l.b16 %v8471
    %v8743 = vunpack.c.l.b16 %v8472
    %v8744 = vunpack.c.l.b16 %v8473
    %v8745 = vunpack.c.l.b16 %v8474
    %v8746 = vunpack.c.l.b16 %v8475
    %v8747 = vunpack.c.l.b16 %v8476
    %v8748 = vunpack.c.l.b16 %v8477
    %v8749 = vunpack.c.l.b16 %v8478
    %v8750 = vunpack.c.l.b16 %v8479
    %v8751 = vunpack.c.l.b16 %v8480
    %v8752 = vunpack.c.l.b16 %v8481
    %v8753 = vunpack.c.l.b16 %v8482
    %v8754 = vunpack.c.l.b16 %v8483
    %v8755 = vunpack.c.l.b16 %v8484
    %v8756 = vunpack.c.l.b16 %v8485
    %v8757 = vunpack.c.l.b16 %v8486
    %v8758 = vunpack.c.l.b16 %v8487
    %v8759 = vunpack.c.l.b16 %v8488
    %v8760 = vunpack.c.l.b16 %v8489
    %v8761 = vunpack.c.l.b16 %v8490
    %v8762 = vunpack.c.l.b16 %v8491
    %v8763 = vunpack.c.l.b16 %v8492
    %v8764 = vunpack.c.l.b16 %v8493
    %v8765 = vunpack.c.l.b16 %v8494
    %v8766 = vunpack.c.l.b16 %v8495
    %v8767 = vunpack.c.l.b16 %v8496
    %v8768 = vunpack.c.l.b16 %v8497
    %v8769 = vunpack.c.l.b16 %v8498
    %v8770 = vunpack.c.l.b16 %v8499
    %v8771 = vunpack.c.l.b16 %v8500
    %v8772 = vunpack.c.l.b16 %v8501
    %v8773 = vunpack.c.l.b16 %v8502
    %v8774 = vunpack.c.l.b16 %v8503
    %v8775 = vunpack.c.l.b16 %v8504
    %v8776 = vunpack.c.l.b16 %v8505
    %v8777 = vunpack.c.l.b16 %v8506
    %v8778 = vunpack.c.l.b16 %v8507
    %v8779 = vunpack.c.l.b16 %v8508
    %v8780 = vunpack.c.l.b16 %v8509
    %v8781 = vunpack.c.l.b16 %v8510
    %v8782 = vunpack.c.l.b16 %v8511
    %v8783 = vunpack.c.l.b16 %v8512
    %v8784 = vunpack.c.l.b16 %v8513
    %v8785 = vunpack.c.l.b16 %v8514
    %v8786 = vunpack.c.l.b16 %v8515
    %v8787 = vunpack.c.l.b16 %v8516
    %v8788 = vunpack.c.l.b16 %v8517
    %v8789 = vunpack.c.l.b16 %v8518
    %v8790 = vunpack.c.l.b16 %v8519
    %v8791 = vunpack.c.l.b16 %v8520
    %v8792 = vunpack.c.l.b16 %v8521
    %v8793 = vunpack.c.l.b16 %v8522
    %v8794 = vunpack.c.l.b16 %v8523
    %v8795 = vunpack.c.l.b16 %v8524
    %v8796 = vunpack.c.l.b16 %v8525
    %v8797 = vunpack.c.l.b16 %v8526
    %v8798 = vunpack.c.l.b16 %v8527
    %v8799 = vunpack.c.l.b16 %v8528
    %v8800 = vunpack.c.l.b16 %v8529
    %v8801 = vunpack.c.l.b16 %v8530
    %v8802 = vunpack.c.l.b16 %v8531
    %v8803 = vunpack.c.l.b16 %v8532
    %v8804 = vunpack.c.l.b16 %v8533
    %v8805 = vunpack.c.l.b16 %v8534
    %v8806 = vunpack.c.l.b16 %v8535
    %v8807 = vunpack.c.l.b16 %v8536
    %v8808 = vunpack.c.l.b16 %v8537
    %v8809 = vunpack.c.l.b16 %v8538
    %v8810 = vunpack.c.l.b16 %v8539
    %v8811 = vunpack.c.l.b16 %v8540
    %v8812 = vunpack.c.l.b16 %v8541
    %v8813 = vunpack.c.l.b16 %v8542
    %v8814 = vunpack.c.l.b16 %v8543
    %v8815 = vunpack.c.l.b16 %v8544
    %v8816 = vunpack.c.l.b16 %v8545
    %v8817 = vunpack.c.l.b16 %v8546
    %v8818 = vunpack.c.l.b16 %v8547
    %v8819 = vunpack.c.l.b16 %v8548
    %v8820 = vunpack.c.l.b16 %v8549
    %v8821 = vunpack.c.l.b16 %v8550
    %v8822 = vunpack.c.l.b16 %v8551
    %v8823 = vunpack.c.l.b16 %v8552
    %v8824 = vunpack.c.l.b16 %v8553
    %v8825 = vunpack.c.l.b16 %v8554
    %v8826 = vunpack.c.l.b16 %v8555
    %v8827 = vunpack.c.l.b16 %v8556
    %v8828 = vunpack.c.l.b16 %v8557
    %v8829 = vunpack.c.l.b16 %v8558
    %v8830 = vunpack.c.l.b16 %v8559
    %v8831 = vunpack.c.l.b16 %v8560
    %v8832 = vunpack.c.l.b16 %v8561
    %v8833 = vunpack.c.l.b16 %v8562
    %v8834 = vunpack.c.l.b16 %v8563
    %v8835 = vunpack.c.l.b16 %v8564
    %v8836 = vunpack.c.l.b16 %v8565
    %v8837 = vunpack.c.l.b16 %v8566
    %v8838 = vunpack.c.l.b16 %v8567
    %v8839 = vunpack.c.l.b16 %v8568
    %v8840 = vunpack.c.l.b16 %v8569
    %v8841 = vunpack.c.l.b16 %v8570
    %v8842 = vunpack.c.l.b16 %v8571
    %v8843 = vunpack.c.l.b16 %v8572
    %v8844 = vunpack.c.l.b16 %v8573
    %v8845 = vunpack.c.l.b16 %v8574
    %v8846 = vunpack.c.l.b16 %v8575
    %v8847 = vunpack.c.l.b16 %v8576
    %v8848 = vunpack.c.l.b16 %v8577
    %v8849 = vunpack.c.l.b16 %v8578
    %v8850 = vunpack.c.l.b16 %v8579
    %v8851 = vunpack.c.l.b16 %v8580
    %v8852 = vunpack.c.l.b16 %v8581
    %v8853 = vunpack.c.l.b16 %v8582
    %v8854 = vunpack.c.l.b16 %v8583
    %v8855 = vunpack.c.l.b16 %v8584
    %v8856 = vunpack.c.l.b16 %v8585
    %v8857 = vunpack.c.l.b16 %v8586
    %v8858 = vunpack.c.l.b16 %v8587
    %v8859 = vunpack.c.l.b16 %v8588
    %v8860 = vunpack.c.l.b16 %v8589
    %v8861 = vpack.c.b16 %v8734, %v8733
    %v8862 = vpack.c.b16 %v8736, %v8735
    %v8863 = vpack.c.b16 %v8738, %v8737
    %v8864 = vpack.c.b16 %v8740, %v8739
    %v8865 = vpack.c.b16 %v8742, %v8741
    %v8866 = vpack.c.b16 %v8744, %v8743
    %v8867 = vpack.c.b16 %v8746, %v8745
    %v8868 = vpack.c.b16 %v8748, %v8747
    %v8869 = vpack.c.b16 %v8750, %v8749
    %v8870 = vpack.c.b16 %v8752, %v8751
    %v8871 = vpack.c.b16 %v8754, %v8753
    %v8872 = vpack.c.b16 %v8756, %v8755
    %v8873 = vpack.c.b16 %v8758, %v8757
    %v8874 = vpack.c.b16 %v8760, %v8759
    %v8875 = vpack.c.b16 %v8762, %v8761
    %v8876 = vpack.c.b16 %v8764, %v8763
    %v8877 = vpack.c.b16 %v8766, %v8765
    %v8878 = vpack.c.b16 %v8768, %v8767
    %v8879 = vpack.c.b16 %v8770, %v8769
    %v8880 = vpack.c.b16 %v8772, %v8771
    %v8881 = vpack.c.b16 %v8774, %v8773
    %v8882 = vpack.c.b16 %v8776, %v8775
    %v8883 = vpack.c.b16 %v8778, %v8777
    %v8884 = vpack.c.b16 %v8780, %v8779
    %v8885 = vpack.c.b16 %v8782, %v8781
    %v8886 = vpack.c.b16 %v8784, %v8783
    %v8887 = vpack.c.b16 %v8786, %v8785
    %v8888 = vpack.c.b16 %v8788, %v8787
    %v8889 = vpack.c.b16 %v8790, %v8789
    %v8890 = vpack.c.b16 %v8792, %v8791
    %v8891 = vpack.c.b16 %v8794, %v8793
    %v8892 = vpack.c.b16 %v8796, %v8795
    %v8893 = vpack.c.b16 %v8798, %v8797
    %v8894 = vpack.c.b16 %v8800, %v8799
    %v8895 = vpack.c.b16 %v8802, %v8801
    %v8896 = vpack.c.b16 %v8804, %v8803
    %v8897 = vpack.c.b16 %v8806, %v8805
    %v8898 = vpack.c.b16 %v8808, %v8807
    %v8899 = vpack.c.b16 %v8810, %v8809
    %v8900 = vpack.c.b16 %v8812, %v8811
    %v8901 = vpack.c.b16 %v8814, %v8813
    %v8902 = vpack.c.b16 %v8816, %v8815
    %v8903 = vpack.c.b16 %v8818, %v8817
    %v8904 = vpack.c.b16 %v8820, %v8819
    %v8905 = vpack.c.b16 %v8822, %v8821
    %v8906 = vpack.c.b16 %v8824, %v8823
    %v8907 = vpack.c.b16 %v8826, %v8825
    %v8908 = vpack.c.b16 %v8828, %v8827
    %v8909 = vpack.c.b16 %v8830, %v8829
    %v8910 = vpack.c.b16 %v8832, %v8831
    %v8911 = vpack.c.b16 %v8834, %v8833
    %v8912 = vpack.c.b16 %v8836, %v8835
    %v8913 = vpack.c.b16 %v8838, %v8837
    %v8914 = vpack.c.b16 %v8840, %v8839
    %v8915 = vpack.c.b16 %v8842, %v8841
    %v8916 = vpack.c.b16 %v8844, %v8843
    %v8917 = vpack.c.b16 %v8846, %v8845
    %v8918 = vpack.c.b16 %v8848, %v8847
    %v8919 = vpack.c.b16 %v8850, %v8849
    %v8920 = vpack.c.b16 %v8852, %v8851
    %v8921 = vpack.c.b16 %v8854, %v8853
    %v8922 = vpack.c.b16 %v8856, %v8855
    %v8923 = vpack.c.b16 %v8858, %v8857
    %v8924 = vpack.c.b16 %v8860, %v8859
    %8989 = vmatprep.subr.bf16.mxu0 0
    %8990 = vmatpush1.bf16.msra.mxu0 %v8861
    %8991 = vmatprep.subr.bf16.mxu0 0
    %8992 = vmatpush1.bf16.msra.mxu0 %v8862
    %8993 = vmatprep.subr.bf16.mxu0 0
    %8994 = vmatpush1.bf16.msra.mxu0 %v8863
    %8995 = vmatprep.subr.bf16.mxu0 0
    %8996 = vmatpush1.bf16.msra.mxu0 %v8864
    %8997 = vmatprep.subr.bf16.mxu0 0
    %8998 = vmatpush1.bf16.msra.mxu0 %v8865
    %8999 = vmatprep.subr.bf16.mxu0 0
    %9000 = vmatpush1.bf16.msra.mxu0 %v8866
    %9001 = vmatprep.subr.bf16.mxu0 0
    %9002 = vmatpush1.bf16.msra.mxu0 %v8867
    %9003 = vmatprep.subr.bf16.mxu0 0
    %9004 = vmatpush1.bf16.msra.mxu0 %v8868
    %9005 = vmatprep.subr.bf16.mxu0 0
    %9006 = vmatpush1.bf16.msra.mxu0 %v8869
    %9007 = vmatprep.subr.bf16.mxu0 0
    %9008 = vmatpush1.bf16.msra.mxu0 %v8870
    %9009 = vmatprep.subr.bf16.mxu0 0
    %9010 = vmatpush1.bf16.msra.mxu0 %v8871
    %9011 = vmatprep.subr.bf16.mxu0 0
    %9012 = vmatpush1.bf16.msra.mxu0 %v8872
    %9013 = vmatprep.subr.bf16.mxu0 0
    %9014 = vmatpush1.bf16.msra.mxu0 %v8873
    %9015 = vmatprep.subr.bf16.mxu0 0
    %9016 = vmatpush1.bf16.msra.mxu0 %v8874
    %9017 = vmatprep.subr.bf16.mxu0 0
    %9018 = vmatpush1.bf16.msra.mxu0 %v8875
    %9019 = vmatprep.subr.bf16.mxu0 0
    %9020 = vmatpush1.bf16.msra.mxu0 %v8876
    %9021 = vmatprep.mubr.bf16.mxu0 %v8591
    %9022 = vmatmul.mubr.bf16.gmra.mrb[0].mxu0 %v8590
    %v9023 = vpop.f32.mrb[0].mxu0
    %v9024 = vadd.f32 %v8603, %v9023
    %v9025 = vpop.f32.mrb[0].mxu0
    %v9026 = vpop.f32.mrb[0].mxu0
    %v9027 = vpop.f32.mrb[0].mxu0
    %9028 = vdwg.mxu0
    %9029 = vmatprep.subr.bf16.mxu0 0
    %9030 = vmatpush1.bf16.msra.mxu0 %v8877
    %9031 = vmatprep.subr.bf16.mxu0 0
    %9032 = vmatpush1.bf16.msra.mxu0 %v8878
    %9033 = vmatprep.subr.bf16.mxu0 0
    %9034 = vmatpush1.bf16.msra.mxu0 %v8879
    %9035 = vmatprep.subr.bf16.mxu0 0
    %9036 = vmatpush1.bf16.msra.mxu0 %v8880
    %9037 = vmatprep.subr.bf16.mxu0 0
    %9038 = vmatpush1.bf16.msra.mxu0 %v8881
    %9039 = vmatprep.subr.bf16.mxu0 0
    %9040 = vmatpush1.bf16.msra.mxu0 %v8882
    %9041 = vmatprep.subr.bf16.mxu0 0
    %9042 = vmatpush1.bf16.msra.mxu0 %v8883
    %9043 = vmatprep.subr.bf16.mxu0 0
    %9044 = vmatpush1.bf16.msra.mxu0 %v8884
    %9045 = vmatprep.subr.bf16.mxu0 0
    %9046 = vmatpush1.bf16.msra.mxu0 %v8885
    %9047 = vmatprep.subr.bf16.mxu0 0
    %9048 = vmatpush1.bf16.msra.mxu0 %v8886
    %9049 = vmatprep.subr.bf16.mxu0 0
    %9050 = vmatpush1.bf16.msra.mxu0 %v8887
    %9051 = vmatprep.subr.bf16.mxu0 0
    %9052 = vmatpush1.bf16.msra.mxu0 %v8888
    %9053 = vmatprep.subr.bf16.mxu0 0
    %9054 = vmatpush1.bf16.msra.mxu0 %v8889
    %9055 = vmatprep.subr.bf16.mxu0 0
    %9056 = vmatpush1.bf16.msra.mxu0 %v8890
    %9057 = vmatprep.subr.bf16.mxu0 0
    %9058 = vmatpush1.bf16.msra.mxu0 %v8891
    %9059 = vmatprep.subr.bf16.mxu0 0
    %9060 = vmatpush1.bf16.msra.mxu0 %v8892
    %9061 = vmatprep.mubr.bf16.mxu0 %v8593
    %9062 = vmatmul.mubr.bf16.gmra.mrb[0].mxu0 %v8592
    %v9063 = vpop.f32.mrb[0].mxu0
    %v9064 = vadd.f32 %v9024, %v9063
    %v9065 = vpop.f32.mrb[0].mxu0
    %v9066 = vpop.f32.mrb[0].mxu0
    %v9067 = vpop.f32.mrb[0].mxu0
    %9068 = vdwg.mxu0
    %9069 = vmatprep.subr.bf16.mxu0 0
    %9070 = vmatpush1.bf16.msra.mxu0 %v8893
    %9071 = vmatprep.subr.bf16.mxu0 0
    %9072 = vmatpush1.bf16.msra.mxu0 %v8894
    %9073 = vmatprep.subr.bf16.mxu0 0
    %9074 = vmatpush1.bf16.msra.mxu0 %v8895
    %9075 = vmatprep.subr.bf16.mxu0 0
    %9076 = vmatpush1.bf16.msra.mxu0 %v8896
    %9077 = vmatprep.subr.bf16.mxu0 0
    %9078 = vmatpush1.bf16.msra.mxu0 %v8897
    %9079 = vmatprep.subr.bf16.mxu0 0
    %9080 = vmatpush1.bf16.msra.mxu0 %v8898
    %9081 = vmatprep.subr.bf16.mxu0 0
    %9082 = vmatpush1.bf16.msra.mxu0 %v8899
    %9083 = vmatprep.subr.bf16.mxu0 0
    %9084 = vmatpush1.bf16.msra.mxu0 %v8900
    %9085 = vmatprep.subr.bf16.mxu0 0
    %9086 = vmatpush1.bf16.msra.mxu0 %v8901
    %9087 = vmatprep.subr.bf16.mxu0 0
    %9088 = vmatpush1.bf16.msra.mxu0 %v8902
    %9089 = vmatprep.subr.bf16.mxu0 0
    %9090 = vmatpush1.bf16.msra.mxu0 %v8903
    %9091 = vmatprep.subr.bf16.mxu0 0
    %9092 = vmatpush1.bf16.msra.mxu0 %v8904
    %9093 = vmatprep.subr.bf16.mxu0 0
    %9094 = vmatpush1.bf16.msra.mxu0 %v8905
    %9095 = vmatprep.subr.bf16.mxu0 0
    %9096 = vmatpush1.bf16.msra.mxu0 %v8906
    %9097 = vmatprep.subr.bf16.mxu0 0
    %9098 = vmatpush1.bf16.msra.mxu0 %v8907
    %9099 = vmatprep.subr.bf16.mxu0 0
    %9100 = vmatpush1.bf16.msra.mxu0 %v8908
    %9101 = vmatprep.mubr.bf16.mxu0 %v8595
    %9102 = vmatmul.mubr.bf16.gmra.mrb[0].mxu0 %v8594
    %v9103 = vpop.f32.mrb[0].mxu0
    %v9104 = vadd.f32 %v9064, %v9103
    %v9105 = vpop.f32.mrb[0].mxu0
    %v9106 = vpop.f32.mrb[0].mxu0
    %v9107 = vpop.f32.mrb[0].mxu0
    %9108 = vdwg.mxu0
    %9109 = vmatprep.subr.bf16.mxu0 0
    %9110 = vmatpush1.bf16.msra.mxu0 %v8909
    %9111 = vmatprep.subr.bf16.mxu0 0
    %9112 = vmatpush1.bf16.msra.mxu0 %v8910
    %9113 = vmatprep.subr.bf16.mxu0 0
    %9114 = vmatpush1.bf16.msra.mxu0 %v8911
    %9115 = vmatprep.subr.bf16.mxu0 0
    %9116 = vmatpush1.bf16.msra.mxu0 %v8912
    %9117 = vmatprep.subr.bf16.mxu0 0
    %9118 = vmatpush1.bf16.msra.mxu0 %v8913
    %9119 = vmatprep.subr.bf16.mxu0 0
    %9120 = vmatpush1.bf16.msra.mxu0 %v8914
    %9121 = vmatprep.subr.bf16.mxu0 0
    %9122 = vmatpush1.bf16.msra.mxu0 %v8915
    %9123 = vmatprep.subr.bf16.mxu0 0
    %9124 = vmatpush1.bf16.msra.mxu0 %v8916
    %9125 = vmatprep.subr.bf16.mxu0 0
    %9126 = vmatpush1.bf16.msra.mxu0 %v8917
    %9127 = vmatprep.subr.bf16.mxu0 0
    %9128 = vmatpush1.bf16.msra.mxu0 %v8918
    %9129 = vmatprep.subr.bf16.mxu0 0
    %9130 = vmatpush1.bf16.msra.mxu0 %v8919
    %9131 = vmatprep.subr.bf16.mxu0 0
    %9132 = vmatpush1.bf16.msra.mxu0 %v8920
    %9133 = vmatprep.subr.bf16.mxu0 0
    %9134 = vmatpush1.bf16.msra.mxu0 %v8921
    %9135 = vmatprep.subr.bf16.mxu0 0
    %9136 = vmatpush1.bf16.msra.mxu0 %v8922
    %9137 = vmatprep.subr.bf16.mxu0 0
    %9138 = vmatpush1.bf16.msra.mxu0 %v8923
    %9139 = vmatprep.subr.bf16.mxu0 0
    %9140 = vmatpush1.bf16.msra.mxu0 %v8924
    %9141 = vmatprep.mubr.bf16.mxu0 %v8597
    %9142 = vmatmul.mubr.bf16.gmra.mrb[0].mxu0 %v8596
    %v9143 = vpop.f32.mrb[0].mxu0
    %v9144 = vadd.f32 %v9104, %v9143
    %v9145 = vpop.f32.mrb[0].mxu0
    %v9146 = vpop.f32.mrb[0].mxu0
    %v9147 = vpop.f32.mrb[0].mxu0
    %9148 = vdwg.mxu0
    %v9149 = vld [vmem:[%s4] sm:$0xff]
    %v9150 = vsub.f32 0.0, %v9149
    %v9151 = vrcp.pop %v9150
    %v9152 = vmul.f32 1.0, %v9151
    %v9153 = vadd.f32 %v9152, 1.0
    %v9154 = vadd.f32 %v9144, %v9153
    %9155 = vst [vmem:[%s22] sm:$0xff] %v9154
    // Predicated region
    $region146: #{forward.1} parent=1 // pred_check
      _
    $region147: #{forward.1} parent=1 // pred_check_branch
      %9157 = sbr.rel (0) target = $region149
    $region148: #{forward.1} parent=1 // pred_region
      _
    $region149: #{forward.1} parent=1 // pred_fallthru
      _
    // Predicated region
    $region150: #{forward.1} parent=1 // pred_check
      _
    $region151: #{forward.1} parent=1 // pred_check_branch
      %9159 = sbr.rel (0) target = $region153
    $region152: #{forward.1} parent=1 // pred_region
      _
    $region153: #{forward.1} parent=1 // pred_fallthru
      _
    %9160 = vsyncpa [#allocation3], 1
    %9161 = vsyncpa [#allocation7], 1
    %9162 = vsyncpa [#allocation10], 1
    %9163 = vsyncpa [#allocation13], 1
    %9164 = vsyncpa [#allocation16], 1
    %9165 = vsyncpa [#allocation19], 1
    %9166 = vsyncpa [#allocation22], 1
    %9167 = vsyncpa [#allocation4], 1

</llo_original>
